<compile_context>
chip_gen: v6e
topology: v6e:2x2x1
jax: 0.10.0
libtpu: 0.0.40
codegen_flags: <defaults>
</compile_context>

<pallas_src>
import functools

import numpy as np
import jax
import jax.numpy as jnp
from jax.experimental import pallas as pl
from jax.experimental.pallas import tpu as pltpu


_MXU_DTYPE = jnp.bfloat16   # bf16 MXU operands, f32 accumulation


# --------------------------- hardware-aware knobs ---------------------------

def _num_tensorcores():
    try:
        d = jax.devices()[0]
        if d.platform != "tpu":
            return 1
        kind = d.device_kind.lower()
        if any(tag in kind for tag in ("v7", "v4", "v5p")):
            return 2
    except Exception:
        pass
    return 1


def _vmem_budget_bytes():
    try:
        info = pltpu.get_tpu_info()
        return max(int(info.vmem_capacity_bytes) // 4, 4 * 1024 * 1024)
    except Exception:
        return 16 * 1024 * 1024   # conservative: fits every generation


_N_TC = _num_tensorcores()
_VMEM_BUDGET = _vmem_budget_bytes()


def _pick_tm(M, K, N, n_adds, n_cores, budget):
    """Largest row tile that divides M, fits the VMEM budget with
    double-buffered operands, and leaves >= n_cores grid steps on multi-core
    chips so a 'parallel' grid axis can shard across TensorCores."""
    if M % 8 != 0:
        return M

    def fits(tm):
        by = 2 * tm * K * 4                  # x tile (f32), double buffered
        by += K * N * 2                      # resident bf16 weight
        by += n_adds * 2 * tm * N * 4        # add operands
        by += 2 * tm * N * 4                 # output tile
        return by + 4096 <= budget

    cands = [d for d in range(8, M + 1, 8) if M % d == 0]
    fit = [d for d in cands if fits(d)] or [cands[0]]
    if n_cores >= 2:
        multi = [d for d in fit if M // d >= n_cores]
        if multi:
            return max(multi)
    return max(fit)


# ----------------------------- Pallas kernels -------------------------------

def _mm_kernel(x_ref, w_ref, b_ref, *rest):
    """o = relu(x @ w + b + sum(adds)); rest = (*add_refs, o_ref)."""
    o_ref = rest[-1]
    add_refs = rest[:-1]
    acc = jnp.dot(x_ref[...].astype(_MXU_DTYPE), w_ref[...],
                  preferred_element_type=jnp.float32)
    acc = acc + b_ref[...]
    for r in add_refs:
        acc = acc + r[...]
    o_ref[...] = jnp.maximum(acc, 0.0)


def _block5_head_kernel(x_ref, w_ref, b_ref, sp_ref, un_ref,
                        w1_ref, b1_ref, w2_ref, b2_ref, o_ref):
    """Last pointwise block fused with the head: relu(x@w + b + sp + un) ->
    fc1 -> relu -> fc2 (width-1 fc2 done as a lane reduction)."""
    a = jnp.dot(x_ref[...].astype(_MXU_DTYPE), w_ref[...],
                preferred_element_type=jnp.float32)
    a = jnp.maximum(a + b_ref[...] + sp_ref[...] + un_ref[...], 0.0)
    h = jnp.dot(a.astype(_MXU_DTYPE), w1_ref[...],
                preferred_element_type=jnp.float32)
    h = jnp.maximum(h + b1_ref[...], 0.0)
    o_ref[...] = jnp.sum(h * w2_ref[...], axis=1, keepdims=True) + b2_ref[...]


def _rowconv_kernel(x_ref, w_ref, b_ref, o_ref, *, act):
    """Row-tap conv: for each image b, out[b] = act(sum_t x[b, t:t+Rout] @ w[t] + bias).
    Column taps / stride / W-padding are already folded into the banded weight,
    so the whole 3x3 conv (or 4x4 deconv) is 2-3 matmuls on a VMEM-resident map."""
    nb = x_ref.shape[0]
    ntaps = w_ref.shape[0]
    rout = o_ref.shape[1]
    bias = b_ref[...]
    for b in range(nb):
        acc = jnp.zeros(o_ref.shape[1:], jnp.float32)
        for t in range(ntaps):
            rows = x_ref[b, t:t + rout, :].astype(_MXU_DTYPE)
            acc = acc + jnp.dot(rows, w_ref[t], preferred_element_type=jnp.float32)
        acc = acc + bias
        if act == "leaky":
            acc = jnp.where(acc >= 0, acc, 0.1 * acc)
        elif act == "relu":
            acc = jnp.maximum(acc, 0.0)
        o_ref[b] = acc


def _spectral_kernel(x_ref, wa_ref, wb_ref, o_ref, *, half):
    """Complex mode mix, lane dense.  x/out pack [Re | Im] over all 4 corners
    along the last dim (2*half lanes).  WA = [wr|wr], WB = [-wi|wi] so
    out = sum_i x*WA + roll(x, half)*WB gives [Re(out) | Im(out)] in one
    unmasked full-width store; the half-swap goes to the XLU via pltpu.roll."""
    x = x_ref[...]                                   # (B, Cin, 2*half)
    xs = pltpu.roll(x, shift=half, axis=2)           # swap re/im halves
    acc = jnp.sum(x[:, :, None, :] * wa_ref[...][None, :, :, :]
                  + xs[:, :, None, :] * wb_ref[...][None, :, :, :], axis=1)
    o_ref[...] = acc


# --------------------------- Pallas call wrappers ---------------------------

def pointwise_block(x, wb, adds):
    """relu(Conv1d_1x1(x) + sum(adds)) with adds + ReLU fused into the matmul."""
    B, H, W, C = x.shape
    M = B * H * W
    xm = x.reshape(M, C)
    w, b = wb["w"], wb["b"]                           # (C, Cout) bf16, (1, Cout) f32
    Cout = w.shape[1]
    adds_flat = [a.reshape(M, Cout) for a in adds]
    TM = _pick_tm(M, C, Cout, len(adds_flat), _N_TC, _VMEM_BUDGET)
    in_specs = [
        pl.BlockSpec((TM, C), lambda i: (i, 0)),
        pl.BlockSpec((C, Cout), lambda i: (0, 0)),     # weight stays resident
        pl.BlockSpec((1, Cout), lambda i: (0, 0)),
    ] + [pl.BlockSpec((TM, Cout), lambda i: (i, 0)) for _ in adds_flat]
    out = pl.pallas_call(
        _mm_kernel,
        grid=(M // TM,),
        in_specs=in_specs,
        out_specs=pl.BlockSpec((TM, Cout), lambda i: (i, 0)),
        out_shape=jax.ShapeDtypeStruct((M, Cout), jnp.float32),
        compiler_params=pltpu.CompilerParams(dimension_semantics=("parallel",)),
    )(xm, w, b, *adds_flat)
    return out.reshape(B, H, W, Cout)


def fused_block5_head(x, wb, sp, un, fc1, fc2):
    """Block 5 (pointwise + spectral + unet adds + ReLU) fused with fc1+ReLU+fc2."""
    B, H, W, C = x.shape
    M = B * H * W
    xm = x.reshape(M, C)
    spm = sp.reshape(M, C)
    unm = un.reshape(M, C)
    w, b = wb["w"], wb["b"]
    w1, b1 = fc1                                      # (C, W2) bf16, (1, W2) f32
    w2, b2 = fc2                                      # (1, W2) f32, (1, 1) f32
    Cout = w.shape[1]
    W2 = w1.shape[1]
    TM = _pick_tm(M, C, max(Cout, W2), 2, _N_TC, _VMEM_BUDGET)
    out = pl.pallas_call(
        _block5_head_kernel,
        grid=(M // TM,),
        in_specs=[
            pl.BlockSpec((TM, C), lambda i: (i, 0)),
            pl.BlockSpec((C, Cout), lambda i: (0, 0)),
            pl.BlockSpec((1, Cout), lambda i: (0, 0)),
            pl.BlockSpec((TM, Cout), lambda i: (i, 0)),
            pl.BlockSpec((TM, Cout), lambda i: (i, 0)),
            pl.BlockSpec((C, W2), lambda i: (0, 0)),
            pl.BlockSpec((1, W2), lambda i: (0, 0)),
            pl.BlockSpec((1, W2), lambda i: (0, 0)),
            pl.BlockSpec((1, 1), lambda i: (0, 0)),
        ],
        out_specs=pl.BlockSpec((TM, 1), lambda i: (i, 0)),
        out_shape=jax.ShapeDtypeStruct((M, 1), jnp.float32),
        compiler_params=pltpu.CompilerParams(dimension_semantics=("parallel",)),
    )(xm, w, b, spm, unm, w1, b1, w2, b2)
    return out


def _rowconv_call(xr, lw, rout, act):
    B = xr.shape[0]
    N = lw["w"].shape[2]
    return pl.pallas_call(
        functools.partial(_rowconv_kernel, act=act),
        out_shape=jax.ShapeDtypeStruct((B, rout, N), jnp.float32),
    )(xr, lw["w"], lw["b"])


def conv3x3(x, lw, stride, act):
    """3x3 Conv2d (padding=1) as a single row-tap Pallas kernel."""
    B, H, W, C = x.shape
    xp = jnp.pad(x, ((0, 0), (1, 1), (0, 0), (0, 0)))          # pad H only
    if stride == 2:
        xr = xp.reshape(B, (H + 2) // 2, 2 * W * C)            # pack 2 rows/lane-row
        Ho, Wo = H // 2, W // 2
    else:
        xr = xp.reshape(B, H + 2, W * C)
        Ho, Wo = H, W
    N = lw["w"].shape[2]
    out = _rowconv_call(xr, lw, Ho, act)
    return out.reshape(B, Ho, Wo, N // Wo)


def deconv4x4(x, lw, act):
    """ConvTranspose2d(k=4, s=2, p=1) as a sub-pixel row-tap Pallas kernel.
    Each input row emits both output-row parities packed along lanes."""
    B, H, W, C = x.shape
    xr = jnp.pad(x, ((0, 0), (1, 1), (0, 0), (0, 0))).reshape(B, H + 2, W * C)
    N = lw["w"].shape[2]
    out = _rowconv_call(xr, lw, H, act)                        # (B, H, 4*W*Cout)
    return out.reshape(B, 2 * H, 2 * W, N // (4 * W))


def spectral_conv2d(x, sc, modes1, modes2):
    """SpectralConv2d on NHWC input; one lane-dense Pallas call for all 4 corners."""
    B, H, W, Cin = x.shape
    Wh = W // 2 + 1
    m = modes1 * modes2
    x_ft = jnp.fft.rfftn(x, axes=(1, 2))                       # (B, H, Wh, Cin) c64
    top = x_ft[:, :modes1]
    bot = x_ft[:, -modes1:]
    corner = jnp.stack([top[:, :, :modes2], bot[:, :, :modes2],
                        top[:, :, -modes2:], bot[:, :, -modes2:]], axis=1)
    xc = corner.transpose(0, 4, 1, 2, 3).reshape(B, Cin, 4 * m)
    x_pack = jnp.concatenate([jnp.real(xc), jnp.imag(xc)], axis=-1).astype(jnp.float32)

    wa, wb = sc["wa"], sc["wb"]                                # (Cin, Cout, 8m)
    Cout = wa.shape[1]
    out = pl.pallas_call(
        functools.partial(_spectral_kernel, half=4 * m),
        out_shape=jax.ShapeDtypeStruct((B, Cout, 8 * m), jnp.float32),
    )(x_pack, wa, wb)

    o_c = (out[:, :, :4 * m] + 1j * out[:, :, 4 * m:]).astype(jnp.complex64)
    o_c = o_c.reshape(B, Cout, 4, modes1, modes2).transpose(0, 2, 3, 4, 1)
    zcol = jnp.zeros((B, modes1, Wh - 2 * modes2, Cout), jnp.complex64)
    top_rows = jnp.concatenate([o_c[:, 0], zcol, o_c[:, 2]], axis=2)
    bot_rows = jnp.concatenate([o_c[:, 1], zcol, o_c[:, 3]], axis=2)
    zmid = jnp.zeros((B, H - 2 * modes1, Wh, Cout), jnp.complex64)
    out_ft = jnp.concatenate([top_rows, zmid, bot_rows], axis=1)
    return jnp.fft.irfftn(out_ft, s=(H, W), axes=(1, 2)).astype(jnp.float32)


def unet_forward(x, u):
    c1 = conv3x3(x, u["conv1"], 2, "leaky")
    c2 = conv3x3(conv3x3(c1, u["conv2"], 2, "leaky"), u["conv2_1"], 1, "leaky")
    c3 = conv3x3(conv3x3(c2, u["conv3"], 2, "leaky"), u["conv3_1"], 1, "leaky")
    d2 = deconv4x4(c3, u["deconv2"], "leaky")
    cat2 = jnp.concatenate((c2, d2), axis=-1)
    d1 = deconv4x4(cat2, u["deconv1"], "leaky")
    cat1 = jnp.concatenate((c1, d1), axis=-1)
    d0 = deconv4x4(cat1, u["deconv0"], "leaky")
    cat0 = jnp.concatenate((x, d0), axis=-1)
    return conv3x3(cat0, u["output"], 1, None)


# ------------------------------- decoder ------------------------------------

def decoder_forward(x, fp, modes1, modes2):
    B, C, H, W = x.shape
    x = jnp.transpose(x, (0, 2, 3, 1))        # NCHW -> NHWC once, at the boundary

    # blocks 0-2: x = relu(SpectralConv(x) + Conv1d_1x1(x))
    for i in range(3):
        sp = spectral_conv2d(x, fp[f"sc{i}"], modes1, modes2)
        x = pointwise_block(x, fp[f"w{i}"], adds=(sp,))

    # blocks 3-4: x = relu(SpectralConv(x) + Conv1d_1x1(x) + U_net(x))
    for i, uname in ((3, "unet3"), (4, "unet4")):
        sp = spectral_conv2d(x, fp[f"sc{i}"], modes1, modes2)
        un = unet_forward(x, fp[uname])
        x = pointwise_block(x, fp[f"w{i}"], adds=(sp, un))

    # block 5 fused with the fc1+relu+fc2 head
    sp = spectral_conv2d(x, fp["sc5"], modes1, modes2)
    un = unet_forward(x, fp["unet5"])
    o = fused_block5_head(x, fp["w5"], sp, un, fp["fc1"], fp["fc2"])

    o = o.reshape(B, H, W, 1)[:, :-8, :-8, :]
    return jnp.squeeze(o)


# -------------------- one-time parameter folding (no jit) --------------------

_DECONV_TAPS = {0: ((1, 1), (0, 3)), 1: ((2, 0), (1, 2))}   # parity -> ((pad row off, k), ...)


def _fold_rowconv(w, bias, W, stride):
    """Conv2d(3x3, pad=1) -> (T, K, N) block-banded row-matmul weight + bias row.
    w: (Cout, Cin, 3, 3); column taps, stride and W-padding folded into the weight."""
    Cout, Cin = w.shape[0], w.shape[1]
    if stride == 1:
        Wo = W
        wt = np.zeros((3, W * Cin, Wo * Cout), np.float32)
        for dy in range(3):
            for dx in range(3):
                blk = w[:, :, dy, dx].T                      # (Cin, Cout)
                for j in range(Wo):
                    jin = j + dx - 1
                    if 0 <= jin < W:
                        wt[dy, jin * Cin:(jin + 1) * Cin, j * Cout:(j + 1) * Cout] += blk
    else:
        Wo = W // 2
        wt = np.zeros((2, 2 * W * Cin, Wo * Cout), np.float32)
        for dy in range(3):
            t, slot = divmod(dy, 2)
            for dx in range(3):
                blk = w[:, :, dy, dx].T
                for j in range(Wo):
                    jin = 2 * j + dx - 1
                    if 0 <= jin < W:
                        koff = slot * W * Cin + jin * Cin
                        wt[t, koff:koff + Cin, j * Cout:(j + 1) * Cout] += blk
    brow = np.tile(np.asarray(bias, np.float32), Wo).reshape(1, -1)
    return {"w": jnp.asarray(wt, jnp.bfloat16), "b": jnp.asarray(brow)}


def _fold_rowdeconv(w, bias, W):
    """ConvTranspose2d(4, stride 2, pad 1) -> 3-row-tap sub-pixel weight.
    w: (Cin, Cout, 4, 4).  Output lane = ph*(2W*Cout) + ox*Cout + co."""
    Cin, Cout = w.shape[0], w.shape[1]
    N = 4 * W * Cout
    wt = np.zeros((3, W * Cin, N), np.float32)
    for ph in (0, 1):
        for dyp, ky in _DECONV_TAPS[ph]:
            for pw in (0, 1):
                for dxp, kx in _DECONV_TAPS[pw]:
                    blk = w[:, :, ky, kx]                    # (Cin, Cout)
                    for j in range(W):
                        jin = j + dxp - 1
                        if 0 <= jin < W:
                            ox = 2 * j + pw
                            noff = ph * (2 * W * Cout) + ox * Cout
                            wt[dyp, jin * Cin:(jin + 1) * Cin, noff:noff + Cout] += blk
    brow = np.tile(np.asarray(bias, np.float32), 4 * W).reshape(1, -1)
    return {"w": jnp.asarray(wt, jnp.bfloat16), "b": jnp.asarray(brow)}


def _fold_unet(u, width, H, W):
    fu = {}
    spat = {"conv1": (W, 2), "conv2": (W // 2, 2), "conv2_1": (W // 4, 1),
            "conv3": (W // 4, 2), "conv3_1": (W // 8, 1)}
    for name, (w_in, s) in spat.items():
        conv_w = np.asarray(u[name]["w"])                    # (Cout, Cin, 3, 3)
        gamma, beta, mean, var = [np.asarray(t) for t in u[name]["bn"]]
        scale = gamma / np.sqrt(var + 1e-5)
        shift = beta - mean * scale
        fu[name] = _fold_rowconv(conv_w * scale[:, None, None, None], shift, w_in, s)
    fu["deconv2"] = _fold_rowdeconv(np.asarray(u["deconv2"][0]), np.asarray(u["deconv2"][1]), W // 8)
    fu["deconv1"] = _fold_rowdeconv(np.asarray(u["deconv1"][0]), np.asarray(u["deconv1"][1]), W // 4)
    fu["deconv0"] = _fold_rowdeconv(np.asarray(u["deconv0"][0]), np.asarray(u["deconv0"][1]), W // 2)
    wo, bo = u["output"]
    fu["output"] = _fold_rowconv(np.asarray(wo), np.asarray(bo), W, 1)
    return fu


def fold_decoder_params(params, modes1, modes2, width, width2, H, W):
    """One-time prep outside jit: BN folding, row-matmul weight builds, weight
    transposes, bias rows, bf16 casts, spectral re|im lane packing."""
    fp = {}
    m = modes1 * modes2
    for i in range(6):
        ws = params[f"sc{i}"]
        wc = np.stack([np.asarray(w).reshape(width, width, m) for w in ws],
                      axis=2).reshape(width, width, 4 * m)
        fp[f"sc{i}"] = {
            "wa": jnp.asarray(np.concatenate([wc.real, wc.real], axis=-1), jnp.float32),
            "wb": jnp.asarray(np.concatenate([-wc.imag, wc.imag], axis=-1), jnp.float32),
        }
    for i in range(6):
        w, b = params[f"w{i}"]
        fp[f"w{i}"] = {"w": jnp.asarray(np.asarray(w)[:, :, 0].T, jnp.bfloat16),
                       "b": jnp.asarray(np.asarray(b).reshape(1, -1), jnp.float32)}
    for uname in ("unet3", "unet4", "unet5"):
        fp[uname] = _fold_unet(params[uname], width, H, W)
    w1, b1 = params["fc1"]
    w2, b2 = params["fc2"]
    fp["fc1"] = (jnp.asarray(np.asarray(w1), jnp.bfloat16),
                 jnp.asarray(np.asarray(b1).reshape(1, -1), jnp.float32))
    fp["fc2"] = (jnp.asarray(np.asarray(w2).reshape(1, -1), jnp.float32),
                 jnp.asarray(np.asarray(b2).reshape(1, 1), jnp.float32))
    return fp


# ----------------------------- parameter init -------------------------------

def init_decoder_params(key, modes1, modes2, width, width2):
    params = {}
    keys = iter(jax.random.split(key, 128))
    sc_scale = 1.0 / (width * width)

    def spectral_w(k):
        kr, ki = jax.random.split(k)
        wr = sc_scale * jax.random.uniform(kr, (width, width, modes1, modes2), jnp.float32)
        wi = sc_scale * jax.random.uniform(ki, (width, width, modes1, modes2), jnp.float32)
        return (wr + 1j * wi).astype(jnp.complex64)

    for i in range(6):
        params[f"sc{i}"] = tuple(spectral_w(next(keys)) for _ in range(4))

    bound = 1.0 / np.sqrt(float(width))
    for i in range(6):
        params[f"w{i}"] = (
            jax.random.uniform(next(keys), (width, width, 1), jnp.float32, -bound, bound),
            jax.random.uniform(next(keys), (width,), jnp.float32, -bound, bound),
        )

    def make_unet():
        u = {}

        def conv_w(cin, cout, k=3):
            b = 1.0 / np.sqrt(float(cin * k * k))
            return jax.random.uniform(next(keys), (cout, cin, k, k), jnp.float32, -b, b)

        def bn(c):
            return (jnp.ones((c,), jnp.float32), jnp.zeros((c,), jnp.float32),
                    jnp.zeros((c,), jnp.float32), jnp.ones((c,), jnp.float32))

        for name, cin in [("conv1", width), ("conv2", width), ("conv2_1", width),
                          ("conv3", width), ("conv3_1", width)]:
            u[name] = {"w": conv_w(cin, width), "bn": bn(width)}

        def deconv_w(cin, cout, k=4):
            b = 1.0 / np.sqrt(float(cin * k * k))
            w = jax.random.uniform(next(keys), (cin, cout, k, k), jnp.float32, -b, b)
            bias = jax.random.uniform(next(keys), (cout,), jnp.float32, -b, b)
            return w, bias

        u["deconv2"] = deconv_w(width, width)
        u["deconv1"] = deconv_w(width * 2, width)
        u["deconv0"] = deconv_w(width * 2, width)
        b = 1.0 / np.sqrt(float(width * 2 * 9))
        u["output"] = (
            jax.random.uniform(next(keys), (width, width * 2, 3, 3), jnp.float32, -b, b),
            jax.random.uniform(next(keys), (width,), jnp.float32, -b, b),
        )
        return u

    params["unet3"] = make_unet()
    params["unet4"] = make_unet()
    params["unet5"] = make_unet()

    b1 = 1.0 / np.sqrt(float(width))
    params["fc1"] = (jax.random.uniform(next(keys), (width, width2), jnp.float32, -b1, b1),
                     jax.random.uniform(next(keys), (width2,), jnp.float32, -b1, b1))
    b2 = 1.0 / np.sqrt(float(width2))
    params["fc2"] = (jax.random.uniform(next(keys), (width2, 1), jnp.float32, -b2, b2),
                     jax.random.uniform(next(keys), (1,), jnp.float32, -b2, b2))
    return params


# --------------------------------- main --------------------------------------

if __name__ == "__main__":
    modes1, modes2, width, width2 = 4, 4, 8, 16
    B, H, W = 2, 16, 16   # H, W divisible by 8 (3 stride-2 U-net levels) and > 8 (final crop)

    key = jax.random.PRNGKey(0)
    kparams, kx = jax.random.split(key)
    params = init_decoder_params(kparams, modes1, modes2, width, width2)
    fparams = fold_decoder_params(params, modes1, modes2, width, width2, H, W)
    x = jax.random.normal(kx, (B, width, H, W), dtype=jnp.float32)   # NCHW

    fwd = jax.jit(lambda xx, pp: decoder_forward(xx, pp, modes1, modes2))
    out = jax.block_until_ready(fwd(x, fparams))
    assert out.shape == (B, H - 8, W - 8), out.shape
    assert bool(jnp.all(jnp.isfinite(out)))
    print("KERNEL_OK")
</pallas_src>

<mosaic_0001>
module attributes {stable_mosaic.version = 11 : i64} {
  func.func @_spectral_kernel(%arg0: memref<2x8x128xf32, #tpu.memory_space<vmem>>, %arg1: memref<8x8x128xf32, #tpu.memory_space<vmem>>, %arg2: memref<8x8x128xf32, #tpu.memory_space<vmem>>, %arg3: memref<2x8x128xf32, #tpu.memory_space<vmem>>) attributes {dimension_semantics = [], scalar_prefetch = 0 : i64, scratch_operands = 0 : i64, tpu.core_type = #tpu.core_type<tc>} {
    %c0 = arith.constant 0 : index
    %c0_0 = arith.constant 0 : index
    %c0_1 = arith.constant 0 : index
    %0 = vector.load %arg0[%c0, %c0_0, %c0_1] : memref<2x8x128xf32, #tpu.memory_space<vmem>>, vector<2x8x128xf32>
    %c64_i32 = arith.constant 64 : i32
    %1 = tpu.dynamic_rotate %0 by %c64_i32 dim 2 : vector<2x8x128xf32>, i32 -> vector<2x8x128xf32>
    %2 = vector.shape_cast %0 : vector<2x8x128xf32> to vector<2x8x1x128xf32>
    %c0_2 = arith.constant 0 : index
    %c0_3 = arith.constant 0 : index
    %c0_4 = arith.constant 0 : index
    %3 = vector.load %arg1[%c0_2, %c0_3, %c0_4] : memref<8x8x128xf32, #tpu.memory_space<vmem>>, vector<8x8x128xf32>
    %4 = vector.shape_cast %3 : vector<8x8x128xf32> to vector<1x8x8x128xf32>
    %5 = vector.broadcast %2 : vector<2x8x1x128xf32> to vector<2x8x8x128xf32>
    %6 = vector.broadcast %4 : vector<1x8x8x128xf32> to vector<2x8x8x128xf32>
    %7 = arith.mulf %5, %6 : vector<2x8x8x128xf32>
    %8 = vector.shape_cast %1 : vector<2x8x128xf32> to vector<2x8x1x128xf32>
    %c0_5 = arith.constant 0 : index
    %c0_6 = arith.constant 0 : index
    %c0_7 = arith.constant 0 : index
    %9 = vector.load %arg2[%c0_5, %c0_6, %c0_7] : memref<8x8x128xf32, #tpu.memory_space<vmem>>, vector<8x8x128xf32>
    %10 = vector.shape_cast %9 : vector<8x8x128xf32> to vector<1x8x8x128xf32>
    %11 = vector.broadcast %8 : vector<2x8x1x128xf32> to vector<2x8x8x128xf32>
    %12 = vector.broadcast %10 : vector<1x8x8x128xf32> to vector<2x8x8x128xf32>
    %13 = arith.mulf %11, %12 : vector<2x8x8x128xf32>
    %14 = arith.addf %7, %13 : vector<2x8x8x128xf32>
    %cst = arith.constant dense<0.000000e+00> : vector<2x8x128xf32>
    %15 = vector.multi_reduction <add>, %14, %cst [1] : vector<2x8x8x128xf32> to vector<2x8x128xf32>
    %c0_8 = arith.constant 0 : index
    %c0_9 = arith.constant 0 : index
    %c0_10 = arith.constant 0 : index
    %16 = vector.load %arg3[%c0_8, %c0_9, %c0_10] : memref<2x8x128xf32, #tpu.memory_space<vmem>>, vector<2x8x128xf32>
    tpu.vector_store %arg3[%c0_8, %c0_9, %c0_10], %15 {strides = array<i32>} : memref<2x8x128xf32, #tpu.memory_space<vmem>>, vector<2x8x128xf32>,
    return
  }
}

module attributes {stable_mosaic.version = 11 : i64} {
  func.func @_mm_kernel(%arg0: i32, %arg1: memref<512x8xf32, #tpu.memory_space<vmem>>, %arg2: memref<8x8xbf16, #tpu.memory_space<vmem>>, %arg3: memref<1x8xf32, #tpu.memory_space<vmem>>, %arg4: memref<512x8xf32, #tpu.memory_space<vmem>>, %arg5: memref<512x8xf32, #tpu.memory_space<vmem>>) attributes {dimension_semantics = [#tpu.dimension_semantics<parallel>], iteration_bounds = array<i64: 1>, scalar_prefetch = 0 : i64, scratch_operands = 0 : i64, tpu.core_type = #tpu.core_type<tc>, window_params = [{transform_indices = @transform_0, window_bounds = array<i64: 512, 8>}, {pipeline_mode = #tpu.pipeline_mode<synchronous>, transform_indices = @transform_1, window_bounds = array<i64: 8, 8>}, {pipeline_mode = #tpu.pipeline_mode<synchronous>, transform_indices = @transform_2, window_bounds = array<i64: 1, 8>}, {transform_indices = @transform_3, window_bounds = array<i64: 512, 8>}, {transform_indices = @transform_4, window_bounds = array<i64: 512, 8>}]} {
    %c0 = arith.constant 0 : index
    %c0_0 = arith.constant 0 : index
    %0 = vector.load %arg1[%c0, %c0_0] : memref<512x8xf32, #tpu.memory_space<vmem>>, vector<512x8xf32>
    %1 = arith.truncf %0 : vector<512x8xf32> to vector<512x8xbf16>
    %c0_1 = arith.constant 0 : index
    %c0_2 = arith.constant 0 : index
    %2 = vector.load %arg2[%c0_1, %c0_2] : memref<8x8xbf16, #tpu.memory_space<vmem>>, vector<8x8xbf16>
    %cst = arith.constant dense<0.000000e+00> : vector<512x8xf32>
    %3 = tpu.matmul %1, %2, %cst {dimension_numbers = #tpu.dot_dimension_numbers<[1], [0], [0], [1], [0, 0, 1, 1], [], []>} : vector<512x8xbf16>, vector<8x8xbf16>, vector<512x8xf32> -> vector<512x8xf32>
    %c0_3 = arith.constant 0 : index
    %c0_4 = arith.constant 0 : index
    %4 = vector.load %arg3[%c0_3, %c0_4] : memref<1x8xf32, #tpu.memory_space<vmem>>, vector<1x8xf32>
    %5 = vector.broadcast %4 : vector<1x8xf32> to vector<512x8xf32>
    %6 = arith.addf %3, %5 : vector<512x8xf32>
    %c0_5 = arith.constant 0 : index
    %c0_6 = arith.constant 0 : index
    %7 = vector.load %arg4[%c0_5, %c0_6] : memref<512x8xf32, #tpu.memory_space<vmem>>, vector<512x8xf32>
    %8 = arith.addf %6, %7 : vector<512x8xf32>
    %cst_7 = arith.constant 0.000000e+00 : f32
    %9 = vector.broadcast %cst_7 : f32 to vector<512x8xf32>
    %10 = arith.maximumf %8, %9 : vector<512x8xf32>
    %c0_8 = arith.constant 0 : index
    %c0_9 = arith.constant 0 : index
    %11 = vector.load %arg5[%c0_8, %c0_9] : memref<512x8xf32, #tpu.memory_space<vmem>>, vector<512x8xf32>
    tpu.vector_store %arg5[%c0_8, %c0_9], %10 {strides = array<i32>} : memref<512x8xf32, #tpu.memory_space<vmem>>, vector<512x8xf32>,
    return
  }
  func.func @transform_0(%arg0: i32) -> (i32, i32) {
    %c0_i32 = arith.constant 0 : i32
    %c0_i32_0 = arith.constant 0 : i32
    return %arg0, %c0_i32 : i32, i32
  }
  func.func @transform_1(%arg0: i32) -> (i32, i32) {
    %c0_i32 = arith.constant 0 : i32
    %c0_i32_0 = arith.constant 0 : i32
    %c0_i32_1 = arith.constant 0 : i32
    return %c0_i32, %c0_i32_0 : i32, i32
  }
  func.func @transform_2(%arg0: i32) -> (i32, i32) {
    %c0_i32 = arith.constant 0 : i32
    %c0_i32_0 = arith.constant 0 : i32
    %c0_i32_1 = arith.constant 0 : i32
    return %c0_i32, %c0_i32_0 : i32, i32
  }
  func.func @transform_3(%arg0: i32) -> (i32, i32) {
    %c0_i32 = arith.constant 0 : i32
    %c0_i32_0 = arith.constant 0 : i32
    return %arg0, %c0_i32 : i32, i32
  }
  func.func @transform_4(%arg0: i32) -> (i32, i32) {
    %c0_i32 = arith.constant 0 : i32
    %c0_i32_0 = arith.constant 0 : i32
    return %arg0, %c0_i32 : i32, i32
  }
}

module attributes {stable_mosaic.version = 11 : i64} {
  func.func @_rowconv_kernel(%arg0: memref<2x9x256xf32, #tpu.memory_space<vmem>>, %arg1: memref<2x256x64xbf16, #tpu.memory_space<vmem>>, %arg2: memref<1x64xf32, #tpu.memory_space<vmem>>, %arg3: memref<2x8x64xf32, #tpu.memory_space<vmem>>) attributes {dimension_semantics = [], scalar_prefetch = 0 : i64, scratch_operands = 0 : i64, tpu.core_type = #tpu.core_type<tc>} {
    %c0 = arith.constant 0 : index
    %c0_0 = arith.constant 0 : index
    %0 = vector.load %arg2[%c0, %c0_0] : memref<1x64xf32, #tpu.memory_space<vmem>>, vector<1x64xf32>
    %cst = arith.constant 0.000000e+00 : f32
    %1 = vector.broadcast %cst : f32 to vector<8x64xf32>
    %c0_1 = arith.constant 0 : index
    %c0_2 = arith.constant 0 : index
    %c0_3 = arith.constant 0 : index
    %2 = vector.load %arg0[%c0_1, %c0_2, %c0_3] : memref<2x9x256xf32, #tpu.memory_space<vmem>>, vector<1x8x256xf32>
    %3 = vector.shape_cast %2 : vector<1x8x256xf32> to vector<8x256xf32>
    %4 = arith.truncf %3 : vector<8x256xf32> to vector<8x256xbf16>
    %c0_4 = arith.constant 0 : index
    %c0_5 = arith.constant 0 : index
    %c0_6 = arith.constant 0 : index
    %5 = vector.load %arg1[%c0_4, %c0_5, %c0_6] : memref<2x256x64xbf16, #tpu.memory_space<vmem>>, vector<1x256x64xbf16>
    %6 = vector.shape_cast %5 : vector<1x256x64xbf16> to vector<256x64xbf16>
    %cst_7 = arith.constant dense<0.000000e+00> : vector<8x64xf32>
    %7 = tpu.matmul %4, %6, %cst_7 {dimension_numbers = #tpu.dot_dimension_numbers<[1], [0], [0], [1], [0, 0, 1, 1], [], []>} : vector<8x256xbf16>, vector<256x64xbf16>, vector<8x64xf32> -> vector<8x64xf32>
    %8 = arith.addf %1, %7 : vector<8x64xf32>
    %c0_8 = arith.constant 0 : index
    %c1 = arith.constant 1 : index
    %c0_9 = arith.constant 0 : index
    %9 = vector.load %arg0[%c0_8, %c1, %c0_9] : memref<2x9x256xf32, #tpu.memory_space<vmem>>, vector<1x8x256xf32>
    %10 = vector.shape_cast %9 : vector<1x8x256xf32> to vector<8x256xf32>
    %11 = arith.truncf %10 : vector<8x256xf32> to vector<8x256xbf16>
    %c1_10 = arith.constant 1 : index
    %c0_11 = arith.constant 0 : index
    %c0_12 = arith.constant 0 : index
    %12 = vector.load %arg1[%c1_10, %c0_11, %c0_12] : memref<2x256x64xbf16, #tpu.memory_space<vmem>>, vector<1x256x64xbf16>
    %13 = vector.shape_cast %12 : vector<1x256x64xbf16> to vector<256x64xbf16>
    %cst_13 = arith.constant dense<0.000000e+00> : vector<8x64xf32>
    %14 = tpu.matmul %11, %13, %cst_13 {dimension_numbers = #tpu.dot_dimension_numbers<[1], [0], [0], [1], [0, 0, 1, 1], [], []>} : vector<8x256xbf16>, vector<256x64xbf16>, vector<8x64xf32> -> vector<8x64xf32>
    %15 = arith.addf %8, %14 : vector<8x64xf32>
    %16 = vector.broadcast %0 : vector<1x64xf32> to vector<8x64xf32>
    %17 = arith.addf %15, %16 : vector<8x64xf32>
    %cst_14 = arith.constant 0.000000e+00 : f32
    %18 = vector.broadcast %cst_14 : f32 to vector<8x64xf32>
    %19 = arith.cmpf oge, %17, %18 : vector<8x64xf32>
    %cst_15 = arith.constant 1.000000e-01 : f32
    %20 = vector.broadcast %cst_15 : f32 to vector<8x64xf32>
    %21 = arith.mulf %20, %17 : vector<8x64xf32>
    %22 = arith.select %19, %17, %21 : vector<8x64xi1>, vector<8x64xf32>
    %c0_16 = arith.constant 0 : index
    %c0_17 = arith.constant 0 : index
    %c0_18 = arith.constant 0 : index
    %23 = vector.load %arg3[%c0_16, %c0_17, %c0_18] : memref<2x8x64xf32, #tpu.memory_space<vmem>>, vector<1x8x64xf32>
    %24 = vector.shape_cast %23 : vector<1x8x64xf32> to vector<8x64xf32>
    %25 = vector.shape_cast %22 : vector<8x64xf32> to vector<1x8x64xf32>
    tpu.vector_store %arg3[%c0_16, %c0_17, %c0_18], %25 {strides = array<i32>} : memref<2x8x64xf32, #tpu.memory_space<vmem>>, vector<1x8x64xf32>,
    %cst_19 = arith.constant 0.000000e+00 : f32
    %26 = vector.broadcast %cst_19 : f32 to vector<8x64xf32>
    %c1_20 = arith.constant 1 : index
    %c0_21 = arith.constant 0 : index
    %c0_22 = arith.constant 0 : index
    %27 = vector.load %arg0[%c1_20, %c0_21, %c0_22] : memref<2x9x256xf32, #tpu.memory_space<vmem>>, vector<1x8x256xf32>
    %28 = vector.shape_cast %27 : vector<1x8x256xf32> to vector<8x256xf32>
    %29 = arith.truncf %28 : vector<8x256xf32> to vector<8x256xbf16>
    %c0_23 = arith.constant 0 : index
    %c0_24 = arith.constant 0 : index
    %c0_25 = arith.constant 0 : index
    %30 = vector.load %arg1[%c0_23, %c0_24, %c0_25] : memref<2x256x64xbf16, #tpu.memory_space<vmem>>, vector<1x256x64xbf16>
    %31 = vector.shape_cast %30 : vector<1x256x64xbf16> to vector<256x64xbf16>
    %cst_26 = arith.constant dense<0.000000e+00> : vector<8x64xf32>
    %32 = tpu.matmul %29, %31, %cst_26 {dimension_numbers = #tpu.dot_dimension_numbers<[1], [0], [0], [1], [0, 0, 1, 1], [], []>} : vector<8x256xbf16>, vector<256x64xbf16>, vector<8x64xf32> -> vector<8x64xf32>
    %33 = arith.addf %26, %32 : vector<8x64xf32>
    %c1_27 = arith.constant 1 : index
    %c1_28 = arith.constant 1 : index
    %c0_29 = arith.constant 0 : index
    %34 = vector.load %arg0[%c1_27, %c1_28, %c0_29] : memref<2x9x256xf32, #tpu.memory_space<vmem>>, vector<1x8x256xf32>
    %35 = vector.shape_cast %34 : vector<1x8x256xf32> to vector<8x256xf32>
    %36 = arith.truncf %35 : vector<8x256xf32> to vector<8x256xbf16>
    %c1_30 = arith.constant 1 : index
    %c0_31 = arith.constant 0 : index
    %c0_32 = arith.constant 0 : index
    %37 = vector.load %arg1[%c1_30, %c0_31, %c0_32] : memref<2x256x64xbf16, #tpu.memory_space<vmem>>, vector<1x256x64xbf16>
    %38 = vector.shape_cast %37 : vector<1x256x64xbf16> to vector<256x64xbf16>
    %cst_33 = arith.constant dense<0.000000e+00> : vector<8x64xf32>
    %39 = tpu.matmul %36, %38, %cst_33 {dimension_numbers = #tpu.dot_dimension_numbers<[1], [0], [0], [1], [0, 0, 1, 1], [], []>} : vector<8x256xbf16>, vector<256x64xbf16>, vector<8x64xf32> -> vector<8x64xf32>
    %40 = arith.addf %33, %39 : vector<8x64xf32>
    %41 = vector.broadcast %0 : vector<1x64xf32> to vector<8x64xf32>
    %42 = arith.addf %40, %41 : vector<8x64xf32>
    %cst_34 = arith.constant 0.000000e+00 : f32
    %43 = vector.broadcast %cst_34 : f32 to vector<8x64xf32>
    %44 = arith.cmpf oge, %42, %43 : vector<8x64xf32>
    %cst_35 = arith.constant 1.000000e-01 : f32
    %45 = vector.broadcast %cst_35 : f32 to vector<8x64xf32>
    %46 = arith.mulf %45, %42 : vector<8x64xf32>
    %47 = arith.select %44, %42, %46 : vector<8x64xi1>, vector<8x64xf32>
    %c1_36 = arith.constant 1 : index
    %c0_37 = arith.constant 0 : index
    %c0_38 = arith.constant 0 : index
    %48 = vector.load %arg3[%c1_36, %c0_37, %c0_38] : memref<2x8x64xf32, #tpu.memory_space<vmem>>, vector<1x8x64xf32>
    %49 = vector.shape_cast %48 : vector<1x8x64xf32> to vector<8x64xf32>
    %50 = vector.shape_cast %47 : vector<8x64xf32> to vector<1x8x64xf32>
    tpu.vector_store %arg3[%c1_36, %c0_37, %c0_38], %50 {strides = array<i32>} : memref<2x8x64xf32, #tpu.memory_space<vmem>>, vector<1x8x64xf32>,
    return
  }
}

module attributes {stable_mosaic.version = 11 : i64} {
  func.func @_rowconv_kernel(%arg0: memref<2x5x128xf32, #tpu.memory_space<vmem>>, %arg1: memref<2x128x32xbf16, #tpu.memory_space<vmem>>, %arg2: memref<1x32xf32, #tpu.memory_space<vmem>>, %arg3: memref<2x4x32xf32, #tpu.memory_space<vmem>>) attributes {dimension_semantics = [], scalar_prefetch = 0 : i64, scratch_operands = 0 : i64, tpu.core_type = #tpu.core_type<tc>} {
    %c0 = arith.constant 0 : index
    %c0_0 = arith.constant 0 : index
    %0 = vector.load %arg2[%c0, %c0_0] : memref<1x32xf32, #tpu.memory_space<vmem>>, vector<1x32xf32>
    %cst = arith.constant 0.000000e+00 : f32
    %1 = vector.broadcast %cst : f32 to vector<4x32xf32>
    %c0_1 = arith.constant 0 : index
    %c0_2 = arith.constant 0 : index
    %c0_3 = arith.constant 0 : index
    %2 = vector.load %arg0[%c0_1, %c0_2, %c0_3] : memref<2x5x128xf32, #tpu.memory_space<vmem>>, vector<1x4x128xf32>
    %3 = vector.shape_cast %2 : vector<1x4x128xf32> to vector<4x128xf32>
    %4 = arith.truncf %3 : vector<4x128xf32> to vector<4x128xbf16>
    %c0_4 = arith.constant 0 : index
    %c0_5 = arith.constant 0 : index
    %c0_6 = arith.constant 0 : index
    %5 = vector.load %arg1[%c0_4, %c0_5, %c0_6] : memref<2x128x32xbf16, #tpu.memory_space<vmem>>, vector<1x128x32xbf16>
    %6 = vector.shape_cast %5 : vector<1x128x32xbf16> to vector<128x32xbf16>
    %cst_7 = arith.constant dense<0.000000e+00> : vector<4x32xf32>
    %7 = tpu.matmul %4, %6, %cst_7 {dimension_numbers = #tpu.dot_dimension_numbers<[1], [0], [0], [1], [0, 0, 1, 1], [], []>} : vector<4x128xbf16>, vector<128x32xbf16>, vector<4x32xf32> -> vector<4x32xf32>
    %8 = arith.addf %1, %7 : vector<4x32xf32>
    %c0_8 = arith.constant 0 : index
    %c1 = arith.constant 1 : index
    %c0_9 = arith.constant 0 : index
    %9 = vector.load %arg0[%c0_8, %c1, %c0_9] : memref<2x5x128xf32, #tpu.memory_space<vmem>>, vector<1x4x128xf32>
    %10 = vector.shape_cast %9 : vector<1x4x128xf32> to vector<4x128xf32>
    %11 = arith.truncf %10 : vector<4x128xf32> to vector<4x128xbf16>
    %c1_10 = arith.constant 1 : index
    %c0_11 = arith.constant 0 : index
    %c0_12 = arith.constant 0 : index
    %12 = vector.load %arg1[%c1_10, %c0_11, %c0_12] : memref<2x128x32xbf16, #tpu.memory_space<vmem>>, vector<1x128x32xbf16>
    %13 = vector.shape_cast %12 : vector<1x128x32xbf16> to vector<128x32xbf16>
    %cst_13 = arith.constant dense<0.000000e+00> : vector<4x32xf32>
    %14 = tpu.matmul %11, %13, %cst_13 {dimension_numbers = #tpu.dot_dimension_numbers<[1], [0], [0], [1], [0, 0, 1, 1], [], []>} : vector<4x128xbf16>, vector<128x32xbf16>, vector<4x32xf32> -> vector<4x32xf32>
    %15 = arith.addf %8, %14 : vector<4x32xf32>
    %16 = vector.broadcast %0 : vector<1x32xf32> to vector<4x32xf32>
    %17 = arith.addf %15, %16 : vector<4x32xf32>
    %cst_14 = arith.constant 0.000000e+00 : f32
    %18 = vector.broadcast %cst_14 : f32 to vector<4x32xf32>
    %19 = arith.cmpf oge, %17, %18 : vector<4x32xf32>
    %cst_15 = arith.constant 1.000000e-01 : f32
    %20 = vector.broadcast %cst_15 : f32 to vector<4x32xf32>
    %21 = arith.mulf %20, %17 : vector<4x32xf32>
    %22 = arith.select %19, %17, %21 : vector<4x32xi1>, vector<4x32xf32>
    %c0_16 = arith.constant 0 : index
    %c0_17 = arith.constant 0 : index
    %c0_18 = arith.constant 0 : index
    %23 = vector.load %arg3[%c0_16, %c0_17, %c0_18] : memref<2x4x32xf32, #tpu.memory_space<vmem>>, vector<1x4x32xf32>
    %24 = vector.shape_cast %23 : vector<1x4x32xf32> to vector<4x32xf32>
    %25 = vector.shape_cast %22 : vector<4x32xf32> to vector<1x4x32xf32>
    tpu.vector_store %arg3[%c0_16, %c0_17, %c0_18], %25 {strides = array<i32>} : memref<2x4x32xf32, #tpu.memory_space<vmem>>, vector<1x4x32xf32>,
    %cst_19 = arith.constant 0.000000e+00 : f32
    %26 = vector.broadcast %cst_19 : f32 to vector<4x32xf32>
    %c1_20 = arith.constant 1 : index
    %c0_21 = arith.constant 0 : index
    %c0_22 = arith.constant 0 : index
    %27 = vector.load %arg0[%c1_20, %c0_21, %c0_22] : memref<2x5x128xf32, #tpu.memory_space<vmem>>, vector<1x4x128xf32>
    %28 = vector.shape_cast %27 : vector<1x4x128xf32> to vector<4x128xf32>
    %29 = arith.truncf %28 : vector<4x128xf32> to vector<4x128xbf16>
    %c0_23 = arith.constant 0 : index
    %c0_24 = arith.constant 0 : index
    %c0_25 = arith.constant 0 : index
    %30 = vector.load %arg1[%c0_23, %c0_24, %c0_25] : memref<2x128x32xbf16, #tpu.memory_space<vmem>>, vector<1x128x32xbf16>
    %31 = vector.shape_cast %30 : vector<1x128x32xbf16> to vector<128x32xbf16>
    %cst_26 = arith.constant dense<0.000000e+00> : vector<4x32xf32>
    %32 = tpu.matmul %29, %31, %cst_26 {dimension_numbers = #tpu.dot_dimension_numbers<[1], [0], [0], [1], [0, 0, 1, 1], [], []>} : vector<4x128xbf16>, vector<128x32xbf16>, vector<4x32xf32> -> vector<4x32xf32>
    %33 = arith.addf %26, %32 : vector<4x32xf32>
    %c1_27 = arith.constant 1 : index
    %c1_28 = arith.constant 1 : index
    %c0_29 = arith.constant 0 : index
    %34 = vector.load %arg0[%c1_27, %c1_28, %c0_29] : memref<2x5x128xf32, #tpu.memory_space<vmem>>, vector<1x4x128xf32>
    %35 = vector.shape_cast %34 : vector<1x4x128xf32> to vector<4x128xf32>
    %36 = arith.truncf %35 : vector<4x128xf32> to vector<4x128xbf16>
    %c1_30 = arith.constant 1 : index
    %c0_31 = arith.constant 0 : index
    %c0_32 = arith.constant 0 : index
    %37 = vector.load %arg1[%c1_30, %c0_31, %c0_32] : memref<2x128x32xbf16, #tpu.memory_space<vmem>>, vector<1x128x32xbf16>
    %38 = vector.shape_cast %37 : vector<1x128x32xbf16> to vector<128x32xbf16>
    %cst_33 = arith.constant dense<0.000000e+00> : vector<4x32xf32>
    %39 = tpu.matmul %36, %38, %cst_33 {dimension_numbers = #tpu.dot_dimension_numbers<[1], [0], [0], [1], [0, 0, 1, 1], [], []>} : vector<4x128xbf16>, vector<128x32xbf16>, vector<4x32xf32> -> vector<4x32xf32>
    %40 = arith.addf %33, %39 : vector<4x32xf32>
    %41 = vector.broadcast %0 : vector<1x32xf32> to vector<4x32xf32>
    %42 = arith.addf %40, %41 : vector<4x32xf32>
    %cst_34 = arith.constant 0.000000e+00 : f32
    %43 = vector.broadcast %cst_34 : f32 to vector<4x32xf32>
    %44 = arith.cmpf oge, %42, %43 : vector<4x32xf32>
    %cst_35 = arith.constant 1.000000e-01 : f32
    %45 = vector.broadcast %cst_35 : f32 to vector<4x32xf32>
    %46 = arith.mulf %45, %42 : vector<4x32xf32>
    %47 = arith.select %44, %42, %46 : vector<4x32xi1>, vector<4x32xf32>
    %c1_36 = arith.constant 1 : index
    %c0_37 = arith.constant 0 : index
    %c0_38 = arith.constant 0 : index
    %48 = vector.load %arg3[%c1_36, %c0_37, %c0_38] : memref<2x4x32xf32, #tpu.memory_space<vmem>>, vector<1x4x32xf32>
    %49 = vector.shape_cast %48 : vector<1x4x32xf32> to vector<4x32xf32>
    %50 = vector.shape_cast %47 : vector<4x32xf32> to vector<1x4x32xf32>
    tpu.vector_store %arg3[%c1_36, %c0_37, %c0_38], %50 {strides = array<i32>} : memref<2x4x32xf32, #tpu.memory_space<vmem>>, vector<1x4x32xf32>,
    return
  }
}

module attributes {stable_mosaic.version = 11 : i64} {
  func.func @_rowconv_kernel(%arg0: memref<2x6x32xf32, #tpu.memory_space<vmem>>, %arg1: memref<3x32x32xbf16, #tpu.memory_space<vmem>>, %arg2: memref<1x32xf32, #tpu.memory_space<vmem>>, %arg3: memref<2x4x32xf32, #tpu.memory_space<vmem>>) attributes {dimension_semantics = [], scalar_prefetch = 0 : i64, scratch_operands = 0 : i64, tpu.core_type = #tpu.core_type<tc>} {
    %c0 = arith.constant 0 : index
    %c0_0 = arith.constant 0 : index
    %0 = vector.load %arg2[%c0, %c0_0] : memref<1x32xf32, #tpu.memory_space<vmem>>, vector<1x32xf32>
    %cst = arith.constant 0.000000e+00 : f32
    %1 = vector.broadcast %cst : f32 to vector<4x32xf32>
    %c0_1 = arith.constant 0 : index
    %c0_2 = arith.constant 0 : index
    %c0_3 = arith.constant 0 : index
    %2 = vector.load %arg0[%c0_1, %c0_2, %c0_3] : memref<2x6x32xf32, #tpu.memory_space<vmem>>, vector<1x4x32xf32>
    %3 = vector.shape_cast %2 : vector<1x4x32xf32> to vector<4x32xf32>
    %4 = arith.truncf %3 : vector<4x32xf32> to vector<4x32xbf16>
    %c0_4 = arith.constant 0 : index
    %c0_5 = arith.constant 0 : index
    %c0_6 = arith.constant 0 : index
    %5 = vector.load %arg1[%c0_4, %c0_5, %c0_6] : memref<3x32x32xbf16, #tpu.memory_space<vmem>>, vector<1x32x32xbf16>
    %6 = vector.shape_cast %5 : vector<1x32x32xbf16> to vector<32x32xbf16>
    %cst_7 = arith.constant dense<0.000000e+00> : vector<4x32xf32>
    %7 = tpu.matmul %4, %6, %cst_7 {dimension_numbers = #tpu.dot_dimension_numbers<[1], [0], [0], [1], [0, 0, 1, 1], [], []>} : vector<4x32xbf16>, vector<32x32xbf16>, vector<4x32xf32> -> vector<4x32xf32>
    %8 = arith.addf %1, %7 : vector<4x32xf32>
    %c0_8 = arith.constant 0 : index
    %c1 = arith.constant 1 : index
    %c0_9 = arith.constant 0 : index
    %9 = vector.load %arg0[%c0_8, %c1, %c0_9] : memref<2x6x32xf32, #tpu.memory_space<vmem>>, vector<1x4x32xf32>
    %10 = vector.shape_cast %9 : vector<1x4x32xf32> to vector<4x32xf32>
    %11 = arith.truncf %10 : vector<4x32xf32> to vector<4x32xbf16>
    %c1_10 = arith.constant 1 : index
    %c0_11 = arith.constant 0 : index
    %c0_12 = arith.constant 0 : index
    %12 = vector.load %arg1[%c1_10, %c0_11, %c0_12] : memref<3x32x32xbf16, #tpu.memory_space<vmem>>, vector<1x32x32xbf16>
    %13 = vector.shape_cast %12 : vector<1x32x32xbf16> to vector<32x32xbf16>
    %cst_13 = arith.constant dense<0.000000e+00> : vector<4x32xf32>
    %14 = tpu.matmul %11, %13, %cst_13 {dimension_numbers = #tpu.dot_dimension_numbers<[1], [0], [0], [1], [0, 0, 1, 1], [], []>} : vector<4x32xbf16>, vector<32x32xbf16>, vector<4x32xf32> -> vector<4x32xf32>
    %15 = arith.addf %8, %14 : vector<4x32xf32>
    %c0_14 = arith.constant 0 : index
    %c2 = arith.constant 2 : index
    %c0_15 = arith.constant 0 : index
    %16 = vector.load %arg0[%c0_14, %c2, %c0_15] : memref<2x6x32xf32, #tpu.memory_space<vmem>>, vector<1x4x32xf32>
    %17 = vector.shape_cast %16 : vector<1x4x32xf32> to vector<4x32xf32>
    %18 = arith.truncf %17 : vector<4x32xf32> to vector<4x32xbf16>
    %c2_16 = arith.constant 2 : index
    %c0_17 = arith.constant 0 : index
    %c0_18 = arith.constant 0 : index
    %19 = vector.load %arg1[%c2_16, %c0_17, %c0_18] : memref<3x32x32xbf16, #tpu.memory_space<vmem>>, vector<1x32x32xbf16>
    %20 = vector.shape_cast %19 : vector<1x32x32xbf16> to vector<32x32xbf16>
    %cst_19 = arith.constant dense<0.000000e+00> : vector<4x32xf32>
    %21 = tpu.matmul %18, %20, %cst_19 {dimension_numbers = #tpu.dot_dimension_numbers<[1], [0], [0], [1], [0, 0, 1, 1], [], []>} : vector<4x32xbf16>, vector<32x32xbf16>, vector<4x32xf32> -> vector<4x32xf32>
    %22 = arith.addf %15, %21 : vector<4x32xf32>
    %23 = vector.broadcast %0 : vector<1x32xf32> to vector<4x32xf32>
    %24 = arith.addf %22, %23 : vector<4x32xf32>
    %cst_20 = arith.constant 0.000000e+00 : f32
    %25 = vector.broadcast %cst_20 : f32 to vector<4x32xf32>
    %26 = arith.cmpf oge, %24, %25 : vector<4x32xf32>
    %cst_21 = arith.constant 1.000000e-01 : f32
    %27 = vector.broadcast %cst_21 : f32 to vector<4x32xf32>
    %28 = arith.mulf %27, %24 : vector<4x32xf32>
    %29 = arith.select %26, %24, %28 : vector<4x32xi1>, vector<4x32xf32>
    %c0_22 = arith.constant 0 : index
    %c0_23 = arith.constant 0 : index
    %c0_24 = arith.constant 0 : index
    %30 = vector.load %arg3[%c0_22, %c0_23, %c0_24] : memref<2x4x32xf32, #tpu.memory_space<vmem>>, vector<1x4x32xf32>
    %31 = vector.shape_cast %30 : vector<1x4x32xf32> to vector<4x32xf32>
    %32 = vector.shape_cast %29 : vector<4x32xf32> to vector<1x4x32xf32>
    tpu.vector_store %arg3[%c0_22, %c0_23, %c0_24], %32 {strides = array<i32>} : memref<2x4x32xf32, #tpu.memory_space<vmem>>, vector<1x4x32xf32>,
    %cst_25 = arith.constant 0.000000e+00 : f32
    %33 = vector.broadcast %cst_25 : f32 to vector<4x32xf32>
    %c1_26 = arith.constant 1 : index
    %c0_27 = arith.constant 0 : index
    %c0_28 = arith.constant 0 : index
    %34 = vector.load %arg0[%c1_26, %c0_27, %c0_28] : memref<2x6x32xf32, #tpu.memory_space<vmem>>, vector<1x4x32xf32>
    %35 = vector.shape_cast %34 : vector<1x4x32xf32> to vector<4x32xf32>
    %36 = arith.truncf %35 : vector<4x32xf32> to vector<4x32xbf16>
    %c0_29 = arith.constant 0 : index
    %c0_30 = arith.constant 0 : index
    %c0_31 = arith.constant 0 : index
    %37 = vector.load %arg1[%c0_29, %c0_30, %c0_31] : memref<3x32x32xbf16, #tpu.memory_space<vmem>>, vector<1x32x32xbf16>
    %38 = vector.shape_cast %37 : vector<1x32x32xbf16> to vector<32x32xbf16>
    %cst_32 = arith.constant dense<0.000000e+00> : vector<4x32xf32>
    %39 = tpu.matmul %36, %38, %cst_32 {dimension_numbers = #tpu.dot_dimension_numbers<[1], [0], [0], [1], [0, 0, 1, 1], [], []>} : vector<4x32xbf16>, vector<32x32xbf16>, vector<4x32xf32> -> vector<4x32xf32>
    %40 = arith.addf %33, %39 : vector<4x32xf32>
    %c1_33 = arith.constant 1 : index
    %c1_34 = arith.constant 1 : index
    %c0_35 = arith.constant 0 : index
    %41 = vector.load %arg0[%c1_33, %c1_34, %c0_35] : memref<2x6x32xf32, #tpu.memory_space<vmem>>, vector<1x4x32xf32>
    %42 = vector.shape_cast %41 : vector<1x4x32xf32> to vector<4x32xf32>
    %43 = arith.truncf %42 : vector<4x32xf32> to vector<4x32xbf16>
    %c1_36 = arith.constant 1 : index
    %c0_37 = arith.constant 0 : index
    %c0_38 = arith.constant 0 : index
    %44 = vector.load %arg1[%c1_36, %c0_37, %c0_38] : memref<3x32x32xbf16, #tpu.memory_space<vmem>>, vector<1x32x32xbf16>
    %45 = vector.shape_cast %44 : vector<1x32x32xbf16> to vector<32x32xbf16>
    %cst_39 = arith.constant dense<0.000000e+00> : vector<4x32xf32>
    %46 = tpu.matmul %43, %45, %cst_39 {dimension_numbers = #tpu.dot_dimension_numbers<[1], [0], [0], [1], [0, 0, 1, 1], [], []>} : vector<4x32xbf16>, vector<32x32xbf16>, vector<4x32xf32> -> vector<4x32xf32>
    %47 = arith.addf %40, %46 : vector<4x32xf32>
    %c1_40 = arith.constant 1 : index
    %c2_41 = arith.constant 2 : index
    %c0_42 = arith.constant 0 : index
    %48 = vector.load %arg0[%c1_40, %c2_41, %c0_42] : memref<2x6x32xf32, #tpu.memory_space<vmem>>, vector<1x4x32xf32>
    %49 = vector.shape_cast %48 : vector<1x4x32xf32> to vector<4x32xf32>
    %50 = arith.truncf %49 : vector<4x32xf32> to vector<4x32xbf16>
    %c2_43 = arith.constant 2 : index
    %c0_44 = arith.constant 0 : index
    %c0_45 = arith.constant 0 : index
    %51 = vector.load %arg1[%c2_43, %c0_44, %c0_45] : memref<3x32x32xbf16, #tpu.memory_space<vmem>>, vector<1x32x32xbf16>
    %52 = vector.shape_cast %51 : vector<1x32x32xbf16> to vector<32x32xbf16>
    %cst_46 = arith.constant dense<0.000000e+00> : vector<4x32xf32>
    %53 = tpu.matmul %50, %52, %cst_46 {dimension_numbers = #tpu.dot_dimension_numbers<[1], [0], [0], [1], [0, 0, 1, 1], [], []>} : vector<4x32xbf16>, vector<32x32xbf16>, vector<4x32xf32> -> vector<4x32xf32>
    %54 = arith.addf %47, %53 : vector<4x32xf32>
    %55 = vector.broadcast %0 : vector<1x32xf32> to vector<4x32xf32>
    %56 = arith.addf %54, %55 : vector<4x32xf32>
    %cst_47 = arith.constant 0.000000e+00 : f32
    %57 = vector.broadcast %cst_47 : f32 to vector<4x32xf32>
    %58 = arith.cmpf oge, %56, %57 : vector<4x32xf32>
    %cst_48 = arith.constant 1.000000e-01 : f32
    %59 = vector.broadcast %cst_48 : f32 to vector<4x32xf32>
    %60 = arith.mulf %59, %56 : vector<4x32xf32>
    %61 = arith.select %58, %56, %60 : vector<4x32xi1>, vector<4x32xf32>
    %c1_49 = arith.constant 1 : index
    %c0_50 = arith.constant 0 : index
    %c0_51 = arith.constant 0 : index
    %62 = vector.load %arg3[%c1_49, %c0_50, %c0_51] : memref<2x4x32xf32, #tpu.memory_space<vmem>>, vector<1x4x32xf32>
    %63 = vector.shape_cast %62 : vector<1x4x32xf32> to vector<4x32xf32>
    %64 = vector.shape_cast %61 : vector<4x32xf32> to vector<1x4x32xf32>
    tpu.vector_store %arg3[%c1_49, %c0_50, %c0_51], %64 {strides = array<i32>} : memref<2x4x32xf32, #tpu.memory_space<vmem>>, vector<1x4x32xf32>,
    return
  }
}

module attributes {stable_mosaic.version = 11 : i64} {
  func.func @_rowconv_kernel(%arg0: memref<2x4x16xf32, #tpu.memory_space<vmem>>, %arg1: memref<3x16x16xbf16, #tpu.memory_space<vmem>>, %arg2: memref<1x16xf32, #tpu.memory_space<vmem>>, %arg3: memref<2x2x16xf32, #tpu.memory_space<vmem>>) attributes {dimension_semantics = [], scalar_prefetch = 0 : i64, scratch_operands = 0 : i64, tpu.core_type = #tpu.core_type<tc>} {
    %c0 = arith.constant 0 : index
    %c0_0 = arith.constant 0 : index
    %0 = vector.load %arg2[%c0, %c0_0] : memref<1x16xf32, #tpu.memory_space<vmem>>, vector<1x16xf32>
    %cst = arith.constant 0.000000e+00 : f32
    %1 = vector.broadcast %cst : f32 to vector<2x16xf32>
    %c0_1 = arith.constant 0 : index
    %c0_2 = arith.constant 0 : index
    %c0_3 = arith.constant 0 : index
    %2 = vector.load %arg0[%c0_1, %c0_2, %c0_3] : memref<2x4x16xf32, #tpu.memory_space<vmem>>, vector<1x2x16xf32>
    %3 = vector.shape_cast %2 : vector<1x2x16xf32> to vector<2x16xf32>
    %4 = arith.truncf %3 : vector<2x16xf32> to vector<2x16xbf16>
    %c0_4 = arith.constant 0 : index
    %c0_5 = arith.constant 0 : index
    %c0_6 = arith.constant 0 : index
    %5 = vector.load %arg1[%c0_4, %c0_5, %c0_6] : memref<3x16x16xbf16, #tpu.memory_space<vmem>>, vector<1x16x16xbf16>
    %6 = vector.shape_cast %5 : vector<1x16x16xbf16> to vector<16x16xbf16>
    %cst_7 = arith.constant dense<0.000000e+00> : vector<2x16xf32>
    %7 = tpu.matmul %4, %6, %cst_7 {dimension_numbers = #tpu.dot_dimension_numbers<[1], [0], [0], [1], [0, 0, 1, 1], [], []>} : vector<2x16xbf16>, vector<16x16xbf16>, vector<2x16xf32> -> vector<2x16xf32>
    %8 = arith.addf %1, %7 : vector<2x16xf32>
    %c0_8 = arith.constant 0 : index
    %c1 = arith.constant 1 : index
    %c0_9 = arith.constant 0 : index
    %9 = vector.load %arg0[%c0_8, %c1, %c0_9] : memref<2x4x16xf32, #tpu.memory_space<vmem>>, vector<1x2x16xf32>
    %10 = vector.shape_cast %9 : vector<1x2x16xf32> to vector<2x16xf32>
    %11 = arith.truncf %10 : vector<2x16xf32> to vector<2x16xbf16>
    %c1_10 = arith.constant 1 : index
    %c0_11 = arith.constant 0 : index
    %c0_12 = arith.constant 0 : index
    %12 = vector.load %arg1[%c1_10, %c0_11, %c0_12] : memref<3x16x16xbf16, #tpu.memory_space<vmem>>, vector<1x16x16xbf16>
    %13 = vector.shape_cast %12 : vector<1x16x16xbf16> to vector<16x16xbf16>
    %cst_13 = arith.constant dense<0.000000e+00> : vector<2x16xf32>
    %14 = tpu.matmul %11, %13, %cst_13 {dimension_numbers = #tpu.dot_dimension_numbers<[1], [0], [0], [1], [0, 0, 1, 1], [], []>} : vector<2x16xbf16>, vector<16x16xbf16>, vector<2x16xf32> -> vector<2x16xf32>
    %15 = arith.addf %8, %14 : vector<2x16xf32>
    %c0_14 = arith.constant 0 : index
    %c2 = arith.constant 2 : index
    %c0_15 = arith.constant 0 : index
    %16 = vector.load %arg0[%c0_14, %c2, %c0_15] : memref<2x4x16xf32, #tpu.memory_space<vmem>>, vector<1x2x16xf32>
    %17 = vector.shape_cast %16 : vector<1x2x16xf32> to vector<2x16xf32>
    %18 = arith.truncf %17 : vector<2x16xf32> to vector<2x16xbf16>
    %c2_16 = arith.constant 2 : index
    %c0_17 = arith.constant 0 : index
    %c0_18 = arith.constant 0 : index
    %19 = vector.load %arg1[%c2_16, %c0_17, %c0_18] : memref<3x16x16xbf16, #tpu.memory_space<vmem>>, vector<1x16x16xbf16>
    %20 = vector.shape_cast %19 : vector<1x16x16xbf16> to vector<16x16xbf16>
    %cst_19 = arith.constant dense<0.000000e+00> : vector<2x16xf32>
    %21 = tpu.matmul %18, %20, %cst_19 {dimension_numbers = #tpu.dot_dimension_numbers<[1], [0], [0], [1], [0, 0, 1, 1], [], []>} : vector<2x16xbf16>, vector<16x16xbf16>, vector<2x16xf32> -> vector<2x16xf32>
    %22 = arith.addf %15, %21 : vector<2x16xf32>
    %23 = vector.broadcast %0 : vector<1x16xf32> to vector<2x16xf32>
    %24 = arith.addf %22, %23 : vector<2x16xf32>
    %cst_20 = arith.constant 0.000000e+00 : f32
    %25 = vector.broadcast %cst_20 : f32 to vector<2x16xf32>
    %26 = arith.cmpf oge, %24, %25 : vector<2x16xf32>
    %cst_21 = arith.constant 1.000000e-01 : f32
    %27 = vector.broadcast %cst_21 : f32 to vector<2x16xf32>
    %28 = arith.mulf %27, %24 : vector<2x16xf32>
    %29 = arith.select %26, %24, %28 : vector<2x16xi1>, vector<2x16xf32>
    %c0_22 = arith.constant 0 : index
    %c0_23 = arith.constant 0 : index
    %c0_24 = arith.constant 0 : index
    %30 = vector.load %arg3[%c0_22, %c0_23, %c0_24] : memref<2x2x16xf32, #tpu.memory_space<vmem>>, vector<1x2x16xf32>
    %31 = vector.shape_cast %30 : vector<1x2x16xf32> to vector<2x16xf32>
    %32 = vector.shape_cast %29 : vector<2x16xf32> to vector<1x2x16xf32>
    tpu.vector_store %arg3[%c0_22, %c0_23, %c0_24], %32 {strides = array<i32>} : memref<2x2x16xf32, #tpu.memory_space<vmem>>, vector<1x2x16xf32>,
    %cst_25 = arith.constant 0.000000e+00 : f32
    %33 = vector.broadcast %cst_25 : f32 to vector<2x16xf32>
    %c1_26 = arith.constant 1 : index
    %c0_27 = arith.constant 0 : index
    %c0_28 = arith.constant 0 : index
    %34 = vector.load %arg0[%c1_26, %c0_27, %c0_28] : memref<2x4x16xf32, #tpu.memory_space<vmem>>, vector<1x2x16xf32>
    %35 = vector.shape_cast %34 : vector<1x2x16xf32> to vector<2x16xf32>
    %36 = arith.truncf %35 : vector<2x16xf32> to vector<2x16xbf16>
    %c0_29 = arith.constant 0 : index
    %c0_30 = arith.constant 0 : index
    %c0_31 = arith.constant 0 : index
    %37 = vector.load %arg1[%c0_29, %c0_30, %c0_31] : memref<3x16x16xbf16, #tpu.memory_space<vmem>>, vector<1x16x16xbf16>
    %38 = vector.shape_cast %37 : vector<1x16x16xbf16> to vector<16x16xbf16>
    %cst_32 = arith.constant dense<0.000000e+00> : vector<2x16xf32>
    %39 = tpu.matmul %36, %38, %cst_32 {dimension_numbers = #tpu.dot_dimension_numbers<[1], [0], [0], [1], [0, 0, 1, 1], [], []>} : vector<2x16xbf16>, vector<16x16xbf16>, vector<2x16xf32> -> vector<2x16xf32>
    %40 = arith.addf %33, %39 : vector<2x16xf32>
    %c1_33 = arith.constant 1 : index
    %c1_34 = arith.constant 1 : index
    %c0_35 = arith.constant 0 : index
    %41 = vector.load %arg0[%c1_33, %c1_34, %c0_35] : memref<2x4x16xf32, #tpu.memory_space<vmem>>, vector<1x2x16xf32>
    %42 = vector.shape_cast %41 : vector<1x2x16xf32> to vector<2x16xf32>
    %43 = arith.truncf %42 : vector<2x16xf32> to vector<2x16xbf16>
    %c1_36 = arith.constant 1 : index
    %c0_37 = arith.constant 0 : index
    %c0_38 = arith.constant 0 : index
    %44 = vector.load %arg1[%c1_36, %c0_37, %c0_38] : memref<3x16x16xbf16, #tpu.memory_space<vmem>>, vector<1x16x16xbf16>
    %45 = vector.shape_cast %44 : vector<1x16x16xbf16> to vector<16x16xbf16>
    %cst_39 = arith.constant dense<0.000000e+00> : vector<2x16xf32>
    %46 = tpu.matmul %43, %45, %cst_39 {dimension_numbers = #tpu.dot_dimension_numbers<[1], [0], [0], [1], [0, 0, 1, 1], [], []>} : vector<2x16xbf16>, vector<16x16xbf16>, vector<2x16xf32> -> vector<2x16xf32>
    %47 = arith.addf %40, %46 : vector<2x16xf32>
    %c1_40 = arith.constant 1 : index
    %c2_41 = arith.constant 2 : index
    %c0_42 = arith.constant 0 : index
    %48 = vector.load %arg0[%c1_40, %c2_41, %c0_42] : memref<2x4x16xf32, #tpu.memory_space<vmem>>, vector<1x2x16xf32>
    %49 = vector.shape_cast %48 : vector<1x2x16xf32> to vector<2x16xf32>
    %50 = arith.truncf %49 : vector<2x16xf32> to vector<2x16xbf16>
    %c2_43 = arith.constant 2 : index
    %c0_44 = arith.constant 0 : index
    %c0_45 = arith.constant 0 : index
    %51 = vector.load %arg1[%c2_43, %c0_44, %c0_45] : memref<3x16x16xbf16, #tpu.memory_space<vmem>>, vector<1x16x16xbf16>
    %52 = vector.shape_cast %51 : vector<1x16x16xbf16> to vector<16x16xbf16>
    %cst_46 = arith.constant dense<0.000000e+00> : vector<2x16xf32>
    %53 = tpu.matmul %50, %52, %cst_46 {dimension_numbers = #tpu.dot_dimension_numbers<[1], [0], [0], [1], [0, 0, 1, 1], [], []>} : vector<2x16xbf16>, vector<16x16xbf16>, vector<2x16xf32> -> vector<2x16xf32>
    %54 = arith.addf %47, %53 : vector<2x16xf32>
    %55 = vector.broadcast %0 : vector<1x16xf32> to vector<2x16xf32>
    %56 = arith.addf %54, %55 : vector<2x16xf32>
    %cst_47 = arith.constant 0.000000e+00 : f32
    %57 = vector.broadcast %cst_47 : f32 to vector<2x16xf32>
    %58 = arith.cmpf oge, %56, %57 : vector<2x16xf32>
    %cst_48 = arith.constant 1.000000e-01 : f32
    %59 = vector.broadcast %cst_48 : f32 to vector<2x16xf32>
    %60 = arith.mulf %59, %56 : vector<2x16xf32>
    %61 = arith.select %58, %56, %60 : vector<2x16xi1>, vector<2x16xf32>
    %c1_49 = arith.constant 1 : index
    %c0_50 = arith.constant 0 : index
    %c0_51 = arith.constant 0 : index
    %62 = vector.load %arg3[%c1_49, %c0_50, %c0_51] : memref<2x2x16xf32, #tpu.memory_space<vmem>>, vector<1x2x16xf32>
    %63 = vector.shape_cast %62 : vector<1x2x16xf32> to vector<2x16xf32>
    %64 = vector.shape_cast %61 : vector<2x16xf32> to vector<1x2x16xf32>
    tpu.vector_store %arg3[%c1_49, %c0_50, %c0_51], %64 {strides = array<i32>} : memref<2x2x16xf32, #tpu.memory_space<vmem>>, vector<1x2x16xf32>,
    return
  }
}

module attributes {stable_mosaic.version = 11 : i64} {
  func.func @_rowconv_kernel(%arg0: memref<2x3x64xf32, #tpu.memory_space<vmem>>, %arg1: memref<2x64x16xbf16, #tpu.memory_space<vmem>>, %arg2: memref<1x16xf32, #tpu.memory_space<vmem>>, %arg3: memref<2x2x16xf32, #tpu.memory_space<vmem>>) attributes {dimension_semantics = [], scalar_prefetch = 0 : i64, scratch_operands = 0 : i64, tpu.core_type = #tpu.core_type<tc>} {
    %c0 = arith.constant 0 : index
    %c0_0 = arith.constant 0 : index
    %0 = vector.load %arg2[%c0, %c0_0] : memref<1x16xf32, #tpu.memory_space<vmem>>, vector<1x16xf32>
    %cst = arith.constant 0.000000e+00 : f32
    %1 = vector.broadcast %cst : f32 to vector<2x16xf32>
    %c0_1 = arith.constant 0 : index
    %c0_2 = arith.constant 0 : index
    %c0_3 = arith.constant 0 : index
    %2 = vector.load %arg0[%c0_1, %c0_2, %c0_3] : memref<2x3x64xf32, #tpu.memory_space<vmem>>, vector<1x2x64xf32>
    %3 = vector.shape_cast %2 : vector<1x2x64xf32> to vector<2x64xf32>
    %4 = arith.truncf %3 : vector<2x64xf32> to vector<2x64xbf16>
    %c0_4 = arith.constant 0 : index
    %c0_5 = arith.constant 0 : index
    %c0_6 = arith.constant 0 : index
    %5 = vector.load %arg1[%c0_4, %c0_5, %c0_6] : memref<2x64x16xbf16, #tpu.memory_space<vmem>>, vector<1x64x16xbf16>
    %6 = vector.shape_cast %5 : vector<1x64x16xbf16> to vector<64x16xbf16>
    %cst_7 = arith.constant dense<0.000000e+00> : vector<2x16xf32>
    %7 = tpu.matmul %4, %6, %cst_7 {dimension_numbers = #tpu.dot_dimension_numbers<[1], [0], [0], [1], [0, 0, 1, 1], [], []>} : vector<2x64xbf16>, vector<64x16xbf16>, vector<2x16xf32> -> vector<2x16xf32>
    %8 = arith.addf %1, %7 : vector<2x16xf32>
    %c0_8 = arith.constant 0 : index
    %c1 = arith.constant 1 : index
    %c0_9 = arith.constant 0 : index
    %9 = vector.load %arg0[%c0_8, %c1, %c0_9] : memref<2x3x64xf32, #tpu.memory_space<vmem>>, vector<1x2x64xf32>
    %10 = vector.shape_cast %9 : vector<1x2x64xf32> to vector<2x64xf32>
    %11 = arith.truncf %10 : vector<2x64xf32> to vector<2x64xbf16>
    %c1_10 = arith.constant 1 : index
    %c0_11 = arith.constant 0 : index
    %c0_12 = arith.constant 0 : index
    %12 = vector.load %arg1[%c1_10, %c0_11, %c0_12] : memref<2x64x16xbf16, #tpu.memory_space<vmem>>, vector<1x64x16xbf16>
    %13 = vector.shape_cast %12 : vector<1x64x16xbf16> to vector<64x16xbf16>
    %cst_13 = arith.constant dense<0.000000e+00> : vector<2x16xf32>
    %14 = tpu.matmul %11, %13, %cst_13 {dimension_numbers = #tpu.dot_dimension_numbers<[1], [0], [0], [1], [0, 0, 1, 1], [], []>} : vector<2x64xbf16>, vector<64x16xbf16>, vector<2x16xf32> -> vector<2x16xf32>
    %15 = arith.addf %8, %14 : vector<2x16xf32>
    %16 = vector.broadcast %0 : vector<1x16xf32> to vector<2x16xf32>
    %17 = arith.addf %15, %16 : vector<2x16xf32>
    %cst_14 = arith.constant 0.000000e+00 : f32
    %18 = vector.broadcast %cst_14 : f32 to vector<2x16xf32>
    %19 = arith.cmpf oge, %17, %18 : vector<2x16xf32>
    %cst_15 = arith.constant 1.000000e-01 : f32
    %20 = vector.broadcast %cst_15 : f32 to vector<2x16xf32>
    %21 = arith.mulf %20, %17 : vector<2x16xf32>
    %22 = arith.select %19, %17, %21 : vector<2x16xi1>, vector<2x16xf32>
    %c0_16 = arith.constant 0 : index
    %c0_17 = arith.constant 0 : index
    %c0_18 = arith.constant 0 : index
    %23 = vector.load %arg3[%c0_16, %c0_17, %c0_18] : memref<2x2x16xf32, #tpu.memory_space<vmem>>, vector<1x2x16xf32>
    %24 = vector.shape_cast %23 : vector<1x2x16xf32> to vector<2x16xf32>
    %25 = vector.shape_cast %22 : vector<2x16xf32> to vector<1x2x16xf32>
    tpu.vector_store %arg3[%c0_16, %c0_17, %c0_18], %25 {strides = array<i32>} : memref<2x2x16xf32, #tpu.memory_space<vmem>>, vector<1x2x16xf32>,
    %cst_19 = arith.constant 0.000000e+00 : f32
    %26 = vector.broadcast %cst_19 : f32 to vector<2x16xf32>
    %c1_20 = arith.constant 1 : index
    %c0_21 = arith.constant 0 : index
    %c0_22 = arith.constant 0 : index
    %27 = vector.load %arg0[%c1_20, %c0_21, %c0_22] : memref<2x3x64xf32, #tpu.memory_space<vmem>>, vector<1x2x64xf32>
    %28 = vector.shape_cast %27 : vector<1x2x64xf32> to vector<2x64xf32>
    %29 = arith.truncf %28 : vector<2x64xf32> to vector<2x64xbf16>
    %c0_23 = arith.constant 0 : index
    %c0_24 = arith.constant 0 : index
    %c0_25 = arith.constant 0 : index
    %30 = vector.load %arg1[%c0_23, %c0_24, %c0_25] : memref<2x64x16xbf16, #tpu.memory_space<vmem>>, vector<1x64x16xbf16>
    %31 = vector.shape_cast %30 : vector<1x64x16xbf16> to vector<64x16xbf16>
    %cst_26 = arith.constant dense<0.000000e+00> : vector<2x16xf32>
    %32 = tpu.matmul %29, %31, %cst_26 {dimension_numbers = #tpu.dot_dimension_numbers<[1], [0], [0], [1], [0, 0, 1, 1], [], []>} : vector<2x64xbf16>, vector<64x16xbf16>, vector<2x16xf32> -> vector<2x16xf32>
    %33 = arith.addf %26, %32 : vector<2x16xf32>
    %c1_27 = arith.constant 1 : index
    %c1_28 = arith.constant 1 : index
    %c0_29 = arith.constant 0 : index
    %34 = vector.load %arg0[%c1_27, %c1_28, %c0_29] : memref<2x3x64xf32, #tpu.memory_space<vmem>>, vector<1x2x64xf32>
    %35 = vector.shape_cast %34 : vector<1x2x64xf32> to vector<2x64xf32>
    %36 = arith.truncf %35 : vector<2x64xf32> to vector<2x64xbf16>
    %c1_30 = arith.constant 1 : index
    %c0_31 = arith.constant 0 : index
    %c0_32 = arith.constant 0 : index
    %37 = vector.load %arg1[%c1_30, %c0_31, %c0_32] : memref<2x64x16xbf16, #tpu.memory_space<vmem>>, vector<1x64x16xbf16>
    %38 = vector.shape_cast %37 : vector<1x64x16xbf16> to vector<64x16xbf16>
    %cst_33 = arith.constant dense<0.000000e+00> : vector<2x16xf32>
    %39 = tpu.matmul %36, %38, %cst_33 {dimension_numbers = #tpu.dot_dimension_numbers<[1], [0], [0], [1], [0, 0, 1, 1], [], []>} : vector<2x64xbf16>, vector<64x16xbf16>, vector<2x16xf32> -> vector<2x16xf32>
    %40 = arith.addf %33, %39 : vector<2x16xf32>
    %41 = vector.broadcast %0 : vector<1x16xf32> to vector<2x16xf32>
    %42 = arith.addf %40, %41 : vector<2x16xf32>
    %cst_34 = arith.constant 0.000000e+00 : f32
    %43 = vector.broadcast %cst_34 : f32 to vector<2x16xf32>
    %44 = arith.cmpf oge, %42, %43 : vector<2x16xf32>
    %cst_35 = arith.constant 1.000000e-01 : f32
    %45 = vector.broadcast %cst_35 : f32 to vector<2x16xf32>
    %46 = arith.mulf %45, %42 : vector<2x16xf32>
    %47 = arith.select %44, %42, %46 : vector<2x16xi1>, vector<2x16xf32>
    %c1_36 = arith.constant 1 : index
    %c0_37 = arith.constant 0 : index
    %c0_38 = arith.constant 0 : index
    %48 = vector.load %arg3[%c1_36, %c0_37, %c0_38] : memref<2x2x16xf32, #tpu.memory_space<vmem>>, vector<1x2x16xf32>
    %49 = vector.shape_cast %48 : vector<1x2x16xf32> to vector<2x16xf32>
    %50 = vector.shape_cast %47 : vector<2x16xf32> to vector<1x2x16xf32>
    tpu.vector_store %arg3[%c1_36, %c0_37, %c0_38], %50 {strides = array<i32>} : memref<2x2x16xf32, #tpu.memory_space<vmem>>, vector<1x2x16xf32>,
    return
  }
}

module attributes {stable_mosaic.version = 11 : i64} {
  func.func @_rowconv_kernel(%arg0: memref<2x4x16xf32, #tpu.memory_space<vmem>>, %arg1: memref<3x16x64xbf16, #tpu.memory_space<vmem>>, %arg2: memref<1x64xf32, #tpu.memory_space<vmem>>, %arg3: memref<2x2x64xf32, #tpu.memory_space<vmem>>) attributes {dimension_semantics = [], scalar_prefetch = 0 : i64, scratch_operands = 0 : i64, tpu.core_type = #tpu.core_type<tc>} {
    %c0 = arith.constant 0 : index
    %c0_0 = arith.constant 0 : index
    %0 = vector.load %arg2[%c0, %c0_0] : memref<1x64xf32, #tpu.memory_space<vmem>>, vector<1x64xf32>
    %cst = arith.constant 0.000000e+00 : f32
    %1 = vector.broadcast %cst : f32 to vector<2x64xf32>
    %c0_1 = arith.constant 0 : index
    %c0_2 = arith.constant 0 : index
    %c0_3 = arith.constant 0 : index
    %2 = vector.load %arg0[%c0_1, %c0_2, %c0_3] : memref<2x4x16xf32, #tpu.memory_space<vmem>>, vector<1x2x16xf32>
    %3 = vector.shape_cast %2 : vector<1x2x16xf32> to vector<2x16xf32>
    %4 = arith.truncf %3 : vector<2x16xf32> to vector<2x16xbf16>
    %c0_4 = arith.constant 0 : index
    %c0_5 = arith.constant 0 : index
    %c0_6 = arith.constant 0 : index
    %5 = vector.load %arg1[%c0_4, %c0_5, %c0_6] : memref<3x16x64xbf16, #tpu.memory_space<vmem>>, vector<1x16x64xbf16>
    %6 = vector.shape_cast %5 : vector<1x16x64xbf16> to vector<16x64xbf16>
    %cst_7 = arith.constant dense<0.000000e+00> : vector<2x64xf32>
    %7 = tpu.matmul %4, %6, %cst_7 {dimension_numbers = #tpu.dot_dimension_numbers<[1], [0], [0], [1], [0, 0, 1, 1], [], []>} : vector<2x16xbf16>, vector<16x64xbf16>, vector<2x64xf32> -> vector<2x64xf32>
    %8 = arith.addf %1, %7 : vector<2x64xf32>
    %c0_8 = arith.constant 0 : index
    %c1 = arith.constant 1 : index
    %c0_9 = arith.constant 0 : index
    %9 = vector.load %arg0[%c0_8, %c1, %c0_9] : memref<2x4x16xf32, #tpu.memory_space<vmem>>, vector<1x2x16xf32>
    %10 = vector.shape_cast %9 : vector<1x2x16xf32> to vector<2x16xf32>
    %11 = arith.truncf %10 : vector<2x16xf32> to vector<2x16xbf16>
    %c1_10 = arith.constant 1 : index
    %c0_11 = arith.constant 0 : index
    %c0_12 = arith.constant 0 : index
    %12 = vector.load %arg1[%c1_10, %c0_11, %c0_12] : memref<3x16x64xbf16, #tpu.memory_space<vmem>>, vector<1x16x64xbf16>
    %13 = vector.shape_cast %12 : vector<1x16x64xbf16> to vector<16x64xbf16>
    %cst_13 = arith.constant dense<0.000000e+00> : vector<2x64xf32>
    %14 = tpu.matmul %11, %13, %cst_13 {dimension_numbers = #tpu.dot_dimension_numbers<[1], [0], [0], [1], [0, 0, 1, 1], [], []>} : vector<2x16xbf16>, vector<16x64xbf16>, vector<2x64xf32> -> vector<2x64xf32>
    %15 = arith.addf %8, %14 : vector<2x64xf32>
    %c0_14 = arith.constant 0 : index
    %c2 = arith.constant 2 : index
    %c0_15 = arith.constant 0 : index
    %16 = vector.load %arg0[%c0_14, %c2, %c0_15] : memref<2x4x16xf32, #tpu.memory_space<vmem>>, vector<1x2x16xf32>
    %17 = vector.shape_cast %16 : vector<1x2x16xf32> to vector<2x16xf32>
    %18 = arith.truncf %17 : vector<2x16xf32> to vector<2x16xbf16>
    %c2_16 = arith.constant 2 : index
    %c0_17 = arith.constant 0 : index
    %c0_18 = arith.constant 0 : index
    %19 = vector.load %arg1[%c2_16, %c0_17, %c0_18] : memref<3x16x64xbf16, #tpu.memory_space<vmem>>, vector<1x16x64xbf16>
    %20 = vector.shape_cast %19 : vector<1x16x64xbf16> to vector<16x64xbf16>
    %cst_19 = arith.constant dense<0.000000e+00> : vector<2x64xf32>
    %21 = tpu.matmul %18, %20, %cst_19 {dimension_numbers = #tpu.dot_dimension_numbers<[1], [0], [0], [1], [0, 0, 1, 1], [], []>} : vector<2x16xbf16>, vector<16x64xbf16>, vector<2x64xf32> -> vector<2x64xf32>
    %22 = arith.addf %15, %21 : vector<2x64xf32>
    %23 = vector.broadcast %0 : vector<1x64xf32> to vector<2x64xf32>
    %24 = arith.addf %22, %23 : vector<2x64xf32>
    %cst_20 = arith.constant 0.000000e+00 : f32
    %25 = vector.broadcast %cst_20 : f32 to vector<2x64xf32>
    %26 = arith.cmpf oge, %24, %25 : vector<2x64xf32>
    %cst_21 = arith.constant 1.000000e-01 : f32
    %27 = vector.broadcast %cst_21 : f32 to vector<2x64xf32>
    %28 = arith.mulf %27, %24 : vector<2x64xf32>
    %29 = arith.select %26, %24, %28 : vector<2x64xi1>, vector<2x64xf32>
    %c0_22 = arith.constant 0 : index
    %c0_23 = arith.constant 0 : index
    %c0_24 = arith.constant 0 : index
    %30 = vector.load %arg3[%c0_22, %c0_23, %c0_24] : memref<2x2x64xf32, #tpu.memory_space<vmem>>, vector<1x2x64xf32>
    %31 = vector.shape_cast %30 : vector<1x2x64xf32> to vector<2x64xf32>
    %32 = vector.shape_cast %29 : vector<2x64xf32> to vector<1x2x64xf32>
    tpu.vector_store %arg3[%c0_22, %c0_23, %c0_24], %32 {strides = array<i32>} : memref<2x2x64xf32, #tpu.memory_space<vmem>>, vector<1x2x64xf32>,
    %cst_25 = arith.constant 0.000000e+00 : f32
    %33 = vector.broadcast %cst_25 : f32 to vector<2x64xf32>
    %c1_26 = arith.constant 1 : index
    %c0_27 = arith.constant 0 : index
    %c0_28 = arith.constant 0 : index
    %34 = vector.load %arg0[%c1_26, %c0_27, %c0_28] : memref<2x4x16xf32, #tpu.memory_space<vmem>>, vector<1x2x16xf32>
    %35 = vector.shape_cast %34 : vector<1x2x16xf32> to vector<2x16xf32>
    %36 = arith.truncf %35 : vector<2x16xf32> to vector<2x16xbf16>
    %c0_29 = arith.constant 0 : index
    %c0_30 = arith.constant 0 : index
    %c0_31 = arith.constant 0 : index
    %37 = vector.load %arg1[%c0_29, %c0_30, %c0_31] : memref<3x16x64xbf16, #tpu.memory_space<vmem>>, vector<1x16x64xbf16>
    %38 = vector.shape_cast %37 : vector<1x16x64xbf16> to vector<16x64xbf16>
    %cst_32 = arith.constant dense<0.000000e+00> : vector<2x64xf32>
    %39 = tpu.matmul %36, %38, %cst_32 {dimension_numbers = #tpu.dot_dimension_numbers<[1], [0], [0], [1], [0, 0, 1, 1], [], []>} : vector<2x16xbf16>, vector<16x64xbf16>, vector<2x64xf32> -> vector<2x64xf32>
    %40 = arith.addf %33, %39 : vector<2x64xf32>
    %c1_33 = arith.constant 1 : index
    %c1_34 = arith.constant 1 : index
    %c0_35 = arith.constant 0 : index
    %41 = vector.load %arg0[%c1_33, %c1_34, %c0_35] : memref<2x4x16xf32, #tpu.memory_space<vmem>>, vector<1x2x16xf32>
    %42 = vector.shape_cast %41 : vector<1x2x16xf32> to vector<2x16xf32>
    %43 = arith.truncf %42 : vector<2x16xf32> to vector<2x16xbf16>
    %c1_36 = arith.constant 1 : index
    %c0_37 = arith.constant 0 : index
    %c0_38 = arith.constant 0 : index
    %44 = vector.load %arg1[%c1_36, %c0_37, %c0_38] : memref<3x16x64xbf16, #tpu.memory_space<vmem>>, vector<1x16x64xbf16>
    %45 = vector.shape_cast %44 : vector<1x16x64xbf16> to vector<16x64xbf16>
    %cst_39 = arith.constant dense<0.000000e+00> : vector<2x64xf32>
    %46 = tpu.matmul %43, %45, %cst_39 {dimension_numbers = #tpu.dot_dimension_numbers<[1], [0], [0], [1], [0, 0, 1, 1], [], []>} : vector<2x16xbf16>, vector<16x64xbf16>, vector<2x64xf32> -> vector<2x64xf32>
    %47 = arith.addf %40, %46 : vector<2x64xf32>
    %c1_40 = arith.constant 1 : index
    %c2_41 = arith.constant 2 : index
    %c0_42 = arith.constant 0 : index
    %48 = vector.load %arg0[%c1_40, %c2_41, %c0_42] : memref<2x4x16xf32, #tpu.memory_space<vmem>>, vector<1x2x16xf32>
    %49 = vector.shape_cast %48 : vector<1x2x16xf32> to vector<2x16xf32>
    %50 = arith.truncf %49 : vector<2x16xf32> to vector<2x16xbf16>
    %c2_43 = arith.constant 2 : index
    %c0_44 = arith.constant 0 : index
    %c0_45 = arith.constant 0 : index
    %51 = vector.load %arg1[%c2_43, %c0_44, %c0_45] : memref<3x16x64xbf16, #tpu.memory_space<vmem>>, vector<1x16x64xbf16>
    %52 = vector.shape_cast %51 : vector<1x16x64xbf16> to vector<16x64xbf16>
    %cst_46 = arith.constant dense<0.000000e+00> : vector<2x64xf32>
    %53 = tpu.matmul %50, %52, %cst_46 {dimension_numbers = #tpu.dot_dimension_numbers<[1], [0], [0], [1], [0, 0, 1, 1], [], []>} : vector<2x16xbf16>, vector<16x64xbf16>, vector<2x64xf32> -> vector<2x64xf32>
    %54 = arith.addf %47, %53 : vector<2x64xf32>
    %55 = vector.broadcast %0 : vector<1x64xf32> to vector<2x64xf32>
    %56 = arith.addf %54, %55 : vector<2x64xf32>
    %cst_47 = arith.constant 0.000000e+00 : f32
    %57 = vector.broadcast %cst_47 : f32 to vector<2x64xf32>
    %58 = arith.cmpf oge, %56, %57 : vector<2x64xf32>
    %cst_48 = arith.constant 1.000000e-01 : f32
    %59 = vector.broadcast %cst_48 : f32 to vector<2x64xf32>
    %60 = arith.mulf %59, %56 : vector<2x64xf32>
    %61 = arith.select %58, %56, %60 : vector<2x64xi1>, vector<2x64xf32>
    %c1_49 = arith.constant 1 : index
    %c0_50 = arith.constant 0 : index
    %c0_51 = arith.constant 0 : index
    %62 = vector.load %arg3[%c1_49, %c0_50, %c0_51] : memref<2x2x64xf32, #tpu.memory_space<vmem>>, vector<1x2x64xf32>
    %63 = vector.shape_cast %62 : vector<1x2x64xf32> to vector<2x64xf32>
    %64 = vector.shape_cast %61 : vector<2x64xf32> to vector<1x2x64xf32>
    tpu.vector_store %arg3[%c1_49, %c0_50, %c0_51], %64 {strides = array<i32>} : memref<2x2x64xf32, #tpu.memory_space<vmem>>, vector<1x2x64xf32>,
    return
  }
}

module attributes {stable_mosaic.version = 11 : i64} {
  func.func @_rowconv_kernel(%arg0: memref<2x6x64xf32, #tpu.memory_space<vmem>>, %arg1: memref<3x64x128xbf16, #tpu.memory_space<vmem>>, %arg2: memref<1x128xf32, #tpu.memory_space<vmem>>, %arg3: memref<2x4x128xf32, #tpu.memory_space<vmem>>) attributes {dimension_semantics = [], scalar_prefetch = 0 : i64, scratch_operands = 0 : i64, tpu.core_type = #tpu.core_type<tc>} {
    %c0 = arith.constant 0 : index
    %c0_0 = arith.constant 0 : index
    %0 = vector.load %arg2[%c0, %c0_0] : memref<1x128xf32, #tpu.memory_space<vmem>>, vector<1x128xf32>
    %cst = arith.constant 0.000000e+00 : f32
    %1 = vector.broadcast %cst : f32 to vector<4x128xf32>
    %c0_1 = arith.constant 0 : index
    %c0_2 = arith.constant 0 : index
    %c0_3 = arith.constant 0 : index
    %2 = vector.load %arg0[%c0_1, %c0_2, %c0_3] : memref<2x6x64xf32, #tpu.memory_space<vmem>>, vector<1x4x64xf32>
    %3 = vector.shape_cast %2 : vector<1x4x64xf32> to vector<4x64xf32>
    %4 = arith.truncf %3 : vector<4x64xf32> to vector<4x64xbf16>
    %c0_4 = arith.constant 0 : index
    %c0_5 = arith.constant 0 : index
    %c0_6 = arith.constant 0 : index
    %5 = vector.load %arg1[%c0_4, %c0_5, %c0_6] : memref<3x64x128xbf16, #tpu.memory_space<vmem>>, vector<1x64x128xbf16>
    %6 = vector.shape_cast %5 : vector<1x64x128xbf16> to vector<64x128xbf16>
    %cst_7 = arith.constant dense<0.000000e+00> : vector<4x128xf32>
    %7 = tpu.matmul %4, %6, %cst_7 {dimension_numbers = #tpu.dot_dimension_numbers<[1], [0], [0], [1], [0, 0, 1, 1], [], []>} : vector<4x64xbf16>, vector<64x128xbf16>, vector<4x128xf32> -> vector<4x128xf32>
    %8 = arith.addf %1, %7 : vector<4x128xf32>
    %c0_8 = arith.constant 0 : index
    %c1 = arith.constant 1 : index
    %c0_9 = arith.constant 0 : index
    %9 = vector.load %arg0[%c0_8, %c1, %c0_9] : memref<2x6x64xf32, #tpu.memory_space<vmem>>, vector<1x4x64xf32>
    %10 = vector.shape_cast %9 : vector<1x4x64xf32> to vector<4x64xf32>
    %11 = arith.truncf %10 : vector<4x64xf32> to vector<4x64xbf16>
    %c1_10 = arith.constant 1 : index
    %c0_11 = arith.constant 0 : index
    %c0_12 = arith.constant 0 : index
    %12 = vector.load %arg1[%c1_10, %c0_11, %c0_12] : memref<3x64x128xbf16, #tpu.memory_space<vmem>>, vector<1x64x128xbf16>
    %13 = vector.shape_cast %12 : vector<1x64x128xbf16> to vector<64x128xbf16>
    %cst_13 = arith.constant dense<0.000000e+00> : vector<4x128xf32>
    %14 = tpu.matmul %11, %13, %cst_13 {dimension_numbers = #tpu.dot_dimension_numbers<[1], [0], [0], [1], [0, 0, 1, 1], [], []>} : vector<4x64xbf16>, vector<64x128xbf16>, vector<4x128xf32> -> vector<4x128xf32>
    %15 = arith.addf %8, %14 : vector<4x128xf32>
    %c0_14 = arith.constant 0 : index
    %c2 = arith.constant 2 : index
    %c0_15 = arith.constant 0 : index
    %16 = vector.load %arg0[%c0_14, %c2, %c0_15] : memref<2x6x64xf32, #tpu.memory_space<vmem>>, vector<1x4x64xf32>
    %17 = vector.shape_cast %16 : vector<1x4x64xf32> to vector<4x64xf32>
    %18 = arith.truncf %17 : vector<4x64xf32> to vector<4x64xbf16>
    %c2_16 = arith.constant 2 : index
    %c0_17 = arith.constant 0 : index
    %c0_18 = arith.constant 0 : index
    %19 = vector.load %arg1[%c2_16, %c0_17, %c0_18] : memref<3x64x128xbf16, #tpu.memory_space<vmem>>, vector<1x64x128xbf16>
    %20 = vector.shape_cast %19 : vector<1x64x128xbf16> to vector<64x128xbf16>
    %cst_19 = arith.constant dense<0.000000e+00> : vector<4x128xf32>
    %21 = tpu.matmul %18, %20, %cst_19 {dimension_numbers = #tpu.dot_dimension_numbers<[1], [0], [0], [1], [0, 0, 1, 1], [], []>} : vector<4x64xbf16>, vector<64x128xbf16>, vector<4x128xf32> -> vector<4x128xf32>
    %22 = arith.addf %15, %21 : vector<4x128xf32>
    %23 = vector.broadcast %0 : vector<1x128xf32> to vector<4x128xf32>
    %24 = arith.addf %22, %23 : vector<4x128xf32>
    %cst_20 = arith.constant 0.000000e+00 : f32
    %25 = vector.broadcast %cst_20 : f32 to vector<4x128xf32>
    %26 = arith.cmpf oge, %24, %25 : vector<4x128xf32>
    %cst_21 = arith.constant 1.000000e-01 : f32
    %27 = vector.broadcast %cst_21 : f32 to vector<4x128xf32>
    %28 = arith.mulf %27, %24 : vector<4x128xf32>
    %29 = arith.select %26, %24, %28 : vector<4x128xi1>, vector<4x128xf32>
    %c0_22 = arith.constant 0 : index
    %c0_23 = arith.constant 0 : index
    %c0_24 = arith.constant 0 : index
    %30 = vector.load %arg3[%c0_22, %c0_23, %c0_24] : memref<2x4x128xf32, #tpu.memory_space<vmem>>, vector<1x4x128xf32>
    %31 = vector.shape_cast %30 : vector<1x4x128xf32> to vector<4x128xf32>
    %32 = vector.shape_cast %29 : vector<4x128xf32> to vector<1x4x128xf32>
    tpu.vector_store %arg3[%c0_22, %c0_23, %c0_24], %32 {strides = array<i32>} : memref<2x4x128xf32, #tpu.memory_space<vmem>>, vector<1x4x128xf32>,
    %cst_25 = arith.constant 0.000000e+00 : f32
    %33 = vector.broadcast %cst_25 : f32 to vector<4x128xf32>
    %c1_26 = arith.constant 1 : index
    %c0_27 = arith.constant 0 : index
    %c0_28 = arith.constant 0 : index
    %34 = vector.load %arg0[%c1_26, %c0_27, %c0_28] : memref<2x6x64xf32, #tpu.memory_space<vmem>>, vector<1x4x64xf32>
    %35 = vector.shape_cast %34 : vector<1x4x64xf32> to vector<4x64xf32>
    %36 = arith.truncf %35 : vector<4x64xf32> to vector<4x64xbf16>
    %c0_29 = arith.constant 0 : index
    %c0_30 = arith.constant 0 : index
    %c0_31 = arith.constant 0 : index
    %37 = vector.load %arg1[%c0_29, %c0_30, %c0_31] : memref<3x64x128xbf16, #tpu.memory_space<vmem>>, vector<1x64x128xbf16>
    %38 = vector.shape_cast %37 : vector<1x64x128xbf16> to vector<64x128xbf16>
    %cst_32 = arith.constant dense<0.000000e+00> : vector<4x128xf32>
    %39 = tpu.matmul %36, %38, %cst_32 {dimension_numbers = #tpu.dot_dimension_numbers<[1], [0], [0], [1], [0, 0, 1, 1], [], []>} : vector<4x64xbf16>, vector<64x128xbf16>, vector<4x128xf32> -> vector<4x128xf32>
    %40 = arith.addf %33, %39 : vector<4x128xf32>
    %c1_33 = arith.constant 1 : index
    %c1_34 = arith.constant 1 : index
    %c0_35 = arith.constant 0 : index
    %41 = vector.load %arg0[%c1_33, %c1_34, %c0_35] : memref<2x6x64xf32, #tpu.memory_space<vmem>>, vector<1x4x64xf32>
    %42 = vector.shape_cast %41 : vector<1x4x64xf32> to vector<4x64xf32>
    %43 = arith.truncf %42 : vector<4x64xf32> to vector<4x64xbf16>
    %c1_36 = arith.constant 1 : index
    %c0_37 = arith.constant 0 : index
    %c0_38 = arith.constant 0 : index
    %44 = vector.load %arg1[%c1_36, %c0_37, %c0_38] : memref<3x64x128xbf16, #tpu.memory_space<vmem>>, vector<1x64x128xbf16>
    %45 = vector.shape_cast %44 : vector<1x64x128xbf16> to vector<64x128xbf16>
    %cst_39 = arith.constant dense<0.000000e+00> : vector<4x128xf32>
    %46 = tpu.matmul %43, %45, %cst_39 {dimension_numbers = #tpu.dot_dimension_numbers<[1], [0], [0], [1], [0, 0, 1, 1], [], []>} : vector<4x64xbf16>, vector<64x128xbf16>, vector<4x128xf32> -> vector<4x128xf32>
    %47 = arith.addf %40, %46 : vector<4x128xf32>
    %c1_40 = arith.constant 1 : index
    %c2_41 = arith.constant 2 : index
    %c0_42 = arith.constant 0 : index
    %48 = vector.load %arg0[%c1_40, %c2_41, %c0_42] : memref<2x6x64xf32, #tpu.memory_space<vmem>>, vector<1x4x64xf32>
    %49 = vector.shape_cast %48 : vector<1x4x64xf32> to vector<4x64xf32>
    %50 = arith.truncf %49 : vector<4x64xf32> to vector<4x64xbf16>
    %c2_43 = arith.constant 2 : index
    %c0_44 = arith.constant 0 : index
    %c0_45 = arith.constant 0 : index
    %51 = vector.load %arg1[%c2_43, %c0_44, %c0_45] : memref<3x64x128xbf16, #tpu.memory_space<vmem>>, vector<1x64x128xbf16>
    %52 = vector.shape_cast %51 : vector<1x64x128xbf16> to vector<64x128xbf16>
    %cst_46 = arith.constant dense<0.000000e+00> : vector<4x128xf32>
    %53 = tpu.matmul %50, %52, %cst_46 {dimension_numbers = #tpu.dot_dimension_numbers<[1], [0], [0], [1], [0, 0, 1, 1], [], []>} : vector<4x64xbf16>, vector<64x128xbf16>, vector<4x128xf32> -> vector<4x128xf32>
    %54 = arith.addf %47, %53 : vector<4x128xf32>
    %55 = vector.broadcast %0 : vector<1x128xf32> to vector<4x128xf32>
    %56 = arith.addf %54, %55 : vector<4x128xf32>
    %cst_47 = arith.constant 0.000000e+00 : f32
    %57 = vector.broadcast %cst_47 : f32 to vector<4x128xf32>
    %58 = arith.cmpf oge, %56, %57 : vector<4x128xf32>
    %cst_48 = arith.constant 1.000000e-01 : f32
    %59 = vector.broadcast %cst_48 : f32 to vector<4x128xf32>
    %60 = arith.mulf %59, %56 : vector<4x128xf32>
    %61 = arith.select %58, %56, %60 : vector<4x128xi1>, vector<4x128xf32>
    %c1_49 = arith.constant 1 : index
    %c0_50 = arith.constant 0 : index
    %c0_51 = arith.constant 0 : index
    %62 = vector.load %arg3[%c1_49, %c0_50, %c0_51] : memref<2x4x128xf32, #tpu.memory_space<vmem>>, vector<1x4x128xf32>
    %63 = vector.shape_cast %62 : vector<1x4x128xf32> to vector<4x128xf32>
    %64 = vector.shape_cast %61 : vector<4x128xf32> to vector<1x4x128xf32>
    tpu.vector_store %arg3[%c1_49, %c0_50, %c0_51], %64 {strides = array<i32>} : memref<2x4x128xf32, #tpu.memory_space<vmem>>, vector<1x4x128xf32>,
    return
  }
}

module attributes {stable_mosaic.version = 11 : i64} {
  func.func @_rowconv_kernel(%arg0: memref<2x10x128xf32, #tpu.memory_space<vmem>>, %arg1: memref<3x128x256xbf16, #tpu.memory_space<vmem>>, %arg2: memref<1x256xf32, #tpu.memory_space<vmem>>, %arg3: memref<2x8x256xf32, #tpu.memory_space<vmem>>) attributes {dimension_semantics = [], scalar_prefetch = 0 : i64, scratch_operands = 0 : i64, tpu.core_type = #tpu.core_type<tc>} {
    %c0 = arith.constant 0 : index
    %c0_0 = arith.constant 0 : index
    %0 = vector.load %arg2[%c0, %c0_0] : memref<1x256xf32, #tpu.memory_space<vmem>>, vector<1x256xf32>
    %cst = arith.constant 0.000000e+00 : f32
    %1 = vector.broadcast %cst : f32 to vector<8x256xf32>
    %c0_1 = arith.constant 0 : index
    %c0_2 = arith.constant 0 : index
    %c0_3 = arith.constant 0 : index
    %2 = vector.load %arg0[%c0_1, %c0_2, %c0_3] : memref<2x10x128xf32, #tpu.memory_space<vmem>>, vector<1x8x128xf32>
    %3 = vector.shape_cast %2 : vector<1x8x128xf32> to vector<8x128xf32>
    %4 = arith.truncf %3 : vector<8x128xf32> to vector<8x128xbf16>
    %c0_4 = arith.constant 0 : index
    %c0_5 = arith.constant 0 : index
    %c0_6 = arith.constant 0 : index
    %5 = vector.load %arg1[%c0_4, %c0_5, %c0_6] : memref<3x128x256xbf16, #tpu.memory_space<vmem>>, vector<1x128x256xbf16>
    %6 = vector.shape_cast %5 : vector<1x128x256xbf16> to vector<128x256xbf16>
    %cst_7 = arith.constant dense<0.000000e+00> : vector<8x256xf32>
    %7 = tpu.matmul %4, %6, %cst_7 {dimension_numbers = #tpu.dot_dimension_numbers<[1], [0], [0], [1], [0, 0, 1, 1], [], []>} : vector<8x128xbf16>, vector<128x256xbf16>, vector<8x256xf32> -> vector<8x256xf32>
    %8 = arith.addf %1, %7 : vector<8x256xf32>
    %c0_8 = arith.constant 0 : index
    %c1 = arith.constant 1 : index
    %c0_9 = arith.constant 0 : index
    %9 = vector.load %arg0[%c0_8, %c1, %c0_9] : memref<2x10x128xf32, #tpu.memory_space<vmem>>, vector<1x8x128xf32>
    %10 = vector.shape_cast %9 : vector<1x8x128xf32> to vector<8x128xf32>
    %11 = arith.truncf %10 : vector<8x128xf32> to vector<8x128xbf16>
    %c1_10 = arith.constant 1 : index
    %c0_11 = arith.constant 0 : index
    %c0_12 = arith.constant 0 : index
    %12 = vector.load %arg1[%c1_10, %c0_11, %c0_12] : memref<3x128x256xbf16, #tpu.memory_space<vmem>>, vector<1x128x256xbf16>
    %13 = vector.shape_cast %12 : vector<1x128x256xbf16> to vector<128x256xbf16>
    %cst_13 = arith.constant dense<0.000000e+00> : vector<8x256xf32>
    %14 = tpu.matmul %11, %13, %cst_13 {dimension_numbers = #tpu.dot_dimension_numbers<[1], [0], [0], [1], [0, 0, 1, 1], [], []>} : vector<8x128xbf16>, vector<128x256xbf16>, vector<8x256xf32> -> vector<8x256xf32>
    %15 = arith.addf %8, %14 : vector<8x256xf32>
    %c0_14 = arith.constant 0 : index
    %c2 = arith.constant 2 : index
    %c0_15 = arith.constant 0 : index
    %16 = vector.load %arg0[%c0_14, %c2, %c0_15] : memref<2x10x128xf32, #tpu.memory_space<vmem>>, vector<1x8x128xf32>
    %17 = vector.shape_cast %16 : vector<1x8x128xf32> to vector<8x128xf32>
    %18 = arith.truncf %17 : vector<8x128xf32> to vector<8x128xbf16>
    %c2_16 = arith.constant 2 : index
    %c0_17 = arith.constant 0 : index
    %c0_18 = arith.constant 0 : index
    %19 = vector.load %arg1[%c2_16, %c0_17, %c0_18] : memref<3x128x256xbf16, #tpu.memory_space<vmem>>, vector<1x128x256xbf16>
    %20 = vector.shape_cast %19 : vector<1x128x256xbf16> to vector<128x256xbf16>
    %cst_19 = arith.constant dense<0.000000e+00> : vector<8x256xf32>
    %21 = tpu.matmul %18, %20, %cst_19 {dimension_numbers = #tpu.dot_dimension_numbers<[1], [0], [0], [1], [0, 0, 1, 1], [], []>} : vector<8x128xbf16>, vector<128x256xbf16>, vector<8x256xf32> -> vector<8x256xf32>
    %22 = arith.addf %15, %21 : vector<8x256xf32>
    %23 = vector.broadcast %0 : vector<1x256xf32> to vector<8x256xf32>
    %24 = arith.addf %22, %23 : vector<8x256xf32>
    %cst_20 = arith.constant 0.000000e+00 : f32
    %25 = vector.broadcast %cst_20 : f32 to vector<8x256xf32>
    %26 = arith.cmpf oge, %24, %25 : vector<8x256xf32>
    %cst_21 = arith.constant 1.000000e-01 : f32
    %27 = vector.broadcast %cst_21 : f32 to vector<8x256xf32>
    %28 = arith.mulf %27, %24 : vector<8x256xf32>
    %29 = arith.select %26, %24, %28 : vector<8x256xi1>, vector<8x256xf32>
    %c0_22 = arith.constant 0 : index
    %c0_23 = arith.constant 0 : index
    %c0_24 = arith.constant 0 : index
    %30 = vector.load %arg3[%c0_22, %c0_23, %c0_24] : memref<2x8x256xf32, #tpu.memory_space<vmem>>, vector<1x8x256xf32>
    %31 = vector.shape_cast %30 : vector<1x8x256xf32> to vector<8x256xf32>
    %32 = vector.shape_cast %29 : vector<8x256xf32> to vector<1x8x256xf32>
    tpu.vector_store %arg3[%c0_22, %c0_23, %c0_24], %32 {strides = array<i32>} : memref<2x8x256xf32, #tpu.memory_space<vmem>>, vector<1x8x256xf32>,
    %cst_25 = arith.constant 0.000000e+00 : f32
    %33 = vector.broadcast %cst_25 : f32 to vector<8x256xf32>
    %c1_26 = arith.constant 1 : index
    %c0_27 = arith.constant 0 : index
    %c0_28 = arith.constant 0 : index
    %34 = vector.load %arg0[%c1_26, %c0_27, %c0_28] : memref<2x10x128xf32, #tpu.memory_space<vmem>>, vector<1x8x128xf32>
    %35 = vector.shape_cast %34 : vector<1x8x128xf32> to vector<8x128xf32>
    %36 = arith.truncf %35 : vector<8x128xf32> to vector<8x128xbf16>
    %c0_29 = arith.constant 0 : index
    %c0_30 = arith.constant 0 : index
    %c0_31 = arith.constant 0 : index
    %37 = vector.load %arg1[%c0_29, %c0_30, %c0_31] : memref<3x128x256xbf16, #tpu.memory_space<vmem>>, vector<1x128x256xbf16>
    %38 = vector.shape_cast %37 : vector<1x128x256xbf16> to vector<128x256xbf16>
    %cst_32 = arith.constant dense<0.000000e+00> : vector<8x256xf32>
    %39 = tpu.matmul %36, %38, %cst_32 {dimension_numbers = #tpu.dot_dimension_numbers<[1], [0], [0], [1], [0, 0, 1, 1], [], []>} : vector<8x128xbf16>, vector<128x256xbf16>, vector<8x256xf32> -> vector<8x256xf32>
    %40 = arith.addf %33, %39 : vector<8x256xf32>
    %c1_33 = arith.constant 1 : index
    %c1_34 = arith.constant 1 : index
    %c0_35 = arith.constant 0 : index
    %41 = vector.load %arg0[%c1_33, %c1_34, %c0_35] : memref<2x10x128xf32, #tpu.memory_space<vmem>>, vector<1x8x128xf32>
    %42 = vector.shape_cast %41 : vector<1x8x128xf32> to vector<8x128xf32>
    %43 = arith.truncf %42 : vector<8x128xf32> to vector<8x128xbf16>
    %c1_36 = arith.constant 1 : index
    %c0_37 = arith.constant 0 : index
    %c0_38 = arith.constant 0 : index
    %44 = vector.load %arg1[%c1_36, %c0_37, %c0_38] : memref<3x128x256xbf16, #tpu.memory_space<vmem>>, vector<1x128x256xbf16>
    %45 = vector.shape_cast %44 : vector<1x128x256xbf16> to vector<128x256xbf16>
    %cst_39 = arith.constant dense<0.000000e+00> : vector<8x256xf32>
    %46 = tpu.matmul %43, %45, %cst_39 {dimension_numbers = #tpu.dot_dimension_numbers<[1], [0], [0], [1], [0, 0, 1, 1], [], []>} : vector<8x128xbf16>, vector<128x256xbf16>, vector<8x256xf32> -> vector<8x256xf32>
    %47 = arith.addf %40, %46 : vector<8x256xf32>
    %c1_40 = arith.constant 1 : index
    %c2_41 = arith.constant 2 : index
    %c0_42 = arith.constant 0 : index
    %48 = vector.load %arg0[%c1_40, %c2_41, %c0_42] : memref<2x10x128xf32, #tpu.memory_space<vmem>>, vector<1x8x128xf32>
    %49 = vector.shape_cast %48 : vector<1x8x128xf32> to vector<8x128xf32>
    %50 = arith.truncf %49 : vector<8x128xf32> to vector<8x128xbf16>
    %c2_43 = arith.constant 2 : index
    %c0_44 = arith.constant 0 : index
    %c0_45 = arith.constant 0 : index
    %51 = vector.load %arg1[%c2_43, %c0_44, %c0_45] : memref<3x128x256xbf16, #tpu.memory_space<vmem>>, vector<1x128x256xbf16>
    %52 = vector.shape_cast %51 : vector<1x128x256xbf16> to vector<128x256xbf16>
    %cst_46 = arith.constant dense<0.000000e+00> : vector<8x256xf32>
    %53 = tpu.matmul %50, %52, %cst_46 {dimension_numbers = #tpu.dot_dimension_numbers<[1], [0], [0], [1], [0, 0, 1, 1], [], []>} : vector<8x128xbf16>, vector<128x256xbf16>, vector<8x256xf32> -> vector<8x256xf32>
    %54 = arith.addf %47, %53 : vector<8x256xf32>
    %55 = vector.broadcast %0 : vector<1x256xf32> to vector<8x256xf32>
    %56 = arith.addf %54, %55 : vector<8x256xf32>
    %cst_47 = arith.constant 0.000000e+00 : f32
    %57 = vector.broadcast %cst_47 : f32 to vector<8x256xf32>
    %58 = arith.cmpf oge, %56, %57 : vector<8x256xf32>
    %cst_48 = arith.constant 1.000000e-01 : f32
    %59 = vector.broadcast %cst_48 : f32 to vector<8x256xf32>
    %60 = arith.mulf %59, %56 : vector<8x256xf32>
    %61 = arith.select %58, %56, %60 : vector<8x256xi1>, vector<8x256xf32>
    %c1_49 = arith.constant 1 : index
    %c0_50 = arith.constant 0 : index
    %c0_51 = arith.constant 0 : index
    %62 = vector.load %arg3[%c1_49, %c0_50, %c0_51] : memref<2x8x256xf32, #tpu.memory_space<vmem>>, vector<1x8x256xf32>
    %63 = vector.shape_cast %62 : vector<1x8x256xf32> to vector<8x256xf32>
    %64 = vector.shape_cast %61 : vector<8x256xf32> to vector<1x8x256xf32>
    tpu.vector_store %arg3[%c1_49, %c0_50, %c0_51], %64 {strides = array<i32>} : memref<2x8x256xf32, #tpu.memory_space<vmem>>, vector<1x8x256xf32>,
    return
  }
}

module attributes {stable_mosaic.version = 11 : i64} {
  func.func @_rowconv_kernel(%arg0: memref<2x18x256xf32, #tpu.memory_space<vmem>>, %arg1: memref<3x256x128xbf16, #tpu.memory_space<vmem>>, %arg2: memref<1x128xf32, #tpu.memory_space<vmem>>, %arg3: memref<2x16x128xf32, #tpu.memory_space<vmem>>) attributes {dimension_semantics = [], scalar_prefetch = 0 : i64, scratch_operands = 0 : i64, tpu.core_type = #tpu.core_type<tc>} {
    %c0 = arith.constant 0 : index
    %c0_0 = arith.constant 0 : index
    %0 = vector.load %arg2[%c0, %c0_0] : memref<1x128xf32, #tpu.memory_space<vmem>>, vector<1x128xf32>
    %cst = arith.constant 0.000000e+00 : f32
    %1 = vector.broadcast %cst : f32 to vector<16x128xf32>
    %c0_1 = arith.constant 0 : index
    %c0_2 = arith.constant 0 : index
    %c0_3 = arith.constant 0 : index
    %2 = vector.load %arg0[%c0_1, %c0_2, %c0_3] : memref<2x18x256xf32, #tpu.memory_space<vmem>>, vector<1x16x256xf32>
    %3 = vector.shape_cast %2 : vector<1x16x256xf32> to vector<16x256xf32>
    %4 = arith.truncf %3 : vector<16x256xf32> to vector<16x256xbf16>
    %c0_4 = arith.constant 0 : index
    %c0_5 = arith.constant 0 : index
    %c0_6 = arith.constant 0 : index
    %5 = vector.load %arg1[%c0_4, %c0_5, %c0_6] : memref<3x256x128xbf16, #tpu.memory_space<vmem>>, vector<1x256x128xbf16>
    %6 = vector.shape_cast %5 : vector<1x256x128xbf16> to vector<256x128xbf16>
    %cst_7 = arith.constant dense<0.000000e+00> : vector<16x128xf32>
    %7 = tpu.matmul %4, %6, %cst_7 {dimension_numbers = #tpu.dot_dimension_numbers<[1], [0], [0], [1], [0, 0, 1, 1], [], []>} : vector<16x256xbf16>, vector<256x128xbf16>, vector<16x128xf32> -> vector<16x128xf32>
    %8 = arith.addf %1, %7 : vector<16x128xf32>
    %c0_8 = arith.constant 0 : index
    %c1 = arith.constant 1 : index
    %c0_9 = arith.constant 0 : index
    %9 = vector.load %arg0[%c0_8, %c1, %c0_9] : memref<2x18x256xf32, #tpu.memory_space<vmem>>, vector<1x16x256xf32>
    %10 = vector.shape_cast %9 : vector<1x16x256xf32> to vector<16x256xf32>
    %11 = arith.truncf %10 : vector<16x256xf32> to vector<16x256xbf16>
    %c1_10 = arith.constant 1 : index
    %c0_11 = arith.constant 0 : index
    %c0_12 = arith.constant 0 : index
    %12 = vector.load %arg1[%c1_10, %c0_11, %c0_12] : memref<3x256x128xbf16, #tpu.memory_space<vmem>>, vector<1x256x128xbf16>
    %13 = vector.shape_cast %12 : vector<1x256x128xbf16> to vector<256x128xbf16>
    %cst_13 = arith.constant dense<0.000000e+00> : vector<16x128xf32>
    %14 = tpu.matmul %11, %13, %cst_13 {dimension_numbers = #tpu.dot_dimension_numbers<[1], [0], [0], [1], [0, 0, 1, 1], [], []>} : vector<16x256xbf16>, vector<256x128xbf16>, vector<16x128xf32> -> vector<16x128xf32>
    %15 = arith.addf %8, %14 : vector<16x128xf32>
    %c0_14 = arith.constant 0 : index
    %c2 = arith.constant 2 : index
    %c0_15 = arith.constant 0 : index
    %16 = vector.load %arg0[%c0_14, %c2, %c0_15] : memref<2x18x256xf32, #tpu.memory_space<vmem>>, vector<1x16x256xf32>
    %17 = vector.shape_cast %16 : vector<1x16x256xf32> to vector<16x256xf32>
    %18 = arith.truncf %17 : vector<16x256xf32> to vector<16x256xbf16>
    %c2_16 = arith.constant 2 : index
    %c0_17 = arith.constant 0 : index
    %c0_18 = arith.constant 0 : index
    %19 = vector.load %arg1[%c2_16, %c0_17, %c0_18] : memref<3x256x128xbf16, #tpu.memory_space<vmem>>, vector<1x256x128xbf16>
    %20 = vector.shape_cast %19 : vector<1x256x128xbf16> to vector<256x128xbf16>
    %cst_19 = arith.constant dense<0.000000e+00> : vector<16x128xf32>
    %21 = tpu.matmul %18, %20, %cst_19 {dimension_numbers = #tpu.dot_dimension_numbers<[1], [0], [0], [1], [0, 0, 1, 1], [], []>} : vector<16x256xbf16>, vector<256x128xbf16>, vector<16x128xf32> -> vector<16x128xf32>
    %22 = arith.addf %15, %21 : vector<16x128xf32>
    %23 = vector.broadcast %0 : vector<1x128xf32> to vector<16x128xf32>
    %24 = arith.addf %22, %23 : vector<16x128xf32>
    %c0_20 = arith.constant 0 : index
    %c0_21 = arith.constant 0 : index
    %c0_22 = arith.constant 0 : index
    %25 = vector.load %arg3[%c0_20, %c0_21, %c0_22] : memref<2x16x128xf32, #tpu.memory_space<vmem>>, vector<1x16x128xf32>
    %26 = vector.shape_cast %25 : vector<1x16x128xf32> to vector<16x128xf32>
    %27 = vector.shape_cast %24 : vector<16x128xf32> to vector<1x16x128xf32>
    tpu.vector_store %arg3[%c0_20, %c0_21, %c0_22], %27 {strides = array<i32>} : memref<2x16x128xf32, #tpu.memory_space<vmem>>, vector<1x16x128xf32>,
    %cst_23 = arith.constant 0.000000e+00 : f32
    %28 = vector.broadcast %cst_23 : f32 to vector<16x128xf32>
    %c1_24 = arith.constant 1 : index
    %c0_25 = arith.constant 0 : index
    %c0_26 = arith.constant 0 : index
    %29 = vector.load %arg0[%c1_24, %c0_25, %c0_26] : memref<2x18x256xf32, #tpu.memory_space<vmem>>, vector<1x16x256xf32>
    %30 = vector.shape_cast %29 : vector<1x16x256xf32> to vector<16x256xf32>
    %31 = arith.truncf %30 : vector<16x256xf32> to vector<16x256xbf16>
    %c0_27 = arith.constant 0 : index
    %c0_28 = arith.constant 0 : index
    %c0_29 = arith.constant 0 : index
    %32 = vector.load %arg1[%c0_27, %c0_28, %c0_29] : memref<3x256x128xbf16, #tpu.memory_space<vmem>>, vector<1x256x128xbf16>
    %33 = vector.shape_cast %32 : vector<1x256x128xbf16> to vector<256x128xbf16>
    %cst_30 = arith.constant dense<0.000000e+00> : vector<16x128xf32>
    %34 = tpu.matmul %31, %33, %cst_30 {dimension_numbers = #tpu.dot_dimension_numbers<[1], [0], [0], [1], [0, 0, 1, 1], [], []>} : vector<16x256xbf16>, vector<256x128xbf16>, vector<16x128xf32> -> vector<16x128xf32>
    %35 = arith.addf %28, %34 : vector<16x128xf32>
    %c1_31 = arith.constant 1 : index
    %c1_32 = arith.constant 1 : index
    %c0_33 = arith.constant 0 : index
    %36 = vector.load %arg0[%c1_31, %c1_32, %c0_33] : memref<2x18x256xf32, #tpu.memory_space<vmem>>, vector<1x16x256xf32>
    %37 = vector.shape_cast %36 : vector<1x16x256xf32> to vector<16x256xf32>
    %38 = arith.truncf %37 : vector<16x256xf32> to vector<16x256xbf16>
    %c1_34 = arith.constant 1 : index
    %c0_35 = arith.constant 0 : index
    %c0_36 = arith.constant 0 : index
    %39 = vector.load %arg1[%c1_34, %c0_35, %c0_36] : memref<3x256x128xbf16, #tpu.memory_space<vmem>>, vector<1x256x128xbf16>
    %40 = vector.shape_cast %39 : vector<1x256x128xbf16> to vector<256x128xbf16>
    %cst_37 = arith.constant dense<0.000000e+00> : vector<16x128xf32>
    %41 = tpu.matmul %38, %40, %cst_37 {dimension_numbers = #tpu.dot_dimension_numbers<[1], [0], [0], [1], [0, 0, 1, 1], [], []>} : vector<16x256xbf16>, vector<256x128xbf16>, vector<16x128xf32> -> vector<16x128xf32>
    %42 = arith.addf %35, %41 : vector<16x128xf32>
    %c1_38 = arith.constant 1 : index
    %c2_39 = arith.constant 2 : index
    %c0_40 = arith.constant 0 : index
    %43 = vector.load %arg0[%c1_38, %c2_39, %c0_40] : memref<2x18x256xf32, #tpu.memory_space<vmem>>, vector<1x16x256xf32>
    %44 = vector.shape_cast %43 : vector<1x16x256xf32> to vector<16x256xf32>
    %45 = arith.truncf %44 : vector<16x256xf32> to vector<16x256xbf16>
    %c2_41 = arith.constant 2 : index
    %c0_42 = arith.constant 0 : index
    %c0_43 = arith.constant 0 : index
    %46 = vector.load %arg1[%c2_41, %c0_42, %c0_43] : memref<3x256x128xbf16, #tpu.memory_space<vmem>>, vector<1x256x128xbf16>
    %47 = vector.shape_cast %46 : vector<1x256x128xbf16> to vector<256x128xbf16>
    %cst_44 = arith.constant dense<0.000000e+00> : vector<16x128xf32>
    %48 = tpu.matmul %45, %47, %cst_44 {dimension_numbers = #tpu.dot_dimension_numbers<[1], [0], [0], [1], [0, 0, 1, 1], [], []>} : vector<16x256xbf16>, vector<256x128xbf16>, vector<16x128xf32> -> vector<16x128xf32>
    %49 = arith.addf %42, %48 : vector<16x128xf32>
    %50 = vector.broadcast %0 : vector<1x128xf32> to vector<16x128xf32>
    %51 = arith.addf %49, %50 : vector<16x128xf32>
    %c1_45 = arith.constant 1 : index
    %c0_46 = arith.constant 0 : index
    %c0_47 = arith.constant 0 : index
    %52 = vector.load %arg3[%c1_45, %c0_46, %c0_47] : memref<2x16x128xf32, #tpu.memory_space<vmem>>, vector<1x16x128xf32>
    %53 = vector.shape_cast %52 : vector<1x16x128xf32> to vector<16x128xf32>
    %54 = vector.shape_cast %51 : vector<16x128xf32> to vector<1x16x128xf32>
    tpu.vector_store %arg3[%c1_45, %c0_46, %c0_47], %54 {strides = array<i32>} : memref<2x16x128xf32, #tpu.memory_space<vmem>>, vector<1x16x128xf32>,
    return
  }
}

module attributes {stable_mosaic.version = 11 : i64} {
  func.func @_mm_kernel(%arg0: i32, %arg1: memref<512x8xf32, #tpu.memory_space<vmem>>, %arg2: memref<8x8xbf16, #tpu.memory_space<vmem>>, %arg3: memref<1x8xf32, #tpu.memory_space<vmem>>, %arg4: memref<512x8xf32, #tpu.memory_space<vmem>>, %arg5: memref<512x8xf32, #tpu.memory_space<vmem>>, %arg6: memref<512x8xf32, #tpu.memory_space<vmem>>) attributes {dimension_semantics = [#tpu.dimension_semantics<parallel>], iteration_bounds = array<i64: 1>, scalar_prefetch = 0 : i64, scratch_operands = 0 : i64, tpu.core_type = #tpu.core_type<tc>, window_params = [{transform_indices = @transform_0, window_bounds = array<i64: 512, 8>}, {pipeline_mode = #tpu.pipeline_mode<synchronous>, transform_indices = @transform_1, window_bounds = array<i64: 8, 8>}, {pipeline_mode = #tpu.pipeline_mode<synchronous>, transform_indices = @transform_2, window_bounds = array<i64: 1, 8>}, {transform_indices = @transform_3, window_bounds = array<i64: 512, 8>}, {transform_indices = @transform_4, window_bounds = array<i64: 512, 8>}, {transform_indices = @transform_5, window_bounds = array<i64: 512, 8>}]} {
    %c0 = arith.constant 0 : index
    %c0_0 = arith.constant 0 : index
    %0 = vector.load %arg1[%c0, %c0_0] : memref<512x8xf32, #tpu.memory_space<vmem>>, vector<512x8xf32>
    %1 = arith.truncf %0 : vector<512x8xf32> to vector<512x8xbf16>
    %c0_1 = arith.constant 0 : index
    %c0_2 = arith.constant 0 : index
    %2 = vector.load %arg2[%c0_1, %c0_2] : memref<8x8xbf16, #tpu.memory_space<vmem>>, vector<8x8xbf16>
    %cst = arith.constant dense<0.000000e+00> : vector<512x8xf32>
    %3 = tpu.matmul %1, %2, %cst {dimension_numbers = #tpu.dot_dimension_numbers<[1], [0], [0], [1], [0, 0, 1, 1], [], []>} : vector<512x8xbf16>, vector<8x8xbf16>, vector<512x8xf32> -> vector<512x8xf32>
    %c0_3 = arith.constant 0 : index
    %c0_4 = arith.constant 0 : index
    %4 = vector.load %arg3[%c0_3, %c0_4] : memref<1x8xf32, #tpu.memory_space<vmem>>, vector<1x8xf32>
    %5 = vector.broadcast %4 : vector<1x8xf32> to vector<512x8xf32>
    %6 = arith.addf %3, %5 : vector<512x8xf32>
    %c0_5 = arith.constant 0 : index
    %c0_6 = arith.constant 0 : index
    %7 = vector.load %arg4[%c0_5, %c0_6] : memref<512x8xf32, #tpu.memory_space<vmem>>, vector<512x8xf32>
    %8 = arith.addf %6, %7 : vector<512x8xf32>
    %c0_7 = arith.constant 0 : index
    %c0_8 = arith.constant 0 : index
    %9 = vector.load %arg5[%c0_7, %c0_8] : memref<512x8xf32, #tpu.memory_space<vmem>>, vector<512x8xf32>
    %10 = arith.addf %8, %9 : vector<512x8xf32>
    %cst_9 = arith.constant 0.000000e+00 : f32
    %11 = vector.broadcast %cst_9 : f32 to vector<512x8xf32>
    %12 = arith.maximumf %10, %11 : vector<512x8xf32>
    %c0_10 = arith.constant 0 : index
    %c0_11 = arith.constant 0 : index
    %13 = vector.load %arg6[%c0_10, %c0_11] : memref<512x8xf32, #tpu.memory_space<vmem>>, vector<512x8xf32>
    tpu.vector_store %arg6[%c0_10, %c0_11], %12 {strides = array<i32>} : memref<512x8xf32, #tpu.memory_space<vmem>>, vector<512x8xf32>,
    return
  }
  func.func @transform_0(%arg0: i32) -> (i32, i32) {
    %c0_i32 = arith.constant 0 : i32
    %c0_i32_0 = arith.constant 0 : i32
    return %arg0, %c0_i32 : i32, i32
  }
  func.func @transform_1(%arg0: i32) -> (i32, i32) {
    %c0_i32 = arith.constant 0 : i32
    %c0_i32_0 = arith.constant 0 : i32
    %c0_i32_1 = arith.constant 0 : i32
    return %c0_i32, %c0_i32_0 : i32, i32
  }
  func.func @transform_2(%arg0: i32) -> (i32, i32) {
    %c0_i32 = arith.constant 0 : i32
    %c0_i32_0 = arith.constant 0 : i32
    %c0_i32_1 = arith.constant 0 : i32
    return %c0_i32, %c0_i32_0 : i32, i32
  }
  func.func @transform_3(%arg0: i32) -> (i32, i32) {
    %c0_i32 = arith.constant 0 : i32
    %c0_i32_0 = arith.constant 0 : i32
    return %arg0, %c0_i32 : i32, i32
  }
  func.func @transform_4(%arg0: i32) -> (i32, i32) {
    %c0_i32 = arith.constant 0 : i32
    %c0_i32_0 = arith.constant 0 : i32
    return %arg0, %c0_i32 : i32, i32
  }
  func.func @transform_5(%arg0: i32) -> (i32, i32) {
    %c0_i32 = arith.constant 0 : i32
    %c0_i32_0 = arith.constant 0 : i32
    return %arg0, %c0_i32 : i32, i32
  }
}

module attributes {stable_mosaic.version = 11 : i64} {
  func.func @_block5_head_kernel(%arg0: i32, %arg1: memref<512x8xf32, #tpu.memory_space<vmem>>, %arg2: memref<8x8xbf16, #tpu.memory_space<vmem>>, %arg3: memref<1x8xf32, #tpu.memory_space<vmem>>, %arg4: memref<512x8xf32, #tpu.memory_space<vmem>>, %arg5: memref<512x8xf32, #tpu.memory_space<vmem>>, %arg6: memref<8x16xbf16, #tpu.memory_space<vmem>>, %arg7: memref<1x16xf32, #tpu.memory_space<vmem>>, %arg8: memref<1x16xf32, #tpu.memory_space<vmem>>, %arg9: memref<1x1xf32, #tpu.memory_space<vmem>>, %arg10: memref<512x1xf32, #tpu.memory_space<vmem>>) attributes {dimension_semantics = [#tpu.dimension_semantics<parallel>], iteration_bounds = array<i64: 1>, scalar_prefetch = 0 : i64, scratch_operands = 0 : i64, tpu.core_type = #tpu.core_type<tc>, window_params = [{transform_indices = @transform_0, window_bounds = array<i64: 512, 8>}, {pipeline_mode = #tpu.pipeline_mode<synchronous>, transform_indices = @transform_1, window_bounds = array<i64: 8, 8>}, {pipeline_mode = #tpu.pipeline_mode<synchronous>, transform_indices = @transform_2, window_bounds = array<i64: 1, 8>}, {transform_indices = @transform_3, window_bounds = array<i64: 512, 8>}, {transform_indices = @transform_4, window_bounds = array<i64: 512, 8>}, {pipeline_mode = #tpu.pipeline_mode<synchronous>, transform_indices = @transform_5, window_bounds = array<i64: 8, 16>}, {pipeline_mode = #tpu.pipeline_mode<synchronous>, transform_indices = @transform_6, window_bounds = array<i64: 1, 16>}, {pipeline_mode = #tpu.pipeline_mode<synchronous>, transform_indices = @transform_7, window_bounds = array<i64: 1, 16>}, {pipeline_mode = #tpu.pipeline_mode<synchronous>, transform_indices = @transform_8, window_bounds = array<i64: 1, 1>}, {transform_indices = @transform_9, window_bounds = array<i64: 512, 1>}]} {
    %c0 = arith.constant 0 : index
    %c0_0 = arith.constant 0 : index
    %0 = vector.load %arg1[%c0, %c0_0] : memref<512x8xf32, #tpu.memory_space<vmem>>, vector<512x8xf32>
    %1 = arith.truncf %0 : vector<512x8xf32> to vector<512x8xbf16>
    %c0_1 = arith.constant 0 : index
    %c0_2 = arith.constant 0 : index
    %2 = vector.load %arg2[%c0_1, %c0_2] : memref<8x8xbf16, #tpu.memory_space<vmem>>, vector<8x8xbf16>
    %cst = arith.constant dense<0.000000e+00> : vector<512x8xf32>
    %3 = tpu.matmul %1, %2, %cst {dimension_numbers = #tpu.dot_dimension_numbers<[1], [0], [0], [1], [0, 0, 1, 1], [], []>} : vector<512x8xbf16>, vector<8x8xbf16>, vector<512x8xf32> -> vector<512x8xf32>
    %c0_3 = arith.constant 0 : index
    %c0_4 = arith.constant 0 : index
    %4 = vector.load %arg3[%c0_3, %c0_4] : memref<1x8xf32, #tpu.memory_space<vmem>>, vector<1x8xf32>
    %5 = vector.broadcast %4 : vector<1x8xf32> to vector<512x8xf32>
    %6 = arith.addf %3, %5 : vector<512x8xf32>
    %c0_5 = arith.constant 0 : index
    %c0_6 = arith.constant 0 : index
    %7 = vector.load %arg4[%c0_5, %c0_6] : memref<512x8xf32, #tpu.memory_space<vmem>>, vector<512x8xf32>
    %8 = arith.addf %6, %7 : vector<512x8xf32>
    %c0_7 = arith.constant 0 : index
    %c0_8 = arith.constant 0 : index
    %9 = vector.load %arg5[%c0_7, %c0_8] : memref<512x8xf32, #tpu.memory_space<vmem>>, vector<512x8xf32>
    %10 = arith.addf %8, %9 : vector<512x8xf32>
    %cst_9 = arith.constant 0.000000e+00 : f32
    %11 = vector.broadcast %cst_9 : f32 to vector<512x8xf32>
    %12 = arith.maximumf %10, %11 : vector<512x8xf32>
    %13 = arith.truncf %12 : vector<512x8xf32> to vector<512x8xbf16>
    %c0_10 = arith.constant 0 : index
    %c0_11 = arith.constant 0 : index
    %14 = vector.load %arg6[%c0_10, %c0_11] : memref<8x16xbf16, #tpu.memory_space<vmem>>, vector<8x16xbf16>
    %cst_12 = arith.constant dense<0.000000e+00> : vector<512x16xf32>
    %15 = tpu.matmul %13, %14, %cst_12 {dimension_numbers = #tpu.dot_dimension_numbers<[1], [0], [0], [1], [0, 0, 1, 1], [], []>} : vector<512x8xbf16>, vector<8x16xbf16>, vector<512x16xf32> -> vector<512x16xf32>
    %c0_13 = arith.constant 0 : index
    %c0_14 = arith.constant 0 : index
    %16 = vector.load %arg7[%c0_13, %c0_14] : memref<1x16xf32, #tpu.memory_space<vmem>>, vector<1x16xf32>
    %17 = vector.broadcast %16 : vector<1x16xf32> to vector<512x16xf32>
    %18 = arith.addf %15, %17 : vector<512x16xf32>
    %cst_15 = arith.constant 0.000000e+00 : f32
    %19 = vector.broadcast %cst_15 : f32 to vector<512x16xf32>
    %20 = arith.maximumf %18, %19 : vector<512x16xf32>
    %c0_16 = arith.constant 0 : index
    %c0_17 = arith.constant 0 : index
    %21 = vector.load %arg8[%c0_16, %c0_17] : memref<1x16xf32, #tpu.memory_space<vmem>>, vector<1x16xf32>
    %22 = vector.broadcast %21 : vector<1x16xf32> to vector<512x16xf32>
    %23 = arith.mulf %20, %22 : vector<512x16xf32>
    %cst_18 = arith.constant dense<0.000000e+00> : vector<512xf32>
    %24 = vector.multi_reduction <add>, %23, %cst_18 [1] : vector<512x16xf32> to vector<512xf32>
    %25 = vector.shape_cast %24 : vector<512xf32> to vector<512x1xf32>
    %c0_19 = arith.constant 0 : index
    %c0_20 = arith.constant 0 : index
    %26 = vector.load %arg9[%c0_19, %c0_20] : memref<1x1xf32, #tpu.memory_space<vmem>>, vector<1x1xf32>
    %27 = vector.broadcast %26 : vector<1x1xf32> to vector<512x1xf32>
    %28 = arith.addf %25, %27 : vector<512x1xf32>
    %c0_21 = arith.constant 0 : index
    %c0_22 = arith.constant 0 : index
    %29 = vector.load %arg10[%c0_21, %c0_22] : memref<512x1xf32, #tpu.memory_space<vmem>>, vector<512x1xf32>
    tpu.vector_store %arg10[%c0_21, %c0_22], %28 {strides = array<i32>} : memref<512x1xf32, #tpu.memory_space<vmem>>, vector<512x1xf32>,
    return
  }
  func.func @transform_0(%arg0: i32) -> (i32, i32) {
    %c0_i32 = arith.constant 0 : i32
    %c0_i32_0 = arith.constant 0 : i32
    return %arg0, %c0_i32 : i32, i32
  }
  func.func @transform_1(%arg0: i32) -> (i32, i32) {
    %c0_i32 = arith.constant 0 : i32
    %c0_i32_0 = arith.constant 0 : i32
    %c0_i32_1 = arith.constant 0 : i32
    return %c0_i32, %c0_i32_0 : i32, i32
  }
  func.func @transform_2(%arg0: i32) -> (i32, i32) {
    %c0_i32 = arith.constant 0 : i32
    %c0_i32_0 = arith.constant 0 : i32
    %c0_i32_1 = arith.constant 0 : i32
    return %c0_i32, %c0_i32_0 : i32, i32
  }
  func.func @transform_3(%arg0: i32) -> (i32, i32) {
    %c0_i32 = arith.constant 0 : i32
    %c0_i32_0 = arith.constant 0 : i32
    return %arg0, %c0_i32 : i32, i32
  }
  func.func @transform_4(%arg0: i32) -> (i32, i32) {
    %c0_i32 = arith.constant 0 : i32
    %c0_i32_0 = arith.constant 0 : i32
    return %arg0, %c0_i32 : i32, i32
  }
  func.func @transform_5(%arg0: i32) -> (i32, i32) {
    %c0_i32 = arith.constant 0 : i32
    %c0_i32_0 = arith.constant 0 : i32
    %c0_i32_1 = arith.constant 0 : i32
    return %c0_i32, %c0_i32_0 : i32, i32
  }
  func.func @transform_6(%arg0: i32) -> (i32, i32) {
    %c0_i32 = arith.constant 0 : i32
    %c0_i32_0 = arith.constant 0 : i32
    %c0_i32_1 = arith.constant 0 : i32
    return %c0_i32, %c0_i32_0 : i32, i32
  }
  func.func @transform_7(%arg0: i32) -> (i32, i32) {
    %c0_i32 = arith.constant 0 : i32
    %c0_i32_0 = arith.constant 0 : i32
    %c0_i32_1 = arith.constant 0 : i32
    return %c0_i32, %c0_i32_0 : i32, i32
  }
  func.func @transform_8(%arg0: i32) -> (i32, i32) {
    %c0_i32 = arith.constant 0 : i32
    %c0_i32_0 = arith.constant 0 : i32
    %c0_i32_1 = arith.constant 0 : i32
    return %c0_i32, %c0_i32_0 : i32, i32
  }
  func.func @transform_9(%arg0: i32) -> (i32, i32) {
    %c0_i32 = arith.constant 0 : i32
    %c0_i32_0 = arith.constant 0 : i32
    return %arg0, %c0_i32 : i32, i32
  }
}

</mosaic_0001>

<llo_original>
// kernel: _lambda_.39
$region0: #{_lambda_.39}
  #allocation0 [shape = 'u32[]', space=smem, size = 0x4, offset = 0x4, fixed_abs, tag = 'smem constant byte address 0x4 - core index']
  #allocation1 [shape = 'u32[144,128]{1,0:T(1,128)}', space=vmem, size = 0x12000, scoped, tag = 'internal scratch']
  %s0 = inlined_call_operand.vmem [shape: f32[2,8,128], index: 0, kind: input, shape index: {}]
  %s1 = inlined_call_operand.vmem [shape: f32[8,8,128], index: 1, kind: input, shape index: {}]
  %s2 = inlined_call_operand.vmem [shape: f32[8,8,128], index: 2, kind: input, shape index: {}]
  %s3 = inlined_call_operand.vmem [shape: f32[2,8,128], index: 3, kind: output, shape index: {}]
  %s4 = sld [smem:[#allocation0]]
  $region22: #{_lambda_.39} parent=0
    _
  %s6 = ssub.s32 1, %s4
  %s7 = scalar_select 0, %s6, %s4
  // Predicated region
  $region2: #{_lambda_.39} parent=0 // pred_check
    _
  $region3: #{_lambda_.39} parent=0 // pred_check_branch
    %9 = sbr.rel (0) target = $region5
  $region4: #{_lambda_.39} parent=0 // pred_region
    _
  $region5: #{_lambda_.39} parent=0 // pred_fallthru
    _
  // Predicated region
  $region6: #{_lambda_.39} parent=0 // pred_check
    _
  $region7: #{_lambda_.39} parent=0 // pred_check_branch
    %11 = sbr.rel (0) target = $region9
  $region8: #{_lambda_.39} parent=0 // pred_region
    _
  $region9: #{_lambda_.39} parent=0 // pred_fallthru
    _
  // Predicated region
  $region10: #{_lambda_.39} parent=0 // pred_check
    _
  $region11: #{_lambda_.39} parent=0 // pred_check_branch
    %13 = sbr.rel (0) target = $region13
  $region12: #{_lambda_.39} parent=0 // pred_region
    _
  $region13: #{_lambda_.39} parent=0 // pred_fallthru
    _
  %v14 = vld [vmem:[%s0] sm:$0xff]
  %v15 = vld [vmem:[%s0 + $0x8] sm:$0xff]
  %16 = vrot.lane.b32.xlu0 %v14, 64
  %v17 = vpop.permute.xlu0 %16
  %18 = vrot.lane.b32.xlu0 %v15, 64
  %v19 = vpop.permute.xlu0 %18
  %v22 = vcombine.high %v14, %v14
  %v24 = vunpack.c.l.s4 1966171168
  %v25 = vunpack.c.0.s8 %v24
  %v26 = vlaneseq
  %v27 = vshrl.u32 %v26, 7
  %v28 = vsub.s32 %v25, %v27
  %v29 = vrot.slane %v14, %v28
  %v31 = vunpack.c.l.s4 1966171168
  %v32 = vunpack.c.0.s8 %v31
  %v33 = vlaneseq
  %v34 = vshrl.u32 %v33, 7
  %v35 = vsub.s32 %v32, %v34
  %v36 = vrot.slane %v22, %v35
  %v37 = vcombine.high %v29, %v29
  %v38 = vcombine.high %v36, %v36
  %v40 = vunpack.c.l.s4 1966171168
  %v41 = vunpack.c.0.s8 %v40
  %v42 = vlaneseq
  %v43 = vshrl.u32 %v42, 7
  %v44 = vsub.s32 %v41, %v43
  %v45 = vrot.slane %v29, %v44
  %v47 = vunpack.c.l.s4 1966171168
  %v48 = vunpack.c.0.s8 %v47
  %v49 = vlaneseq
  %v50 = vshrl.u32 %v49, 7
  %v51 = vsub.s32 %v48, %v50
  %v52 = vrot.slane %v36, %v51
  %v54 = vunpack.c.l.s4 1966171168
  %v55 = vunpack.c.0.s8 %v54
  %v56 = vlaneseq
  %v57 = vshrl.u32 %v56, 7
  %v58 = vsub.s32 %v55, %v57
  %v59 = vrot.slane %v37, %v58
  %v61 = vunpack.c.l.s4 1966171168
  %v62 = vunpack.c.0.s8 %v61
  %v63 = vlaneseq
  %v64 = vshrl.u32 %v63, 7
  %v65 = vsub.s32 %v62, %v64
  %v66 = vrot.slane %v38, %v65
  %v67 = vcombine.high %v45, %v45
  %v68 = vcombine.high %v52, %v52
  %v69 = vcombine.high %v59, %v59
  %v70 = vcombine.high %v66, %v66
  %v71 = vcombine.high %v15, %v15
  %v73 = vunpack.c.l.s4 1966171168
  %v74 = vunpack.c.0.s8 %v73
  %v75 = vlaneseq
  %v76 = vshrl.u32 %v75, 7
  %v77 = vsub.s32 %v74, %v76
  %v78 = vrot.slane %v15, %v77
  %v80 = vunpack.c.l.s4 1966171168
  %v81 = vunpack.c.0.s8 %v80
  %v82 = vlaneseq
  %v83 = vshrl.u32 %v82, 7
  %v84 = vsub.s32 %v81, %v83
  %v85 = vrot.slane %v71, %v84
  %v86 = vcombine.high %v78, %v78
  %v87 = vcombine.high %v85, %v85
  %v89 = vunpack.c.l.s4 1966171168
  %v90 = vunpack.c.0.s8 %v89
  %v91 = vlaneseq
  %v92 = vshrl.u32 %v91, 7
  %v93 = vsub.s32 %v90, %v92
  %v94 = vrot.slane %v78, %v93
  %v96 = vunpack.c.l.s4 1966171168
  %v97 = vunpack.c.0.s8 %v96
  %v98 = vlaneseq
  %v99 = vshrl.u32 %v98, 7
  %v100 = vsub.s32 %v97, %v99
  %v101 = vrot.slane %v85, %v100
  %v103 = vunpack.c.l.s4 1966171168
  %v104 = vunpack.c.0.s8 %v103
  %v105 = vlaneseq
  %v106 = vshrl.u32 %v105, 7
  %v107 = vsub.s32 %v104, %v106
  %v108 = vrot.slane %v86, %v107
  %v110 = vunpack.c.l.s4 1966171168
  %v111 = vunpack.c.0.s8 %v110
  %v112 = vlaneseq
  %v113 = vshrl.u32 %v112, 7
  %v114 = vsub.s32 %v111, %v113
  %v115 = vrot.slane %v87, %v114
  %v116 = vcombine.high %v94, %v94
  %v117 = vcombine.high %v101, %v101
  %v118 = vcombine.high %v108, %v108
  %v119 = vcombine.high %v115, %v115
  %v120 = vld [vmem:[%s1] sm:$0xff]
  %v121 = vld [vmem:[%s1 + $0x8] sm:$0xff]
  %v122 = vld [vmem:[%s1 + $0x10] sm:$0xff]
  %v123 = vld [vmem:[%s1 + $0x18] sm:$0xff]
  %v124 = vld [vmem:[%s1 + $0x20] sm:$0xff]
  %v125 = vld [vmem:[%s1 + $0x28] sm:$0xff]
  %v126 = vld [vmem:[%s1 + $0x30] sm:$0xff]
  %v127 = vld [vmem:[%s1 + $0x38] sm:$0xff]
  %v128 = vlaneseq
  %v129 = vshrl.u32 %v128, 7
  %v130 = vsub.s32 0, %v129
  %v131 = vrot.slane %v45, %v130
  %v132 = vlaneseq
  %v133 = vshrl.u32 %v132, 7
  %v134 = vsub.s32 0, %v133
  %v135 = vrot.slane %v59, %v134
  %v136 = vlaneseq
  %v137 = vshrl.u32 %v136, 7
  %v138 = vsub.s32 0, %v137
  %v139 = vrot.slane %v67, %v138
  %v140 = vlaneseq
  %v141 = vshrl.u32 %v140, 7
  %v142 = vsub.s32 0, %v141
  %v143 = vrot.slane %v69, %v142
  %v144 = vlaneseq
  %v145 = vshrl.u32 %v144, 7
  %v146 = vsub.s32 0, %v145
  %v147 = vrot.slane %v52, %v146
  %v148 = vlaneseq
  %v149 = vshrl.u32 %v148, 7
  %v150 = vsub.s32 0, %v149
  %v151 = vrot.slane %v66, %v150
  %v152 = vlaneseq
  %v153 = vshrl.u32 %v152, 7
  %v154 = vsub.s32 0, %v153
  %v155 = vrot.slane %v68, %v154
  %v156 = vlaneseq
  %v157 = vshrl.u32 %v156, 7
  %v158 = vsub.s32 0, %v157
  %v159 = vrot.slane %v70, %v158
  %v160 = vlaneseq
  %v161 = vshrl.u32 %v160, 7
  %v162 = vsub.s32 0, %v161
  %v163 = vrot.slane %v94, %v162
  %v164 = vlaneseq
  %v165 = vshrl.u32 %v164, 7
  %v166 = vsub.s32 0, %v165
  %v167 = vrot.slane %v108, %v166
  %v168 = vlaneseq
  %v169 = vshrl.u32 %v168, 7
  %v170 = vsub.s32 0, %v169
  %v171 = vrot.slane %v116, %v170
  %v172 = vlaneseq
  %v173 = vshrl.u32 %v172, 7
  %v174 = vsub.s32 0, %v173
  %v175 = vrot.slane %v118, %v174
  %v176 = vlaneseq
  %v177 = vshrl.u32 %v176, 7
  %v178 = vsub.s32 0, %v177
  %v179 = vrot.slane %v101, %v178
  %v180 = vlaneseq
  %v181 = vshrl.u32 %v180, 7
  %v182 = vsub.s32 0, %v181
  %v183 = vrot.slane %v115, %v182
  %v184 = vlaneseq
  %v185 = vshrl.u32 %v184, 7
  %v186 = vsub.s32 0, %v185
  %v187 = vrot.slane %v117, %v186
  %v188 = vlaneseq
  %v189 = vshrl.u32 %v188, 7
  %v190 = vsub.s32 0, %v189
  %v191 = vrot.slane %v119, %v190
  %v208 = vmul.f32 %v131, %v120
  %v209 = vmul.f32 %v135, %v121
  %v210 = vmul.f32 %v139, %v122
  %v211 = vmul.f32 %v143, %v123
  %v212 = vmul.f32 %v147, %v124
  %v213 = vmul.f32 %v151, %v125
  %v214 = vmul.f32 %v155, %v126
  %v215 = vmul.f32 %v159, %v127
  %v216 = vmul.f32 %v163, %v120
  %v217 = vmul.f32 %v167, %v121
  %v218 = vmul.f32 %v171, %v122
  %v219 = vmul.f32 %v175, %v123
  %v220 = vmul.f32 %v179, %v124
  %v221 = vmul.f32 %v183, %v125
  %v222 = vmul.f32 %v187, %v126
  %v223 = vmul.f32 %v191, %v127
  %v226 = vcombine.high %v17, %v17
  %v228 = vunpack.c.l.s4 1966171168
  %v229 = vunpack.c.0.s8 %v228
  %v230 = vlaneseq
  %v231 = vshrl.u32 %v230, 7
  %v232 = vsub.s32 %v229, %v231
  %v233 = vrot.slane %v17, %v232
  %v235 = vunpack.c.l.s4 1966171168
  %v236 = vunpack.c.0.s8 %v235
  %v237 = vlaneseq
  %v238 = vshrl.u32 %v237, 7
  %v239 = vsub.s32 %v236, %v238
  %v240 = vrot.slane %v226, %v239
  %v241 = vcombine.high %v233, %v233
  %v242 = vcombine.high %v240, %v240
  %v244 = vunpack.c.l.s4 1966171168
  %v245 = vunpack.c.0.s8 %v244
  %v246 = vlaneseq
  %v247 = vshrl.u32 %v246, 7
  %v248 = vsub.s32 %v245, %v247
  %v249 = vrot.slane %v233, %v248
  %v251 = vunpack.c.l.s4 1966171168
  %v252 = vunpack.c.0.s8 %v251
  %v253 = vlaneseq
  %v254 = vshrl.u32 %v253, 7
  %v255 = vsub.s32 %v252, %v254
  %v256 = vrot.slane %v240, %v255
  %v258 = vunpack.c.l.s4 1966171168
  %v259 = vunpack.c.0.s8 %v258
  %v260 = vlaneseq
  %v261 = vshrl.u32 %v260, 7
  %v262 = vsub.s32 %v259, %v261
  %v263 = vrot.slane %v241, %v262
  %v265 = vunpack.c.l.s4 1966171168
  %v266 = vunpack.c.0.s8 %v265
  %v267 = vlaneseq
  %v268 = vshrl.u32 %v267, 7
  %v269 = vsub.s32 %v266, %v268
  %v270 = vrot.slane %v242, %v269
  %v271 = vcombine.high %v249, %v249
  %v272 = vcombine.high %v256, %v256
  %v273 = vcombine.high %v263, %v263
  %v274 = vcombine.high %v270, %v270
  %v275 = vcombine.high %v19, %v19
  %v277 = vunpack.c.l.s4 1966171168
  %v278 = vunpack.c.0.s8 %v277
  %v279 = vlaneseq
  %v280 = vshrl.u32 %v279, 7
  %v281 = vsub.s32 %v278, %v280
  %v282 = vrot.slane %v19, %v281
  %v284 = vunpack.c.l.s4 1966171168
  %v285 = vunpack.c.0.s8 %v284
  %v286 = vlaneseq
  %v287 = vshrl.u32 %v286, 7
  %v288 = vsub.s32 %v285, %v287
  %v289 = vrot.slane %v275, %v288
  %v290 = vcombine.high %v282, %v282
  %v291 = vcombine.high %v289, %v289
  %v293 = vunpack.c.l.s4 1966171168
  %v294 = vunpack.c.0.s8 %v293
  %v295 = vlaneseq
  %v296 = vshrl.u32 %v295, 7
  %v297 = vsub.s32 %v294, %v296
  %v298 = vrot.slane %v282, %v297
  %v300 = vunpack.c.l.s4 1966171168
  %v301 = vunpack.c.0.s8 %v300
  %v302 = vlaneseq
  %v303 = vshrl.u32 %v302, 7
  %v304 = vsub.s32 %v301, %v303
  %v305 = vrot.slane %v289, %v304
  %v307 = vunpack.c.l.s4 1966171168
  %v308 = vunpack.c.0.s8 %v307
  %v309 = vlaneseq
  %v310 = vshrl.u32 %v309, 7
  %v311 = vsub.s32 %v308, %v310
  %v312 = vrot.slane %v290, %v311
  %v314 = vunpack.c.l.s4 1966171168
  %v315 = vunpack.c.0.s8 %v314
  %v316 = vlaneseq
  %v317 = vshrl.u32 %v316, 7
  %v318 = vsub.s32 %v315, %v317
  %v319 = vrot.slane %v291, %v318
  %v320 = vcombine.high %v298, %v298
  %v321 = vcombine.high %v305, %v305
  %v322 = vcombine.high %v312, %v312
  %v323 = vcombine.high %v319, %v319
  %v324 = vld [vmem:[%s2] sm:$0xff]
  %v325 = vld [vmem:[%s2 + $0x8] sm:$0xff]
  %v326 = vld [vmem:[%s2 + $0x10] sm:$0xff]
  %v327 = vld [vmem:[%s2 + $0x18] sm:$0xff]
  %v328 = vld [vmem:[%s2 + $0x20] sm:$0xff]
  %v329 = vld [vmem:[%s2 + $0x28] sm:$0xff]
  %v330 = vld [vmem:[%s2 + $0x30] sm:$0xff]
  %v331 = vld [vmem:[%s2 + $0x38] sm:$0xff]
  %v332 = vlaneseq
  %v333 = vshrl.u32 %v332, 7
  %v334 = vsub.s32 0, %v333
  %v335 = vrot.slane %v249, %v334
  %v336 = vlaneseq
  %v337 = vshrl.u32 %v336, 7
  %v338 = vsub.s32 0, %v337
  %v339 = vrot.slane %v263, %v338
  %v340 = vlaneseq
  %v341 = vshrl.u32 %v340, 7
  %v342 = vsub.s32 0, %v341
  %v343 = vrot.slane %v271, %v342
  %v344 = vlaneseq
  %v345 = vshrl.u32 %v344, 7
  %v346 = vsub.s32 0, %v345
  %v347 = vrot.slane %v273, %v346
  %v348 = vlaneseq
  %v349 = vshrl.u32 %v348, 7
  %v350 = vsub.s32 0, %v349
  %v351 = vrot.slane %v256, %v350
  %v352 = vlaneseq
  %v353 = vshrl.u32 %v352, 7
  %v354 = vsub.s32 0, %v353
  %v355 = vrot.slane %v270, %v354
  %v356 = vlaneseq
  %v357 = vshrl.u32 %v356, 7
  %v358 = vsub.s32 0, %v357
  %v359 = vrot.slane %v272, %v358
  %v360 = vlaneseq
  %v361 = vshrl.u32 %v360, 7
  %v362 = vsub.s32 0, %v361
  %v363 = vrot.slane %v274, %v362
  %v364 = vlaneseq
  %v365 = vshrl.u32 %v364, 7
  %v366 = vsub.s32 0, %v365
  %v367 = vrot.slane %v298, %v366
  %v368 = vlaneseq
  %v369 = vshrl.u32 %v368, 7
  %v370 = vsub.s32 0, %v369
  %v371 = vrot.slane %v312, %v370
  %v372 = vlaneseq
  %v373 = vshrl.u32 %v372, 7
  %v374 = vsub.s32 0, %v373
  %v375 = vrot.slane %v320, %v374
  %v376 = vlaneseq
  %v377 = vshrl.u32 %v376, 7
  %v378 = vsub.s32 0, %v377
  %v379 = vrot.slane %v322, %v378
  %v380 = vlaneseq
  %v381 = vshrl.u32 %v380, 7
  %v382 = vsub.s32 0, %v381
  %v383 = vrot.slane %v305, %v382
  %v384 = vlaneseq
  %v385 = vshrl.u32 %v384, 7
  %v386 = vsub.s32 0, %v385
  %v387 = vrot.slane %v319, %v386
  %v388 = vlaneseq
  %v389 = vshrl.u32 %v388, 7
  %v390 = vsub.s32 0, %v389
  %v391 = vrot.slane %v321, %v390
  %v392 = vlaneseq
  %v393 = vshrl.u32 %v392, 7
  %v394 = vsub.s32 0, %v393
  %v395 = vrot.slane %v323, %v394
  %v412 = vmul.f32 %v335, %v324
  %v413 = vmul.f32 %v339, %v325
  %v414 = vmul.f32 %v343, %v326
  %v415 = vmul.f32 %v347, %v327
  %v416 = vmul.f32 %v351, %v328
  %v417 = vmul.f32 %v355, %v329
  %v418 = vmul.f32 %v359, %v330
  %v419 = vmul.f32 %v363, %v331
  %v420 = vmul.f32 %v367, %v324
  %v421 = vmul.f32 %v371, %v325
  %v422 = vmul.f32 %v375, %v326
  %v423 = vmul.f32 %v379, %v327
  %v424 = vmul.f32 %v383, %v328
  %v425 = vmul.f32 %v387, %v329
  %v426 = vmul.f32 %v391, %v330
  %v427 = vmul.f32 %v395, %v331
  %v428 = vadd.f32 %v208, %v412
  %v429 = vadd.f32 %v209, %v413
  %v430 = vadd.f32 %v210, %v414
  %v431 = vadd.f32 %v211, %v415
  %v432 = vadd.f32 %v212, %v416
  %v433 = vadd.f32 %v213, %v417
  %v434 = vadd.f32 %v214, %v418
  %v435 = vadd.f32 %v215, %v419
  %v436 = vadd.f32 %v216, %v420
  %v437 = vadd.f32 %v217, %v421
  %v438 = vadd.f32 %v218, %v422
  %v439 = vadd.f32 %v219, %v423
  %v440 = vadd.f32 %v220, %v424
  %v441 = vadd.f32 %v221, %v425
  %v442 = vadd.f32 %v222, %v426
  %v443 = vadd.f32 %v223, %v427
  %v444 = vadd.f32 %v428, %v429
  %v445 = vadd.f32 %v444, %v430
  %v446 = vadd.f32 %v445, %v431
  %v447 = vadd.f32 %v446, %v432
  %v448 = vadd.f32 %v447, %v433
  %v449 = vadd.f32 %v448, %v434
  %v450 = vadd.f32 %v449, %v435
  %v451 = vadd.f32 %v436, %v437
  %v452 = vadd.f32 %v451, %v438
  %v453 = vadd.f32 %v452, %v439
  %v454 = vadd.f32 %v453, %v440
  %v455 = vadd.f32 %v454, %v441
  %v456 = vadd.f32 %v455, %v442
  %v457 = vadd.f32 %v456, %v443
  %458 = vst [vmem:[%s3] sm:$0xff] %v450
  %459 = vst [vmem:[%s3 + $0x8] sm:$0xff] %v457
  // Predicated region
  $region14: #{_lambda_.39} parent=0 // pred_check
    _
  $region15: #{_lambda_.39} parent=0 // pred_check_branch
    %461 = sbr.rel (0) target = $region17
  $region16: #{_lambda_.39} parent=0 // pred_region
    _
  $region17: #{_lambda_.39} parent=0 // pred_fallthru
    _
  // Predicated region
  $region18: #{_lambda_.39} parent=0 // pred_check
    _
  $region19: #{_lambda_.39} parent=0 // pred_check_branch
    %463 = sbr.rel (0) target = $region21
  $region20: #{_lambda_.39} parent=0 // pred_region
    _
  $region21: #{_lambda_.39} parent=0 // pred_fallthru
    _

// kernel: reverse.13
$region0: #{reverse.13}
  %s0 = inlined_call_operand.vmem [shape: f32[2,8,16,7], index: 0, kind: input, shape index: {}]
  %s1 = inlined_call_operand.vmem [shape: f32[2,8,16,7], index: 1, kind: output, shape index: {}]
  $region1: #{reverse.13} parent=0
    #allocation0 [shape = 'u8[131072]{0}', space=vmem, size = 0x20000, scoped, tag = 'operand span for operand 0']
    #allocation1 [shape = 'u8[65536]{0}', space=vmem, size = 0x10000, scoped, tag = 'operand span for operand 1']
    %s2 = scalar_lea.vmem [#allocation0], 8
    // Predicated region
    $region2: #{reverse.13} parent=1 // pred_check
      _
    $region3: #{reverse.13} parent=1 // pred_check_branch
      %4 = sbr.rel (0) target = $region5
    $region4: #{reverse.13} parent=1 // pred_region
      // Predicated region
      $region6: #{reverse.13} parent=4 // pred_check
        _
      $region7: #{reverse.13} parent=4 // pred_check_branch
        %6 = sbr.rel (0) target = $region9
      $region8: #{reverse.13} parent=4 // pred_region
        // Predicated region
        $region21: #{reverse.13} parent=8 // pred_check
          _
        $region22: #{reverse.13} parent=8 // pred_check_branch
          %52 = sbr.rel (0) target = $region24
        $region23: #{reverse.13} parent=8 // pred_region
          loop: start=0, step=1, limit=1
          $region25: #{reverse.13} parent=23 // loop_pre_header
            _
          $region26: #{reverse.13} parent=23 // loop_header
            %s54 = sphi 0, %s58
            %p55 = scmp.ge.s32.totalorder %s54, 1
            %s59 = sphi %s0, %s0
            %s60 = sphi %s2, %s2
          $region27: #{reverse.13} parent=23 // loop_header_branch
            %57 = sbr.rel (%p55) target = $region31
          $region28: #{reverse.13} parent=23 // loop_body
            %v61 = vld [vmem:[%s59] sm:$0xff]
            %62 = vst [vmem:[%s60] sm:$0xff] %v61
            %v63 = vld [vmem:[%s59 + $0x8] sm:$0xff]
            %64 = vst [vmem:[%s60 + $0x10] sm:$0xff] %v63
            %v65 = vld [vmem:[%s59 + $0x10] sm:$0xff]
            %66 = vst [vmem:[%s60 + $0x20] sm:$0xff] %v65
            %v67 = vld [vmem:[%s59 + $0x18] sm:$0xff]
            %68 = vst [vmem:[%s60 + $0x30] sm:$0xff] %v67
            %v69 = vld [vmem:[%s59 + $0x20] sm:$0xff]
            %70 = vst [vmem:[%s60 + $0x40] sm:$0xff] %v69
            %v71 = vld [vmem:[%s59 + $0x28] sm:$0xff]
            %72 = vst [vmem:[%s60 + $0x50] sm:$0xff] %v71
            %v73 = vld [vmem:[%s59 + $0x30] sm:$0xff]
            %74 = vst [vmem:[%s60 + $0x60] sm:$0xff] %v73
            %v75 = vld [vmem:[%s59 + $0x38] sm:$0xff]
            %76 = vst [vmem:[%s60 + $0x70] sm:$0xff] %v75
            %v77 = vld [vmem:[%s59 + $0x40] sm:$0xff]
            %78 = vst [vmem:[%s60 + $0x80] sm:$0xff] %v77
            %v79 = vld [vmem:[%s59 + $0x48] sm:$0xff]
            %80 = vst [vmem:[%s60 + $0x90] sm:$0xff] %v79
            %v81 = vld [vmem:[%s59 + $0x50] sm:$0xff]
            %82 = vst [vmem:[%s60 + $0xa0] sm:$0xff] %v81
            %v83 = vld [vmem:[%s59 + $0x58] sm:$0xff]
            %84 = vst [vmem:[%s60 + $0xb0] sm:$0xff] %v83
            %v85 = vld [vmem:[%s59 + $0x60] sm:$0xff]
            %86 = vst [vmem:[%s60 + $0xc0] sm:$0xff] %v85
            %v87 = vld [vmem:[%s59 + $0x68] sm:$0xff]
            %88 = vst [vmem:[%s60 + $0xd0] sm:$0xff] %v87
            %v89 = vld [vmem:[%s59 + $0x70] sm:$0xff]
            %90 = vst [vmem:[%s60 + $0xe0] sm:$0xff] %v89
            %v91 = vld [vmem:[%s59 + $0x78] sm:$0xff]
            %92 = vst [vmem:[%s60 + $0xf0] sm:$0xff] %v91
          $region29: #{reverse.13} parent=23 // loop_footer
            %s58 = sadd.s32 1, %s54
          $region30: #{reverse.13} parent=23 // loop_footer_branch
            %53 = sbr.rel target = $region26
          $region31: #{reverse.13} parent=23 // loop_exit
            _
        $region24: #{reverse.13} parent=8 // pred_fallthru
          _
        // Predicated region
        $region32: #{reverse.13} parent=8 // pred_check
          _
        $region33: #{reverse.13} parent=8 // pred_check_branch
          %94 = sbr.rel target = $region35
        $region34: #{reverse.13} parent=8 // pred_region
          _
        $region35: #{reverse.13} parent=8 // pred_fallthru
          _
      $region9: #{reverse.13} parent=4 // pred_fallthru
        _
      // Predicated region
      $region10: #{reverse.13} parent=4 // pred_check
        _
      $region11: #{reverse.13} parent=4 // pred_check_branch
        %8 = sbr.rel target = $region13
      $region12: #{reverse.13} parent=4 // pred_region
        %s10 = ssub.s32 256, 1
        loop: start=0, step=1, limit=1
        $region14: #{reverse.13} parent=12 // loop_pre_header
          _
        $region15: #{reverse.13} parent=12 // loop_header
          %s12 = sphi 0, %s16
          %p13 = scmp.ge.s32.totalorder %s12, 1
          %s17 = sphi %s0, %s0
          %s18 = sphi %s2, %s2
        $region16: #{reverse.13} parent=12 // loop_header_branch
          %15 = sbr.rel (%p13) target = $region20
        $region17: #{reverse.13} parent=12 // loop_body
          %v19 = vld [vmem:[%s17] sm:%s10]
          %20 = vst [vmem:[%s18] sm:%s10] %v19
          %v21 = vld [vmem:[%s17 + $0x8] sm:%s10]
          %22 = vst [vmem:[%s18 + $0x10] sm:%s10] %v21
          %v23 = vld [vmem:[%s17 + $0x10] sm:%s10]
          %24 = vst [vmem:[%s18 + $0x20] sm:%s10] %v23
          %v25 = vld [vmem:[%s17 + $0x18] sm:%s10]
          %26 = vst [vmem:[%s18 + $0x30] sm:%s10] %v25
          %v27 = vld [vmem:[%s17 + $0x20] sm:%s10]
          %28 = vst [vmem:[%s18 + $0x40] sm:%s10] %v27
          %v29 = vld [vmem:[%s17 + $0x28] sm:%s10]
          %30 = vst [vmem:[%s18 + $0x50] sm:%s10] %v29
          %v31 = vld [vmem:[%s17 + $0x30] sm:%s10]
          %32 = vst [vmem:[%s18 + $0x60] sm:%s10] %v31
          %v33 = vld [vmem:[%s17 + $0x38] sm:%s10]
          %34 = vst [vmem:[%s18 + $0x70] sm:%s10] %v33
          %v35 = vld [vmem:[%s17 + $0x40] sm:%s10]
          %36 = vst [vmem:[%s18 + $0x80] sm:%s10] %v35
          %v37 = vld [vmem:[%s17 + $0x48] sm:%s10]
          %38 = vst [vmem:[%s18 + $0x90] sm:%s10] %v37
          %v39 = vld [vmem:[%s17 + $0x50] sm:%s10]
          %40 = vst [vmem:[%s18 + $0xa0] sm:%s10] %v39
          %v41 = vld [vmem:[%s17 + $0x58] sm:%s10]
          %42 = vst [vmem:[%s18 + $0xb0] sm:%s10] %v41
          %v43 = vld [vmem:[%s17 + $0x60] sm:%s10]
          %44 = vst [vmem:[%s18 + $0xc0] sm:%s10] %v43
          %v45 = vld [vmem:[%s17 + $0x68] sm:%s10]
          %46 = vst [vmem:[%s18 + $0xd0] sm:%s10] %v45
          %v47 = vld [vmem:[%s17 + $0x70] sm:%s10]
          %48 = vst [vmem:[%s18 + $0xe0] sm:%s10] %v47
          %v49 = vld [vmem:[%s17 + $0x78] sm:%s10]
          %50 = vst [vmem:[%s18 + $0xf0] sm:%s10] %v49
        $region18: #{reverse.13} parent=12 // loop_footer
          %s16 = sadd.s32 1, %s12
        $region19: #{reverse.13} parent=12 // loop_footer_branch
          %11 = sbr.rel target = $region15
        $region20: #{reverse.13} parent=12 // loop_exit
          _
      $region13: #{reverse.13} parent=4 // pred_fallthru
        _
    $region5: #{reverse.13} parent=1 // pred_fallthru
      _
    %95 = vnop
    %s96 = scalar_lea.vmem [#allocation0], 7
    %v97 = vld [vmem:[%s96] ss:$-1 sm:$0xff]
    %v98 = vrot.slane %v97, 1
    %99 = vst [vmem:[#allocation1] sm:$0xff] %v98
    %s100 = scalar_lea.vmem [#allocation0], 8
    %s101 = scalar_lea.vmem %s100, 7 [#allocation0]
    %v102 = vld [vmem:[%s101] ss:$-1 sm:$0xff]
    %v103 = vrot.slane %v102, 1
    %v104 = vlaneseq
    %v105 = vshrl.u32 %v104, 7
    %vm106 = vcmp.lt.s32.totalorder %v105, 7
    %107 = vst.msk [vmem:[#allocation1] sm:$0xff] %vm106, %v103
    %s108 = scalar_lea.vmem [#allocation1], 8
    %s109 = scalar_lea.vmem [#allocation0], 16
    %s110 = scalar_lea.vmem %s109, 7 [#allocation0]
    %v111 = vld [vmem:[%s110] ss:$-1 sm:$0xff]
    %v112 = vrot.slane %v111, 1
    %113 = vst [vmem:[%s108] sm:$0xff] %v112
    %s114 = scalar_lea.vmem %s109, 8 [#allocation0]
    %s115 = scalar_lea.vmem %s114, 7 [#allocation0]
    %v116 = vld [vmem:[%s115] ss:$-1 sm:$0xff]
    %v117 = vrot.slane %v116, 1
    %v118 = vlaneseq
    %v119 = vshrl.u32 %v118, 7
    %vm120 = vcmp.lt.s32.totalorder %v119, 7
    %121 = vst.msk [vmem:[%s108] sm:$0xff] %vm120, %v117
    %s122 = scalar_lea.vmem [#allocation1], 16
    %s123 = scalar_lea.vmem [#allocation0], 32
    %s124 = scalar_lea.vmem %s123, 7 [#allocation0]
    %v125 = vld [vmem:[%s124] ss:$-1 sm:$0xff]
    %v126 = vrot.slane %v125, 1
    %127 = vst [vmem:[%s122] sm:$0xff] %v126
    %s128 = scalar_lea.vmem %s123, 8 [#allocation0]
    %s129 = scalar_lea.vmem %s128, 7 [#allocation0]
    %v130 = vld [vmem:[%s129] ss:$-1 sm:$0xff]
    %v131 = vrot.slane %v130, 1
    %v132 = vlaneseq
    %v133 = vshrl.u32 %v132, 7
    %vm134 = vcmp.lt.s32.totalorder %v133, 7
    %135 = vst.msk [vmem:[%s122] sm:$0xff] %vm134, %v131
    %s136 = scalar_lea.vmem [#allocation1], 24
    %s137 = scalar_lea.vmem [#allocation0], 48
    %s138 = scalar_lea.vmem %s137, 7 [#allocation0]
    %v139 = vld [vmem:[%s138] ss:$-1 sm:$0xff]
    %v140 = vrot.slane %v139, 1
    %141 = vst [vmem:[%s136] sm:$0xff] %v140
    %s142 = scalar_lea.vmem %s137, 8 [#allocation0]
    %s143 = scalar_lea.vmem %s142, 7 [#allocation0]
    %v144 = vld [vmem:[%s143] ss:$-1 sm:$0xff]
    %v145 = vrot.slane %v144, 1
    %v146 = vlaneseq
    %v147 = vshrl.u32 %v146, 7
    %vm148 = vcmp.lt.s32.totalorder %v147, 7
    %149 = vst.msk [vmem:[%s136] sm:$0xff] %vm148, %v145
    %s150 = scalar_lea.vmem [#allocation1], 32
    %s151 = scalar_lea.vmem [#allocation0], 64
    %s152 = scalar_lea.vmem %s151, 7 [#allocation0]
    %v153 = vld [vmem:[%s152] ss:$-1 sm:$0xff]
    %v154 = vrot.slane %v153, 1
    %155 = vst [vmem:[%s150] sm:$0xff] %v154
    %s156 = scalar_lea.vmem %s151, 8 [#allocation0]
    %s157 = scalar_lea.vmem %s156, 7 [#allocation0]
    %v158 = vld [vmem:[%s157] ss:$-1 sm:$0xff]
    %v159 = vrot.slane %v158, 1
    %v160 = vlaneseq
    %v161 = vshrl.u32 %v160, 7
    %vm162 = vcmp.lt.s32.totalorder %v161, 7
    %163 = vst.msk [vmem:[%s150] sm:$0xff] %vm162, %v159
    %s164 = scalar_lea.vmem [#allocation1], 40
    %s165 = scalar_lea.vmem [#allocation0], 80
    %s166 = scalar_lea.vmem %s165, 7 [#allocation0]
    %v167 = vld [vmem:[%s166] ss:$-1 sm:$0xff]
    %v168 = vrot.slane %v167, 1
    %169 = vst [vmem:[%s164] sm:$0xff] %v168
    %s170 = scalar_lea.vmem %s165, 8 [#allocation0]
    %s171 = scalar_lea.vmem %s170, 7 [#allocation0]
    %v172 = vld [vmem:[%s171] ss:$-1 sm:$0xff]
    %v173 = vrot.slane %v172, 1
    %v174 = vlaneseq
    %v175 = vshrl.u32 %v174, 7
    %vm176 = vcmp.lt.s32.totalorder %v175, 7
    %177 = vst.msk [vmem:[%s164] sm:$0xff] %vm176, %v173
    %s178 = scalar_lea.vmem [#allocation1], 48
    %s179 = scalar_lea.vmem [#allocation0], 96
    %s180 = scalar_lea.vmem %s179, 7 [#allocation0]
    %v181 = vld [vmem:[%s180] ss:$-1 sm:$0xff]
    %v182 = vrot.slane %v181, 1
    %183 = vst [vmem:[%s178] sm:$0xff] %v182
    %s184 = scalar_lea.vmem %s179, 8 [#allocation0]
    %s185 = scalar_lea.vmem %s184, 7 [#allocation0]
    %v186 = vld [vmem:[%s185] ss:$-1 sm:$0xff]
    %v187 = vrot.slane %v186, 1
    %v188 = vlaneseq
    %v189 = vshrl.u32 %v188, 7
    %vm190 = vcmp.lt.s32.totalorder %v189, 7
    %191 = vst.msk [vmem:[%s178] sm:$0xff] %vm190, %v187
    %s192 = scalar_lea.vmem [#allocation1], 56
    %s193 = scalar_lea.vmem [#allocation0], 112
    %s194 = scalar_lea.vmem %s193, 7 [#allocation0]
    %v195 = vld [vmem:[%s194] ss:$-1 sm:$0xff]
    %v196 = vrot.slane %v195, 1
    %197 = vst [vmem:[%s192] sm:$0xff] %v196
    %s198 = scalar_lea.vmem %s193, 8 [#allocation0]
    %s199 = scalar_lea.vmem %s198, 7 [#allocation0]
    %v200 = vld [vmem:[%s199] ss:$-1 sm:$0xff]
    %v201 = vrot.slane %v200, 1
    %v202 = vlaneseq
    %v203 = vshrl.u32 %v202, 7
    %vm204 = vcmp.lt.s32.totalorder %v203, 7
    %205 = vst.msk [vmem:[%s192] sm:$0xff] %vm204, %v201
    %s206 = scalar_lea.vmem [#allocation1], 64
    %s207 = scalar_lea.vmem [#allocation0], 128
    %s208 = scalar_lea.vmem %s207, 7 [#allocation0]
    %v209 = vld [vmem:[%s208] ss:$-1 sm:$0xff]
    %v210 = vrot.slane %v209, 1
    %211 = vst [vmem:[%s206] sm:$0xff] %v210
    %s212 = scalar_lea.vmem %s207, 8 [#allocation0]
    %s213 = scalar_lea.vmem %s212, 7 [#allocation0]
    %v214 = vld [vmem:[%s213] ss:$-1 sm:$0xff]
    %v215 = vrot.slane %v214, 1
    %v216 = vlaneseq
    %v217 = vshrl.u32 %v216, 7
    %vm218 = vcmp.lt.s32.totalorder %v217, 7
    %219 = vst.msk [vmem:[%s206] sm:$0xff] %vm218, %v215
    %s220 = scalar_lea.vmem [#allocation1], 72
    %s221 = scalar_lea.vmem [#allocation0], 144
    %s222 = scalar_lea.vmem %s221, 7 [#allocation0]
    %v223 = vld [vmem:[%s222] ss:$-1 sm:$0xff]
    %v224 = vrot.slane %v223, 1
    %225 = vst [vmem:[%s220] sm:$0xff] %v224
    %s226 = scalar_lea.vmem %s221, 8 [#allocation0]
    %s227 = scalar_lea.vmem %s226, 7 [#allocation0]
    %v228 = vld [vmem:[%s227] ss:$-1 sm:$0xff]
    %v229 = vrot.slane %v228, 1
    %v230 = vlaneseq
    %v231 = vshrl.u32 %v230, 7
    %vm232 = vcmp.lt.s32.totalorder %v231, 7
    %233 = vst.msk [vmem:[%s220] sm:$0xff] %vm232, %v229
    %s234 = scalar_lea.vmem [#allocation1], 80
    %s235 = scalar_lea.vmem [#allocation0], 160
    %s236 = scalar_lea.vmem %s235, 7 [#allocation0]
    %v237 = vld [vmem:[%s236] ss:$-1 sm:$0xff]
    %v238 = vrot.slane %v237, 1
    %239 = vst [vmem:[%s234] sm:$0xff] %v238
    %s240 = scalar_lea.vmem %s235, 8 [#allocation0]
    %s241 = scalar_lea.vmem %s240, 7 [#allocation0]
    %v242 = vld [vmem:[%s241] ss:$-1 sm:$0xff]
    %v243 = vrot.slane %v242, 1
    %v244 = vlaneseq
    %v245 = vshrl.u32 %v244, 7
    %vm246 = vcmp.lt.s32.totalorder %v245, 7
    %247 = vst.msk [vmem:[%s234] sm:$0xff] %vm246, %v243
    %s248 = scalar_lea.vmem [#allocation1], 88
    %s249 = scalar_lea.vmem [#allocation0], 176
    %s250 = scalar_lea.vmem %s249, 7 [#allocation0]
    %v251 = vld [vmem:[%s250] ss:$-1 sm:$0xff]
    %v252 = vrot.slane %v251, 1
    %253 = vst [vmem:[%s248] sm:$0xff] %v252
    %s254 = scalar_lea.vmem %s249, 8 [#allocation0]
    %s255 = scalar_lea.vmem %s254, 7 [#allocation0]
    %v256 = vld [vmem:[%s255] ss:$-1 sm:$0xff]
    %v257 = vrot.slane %v256, 1
    %v258 = vlaneseq
    %v259 = vshrl.u32 %v258, 7
    %vm260 = vcmp.lt.s32.totalorder %v259, 7
    %261 = vst.msk [vmem:[%s248] sm:$0xff] %vm260, %v257
    %s262 = scalar_lea.vmem [#allocation1], 96
    %s263 = scalar_lea.vmem [#allocation0], 192
    %s264 = scalar_lea.vmem %s263, 7 [#allocation0]
    %v265 = vld [vmem:[%s264] ss:$-1 sm:$0xff]
    %v266 = vrot.slane %v265, 1
    %267 = vst [vmem:[%s262] sm:$0xff] %v266
    %s268 = scalar_lea.vmem %s263, 8 [#allocation0]
    %s269 = scalar_lea.vmem %s268, 7 [#allocation0]
    %v270 = vld [vmem:[%s269] ss:$-1 sm:$0xff]
    %v271 = vrot.slane %v270, 1
    %v272 = vlaneseq
    %v273 = vshrl.u32 %v272, 7
    %vm274 = vcmp.lt.s32.totalorder %v273, 7
    %275 = vst.msk [vmem:[%s262] sm:$0xff] %vm274, %v271
    %s276 = scalar_lea.vmem [#allocation1], 104
    %s277 = scalar_lea.vmem [#allocation0], 208
    %s278 = scalar_lea.vmem %s277, 7 [#allocation0]
    %v279 = vld [vmem:[%s278] ss:$-1 sm:$0xff]
    %v280 = vrot.slane %v279, 1
    %281 = vst [vmem:[%s276] sm:$0xff] %v280
    %s282 = scalar_lea.vmem %s277, 8 [#allocation0]
    %s283 = scalar_lea.vmem %s282, 7 [#allocation0]
    %v284 = vld [vmem:[%s283] ss:$-1 sm:$0xff]
    %v285 = vrot.slane %v284, 1
    %v286 = vlaneseq
    %v287 = vshrl.u32 %v286, 7
    %vm288 = vcmp.lt.s32.totalorder %v287, 7
    %289 = vst.msk [vmem:[%s276] sm:$0xff] %vm288, %v285
    %s290 = scalar_lea.vmem [#allocation1], 112
    %s291 = scalar_lea.vmem [#allocation0], 224
    %s292 = scalar_lea.vmem %s291, 7 [#allocation0]
    %v293 = vld [vmem:[%s292] ss:$-1 sm:$0xff]
    %v294 = vrot.slane %v293, 1
    %295 = vst [vmem:[%s290] sm:$0xff] %v294
    %s296 = scalar_lea.vmem %s291, 8 [#allocation0]
    %s297 = scalar_lea.vmem %s296, 7 [#allocation0]
    %v298 = vld [vmem:[%s297] ss:$-1 sm:$0xff]
    %v299 = vrot.slane %v298, 1
    %v300 = vlaneseq
    %v301 = vshrl.u32 %v300, 7
    %vm302 = vcmp.lt.s32.totalorder %v301, 7
    %303 = vst.msk [vmem:[%s290] sm:$0xff] %vm302, %v299
    %s304 = scalar_lea.vmem [#allocation1], 120
    %s305 = scalar_lea.vmem [#allocation0], 240
    %s306 = scalar_lea.vmem %s305, 7 [#allocation0]
    %v307 = vld [vmem:[%s306] ss:$-1 sm:$0xff]
    %v308 = vrot.slane %v307, 1
    %309 = vst [vmem:[%s304] sm:$0xff] %v308
    %s310 = scalar_lea.vmem %s305, 8 [#allocation0]
    %s311 = scalar_lea.vmem %s310, 7 [#allocation0]
    %v312 = vld [vmem:[%s311] ss:$-1 sm:$0xff]
    %v313 = vrot.slane %v312, 1
    %v314 = vlaneseq
    %v315 = vshrl.u32 %v314, 7
    %vm316 = vcmp.lt.s32.totalorder %v315, 7
    %317 = vst.msk [vmem:[%s304] sm:$0xff] %vm316, %v313
    // Predicated region
    $region36: #{reverse.13} parent=1 // pred_check
      _
    $region37: #{reverse.13} parent=1 // pred_check_branch
      %319 = sbr.rel (0) target = $region39
    $region38: #{reverse.13} parent=1 // pred_region
      // Predicated region
      $region40: #{reverse.13} parent=38 // pred_check
        _
      $region41: #{reverse.13} parent=38 // pred_check_branch
        %321 = sbr.rel (0) target = $region43
      $region42: #{reverse.13} parent=38 // pred_region
        // Predicated region
        $region55: #{reverse.13} parent=42 // pred_check
          _
        $region56: #{reverse.13} parent=42 // pred_check_branch
          %367 = sbr.rel (0) target = $region58
        $region57: #{reverse.13} parent=42 // pred_region
          loop: start=0, step=1, limit=1
          $region59: #{reverse.13} parent=57 // loop_pre_header
            _
          $region60: #{reverse.13} parent=57 // loop_header
            %s369 = sphi 0, %s373
            %p370 = scmp.ge.s32.totalorder %s369, 1
            %s374 = sphi [#allocation1], [#allocation1]
            %s375 = sphi %s1, %s1
          $region61: #{reverse.13} parent=57 // loop_header_branch
            %372 = sbr.rel (%p370) target = $region65
          $region62: #{reverse.13} parent=57 // loop_body
            %v376 = vld [vmem:[%s374] sm:$0xff]
            %377 = vst [vmem:[%s375] sm:$0xff] %v376
            %v378 = vld [vmem:[%s374 + $0x8] sm:$0xff]
            %379 = vst [vmem:[%s375 + $0x8] sm:$0xff] %v378
            %v380 = vld [vmem:[%s374 + $0x10] sm:$0xff]
            %381 = vst [vmem:[%s375 + $0x10] sm:$0xff] %v380
            %v382 = vld [vmem:[%s374 + $0x18] sm:$0xff]
            %383 = vst [vmem:[%s375 + $0x18] sm:$0xff] %v382
            %v384 = vld [vmem:[%s374 + $0x20] sm:$0xff]
            %385 = vst [vmem:[%s375 + $0x20] sm:$0xff] %v384
            %v386 = vld [vmem:[%s374 + $0x28] sm:$0xff]
            %387 = vst [vmem:[%s375 + $0x28] sm:$0xff] %v386
            %v388 = vld [vmem:[%s374 + $0x30] sm:$0xff]
            %389 = vst [vmem:[%s375 + $0x30] sm:$0xff] %v388
            %v390 = vld [vmem:[%s374 + $0x38] sm:$0xff]
            %391 = vst [vmem:[%s375 + $0x38] sm:$0xff] %v390
            %v392 = vld [vmem:[%s374 + $0x40] sm:$0xff]
            %393 = vst [vmem:[%s375 + $0x40] sm:$0xff] %v392
            %v394 = vld [vmem:[%s374 + $0x48] sm:$0xff]
            %395 = vst [vmem:[%s375 + $0x48] sm:$0xff] %v394
            %v396 = vld [vmem:[%s374 + $0x50] sm:$0xff]
            %397 = vst [vmem:[%s375 + $0x50] sm:$0xff] %v396
            %v398 = vld [vmem:[%s374 + $0x58] sm:$0xff]
            %399 = vst [vmem:[%s375 + $0x58] sm:$0xff] %v398
            %v400 = vld [vmem:[%s374 + $0x60] sm:$0xff]
            %401 = vst [vmem:[%s375 + $0x60] sm:$0xff] %v400
            %v402 = vld [vmem:[%s374 + $0x68] sm:$0xff]
            %403 = vst [vmem:[%s375 + $0x68] sm:$0xff] %v402
            %v404 = vld [vmem:[%s374 + $0x70] sm:$0xff]
            %405 = vst [vmem:[%s375 + $0x70] sm:$0xff] %v404
            %v406 = vld [vmem:[%s374 + $0x78] sm:$0xff]
            %407 = vst [vmem:[%s375 + $0x78] sm:$0xff] %v406
          $region63: #{reverse.13} parent=57 // loop_footer
            %s373 = sadd.s32 1, %s369
          $region64: #{reverse.13} parent=57 // loop_footer_branch
            %368 = sbr.rel target = $region60
          $region65: #{reverse.13} parent=57 // loop_exit
            _
        $region58: #{reverse.13} parent=42 // pred_fallthru
          _
        // Predicated region
        $region66: #{reverse.13} parent=42 // pred_check
          _
        $region67: #{reverse.13} parent=42 // pred_check_branch
          %409 = sbr.rel target = $region69
        $region68: #{reverse.13} parent=42 // pred_region
          _
        $region69: #{reverse.13} parent=42 // pred_fallthru
          _
      $region43: #{reverse.13} parent=38 // pred_fallthru
        _
      // Predicated region
      $region44: #{reverse.13} parent=38 // pred_check
        _
      $region45: #{reverse.13} parent=38 // pred_check_branch
        %323 = sbr.rel target = $region47
      $region46: #{reverse.13} parent=38 // pred_region
        %s325 = ssub.s32 256, 1
        loop: start=0, step=1, limit=1
        $region48: #{reverse.13} parent=46 // loop_pre_header
          _
        $region49: #{reverse.13} parent=46 // loop_header
          %s327 = sphi 0, %s331
          %p328 = scmp.ge.s32.totalorder %s327, 1
          %s332 = sphi [#allocation1], [#allocation1]
          %s333 = sphi %s1, %s1
        $region50: #{reverse.13} parent=46 // loop_header_branch
          %330 = sbr.rel (%p328) target = $region54
        $region51: #{reverse.13} parent=46 // loop_body
          %v334 = vld [vmem:[%s332] sm:%s325]
          %335 = vst [vmem:[%s333] sm:%s325] %v334
          %v336 = vld [vmem:[%s332 + $0x8] sm:%s325]
          %337 = vst [vmem:[%s333 + $0x8] sm:%s325] %v336
          %v338 = vld [vmem:[%s332 + $0x10] sm:%s325]
          %339 = vst [vmem:[%s333 + $0x10] sm:%s325] %v338
          %v340 = vld [vmem:[%s332 + $0x18] sm:%s325]
          %341 = vst [vmem:[%s333 + $0x18] sm:%s325] %v340
          %v342 = vld [vmem:[%s332 + $0x20] sm:%s325]
          %343 = vst [vmem:[%s333 + $0x20] sm:%s325] %v342
          %v344 = vld [vmem:[%s332 + $0x28] sm:%s325]
          %345 = vst [vmem:[%s333 + $0x28] sm:%s325] %v344
          %v346 = vld [vmem:[%s332 + $0x30] sm:%s325]
          %347 = vst [vmem:[%s333 + $0x30] sm:%s325] %v346
          %v348 = vld [vmem:[%s332 + $0x38] sm:%s325]
          %349 = vst [vmem:[%s333 + $0x38] sm:%s325] %v348
          %v350 = vld [vmem:[%s332 + $0x40] sm:%s325]
          %351 = vst [vmem:[%s333 + $0x40] sm:%s325] %v350
          %v352 = vld [vmem:[%s332 + $0x48] sm:%s325]
          %353 = vst [vmem:[%s333 + $0x48] sm:%s325] %v352
          %v354 = vld [vmem:[%s332 + $0x50] sm:%s325]
          %355 = vst [vmem:[%s333 + $0x50] sm:%s325] %v354
          %v356 = vld [vmem:[%s332 + $0x58] sm:%s325]
          %357 = vst [vmem:[%s333 + $0x58] sm:%s325] %v356
          %v358 = vld [vmem:[%s332 + $0x60] sm:%s325]
          %359 = vst [vmem:[%s333 + $0x60] sm:%s325] %v358
          %v360 = vld [vmem:[%s332 + $0x68] sm:%s325]
          %361 = vst [vmem:[%s333 + $0x68] sm:%s325] %v360
          %v362 = vld [vmem:[%s332 + $0x70] sm:%s325]
          %363 = vst [vmem:[%s333 + $0x70] sm:%s325] %v362
          %v364 = vld [vmem:[%s332 + $0x78] sm:%s325]
          %365 = vst [vmem:[%s333 + $0x78] sm:%s325] %v364
        $region52: #{reverse.13} parent=46 // loop_footer
          %s331 = sadd.s32 1, %s327
        $region53: #{reverse.13} parent=46 // loop_footer_branch
          %326 = sbr.rel target = $region49
        $region54: #{reverse.13} parent=46 // loop_exit
          _
      $region47: #{reverse.13} parent=38 // pred_fallthru
        _
    $region39: #{reverse.13} parent=1 // pred_fallthru
      _
    %410 = vnop

// kernel: _lambda_.40
$region0: #{_lambda_.40}
  #allocation0 [shape = 'u32[]', space=smem, size = 0x4, offset = 0x4, fixed_abs, tag = 'smem constant byte address 0x4 - core index']
  #allocation1 [shape = 'u32[144,128]{1,0:T(1,128)}', space=vmem, size = 0x12000, scoped, tag = 'internal scratch']
  %s0 = inlined_call_operand.vmem [shape: f32[512,8], index: 0, kind: input, shape index: {}]
  %s1 = inlined_call_operand.vmem [shape: bf16[8,8], index: 1, kind: input, shape index: {}]
  %s2 = inlined_call_operand.vmem [shape: f32[1,8], index: 2, kind: input, shape index: {}]
  %s3 = inlined_call_operand.vmem [shape: f32[512,8], index: 3, kind: input, shape index: {}]
  %s4 = inlined_call_operand.vmem [shape: f32[512,8], index: 4, kind: output, shape index: {}]
  %s5 = sld [smem:[#allocation0]]
  $region26: #{_lambda_.40} parent=0
    _
  %s7 = ssub.s32 1, %s5
  %s8 = scalar_select 0, %s7, %s5
  // Predicated region
  $region2: #{_lambda_.40} parent=0 // pred_check
    _
  $region3: #{_lambda_.40} parent=0 // pred_check_branch
    %10 = sbr.rel (0) target = $region5
  $region4: #{_lambda_.40} parent=0 // pred_region
    _
  $region5: #{_lambda_.40} parent=0 // pred_fallthru
    _
  // Predicated region
  $region6: #{_lambda_.40} parent=0 // pred_check
    _
  $region7: #{_lambda_.40} parent=0 // pred_check_branch
    %12 = sbr.rel (0) target = $region9
  $region8: #{_lambda_.40} parent=0 // pred_region
    _
  $region9: #{_lambda_.40} parent=0 // pred_fallthru
    _
  // Predicated region
  $region10: #{_lambda_.40} parent=0 // pred_check
    _
  $region11: #{_lambda_.40} parent=0 // pred_check_branch
    %14 = sbr.rel (0) target = $region13
  $region12: #{_lambda_.40} parent=0 // pred_region
    _
  $region13: #{_lambda_.40} parent=0 // pred_fallthru
    _
  // Predicated region
  $region14: #{_lambda_.40} parent=0 // pred_check
    _
  $region15: #{_lambda_.40} parent=0 // pred_check_branch
    %16 = sbr.rel (0) target = $region17
  $region16: #{_lambda_.40} parent=0 // pred_region
    _
  $region17: #{_lambda_.40} parent=0 // pred_fallthru
    _
  %v18 = vld [vmem:[%s0] sm:$0xff]
  %v19 = vld [vmem:[%s0 + $0x8] sm:$0xff]
  %v20 = vld [vmem:[%s0 + $0x10] sm:$0xff]
  %v21 = vld [vmem:[%s0 + $0x18] sm:$0xff]
  %v22 = vld [vmem:[%s0 + $0x20] sm:$0xff]
  %v23 = vld [vmem:[%s0 + $0x28] sm:$0xff]
  %v24 = vld [vmem:[%s0 + $0x30] sm:$0xff]
  %v25 = vld [vmem:[%s0 + $0x38] sm:$0xff]
  %v26 = vld [vmem:[%s0 + $0x40] sm:$0xff]
  %v27 = vld [vmem:[%s0 + $0x48] sm:$0xff]
  %v28 = vld [vmem:[%s0 + $0x50] sm:$0xff]
  %v29 = vld [vmem:[%s0 + $0x58] sm:$0xff]
  %v30 = vld [vmem:[%s0 + $0x60] sm:$0xff]
  %v31 = vld [vmem:[%s0 + $0x68] sm:$0xff]
  %v32 = vld [vmem:[%s0 + $0x70] sm:$0xff]
  %v33 = vld [vmem:[%s0 + $0x78] sm:$0xff]
  %v34 = vld [vmem:[%s0 + $0x80] sm:$0xff]
  %v35 = vld [vmem:[%s0 + $0x88] sm:$0xff]
  %v36 = vld [vmem:[%s0 + $0x90] sm:$0xff]
  %v37 = vld [vmem:[%s0 + $0x98] sm:$0xff]
  %v38 = vld [vmem:[%s0 + $0xa0] sm:$0xff]
  %v39 = vld [vmem:[%s0 + $0xa8] sm:$0xff]
  %v40 = vld [vmem:[%s0 + $0xb0] sm:$0xff]
  %v41 = vld [vmem:[%s0 + $0xb8] sm:$0xff]
  %v42 = vld [vmem:[%s0 + $0xc0] sm:$0xff]
  %v43 = vld [vmem:[%s0 + $0xc8] sm:$0xff]
  %v44 = vld [vmem:[%s0 + $0xd0] sm:$0xff]
  %v45 = vld [vmem:[%s0 + $0xd8] sm:$0xff]
  %v46 = vld [vmem:[%s0 + $0xe0] sm:$0xff]
  %v47 = vld [vmem:[%s0 + $0xe8] sm:$0xff]
  %v48 = vld [vmem:[%s0 + $0xf0] sm:$0xff]
  %v49 = vld [vmem:[%s0 + $0xf8] sm:$0xff]
  %v50 = vld [vmem:[%s0 + $0x100] sm:$0xff]
  %v51 = vld [vmem:[%s0 + $0x108] sm:$0xff]
  %v52 = vld [vmem:[%s0 + $0x110] sm:$0xff]
  %v53 = vld [vmem:[%s0 + $0x118] sm:$0xff]
  %v54 = vld [vmem:[%s0 + $0x120] sm:$0xff]
  %v55 = vld [vmem:[%s0 + $0x128] sm:$0xff]
  %v56 = vld [vmem:[%s0 + $0x130] sm:$0xff]
  %v57 = vld [vmem:[%s0 + $0x138] sm:$0xff]
  %v58 = vld [vmem:[%s0 + $0x140] sm:$0xff]
  %v59 = vld [vmem:[%s0 + $0x148] sm:$0xff]
  %v60 = vld [vmem:[%s0 + $0x150] sm:$0xff]
  %v61 = vld [vmem:[%s0 + $0x158] sm:$0xff]
  %v62 = vld [vmem:[%s0 + $0x160] sm:$0xff]
  %v63 = vld [vmem:[%s0 + $0x168] sm:$0xff]
  %v64 = vld [vmem:[%s0 + $0x170] sm:$0xff]
  %v65 = vld [vmem:[%s0 + $0x178] sm:$0xff]
  %v66 = vld [vmem:[%s0 + $0x180] sm:$0xff]
  %v67 = vld [vmem:[%s0 + $0x188] sm:$0xff]
  %v68 = vld [vmem:[%s0 + $0x190] sm:$0xff]
  %v69 = vld [vmem:[%s0 + $0x198] sm:$0xff]
  %v70 = vld [vmem:[%s0 + $0x1a0] sm:$0xff]
  %v71 = vld [vmem:[%s0 + $0x1a8] sm:$0xff]
  %v72 = vld [vmem:[%s0 + $0x1b0] sm:$0xff]
  %v73 = vld [vmem:[%s0 + $0x1b8] sm:$0xff]
  %v74 = vld [vmem:[%s0 + $0x1c0] sm:$0xff]
  %v75 = vld [vmem:[%s0 + $0x1c8] sm:$0xff]
  %v76 = vld [vmem:[%s0 + $0x1d0] sm:$0xff]
  %v77 = vld [vmem:[%s0 + $0x1d8] sm:$0xff]
  %v78 = vld [vmem:[%s0 + $0x1e0] sm:$0xff]
  %v79 = vld [vmem:[%s0 + $0x1e8] sm:$0xff]
  %v80 = vld [vmem:[%s0 + $0x1f0] sm:$0xff]
  %v81 = vld [vmem:[%s0 + $0x1f8] sm:$0xff]
  %v82 = vpack.c.bf16 %v19, %v18
  %v83 = vpack.c.bf16 %v21, %v20
  %v84 = vpack.c.bf16 %v23, %v22
  %v85 = vpack.c.bf16 %v25, %v24
  %v86 = vpack.c.bf16 %v27, %v26
  %v87 = vpack.c.bf16 %v29, %v28
  %v88 = vpack.c.bf16 %v31, %v30
  %v89 = vpack.c.bf16 %v33, %v32
  %v90 = vpack.c.bf16 %v35, %v34
  %v91 = vpack.c.bf16 %v37, %v36
  %v92 = vpack.c.bf16 %v39, %v38
  %v93 = vpack.c.bf16 %v41, %v40
  %v94 = vpack.c.bf16 %v43, %v42
  %v95 = vpack.c.bf16 %v45, %v44
  %v96 = vpack.c.bf16 %v47, %v46
  %v97 = vpack.c.bf16 %v49, %v48
  %v98 = vpack.c.bf16 %v51, %v50
  %v99 = vpack.c.bf16 %v53, %v52
  %v100 = vpack.c.bf16 %v55, %v54
  %v101 = vpack.c.bf16 %v57, %v56
  %v102 = vpack.c.bf16 %v59, %v58
  %v103 = vpack.c.bf16 %v61, %v60
  %v104 = vpack.c.bf16 %v63, %v62
  %v105 = vpack.c.bf16 %v65, %v64
  %v106 = vpack.c.bf16 %v67, %v66
  %v107 = vpack.c.bf16 %v69, %v68
  %v108 = vpack.c.bf16 %v71, %v70
  %v109 = vpack.c.bf16 %v73, %v72
  %v110 = vpack.c.bf16 %v75, %v74
  %v111 = vpack.c.bf16 %v77, %v76
  %v112 = vpack.c.bf16 %v79, %v78
  %v113 = vpack.c.bf16 %v81, %v80
  %v114 = vld [vmem:[%s1] sm:$0xf]
  %v115 = vld [vmem:[%s2] sm:$0x1]
  %v117 = vlaneseq
  %v118 = vshrl.u32 %v117, 7
  %v119 = vsub.s32 0, %v118
  %v120 = vrot.slane %v115, %v119
  %vm122 = vcmask 64512
  %v124 = vsel %vm122, %v82, 0
  %v127 = vsel %vm122, %v83, 0
  %v130 = vsel %vm122, %v84, 0
  %v133 = vsel %vm122, %v85, 0
  %v136 = vsel %vm122, %v86, 0
  %v139 = vsel %vm122, %v87, 0
  %v142 = vsel %vm122, %v88, 0
  %v145 = vsel %vm122, %v89, 0
  %v148 = vsel %vm122, %v90, 0
  %v151 = vsel %vm122, %v91, 0
  %v154 = vsel %vm122, %v92, 0
  %v157 = vsel %vm122, %v93, 0
  %v160 = vsel %vm122, %v94, 0
  %v163 = vsel %vm122, %v95, 0
  %v166 = vsel %vm122, %v96, 0
  %v169 = vsel %vm122, %v97, 0
  %v172 = vsel %vm122, %v98, 0
  %v175 = vsel %vm122, %v99, 0
  %v178 = vsel %vm122, %v100, 0
  %v181 = vsel %vm122, %v101, 0
  %v184 = vsel %vm122, %v102, 0
  %v187 = vsel %vm122, %v103, 0
  %v190 = vsel %vm122, %v104, 0
  %v193 = vsel %vm122, %v105, 0
  %v196 = vsel %vm122, %v106, 0
  %v199 = vsel %vm122, %v107, 0
  %v202 = vsel %vm122, %v108, 0
  %v205 = vsel %vm122, %v109, 0
  %v208 = vsel %vm122, %v110, 0
  %v211 = vsel %vm122, %v111, 0
  %v214 = vsel %vm122, %v112, 0
  %v217 = vsel %vm122, %v113, 0
  %vm219 = vcmask 1043456
  %v221 = vsel %vm219, %v114, 0
  %223 = vmatprep.subr.bf16.mxu0 0
  %224 = vmatpush1.bf16.msra.mxu0 0
  %225 = vmatprep.subr.bf16.mxu0 0
  %226 = vmatpush1.bf16.msra.mxu0 0
  %227 = vmatprep.subr.bf16.mxu0 0
  %228 = vmatpush1.bf16.msra.mxu0 0
  %229 = vmatprep.subr.bf16.mxu0 0
  %230 = vmatpush1.bf16.msra.mxu0 0
  %231 = vmatprep.subr.bf16.mxu0 0
  %232 = vmatpush1.bf16.msra.mxu0 0
  %233 = vmatprep.subr.bf16.mxu0 0
  %234 = vmatpush1.bf16.msra.mxu0 0
  %235 = vmatprep.subr.bf16.mxu0 0
  %236 = vmatpush1.bf16.msra.mxu0 0
  %237 = vmatprep.subr.bf16.mxu0 0
  %238 = vmatpush1.bf16.msra.mxu0 %v221
  %239 = vmatprep.subr.bf16.mxu0 0
  %240 = vmatpush2.bf16.msra.mxu0 0
  %241 = vmatprep.subr.bf16.mxu0 0
  %242 = vmatpush2.bf16.msra.mxu0 0
  %243 = vmatprep.subr.bf16.mxu0 0
  %244 = vmatpush2.bf16.msra.mxu0 0
  %245 = vmatprep.subr.bf16.mxu0 0
  %246 = vmatpush2.bf16.msra.mxu0 0
  %247 = vmatprep.subr.bf16.mxu0 0
  %248 = vmatpush2.bf16.msra.mxu0 0
  %249 = vmatprep.subr.bf16.mxu0 0
  %250 = vmatpush2.bf16.msra.mxu0 0
  %251 = vmatprep.subr.bf16.mxu0 0
  %252 = vmatpush2.bf16.msra.mxu0 0
  %253 = vmatprep.subr.bf16.mxu0 0
  %254 = vmatpush2.bf16.msra.mxu0 0
  %255 = vmatprep.mubr.bf16.mxu0 0
  %256 = vmatmul.mubr.bf16.gmra.mxu0 %v124
  %v257 = vpop.f32.mrf.mxu0
  %v258 = vadd.f32 %v120, %v257
  %v259 = vpop.f32.mrf.mxu0
  %v260 = vpop.f32.mrf.mxu0
  %v261 = vadd.f32 %v120, %v260
  %v262 = vpop.f32.mrf.mxu0
  %263 = vmatprep.mubr.bf16.mxu0 0
  %264 = vmatmul.mubr.bf16.gmra.mxu0 %v127
  %v265 = vpop.f32.mrf.mxu0
  %v266 = vadd.f32 %v120, %v265
  %v267 = vpop.f32.mrf.mxu0
  %v268 = vpop.f32.mrf.mxu0
  %v269 = vadd.f32 %v120, %v268
  %v270 = vpop.f32.mrf.mxu0
  %271 = vmatprep.mubr.bf16.mxu0 0
  %272 = vmatmul.mubr.bf16.gmra.mxu0 %v130
  %v273 = vpop.f32.mrf.mxu0
  %v274 = vadd.f32 %v120, %v273
  %v275 = vpop.f32.mrf.mxu0
  %v276 = vpop.f32.mrf.mxu0
  %v277 = vadd.f32 %v120, %v276
  %v278 = vpop.f32.mrf.mxu0
  %279 = vmatprep.mubr.bf16.mxu0 0
  %280 = vmatmul.mubr.bf16.gmra.mxu0 %v133
  %v281 = vpop.f32.mrf.mxu0
  %v282 = vadd.f32 %v120, %v281
  %v283 = vpop.f32.mrf.mxu0
  %v284 = vpop.f32.mrf.mxu0
  %v285 = vadd.f32 %v120, %v284
  %v286 = vpop.f32.mrf.mxu0
  %287 = vmatprep.mubr.bf16.mxu0 0
  %288 = vmatmul.mubr.bf16.gmra.mxu0 %v136
  %v289 = vpop.f32.mrf.mxu0
  %v290 = vadd.f32 %v120, %v289
  %v291 = vpop.f32.mrf.mxu0
  %v292 = vpop.f32.mrf.mxu0
  %v293 = vadd.f32 %v120, %v292
  %v294 = vpop.f32.mrf.mxu0
  %295 = vmatprep.mubr.bf16.mxu0 0
  %296 = vmatmul.mubr.bf16.gmra.mxu0 %v139
  %v297 = vpop.f32.mrf.mxu0
  %v298 = vadd.f32 %v120, %v297
  %v299 = vpop.f32.mrf.mxu0
  %v300 = vpop.f32.mrf.mxu0
  %v301 = vadd.f32 %v120, %v300
  %v302 = vpop.f32.mrf.mxu0
  %303 = vmatprep.mubr.bf16.mxu0 0
  %304 = vmatmul.mubr.bf16.gmra.mxu0 %v142
  %v305 = vpop.f32.mrf.mxu0
  %v306 = vadd.f32 %v120, %v305
  %v307 = vpop.f32.mrf.mxu0
  %v308 = vpop.f32.mrf.mxu0
  %v309 = vadd.f32 %v120, %v308
  %v310 = vpop.f32.mrf.mxu0
  %311 = vmatprep.mubr.bf16.mxu0 0
  %312 = vmatmul.mubr.bf16.gmra.mxu0 %v145
  %v313 = vpop.f32.mrf.mxu0
  %v314 = vadd.f32 %v120, %v313
  %v315 = vpop.f32.mrf.mxu0
  %v316 = vpop.f32.mrf.mxu0
  %v317 = vadd.f32 %v120, %v316
  %v318 = vpop.f32.mrf.mxu0
  %319 = vmatprep.mubr.bf16.mxu0 0
  %320 = vmatmul.mubr.bf16.gmra.mxu0 %v148
  %v321 = vpop.f32.mrf.mxu0
  %v322 = vadd.f32 %v120, %v321
  %v323 = vpop.f32.mrf.mxu0
  %v324 = vpop.f32.mrf.mxu0
  %v325 = vadd.f32 %v120, %v324
  %v326 = vpop.f32.mrf.mxu0
  %327 = vmatprep.mubr.bf16.mxu0 0
  %328 = vmatmul.mubr.bf16.gmra.mxu0 %v151
  %v329 = vpop.f32.mrf.mxu0
  %v330 = vadd.f32 %v120, %v329
  %v331 = vpop.f32.mrf.mxu0
  %v332 = vpop.f32.mrf.mxu0
  %v333 = vadd.f32 %v120, %v332
  %v334 = vpop.f32.mrf.mxu0
  %335 = vmatprep.mubr.bf16.mxu0 0
  %336 = vmatmul.mubr.bf16.gmra.mxu0 %v154
  %v337 = vpop.f32.mrf.mxu0
  %v338 = vadd.f32 %v120, %v337
  %v339 = vpop.f32.mrf.mxu0
  %v340 = vpop.f32.mrf.mxu0
  %v341 = vadd.f32 %v120, %v340
  %v342 = vpop.f32.mrf.mxu0
  %343 = vmatprep.mubr.bf16.mxu0 0
  %344 = vmatmul.mubr.bf16.gmra.mxu0 %v157
  %v345 = vpop.f32.mrf.mxu0
  %v346 = vadd.f32 %v120, %v345
  %v347 = vpop.f32.mrf.mxu0
  %v348 = vpop.f32.mrf.mxu0
  %v349 = vadd.f32 %v120, %v348
  %v350 = vpop.f32.mrf.mxu0
  %351 = vmatprep.mubr.bf16.mxu0 0
  %352 = vmatmul.mubr.bf16.gmra.mxu0 %v160
  %v353 = vpop.f32.mrf.mxu0
  %v354 = vadd.f32 %v120, %v353
  %v355 = vpop.f32.mrf.mxu0
  %v356 = vpop.f32.mrf.mxu0
  %v357 = vadd.f32 %v120, %v356
  %v358 = vpop.f32.mrf.mxu0
  %359 = vmatprep.mubr.bf16.mxu0 0
  %360 = vmatmul.mubr.bf16.gmra.mxu0 %v163
  %v361 = vpop.f32.mrf.mxu0
  %v362 = vadd.f32 %v120, %v361
  %v363 = vpop.f32.mrf.mxu0
  %v364 = vpop.f32.mrf.mxu0
  %v365 = vadd.f32 %v120, %v364
  %v366 = vpop.f32.mrf.mxu0
  %367 = vmatprep.mubr.bf16.mxu0 0
  %368 = vmatmul.mubr.bf16.gmra.mxu0 %v166
  %v369 = vpop.f32.mrf.mxu0
  %v370 = vadd.f32 %v120, %v369
  %v371 = vpop.f32.mrf.mxu0
  %v372 = vpop.f32.mrf.mxu0
  %v373 = vadd.f32 %v120, %v372
  %v374 = vpop.f32.mrf.mxu0
  %375 = vmatprep.mubr.bf16.mxu0 0
  %376 = vmatmul.mubr.bf16.gmra.mxu0 %v169
  %v377 = vpop.f32.mrf.mxu0
  %v378 = vadd.f32 %v120, %v377
  %v379 = vpop.f32.mrf.mxu0
  %v380 = vpop.f32.mrf.mxu0
  %v381 = vadd.f32 %v120, %v380
  %v382 = vpop.f32.mrf.mxu0
  %383 = vmatprep.mubr.bf16.mxu0 0
  %384 = vmatmul.mubr.bf16.gmra.mxu0 %v172
  %v385 = vpop.f32.mrf.mxu0
  %v386 = vadd.f32 %v120, %v385
  %v387 = vpop.f32.mrf.mxu0
  %v388 = vpop.f32.mrf.mxu0
  %v389 = vadd.f32 %v120, %v388
  %v390 = vpop.f32.mrf.mxu0
  %391 = vmatprep.mubr.bf16.mxu0 0
  %392 = vmatmul.mubr.bf16.gmra.mxu0 %v175
  %v393 = vpop.f32.mrf.mxu0
  %v394 = vadd.f32 %v120, %v393
  %v395 = vpop.f32.mrf.mxu0
  %v396 = vpop.f32.mrf.mxu0
  %v397 = vadd.f32 %v120, %v396
  %v398 = vpop.f32.mrf.mxu0
  %399 = vmatprep.mubr.bf16.mxu0 0
  %400 = vmatmul.mubr.bf16.gmra.mxu0 %v178
  %v401 = vpop.f32.mrf.mxu0
  %v402 = vadd.f32 %v120, %v401
  %v403 = vpop.f32.mrf.mxu0
  %v404 = vpop.f32.mrf.mxu0
  %v405 = vadd.f32 %v120, %v404
  %v406 = vpop.f32.mrf.mxu0
  %407 = vmatprep.mubr.bf16.mxu0 0
  %408 = vmatmul.mubr.bf16.gmra.mxu0 %v181
  %v409 = vpop.f32.mrf.mxu0
  %v410 = vadd.f32 %v120, %v409
  %v411 = vpop.f32.mrf.mxu0
  %v412 = vpop.f32.mrf.mxu0
  %v413 = vadd.f32 %v120, %v412
  %v414 = vpop.f32.mrf.mxu0
  %415 = vmatprep.mubr.bf16.mxu0 0
  %416 = vmatmul.mubr.bf16.gmra.mxu0 %v184
  %v417 = vpop.f32.mrf.mxu0
  %v418 = vadd.f32 %v120, %v417
  %v419 = vpop.f32.mrf.mxu0
  %v420 = vpop.f32.mrf.mxu0
  %v421 = vadd.f32 %v120, %v420
  %v422 = vpop.f32.mrf.mxu0
  %423 = vmatprep.mubr.bf16.mxu0 0
  %424 = vmatmul.mubr.bf16.gmra.mxu0 %v187
  %v425 = vpop.f32.mrf.mxu0
  %v426 = vadd.f32 %v120, %v425
  %v427 = vpop.f32.mrf.mxu0
  %v428 = vpop.f32.mrf.mxu0
  %v429 = vadd.f32 %v120, %v428
  %v430 = vpop.f32.mrf.mxu0
  %431 = vmatprep.mubr.bf16.mxu0 0
  %432 = vmatmul.mubr.bf16.gmra.mxu0 %v190
  %v433 = vpop.f32.mrf.mxu0
  %v434 = vadd.f32 %v120, %v433
  %v435 = vpop.f32.mrf.mxu0
  %v436 = vpop.f32.mrf.mxu0
  %v437 = vadd.f32 %v120, %v436
  %v438 = vpop.f32.mrf.mxu0
  %439 = vmatprep.mubr.bf16.mxu0 0
  %440 = vmatmul.mubr.bf16.gmra.mxu0 %v193
  %v441 = vpop.f32.mrf.mxu0
  %v442 = vadd.f32 %v120, %v441
  %v443 = vpop.f32.mrf.mxu0
  %v444 = vpop.f32.mrf.mxu0
  %v445 = vadd.f32 %v120, %v444
  %v446 = vpop.f32.mrf.mxu0
  %447 = vmatprep.mubr.bf16.mxu0 0
  %448 = vmatmul.mubr.bf16.gmra.mxu0 %v196
  %v449 = vpop.f32.mrf.mxu0
  %v450 = vadd.f32 %v120, %v449
  %v451 = vpop.f32.mrf.mxu0
  %v452 = vpop.f32.mrf.mxu0
  %v453 = vadd.f32 %v120, %v452
  %v454 = vpop.f32.mrf.mxu0
  %455 = vmatprep.mubr.bf16.mxu0 0
  %456 = vmatmul.mubr.bf16.gmra.mxu0 %v199
  %v457 = vpop.f32.mrf.mxu0
  %v458 = vadd.f32 %v120, %v457
  %v459 = vpop.f32.mrf.mxu0
  %v460 = vpop.f32.mrf.mxu0
  %v461 = vadd.f32 %v120, %v460
  %v462 = vpop.f32.mrf.mxu0
  %463 = vmatprep.mubr.bf16.mxu0 0
  %464 = vmatmul.mubr.bf16.gmra.mxu0 %v202
  %v465 = vpop.f32.mrf.mxu0
  %v466 = vadd.f32 %v120, %v465
  %v467 = vpop.f32.mrf.mxu0
  %v468 = vpop.f32.mrf.mxu0
  %v469 = vadd.f32 %v120, %v468
  %v470 = vpop.f32.mrf.mxu0
  %471 = vmatprep.mubr.bf16.mxu0 0
  %472 = vmatmul.mubr.bf16.gmra.mxu0 %v205
  %v473 = vpop.f32.mrf.mxu0
  %v474 = vadd.f32 %v120, %v473
  %v475 = vpop.f32.mrf.mxu0
  %v476 = vpop.f32.mrf.mxu0
  %v477 = vadd.f32 %v120, %v476
  %v478 = vpop.f32.mrf.mxu0
  %479 = vmatprep.mubr.bf16.mxu0 0
  %480 = vmatmul.mubr.bf16.gmra.mxu0 %v208
  %v481 = vpop.f32.mrf.mxu0
  %v482 = vadd.f32 %v120, %v481
  %v483 = vpop.f32.mrf.mxu0
  %v484 = vpop.f32.mrf.mxu0
  %v485 = vadd.f32 %v120, %v484
  %v486 = vpop.f32.mrf.mxu0
  %487 = vmatprep.mubr.bf16.mxu0 0
  %488 = vmatmul.mubr.bf16.gmra.mxu0 %v211
  %v489 = vpop.f32.mrf.mxu0
  %v490 = vadd.f32 %v120, %v489
  %v491 = vpop.f32.mrf.mxu0
  %v492 = vpop.f32.mrf.mxu0
  %v493 = vadd.f32 %v120, %v492
  %v494 = vpop.f32.mrf.mxu0
  %495 = vmatprep.mubr.bf16.mxu0 0
  %496 = vmatmul.mubr.bf16.gmra.mxu0 %v214
  %v497 = vpop.f32.mrf.mxu0
  %v498 = vadd.f32 %v120, %v497
  %v499 = vpop.f32.mrf.mxu0
  %v500 = vpop.f32.mrf.mxu0
  %v501 = vadd.f32 %v120, %v500
  %v502 = vpop.f32.mrf.mxu0
  %503 = vmatprep.mubr.bf16.mxu0 0
  %504 = vmatmul.mubr.bf16.gmra.mxu0 %v217
  %v505 = vpop.f32.mrf.mxu0
  %v506 = vadd.f32 %v120, %v505
  %v507 = vpop.f32.mrf.mxu0
  %v508 = vpop.f32.mrf.mxu0
  %v509 = vadd.f32 %v120, %v508
  %v510 = vpop.f32.mrf.mxu0
  %511 = vdwg.mxu0
  %v512 = vld [vmem:[%s3] sm:$0xff]
  %v513 = vld [vmem:[%s3 + $0x8] sm:$0xff]
  %v514 = vld [vmem:[%s3 + $0x10] sm:$0xff]
  %v515 = vld [vmem:[%s3 + $0x18] sm:$0xff]
  %v516 = vld [vmem:[%s3 + $0x20] sm:$0xff]
  %v517 = vld [vmem:[%s3 + $0x28] sm:$0xff]
  %v518 = vld [vmem:[%s3 + $0x30] sm:$0xff]
  %v519 = vld [vmem:[%s3 + $0x38] sm:$0xff]
  %v520 = vld [vmem:[%s3 + $0x40] sm:$0xff]
  %v521 = vld [vmem:[%s3 + $0x48] sm:$0xff]
  %v522 = vld [vmem:[%s3 + $0x50] sm:$0xff]
  %v523 = vld [vmem:[%s3 + $0x58] sm:$0xff]
  %v524 = vld [vmem:[%s3 + $0x60] sm:$0xff]
  %v525 = vld [vmem:[%s3 + $0x68] sm:$0xff]
  %v526 = vld [vmem:[%s3 + $0x70] sm:$0xff]
  %v527 = vld [vmem:[%s3 + $0x78] sm:$0xff]
  %v528 = vld [vmem:[%s3 + $0x80] sm:$0xff]
  %v529 = vld [vmem:[%s3 + $0x88] sm:$0xff]
  %v530 = vld [vmem:[%s3 + $0x90] sm:$0xff]
  %v531 = vld [vmem:[%s3 + $0x98] sm:$0xff]
  %v532 = vld [vmem:[%s3 + $0xa0] sm:$0xff]
  %v533 = vld [vmem:[%s3 + $0xa8] sm:$0xff]
  %v534 = vld [vmem:[%s3 + $0xb0] sm:$0xff]
  %v535 = vld [vmem:[%s3 + $0xb8] sm:$0xff]
  %v536 = vld [vmem:[%s3 + $0xc0] sm:$0xff]
  %v537 = vld [vmem:[%s3 + $0xc8] sm:$0xff]
  %v538 = vld [vmem:[%s3 + $0xd0] sm:$0xff]
  %v539 = vld [vmem:[%s3 + $0xd8] sm:$0xff]
  %v540 = vld [vmem:[%s3 + $0xe0] sm:$0xff]
  %v541 = vld [vmem:[%s3 + $0xe8] sm:$0xff]
  %v542 = vld [vmem:[%s3 + $0xf0] sm:$0xff]
  %v543 = vld [vmem:[%s3 + $0xf8] sm:$0xff]
  %v544 = vld [vmem:[%s3 + $0x100] sm:$0xff]
  %v545 = vld [vmem:[%s3 + $0x108] sm:$0xff]
  %v546 = vld [vmem:[%s3 + $0x110] sm:$0xff]
  %v547 = vld [vmem:[%s3 + $0x118] sm:$0xff]
  %v548 = vld [vmem:[%s3 + $0x120] sm:$0xff]
  %v549 = vld [vmem:[%s3 + $0x128] sm:$0xff]
  %v550 = vld [vmem:[%s3 + $0x130] sm:$0xff]
  %v551 = vld [vmem:[%s3 + $0x138] sm:$0xff]
  %v552 = vld [vmem:[%s3 + $0x140] sm:$0xff]
  %v553 = vld [vmem:[%s3 + $0x148] sm:$0xff]
  %v554 = vld [vmem:[%s3 + $0x150] sm:$0xff]
  %v555 = vld [vmem:[%s3 + $0x158] sm:$0xff]
  %v556 = vld [vmem:[%s3 + $0x160] sm:$0xff]
  %v557 = vld [vmem:[%s3 + $0x168] sm:$0xff]
  %v558 = vld [vmem:[%s3 + $0x170] sm:$0xff]
  %v559 = vld [vmem:[%s3 + $0x178] sm:$0xff]
  %v560 = vld [vmem:[%s3 + $0x180] sm:$0xff]
  %v561 = vld [vmem:[%s3 + $0x188] sm:$0xff]
  %v562 = vld [vmem:[%s3 + $0x190] sm:$0xff]
  %v563 = vld [vmem:[%s3 + $0x198] sm:$0xff]
  %v564 = vld [vmem:[%s3 + $0x1a0] sm:$0xff]
  %v565 = vld [vmem:[%s3 + $0x1a8] sm:$0xff]
  %v566 = vld [vmem:[%s3 + $0x1b0] sm:$0xff]
  %v567 = vld [vmem:[%s3 + $0x1b8] sm:$0xff]
  %v568 = vld [vmem:[%s3 + $0x1c0] sm:$0xff]
  %v569 = vld [vmem:[%s3 + $0x1c8] sm:$0xff]
  %v570 = vld [vmem:[%s3 + $0x1d0] sm:$0xff]
  %v571 = vld [vmem:[%s3 + $0x1d8] sm:$0xff]
  %v572 = vld [vmem:[%s3 + $0x1e0] sm:$0xff]
  %v573 = vld [vmem:[%s3 + $0x1e8] sm:$0xff]
  %v574 = vld [vmem:[%s3 + $0x1f0] sm:$0xff]
  %v575 = vld [vmem:[%s3 + $0x1f8] sm:$0xff]
  %v576 = vadd.f32 %v258, %v512
  %v577 = vadd.f32 %v261, %v513
  %v578 = vadd.f32 %v266, %v514
  %v579 = vadd.f32 %v269, %v515
  %v580 = vadd.f32 %v274, %v516
  %v581 = vadd.f32 %v277, %v517
  %v582 = vadd.f32 %v282, %v518
  %v583 = vadd.f32 %v285, %v519
  %v584 = vadd.f32 %v290, %v520
  %v585 = vadd.f32 %v293, %v521
  %v586 = vadd.f32 %v298, %v522
  %v587 = vadd.f32 %v301, %v523
  %v588 = vadd.f32 %v306, %v524
  %v589 = vadd.f32 %v309, %v525
  %v590 = vadd.f32 %v314, %v526
  %v591 = vadd.f32 %v317, %v527
  %v592 = vadd.f32 %v322, %v528
  %v593 = vadd.f32 %v325, %v529
  %v594 = vadd.f32 %v330, %v530
  %v595 = vadd.f32 %v333, %v531
  %v596 = vadd.f32 %v338, %v532
  %v597 = vadd.f32 %v341, %v533
  %v598 = vadd.f32 %v346, %v534
  %v599 = vadd.f32 %v349, %v535
  %v600 = vadd.f32 %v354, %v536
  %v601 = vadd.f32 %v357, %v537
  %v602 = vadd.f32 %v362, %v538
  %v603 = vadd.f32 %v365, %v539
  %v604 = vadd.f32 %v370, %v540
  %v605 = vadd.f32 %v373, %v541
  %v606 = vadd.f32 %v378, %v542
  %v607 = vadd.f32 %v381, %v543
  %v608 = vadd.f32 %v386, %v544
  %v609 = vadd.f32 %v389, %v545
  %v610 = vadd.f32 %v394, %v546
  %v611 = vadd.f32 %v397, %v547
  %v612 = vadd.f32 %v402, %v548
  %v613 = vadd.f32 %v405, %v549
  %v614 = vadd.f32 %v410, %v550
  %v615 = vadd.f32 %v413, %v551
  %v616 = vadd.f32 %v418, %v552
  %v617 = vadd.f32 %v421, %v553
  %v618 = vadd.f32 %v426, %v554
  %v619 = vadd.f32 %v429, %v555
  %v620 = vadd.f32 %v434, %v556
  %v621 = vadd.f32 %v437, %v557
  %v622 = vadd.f32 %v442, %v558
  %v623 = vadd.f32 %v445, %v559
  %v624 = vadd.f32 %v450, %v560
  %v625 = vadd.f32 %v453, %v561
  %v626 = vadd.f32 %v458, %v562
  %v627 = vadd.f32 %v461, %v563
  %v628 = vadd.f32 %v466, %v564
  %v629 = vadd.f32 %v469, %v565
  %v630 = vadd.f32 %v474, %v566
  %v631 = vadd.f32 %v477, %v567
  %v632 = vadd.f32 %v482, %v568
  %v633 = vadd.f32 %v485, %v569
  %v634 = vadd.f32 %v490, %v570
  %v635 = vadd.f32 %v493, %v571
  %v636 = vadd.f32 %v498, %v572
  %v637 = vadd.f32 %v501, %v573
  %v638 = vadd.f32 %v506, %v574
  %v639 = vadd.f32 %v509, %v575
  %v640 = vmax.f32 %v576, 0.0
  %v641 = vmax.f32 %v577, 0.0
  %v642 = vmax.f32 %v578, 0.0
  %v643 = vmax.f32 %v579, 0.0
  %v644 = vmax.f32 %v580, 0.0
  %v645 = vmax.f32 %v581, 0.0
  %v646 = vmax.f32 %v582, 0.0
  %v647 = vmax.f32 %v583, 0.0
  %v648 = vmax.f32 %v584, 0.0
  %v649 = vmax.f32 %v585, 0.0
  %v650 = vmax.f32 %v586, 0.0
  %v651 = vmax.f32 %v587, 0.0
  %v652 = vmax.f32 %v588, 0.0
  %v653 = vmax.f32 %v589, 0.0
  %v654 = vmax.f32 %v590, 0.0
  %v655 = vmax.f32 %v591, 0.0
  %v656 = vmax.f32 %v592, 0.0
  %v657 = vmax.f32 %v593, 0.0
  %v658 = vmax.f32 %v594, 0.0
  %v659 = vmax.f32 %v595, 0.0
  %v660 = vmax.f32 %v596, 0.0
  %v661 = vmax.f32 %v597, 0.0
  %v662 = vmax.f32 %v598, 0.0
  %v663 = vmax.f32 %v599, 0.0
  %v664 = vmax.f32 %v600, 0.0
  %v665 = vmax.f32 %v601, 0.0
  %v666 = vmax.f32 %v602, 0.0
  %v667 = vmax.f32 %v603, 0.0
  %v668 = vmax.f32 %v604, 0.0
  %v669 = vmax.f32 %v605, 0.0
  %v670 = vmax.f32 %v606, 0.0
  %v671 = vmax.f32 %v607, 0.0
  %v672 = vmax.f32 %v608, 0.0
  %v673 = vmax.f32 %v609, 0.0
  %v674 = vmax.f32 %v610, 0.0
  %v675 = vmax.f32 %v611, 0.0
  %v676 = vmax.f32 %v612, 0.0
  %v677 = vmax.f32 %v613, 0.0
  %v678 = vmax.f32 %v614, 0.0
  %v679 = vmax.f32 %v615, 0.0
  %v680 = vmax.f32 %v616, 0.0
  %v681 = vmax.f32 %v617, 0.0
  %v682 = vmax.f32 %v618, 0.0
  %v683 = vmax.f32 %v619, 0.0
  %v684 = vmax.f32 %v620, 0.0
  %v685 = vmax.f32 %v621, 0.0
  %v686 = vmax.f32 %v622, 0.0
  %v687 = vmax.f32 %v623, 0.0
  %v688 = vmax.f32 %v624, 0.0
  %v689 = vmax.f32 %v625, 0.0
  %v690 = vmax.f32 %v626, 0.0
  %v691 = vmax.f32 %v627, 0.0
  %v692 = vmax.f32 %v628, 0.0
  %v693 = vmax.f32 %v629, 0.0
  %v694 = vmax.f32 %v630, 0.0
  %v695 = vmax.f32 %v631, 0.0
  %v696 = vmax.f32 %v632, 0.0
  %v697 = vmax.f32 %v633, 0.0
  %v698 = vmax.f32 %v634, 0.0
  %v699 = vmax.f32 %v635, 0.0
  %v700 = vmax.f32 %v636, 0.0
  %v701 = vmax.f32 %v637, 0.0
  %v702 = vmax.f32 %v638, 0.0
  %v703 = vmax.f32 %v639, 0.0
  %704 = vst.msk [vmem:[%s4] sm:$0xff] %vm122, %v640
  %705 = vst.msk [vmem:[%s4 + $0x8] sm:$0xff] %vm122, %v641
  %706 = vst.msk [vmem:[%s4 + $0x10] sm:$0xff] %vm122, %v642
  %707 = vst.msk [vmem:[%s4 + $0x18] sm:$0xff] %vm122, %v643
  %708 = vst.msk [vmem:[%s4 + $0x20] sm:$0xff] %vm122, %v644
  %709 = vst.msk [vmem:[%s4 + $0x28] sm:$0xff] %vm122, %v645
  %710 = vst.msk [vmem:[%s4 + $0x30] sm:$0xff] %vm122, %v646
  %711 = vst.msk [vmem:[%s4 + $0x38] sm:$0xff] %vm122, %v647
  %712 = vst.msk [vmem:[%s4 + $0x40] sm:$0xff] %vm122, %v648
  %713 = vst.msk [vmem:[%s4 + $0x48] sm:$0xff] %vm122, %v649
  %714 = vst.msk [vmem:[%s4 + $0x50] sm:$0xff] %vm122, %v650
  %715 = vst.msk [vmem:[%s4 + $0x58] sm:$0xff] %vm122, %v651
  %716 = vst.msk [vmem:[%s4 + $0x60] sm:$0xff] %vm122, %v652
  %717 = vst.msk [vmem:[%s4 + $0x68] sm:$0xff] %vm122, %v653
  %718 = vst.msk [vmem:[%s4 + $0x70] sm:$0xff] %vm122, %v654
  %719 = vst.msk [vmem:[%s4 + $0x78] sm:$0xff] %vm122, %v655
  %720 = vst.msk [vmem:[%s4 + $0x80] sm:$0xff] %vm122, %v656
  %721 = vst.msk [vmem:[%s4 + $0x88] sm:$0xff] %vm122, %v657
  %722 = vst.msk [vmem:[%s4 + $0x90] sm:$0xff] %vm122, %v658
  %723 = vst.msk [vmem:[%s4 + $0x98] sm:$0xff] %vm122, %v659
  %724 = vst.msk [vmem:[%s4 + $0xa0] sm:$0xff] %vm122, %v660
  %725 = vst.msk [vmem:[%s4 + $0xa8] sm:$0xff] %vm122, %v661
  %726 = vst.msk [vmem:[%s4 + $0xb0] sm:$0xff] %vm122, %v662
  %727 = vst.msk [vmem:[%s4 + $0xb8] sm:$0xff] %vm122, %v663
  %728 = vst.msk [vmem:[%s4 + $0xc0] sm:$0xff] %vm122, %v664
  %729 = vst.msk [vmem:[%s4 + $0xc8] sm:$0xff] %vm122, %v665
  %730 = vst.msk [vmem:[%s4 + $0xd0] sm:$0xff] %vm122, %v666
  %731 = vst.msk [vmem:[%s4 + $0xd8] sm:$0xff] %vm122, %v667
  %732 = vst.msk [vmem:[%s4 + $0xe0] sm:$0xff] %vm122, %v668
  %733 = vst.msk [vmem:[%s4 + $0xe8] sm:$0xff] %vm122, %v669
  %734 = vst.msk [vmem:[%s4 + $0xf0] sm:$0xff] %vm122, %v670
  %735 = vst.msk [vmem:[%s4 + $0xf8] sm:$0xff] %vm122, %v671
  %736 = vst.msk [vmem:[%s4 + $0x100] sm:$0xff] %vm122, %v672
  %737 = vst.msk [vmem:[%s4 + $0x108] sm:$0xff] %vm122, %v673
  %738 = vst.msk [vmem:[%s4 + $0x110] sm:$0xff] %vm122, %v674
  %739 = vst.msk [vmem:[%s4 + $0x118] sm:$0xff] %vm122, %v675
  %740 = vst.msk [vmem:[%s4 + $0x120] sm:$0xff] %vm122, %v676
  %741 = vst.msk [vmem:[%s4 + $0x128] sm:$0xff] %vm122, %v677
  %742 = vst.msk [vmem:[%s4 + $0x130] sm:$0xff] %vm122, %v678
  %743 = vst.msk [vmem:[%s4 + $0x138] sm:$0xff] %vm122, %v679
  %744 = vst.msk [vmem:[%s4 + $0x140] sm:$0xff] %vm122, %v680
  %745 = vst.msk [vmem:[%s4 + $0x148] sm:$0xff] %vm122, %v681
  %746 = vst.msk [vmem:[%s4 + $0x150] sm:$0xff] %vm122, %v682
  %747 = vst.msk [vmem:[%s4 + $0x158] sm:$0xff] %vm122, %v683
  %748 = vst.msk [vmem:[%s4 + $0x160] sm:$0xff] %vm122, %v684
  %749 = vst.msk [vmem:[%s4 + $0x168] sm:$0xff] %vm122, %v685
  %750 = vst.msk [vmem:[%s4 + $0x170] sm:$0xff] %vm122, %v686
  %751 = vst.msk [vmem:[%s4 + $0x178] sm:$0xff] %vm122, %v687
  %752 = vst.msk [vmem:[%s4 + $0x180] sm:$0xff] %vm122, %v688
  %753 = vst.msk [vmem:[%s4 + $0x188] sm:$0xff] %vm122, %v689
  %754 = vst.msk [vmem:[%s4 + $0x190] sm:$0xff] %vm122, %v690
  %755 = vst.msk [vmem:[%s4 + $0x198] sm:$0xff] %vm122, %v691
  %756 = vst.msk [vmem:[%s4 + $0x1a0] sm:$0xff] %vm122, %v692
  %757 = vst.msk [vmem:[%s4 + $0x1a8] sm:$0xff] %vm122, %v693
  %758 = vst.msk [vmem:[%s4 + $0x1b0] sm:$0xff] %vm122, %v694
  %759 = vst.msk [vmem:[%s4 + $0x1b8] sm:$0xff] %vm122, %v695
  %760 = vst.msk [vmem:[%s4 + $0x1c0] sm:$0xff] %vm122, %v696
  %761 = vst.msk [vmem:[%s4 + $0x1c8] sm:$0xff] %vm122, %v697
  %762 = vst.msk [vmem:[%s4 + $0x1d0] sm:$0xff] %vm122, %v698
  %763 = vst.msk [vmem:[%s4 + $0x1d8] sm:$0xff] %vm122, %v699
  %764 = vst.msk [vmem:[%s4 + $0x1e0] sm:$0xff] %vm122, %v700
  %765 = vst.msk [vmem:[%s4 + $0x1e8] sm:$0xff] %vm122, %v701
  %766 = vst.msk [vmem:[%s4 + $0x1f0] sm:$0xff] %vm122, %v702
  %767 = vst.msk [vmem:[%s4 + $0x1f8] sm:$0xff] %vm122, %v703
  // Predicated region
  $region18: #{_lambda_.40} parent=0 // pred_check
    _
  $region19: #{_lambda_.40} parent=0 // pred_check_branch
    %769 = sbr.rel (0) target = $region21
  $region20: #{_lambda_.40} parent=0 // pred_region
    _
  $region21: #{_lambda_.40} parent=0 // pred_fallthru
    _
  // Predicated region
  $region22: #{_lambda_.40} parent=0 // pred_check
    _
  $region23: #{_lambda_.40} parent=0 // pred_check_branch
    %771 = sbr.rel (0) target = $region25
  $region24: #{_lambda_.40} parent=0 // pred_region
    _
  $region25: #{_lambda_.40} parent=0 // pred_fallthru
    _

// kernel: _lambda_.47
$region0: #{_lambda_.47}
  #allocation0 [shape = 'u32[]', space=smem, size = 0x4, offset = 0x4, fixed_abs, tag = 'smem constant byte address 0x4 - core index']
  #allocation1 [shape = 'u32[144,128]{1,0:T(1,128)}', space=vmem, size = 0x12000, scoped, tag = 'internal scratch']
  %s0 = inlined_call_operand.vmem [shape: f32[2,5,128], index: 0, kind: input, shape index: {}]
  %s1 = inlined_call_operand.vmem [shape: bf16[2,128,32], index: 1, kind: input, shape index: {}]
  %s2 = inlined_call_operand.vmem [shape: f32[1,32], index: 2, kind: input, shape index: {}]
  %s3 = inlined_call_operand.vmem [shape: f32[2,4,32], index: 3, kind: output, shape index: {}]
  %s4 = sld [smem:[#allocation0]]
  $region22: #{_lambda_.47} parent=0
    _
  %s6 = ssub.s32 1, %s4
  %s7 = scalar_select 0, %s6, %s4
  // Predicated region
  $region2: #{_lambda_.47} parent=0 // pred_check
    _
  $region3: #{_lambda_.47} parent=0 // pred_check_branch
    %9 = sbr.rel (0) target = $region5
  $region4: #{_lambda_.47} parent=0 // pred_region
    _
  $region5: #{_lambda_.47} parent=0 // pred_fallthru
    _
  // Predicated region
  $region6: #{_lambda_.47} parent=0 // pred_check
    _
  $region7: #{_lambda_.47} parent=0 // pred_check_branch
    %11 = sbr.rel (0) target = $region9
  $region8: #{_lambda_.47} parent=0 // pred_region
    _
  $region9: #{_lambda_.47} parent=0 // pred_fallthru
    _
  // Predicated region
  $region10: #{_lambda_.47} parent=0 // pred_check
    _
  $region11: #{_lambda_.47} parent=0 // pred_check_branch
    %13 = sbr.rel (0) target = $region13
  $region12: #{_lambda_.47} parent=0 // pred_region
    _
  $region13: #{_lambda_.47} parent=0 // pred_fallthru
    _
  %v15 = vld [vmem:[%s2] sm:$0x1]
  %v16 = vld [vmem:[%s0] sm:$0xf]
  %v17 = vpack.c.bf16 %v16, %v16
  %v18 = vld [vmem:[%s1] sm:$0xf]
  %v19 = vld [vmem:[%s1 + $0x4] sm:$0xf]
  %v20 = vld [vmem:[%s1 + $0x8] sm:$0xf]
  %v21 = vld [vmem:[%s1 + $0xc] sm:$0xf]
  %v22 = vld [vmem:[%s1 + $0x10] sm:$0xf]
  %v23 = vld [vmem:[%s1 + $0x14] sm:$0xf]
  %v24 = vld [vmem:[%s1 + $0x18] sm:$0xf]
  %v25 = vld [vmem:[%s1 + $0x1c] sm:$0xf]
  %v26 = vld [vmem:[%s1 + $0x20] sm:$0xf]
  %v27 = vld [vmem:[%s1 + $0x24] sm:$0xf]
  %v28 = vld [vmem:[%s1 + $0x28] sm:$0xf]
  %v29 = vld [vmem:[%s1 + $0x2c] sm:$0xf]
  %v30 = vld [vmem:[%s1 + $0x30] sm:$0xf]
  %v31 = vld [vmem:[%s1 + $0x34] sm:$0xf]
  %v32 = vld [vmem:[%s1 + $0x38] sm:$0xf]
  %v33 = vld [vmem:[%s1 + $0x3c] sm:$0xf]
  %v34 = vld [vmem:[%s0 + $0x1] sm:$0xf]
  %v35 = vpack.c.bf16 %v34, %v34
  %s36 = scalar_lea.vmem %s1, 64
  %v37 = vld [vmem:[%s36] sm:$0xf]
  %v38 = vld [vmem:[%s36 + $0x4] sm:$0xf]
  %v39 = vld [vmem:[%s36 + $0x8] sm:$0xf]
  %v40 = vld [vmem:[%s36 + $0xc] sm:$0xf]
  %v41 = vld [vmem:[%s36 + $0x10] sm:$0xf]
  %v42 = vld [vmem:[%s36 + $0x14] sm:$0xf]
  %v43 = vld [vmem:[%s36 + $0x18] sm:$0xf]
  %v44 = vld [vmem:[%s36 + $0x1c] sm:$0xf]
  %v45 = vld [vmem:[%s36 + $0x20] sm:$0xf]
  %v46 = vld [vmem:[%s36 + $0x24] sm:$0xf]
  %v47 = vld [vmem:[%s36 + $0x28] sm:$0xf]
  %v48 = vld [vmem:[%s36 + $0x2c] sm:$0xf]
  %v49 = vld [vmem:[%s36 + $0x30] sm:$0xf]
  %v50 = vld [vmem:[%s36 + $0x34] sm:$0xf]
  %v51 = vld [vmem:[%s36 + $0x38] sm:$0xf]
  %v52 = vld [vmem:[%s36 + $0x3c] sm:$0xf]
  %v69 = vunpack.c.l.b16 %v37
  %v70 = vunpack.c.l.b16 %v38
  %v71 = vunpack.c.l.b16 %v39
  %v72 = vunpack.c.l.b16 %v40
  %v73 = vunpack.c.l.b16 %v41
  %v74 = vunpack.c.l.b16 %v42
  %v75 = vunpack.c.l.b16 %v43
  %v76 = vunpack.c.l.b16 %v44
  %v77 = vunpack.c.l.b16 %v45
  %v78 = vunpack.c.l.b16 %v46
  %v79 = vunpack.c.l.b16 %v47
  %v80 = vunpack.c.l.b16 %v48
  %v81 = vunpack.c.l.b16 %v49
  %v82 = vunpack.c.l.b16 %v50
  %v83 = vunpack.c.l.b16 %v51
  %v84 = vunpack.c.l.b16 %v52
  %v85 = vpack.c.b16 %v70, %v69
  %v86 = vpack.c.b16 %v72, %v71
  %v87 = vpack.c.b16 %v74, %v73
  %v88 = vpack.c.b16 %v76, %v75
  %v89 = vpack.c.b16 %v78, %v77
  %v90 = vpack.c.b16 %v80, %v79
  %v91 = vpack.c.b16 %v82, %v81
  %v92 = vpack.c.b16 %v84, %v83
  %101 = vmatprep.subr.bf16.mxu0 0
  %102 = vmatpush1.bf16.msra.mxu0 %v92
  %103 = vmatprep.subr.bf16.mxu0 0
  %104 = vmatpush1.bf16.msra.mxu0 %v91
  %105 = vmatprep.subr.bf16.mxu0 0
  %106 = vmatpush1.bf16.msra.mxu0 %v90
  %107 = vmatprep.subr.bf16.mxu0 0
  %108 = vmatpush1.bf16.msra.mxu0 %v89
  %109 = vmatprep.subr.bf16.mxu0 0
  %110 = vmatpush1.bf16.msra.mxu0 %v88
  %111 = vmatprep.subr.bf16.mxu0 0
  %112 = vmatpush1.bf16.msra.mxu0 %v87
  %113 = vmatprep.subr.bf16.mxu0 0
  %114 = vmatpush1.bf16.msra.mxu0 %v86
  %115 = vmatprep.subr.bf16.mxu0 0
  %116 = vmatpush1.bf16.msra.mxu0 %v85
  %117 = vmatprep.subr.bf16.mxu0 0
  %118 = vmatpush2.bf16.msra.mxu0 0
  %119 = vmatprep.subr.bf16.mxu0 0
  %120 = vmatpush2.bf16.msra.mxu0 0
  %121 = vmatprep.subr.bf16.mxu0 0
  %122 = vmatpush2.bf16.msra.mxu0 0
  %123 = vmatprep.subr.bf16.mxu0 0
  %124 = vmatpush2.bf16.msra.mxu0 0
  %125 = vmatprep.subr.bf16.mxu0 0
  %126 = vmatpush2.bf16.msra.mxu0 0
  %127 = vmatprep.subr.bf16.mxu0 0
  %128 = vmatpush2.bf16.msra.mxu0 0
  %129 = vmatprep.subr.bf16.mxu0 0
  %130 = vmatpush2.bf16.msra.mxu0 0
  %131 = vmatprep.subr.bf16.mxu0 0
  %132 = vmatpush2.bf16.msra.mxu0 0
  %133 = vmatprep.mubr.bf16.mxu0 0
  %134 = vmatmul.mubr.bf16.gmra.mxu0 %v35
  %v135 = vpop.f32.mrf.mxu0
  %v136 = vadd.f32 0.0, %v135
  %v137 = vpop.f32.mrf.mxu0
  %v138 = vpop.f32.mrf.mxu0
  %v139 = vpop.f32.mrf.mxu0
  %140 = vdwg.mxu0
  %v157 = vunpack.c.l.b16 %v18
  %v158 = vunpack.c.l.b16 %v19
  %v159 = vunpack.c.l.b16 %v20
  %v160 = vunpack.c.l.b16 %v21
  %v161 = vunpack.c.l.b16 %v22
  %v162 = vunpack.c.l.b16 %v23
  %v163 = vunpack.c.l.b16 %v24
  %v164 = vunpack.c.l.b16 %v25
  %v165 = vunpack.c.l.b16 %v26
  %v166 = vunpack.c.l.b16 %v27
  %v167 = vunpack.c.l.b16 %v28
  %v168 = vunpack.c.l.b16 %v29
  %v169 = vunpack.c.l.b16 %v30
  %v170 = vunpack.c.l.b16 %v31
  %v171 = vunpack.c.l.b16 %v32
  %v172 = vunpack.c.l.b16 %v33
  %v173 = vpack.c.b16 %v158, %v157
  %v174 = vpack.c.b16 %v160, %v159
  %v175 = vpack.c.b16 %v162, %v161
  %v176 = vpack.c.b16 %v164, %v163
  %v177 = vpack.c.b16 %v166, %v165
  %v178 = vpack.c.b16 %v168, %v167
  %v179 = vpack.c.b16 %v170, %v169
  %v180 = vpack.c.b16 %v172, %v171
  %189 = vmatprep.subr.bf16.mxu0 0
  %190 = vmatpush1.bf16.msra.mxu0 %v180
  %191 = vmatprep.subr.bf16.mxu0 0
  %192 = vmatpush1.bf16.msra.mxu0 %v179
  %193 = vmatprep.subr.bf16.mxu0 0
  %194 = vmatpush1.bf16.msra.mxu0 %v178
  %195 = vmatprep.subr.bf16.mxu0 0
  %196 = vmatpush1.bf16.msra.mxu0 %v177
  %197 = vmatprep.subr.bf16.mxu0 0
  %198 = vmatpush1.bf16.msra.mxu0 %v176
  %199 = vmatprep.subr.bf16.mxu0 0
  %200 = vmatpush1.bf16.msra.mxu0 %v175
  %201 = vmatprep.subr.bf16.mxu0 0
  %202 = vmatpush1.bf16.msra.mxu0 %v174
  %203 = vmatprep.subr.bf16.mxu0 0
  %204 = vmatpush1.bf16.msra.mxu0 %v173
  %205 = vmatprep.subr.bf16.mxu0 0
  %206 = vmatpush2.bf16.msra.mxu0 0
  %207 = vmatprep.subr.bf16.mxu0 0
  %208 = vmatpush2.bf16.msra.mxu0 0
  %209 = vmatprep.subr.bf16.mxu0 0
  %210 = vmatpush2.bf16.msra.mxu0 0
  %211 = vmatprep.subr.bf16.mxu0 0
  %212 = vmatpush2.bf16.msra.mxu0 0
  %213 = vmatprep.subr.bf16.mxu0 0
  %214 = vmatpush2.bf16.msra.mxu0 0
  %215 = vmatprep.subr.bf16.mxu0 0
  %216 = vmatpush2.bf16.msra.mxu0 0
  %217 = vmatprep.subr.bf16.mxu0 0
  %218 = vmatpush2.bf16.msra.mxu0 0
  %219 = vmatprep.subr.bf16.mxu0 0
  %220 = vmatpush2.bf16.msra.mxu0 0
  %221 = vmatprep.mubr.bf16.mxu0 0
  %222 = vmatmul.mubr.bf16.gmra.mxu0 %v17
  %v223 = vpop.f32.mrf.mxu0
  %v224 = vadd.f32 %v136, %v223
  %v225 = vpop.f32.mrf.mxu0
  %v226 = vpop.f32.mrf.mxu0
  %v227 = vpop.f32.mrf.mxu0
  %228 = vdwg.mxu0
  %v230 = vlaneseq
  %v231 = vshrl.u32 %v230, 7
  %v232 = vsub.s32 0, %v231
  %v233 = vrot.slane %v15, %v232
  %v235 = vadd.f32 %v224, %v233
  %vm236 = vcmp.ge.f32.partialorder %v235, 0.0
  %v237 = vmul.f32 %v235, 0.1
  %v238 = vsel %vm236, %v235, %v237
  %vm239 = vcmask 257024
  %240 = vst.msk [vmem:[%s3] sm:$0xf] %vm239, %v238
  %s241 = scalar_lea.vmem %s0, 8
  %v242 = vld [vmem:[%s241] sm:$0xf]
  %v243 = vpack.c.bf16 %v242, %v242
  %v244 = vld [vmem:[%s1] sm:$0xf]
  %v245 = vld [vmem:[%s1 + $0x4] sm:$0xf]
  %v246 = vld [vmem:[%s1 + $0x8] sm:$0xf]
  %v247 = vld [vmem:[%s1 + $0xc] sm:$0xf]
  %v248 = vld [vmem:[%s1 + $0x10] sm:$0xf]
  %v249 = vld [vmem:[%s1 + $0x14] sm:$0xf]
  %v250 = vld [vmem:[%s1 + $0x18] sm:$0xf]
  %v251 = vld [vmem:[%s1 + $0x1c] sm:$0xf]
  %v252 = vld [vmem:[%s1 + $0x20] sm:$0xf]
  %v253 = vld [vmem:[%s1 + $0x24] sm:$0xf]
  %v254 = vld [vmem:[%s1 + $0x28] sm:$0xf]
  %v255 = vld [vmem:[%s1 + $0x2c] sm:$0xf]
  %v256 = vld [vmem:[%s1 + $0x30] sm:$0xf]
  %v257 = vld [vmem:[%s1 + $0x34] sm:$0xf]
  %v258 = vld [vmem:[%s1 + $0x38] sm:$0xf]
  %v259 = vld [vmem:[%s1 + $0x3c] sm:$0xf]
  %v260 = vld [vmem:[%s241 + $0x1] sm:$0xf]
  %v261 = vpack.c.bf16 %v260, %v260
  %v262 = vld [vmem:[%s36] sm:$0xf]
  %v263 = vld [vmem:[%s36 + $0x4] sm:$0xf]
  %v264 = vld [vmem:[%s36 + $0x8] sm:$0xf]
  %v265 = vld [vmem:[%s36 + $0xc] sm:$0xf]
  %v266 = vld [vmem:[%s36 + $0x10] sm:$0xf]
  %v267 = vld [vmem:[%s36 + $0x14] sm:$0xf]
  %v268 = vld [vmem:[%s36 + $0x18] sm:$0xf]
  %v269 = vld [vmem:[%s36 + $0x1c] sm:$0xf]
  %v270 = vld [vmem:[%s36 + $0x20] sm:$0xf]
  %v271 = vld [vmem:[%s36 + $0x24] sm:$0xf]
  %v272 = vld [vmem:[%s36 + $0x28] sm:$0xf]
  %v273 = vld [vmem:[%s36 + $0x2c] sm:$0xf]
  %v274 = vld [vmem:[%s36 + $0x30] sm:$0xf]
  %v275 = vld [vmem:[%s36 + $0x34] sm:$0xf]
  %v276 = vld [vmem:[%s36 + $0x38] sm:$0xf]
  %v277 = vld [vmem:[%s36 + $0x3c] sm:$0xf]
  %v294 = vunpack.c.l.b16 %v262
  %v295 = vunpack.c.l.b16 %v263
  %v296 = vunpack.c.l.b16 %v264
  %v297 = vunpack.c.l.b16 %v265
  %v298 = vunpack.c.l.b16 %v266
  %v299 = vunpack.c.l.b16 %v267
  %v300 = vunpack.c.l.b16 %v268
  %v301 = vunpack.c.l.b16 %v269
  %v302 = vunpack.c.l.b16 %v270
  %v303 = vunpack.c.l.b16 %v271
  %v304 = vunpack.c.l.b16 %v272
  %v305 = vunpack.c.l.b16 %v273
  %v306 = vunpack.c.l.b16 %v274
  %v307 = vunpack.c.l.b16 %v275
  %v308 = vunpack.c.l.b16 %v276
  %v309 = vunpack.c.l.b16 %v277
  %v310 = vpack.c.b16 %v295, %v294
  %v311 = vpack.c.b16 %v297, %v296
  %v312 = vpack.c.b16 %v299, %v298
  %v313 = vpack.c.b16 %v301, %v300
  %v314 = vpack.c.b16 %v303, %v302
  %v315 = vpack.c.b16 %v305, %v304
  %v316 = vpack.c.b16 %v307, %v306
  %v317 = vpack.c.b16 %v309, %v308
  %326 = vmatprep.subr.bf16.mxu0 0
  %327 = vmatpush1.bf16.msra.mxu0 %v317
  %328 = vmatprep.subr.bf16.mxu0 0
  %329 = vmatpush1.bf16.msra.mxu0 %v316
  %330 = vmatprep.subr.bf16.mxu0 0
  %331 = vmatpush1.bf16.msra.mxu0 %v315
  %332 = vmatprep.subr.bf16.mxu0 0
  %333 = vmatpush1.bf16.msra.mxu0 %v314
  %334 = vmatprep.subr.bf16.mxu0 0
  %335 = vmatpush1.bf16.msra.mxu0 %v313
  %336 = vmatprep.subr.bf16.mxu0 0
  %337 = vmatpush1.bf16.msra.mxu0 %v312
  %338 = vmatprep.subr.bf16.mxu0 0
  %339 = vmatpush1.bf16.msra.mxu0 %v311
  %340 = vmatprep.subr.bf16.mxu0 0
  %341 = vmatpush1.bf16.msra.mxu0 %v310
  %342 = vmatprep.subr.bf16.mxu0 0
  %343 = vmatpush2.bf16.msra.mxu0 0
  %344 = vmatprep.subr.bf16.mxu0 0
  %345 = vmatpush2.bf16.msra.mxu0 0
  %346 = vmatprep.subr.bf16.mxu0 0
  %347 = vmatpush2.bf16.msra.mxu0 0
  %348 = vmatprep.subr.bf16.mxu0 0
  %349 = vmatpush2.bf16.msra.mxu0 0
  %350 = vmatprep.subr.bf16.mxu0 0
  %351 = vmatpush2.bf16.msra.mxu0 0
  %352 = vmatprep.subr.bf16.mxu0 0
  %353 = vmatpush2.bf16.msra.mxu0 0
  %354 = vmatprep.subr.bf16.mxu0 0
  %355 = vmatpush2.bf16.msra.mxu0 0
  %356 = vmatprep.subr.bf16.mxu0 0
  %357 = vmatpush2.bf16.msra.mxu0 0
  %358 = vmatprep.mubr.bf16.mxu0 0
  %359 = vmatmul.mubr.bf16.gmra.mxu0 %v261
  %v360 = vpop.f32.mrf.mxu0
  %v361 = vadd.f32 0.0, %v360
  %v362 = vpop.f32.mrf.mxu0
  %v363 = vpop.f32.mrf.mxu0
  %v364 = vpop.f32.mrf.mxu0
  %365 = vdwg.mxu0
  %v382 = vunpack.c.l.b16 %v244
  %v383 = vunpack.c.l.b16 %v245
  %v384 = vunpack.c.l.b16 %v246
  %v385 = vunpack.c.l.b16 %v247
  %v386 = vunpack.c.l.b16 %v248
  %v387 = vunpack.c.l.b16 %v249
  %v388 = vunpack.c.l.b16 %v250
  %v389 = vunpack.c.l.b16 %v251
  %v390 = vunpack.c.l.b16 %v252
  %v391 = vunpack.c.l.b16 %v253
  %v392 = vunpack.c.l.b16 %v254
  %v393 = vunpack.c.l.b16 %v255
  %v394 = vunpack.c.l.b16 %v256
  %v395 = vunpack.c.l.b16 %v257
  %v396 = vunpack.c.l.b16 %v258
  %v397 = vunpack.c.l.b16 %v259
  %v398 = vpack.c.b16 %v383, %v382
  %v399 = vpack.c.b16 %v385, %v384
  %v400 = vpack.c.b16 %v387, %v386
  %v401 = vpack.c.b16 %v389, %v388
  %v402 = vpack.c.b16 %v391, %v390
  %v403 = vpack.c.b16 %v393, %v392
  %v404 = vpack.c.b16 %v395, %v394
  %v405 = vpack.c.b16 %v397, %v396
  %414 = vmatprep.subr.bf16.mxu0 0
  %415 = vmatpush1.bf16.msra.mxu0 %v405
  %416 = vmatprep.subr.bf16.mxu0 0
  %417 = vmatpush1.bf16.msra.mxu0 %v404
  %418 = vmatprep.subr.bf16.mxu0 0
  %419 = vmatpush1.bf16.msra.mxu0 %v403
  %420 = vmatprep.subr.bf16.mxu0 0
  %421 = vmatpush1.bf16.msra.mxu0 %v402
  %422 = vmatprep.subr.bf16.mxu0 0
  %423 = vmatpush1.bf16.msra.mxu0 %v401
  %424 = vmatprep.subr.bf16.mxu0 0
  %425 = vmatpush1.bf16.msra.mxu0 %v400
  %426 = vmatprep.subr.bf16.mxu0 0
  %427 = vmatpush1.bf16.msra.mxu0 %v399
  %428 = vmatprep.subr.bf16.mxu0 0
  %429 = vmatpush1.bf16.msra.mxu0 %v398
  %430 = vmatprep.subr.bf16.mxu0 0
  %431 = vmatpush2.bf16.msra.mxu0 0
  %432 = vmatprep.subr.bf16.mxu0 0
  %433 = vmatpush2.bf16.msra.mxu0 0
  %434 = vmatprep.subr.bf16.mxu0 0
  %435 = vmatpush2.bf16.msra.mxu0 0
  %436 = vmatprep.subr.bf16.mxu0 0
  %437 = vmatpush2.bf16.msra.mxu0 0
  %438 = vmatprep.subr.bf16.mxu0 0
  %439 = vmatpush2.bf16.msra.mxu0 0
  %440 = vmatprep.subr.bf16.mxu0 0
  %441 = vmatpush2.bf16.msra.mxu0 0
  %442 = vmatprep.subr.bf16.mxu0 0
  %443 = vmatpush2.bf16.msra.mxu0 0
  %444 = vmatprep.subr.bf16.mxu0 0
  %445 = vmatpush2.bf16.msra.mxu0 0
  %446 = vmatprep.mubr.bf16.mxu0 0
  %447 = vmatmul.mubr.bf16.gmra.mxu0 %v243
  %v448 = vpop.f32.mrf.mxu0
  %v449 = vadd.f32 %v361, %v448
  %v450 = vpop.f32.mrf.mxu0
  %v451 = vpop.f32.mrf.mxu0
  %v452 = vpop.f32.mrf.mxu0
  %453 = vdwg.mxu0
  %v454 = vadd.f32 %v449, %v233
  %vm455 = vcmp.ge.f32.partialorder %v454, 0.0
  %v456 = vmul.f32 %v454, 0.1
  %v457 = vsel %vm455, %v454, %v456
  %s458 = scalar_lea.vmem %s3, 4
  %459 = vst.msk [vmem:[%s458] sm:$0xf] %vm239, %v457
  // Predicated region
  $region14: #{_lambda_.47} parent=0 // pred_check
    _
  $region15: #{_lambda_.47} parent=0 // pred_check_branch
    %461 = sbr.rel (0) target = $region17
  $region16: #{_lambda_.47} parent=0 // pred_region
    _
  $region17: #{_lambda_.47} parent=0 // pred_fallthru
    _
  // Predicated region
  $region18: #{_lambda_.47} parent=0 // pred_check
    _
  $region19: #{_lambda_.47} parent=0 // pred_check_branch
    %463 = sbr.rel (0) target = $region21
  $region20: #{_lambda_.47} parent=0 // pred_region
    _
  $region21: #{_lambda_.47} parent=0 // pred_fallthru
    _

// kernel: _lambda_.46
$region0: #{_lambda_.46}
  #allocation0 [shape = 'u32[]', space=smem, size = 0x4, offset = 0x4, fixed_abs, tag = 'smem constant byte address 0x4 - core index']
  #allocation1 [shape = 'u32[144,128]{1,0:T(1,128)}', space=vmem, size = 0x12000, scoped, tag = 'internal scratch']
  %s0 = inlined_call_operand.vmem [shape: f32[2,9,256], index: 0, kind: input, shape index: {}]
  %s1 = inlined_call_operand.vmem [shape: bf16[2,256,64], index: 1, kind: input, shape index: {}]
  %s2 = inlined_call_operand.vmem [shape: f32[1,64], index: 2, kind: input, shape index: {}]
  %s3 = inlined_call_operand.vmem [shape: f32[2,8,64], index: 3, kind: output, shape index: {}]
  %s4 = sld [smem:[#allocation0]]
  $region22: #{_lambda_.46} parent=0
    _
  %s6 = ssub.s32 1, %s4
  %s7 = scalar_select 0, %s6, %s4
  // Predicated region
  $region2: #{_lambda_.46} parent=0 // pred_check
    _
  $region3: #{_lambda_.46} parent=0 // pred_check_branch
    %9 = sbr.rel (0) target = $region5
  $region4: #{_lambda_.46} parent=0 // pred_region
    _
  $region5: #{_lambda_.46} parent=0 // pred_fallthru
    _
  // Predicated region
  $region6: #{_lambda_.46} parent=0 // pred_check
    _
  $region7: #{_lambda_.46} parent=0 // pred_check_branch
    %11 = sbr.rel (0) target = $region9
  $region8: #{_lambda_.46} parent=0 // pred_region
    _
  $region9: #{_lambda_.46} parent=0 // pred_fallthru
    _
  // Predicated region
  $region10: #{_lambda_.46} parent=0 // pred_check
    _
  $region11: #{_lambda_.46} parent=0 // pred_check_branch
    %13 = sbr.rel (0) target = $region13
  $region12: #{_lambda_.46} parent=0 // pred_region
    _
  $region13: #{_lambda_.46} parent=0 // pred_fallthru
    _
  %v15 = vld [vmem:[%s2] sm:$0x1]
  %v16 = vld [vmem:[%s0] sm:$0xff]
  %v17 = vld [vmem:[%s0 + $0x8] sm:$0xff]
  %v18 = vpack.c.bf16 %v16, %v16
  %v19 = vpack.c.bf16 %v17, %v17
  %v20 = vld [vmem:[%s1] sm:$0xf]
  %v21 = vld [vmem:[%s1 + $0x4] sm:$0xf]
  %v22 = vld [vmem:[%s1 + $0x8] sm:$0xf]
  %v23 = vld [vmem:[%s1 + $0xc] sm:$0xf]
  %v24 = vld [vmem:[%s1 + $0x10] sm:$0xf]
  %v25 = vld [vmem:[%s1 + $0x14] sm:$0xf]
  %v26 = vld [vmem:[%s1 + $0x18] sm:$0xf]
  %v27 = vld [vmem:[%s1 + $0x1c] sm:$0xf]
  %v28 = vld [vmem:[%s1 + $0x20] sm:$0xf]
  %v29 = vld [vmem:[%s1 + $0x24] sm:$0xf]
  %v30 = vld [vmem:[%s1 + $0x28] sm:$0xf]
  %v31 = vld [vmem:[%s1 + $0x2c] sm:$0xf]
  %v32 = vld [vmem:[%s1 + $0x30] sm:$0xf]
  %v33 = vld [vmem:[%s1 + $0x34] sm:$0xf]
  %v34 = vld [vmem:[%s1 + $0x38] sm:$0xf]
  %v35 = vld [vmem:[%s1 + $0x3c] sm:$0xf]
  %v36 = vld [vmem:[%s1 + $0x40] sm:$0xf]
  %v37 = vld [vmem:[%s1 + $0x44] sm:$0xf]
  %v38 = vld [vmem:[%s1 + $0x48] sm:$0xf]
  %v39 = vld [vmem:[%s1 + $0x4c] sm:$0xf]
  %v40 = vld [vmem:[%s1 + $0x50] sm:$0xf]
  %v41 = vld [vmem:[%s1 + $0x54] sm:$0xf]
  %v42 = vld [vmem:[%s1 + $0x58] sm:$0xf]
  %v43 = vld [vmem:[%s1 + $0x5c] sm:$0xf]
  %v44 = vld [vmem:[%s1 + $0x60] sm:$0xf]
  %v45 = vld [vmem:[%s1 + $0x64] sm:$0xf]
  %v46 = vld [vmem:[%s1 + $0x68] sm:$0xf]
  %v47 = vld [vmem:[%s1 + $0x6c] sm:$0xf]
  %v48 = vld [vmem:[%s1 + $0x70] sm:$0xf]
  %v49 = vld [vmem:[%s1 + $0x74] sm:$0xf]
  %v50 = vld [vmem:[%s1 + $0x78] sm:$0xf]
  %v51 = vld [vmem:[%s1 + $0x7c] sm:$0xf]
  %v52 = vld [vmem:[%s0] sm:$0xfe]
  %v53 = vld [vmem:[%s0 + $0x8] sm:$0xfe]
  %v54 = vld [vmem:[%s0 + $0x10] sm:$0x1]
  %v55 = vld [vmem:[%s0 + $0x18] sm:$0x1]
  %v56 = vpack.c.bf16 %v54, %v52
  %v57 = vpack.c.bf16 %v55, %v53
  %s58 = scalar_lea.vmem %s1, 128
  %v59 = vld [vmem:[%s58] sm:$0xf]
  %v60 = vld [vmem:[%s58 + $0x4] sm:$0xf]
  %v61 = vld [vmem:[%s58 + $0x8] sm:$0xf]
  %v62 = vld [vmem:[%s58 + $0xc] sm:$0xf]
  %v63 = vld [vmem:[%s58 + $0x10] sm:$0xf]
  %v64 = vld [vmem:[%s58 + $0x14] sm:$0xf]
  %v65 = vld [vmem:[%s58 + $0x18] sm:$0xf]
  %v66 = vld [vmem:[%s58 + $0x1c] sm:$0xf]
  %v67 = vld [vmem:[%s58 + $0x20] sm:$0xf]
  %v68 = vld [vmem:[%s58 + $0x24] sm:$0xf]
  %v69 = vld [vmem:[%s58 + $0x28] sm:$0xf]
  %v70 = vld [vmem:[%s58 + $0x2c] sm:$0xf]
  %v71 = vld [vmem:[%s58 + $0x30] sm:$0xf]
  %v72 = vld [vmem:[%s58 + $0x34] sm:$0xf]
  %v73 = vld [vmem:[%s58 + $0x38] sm:$0xf]
  %v74 = vld [vmem:[%s58 + $0x3c] sm:$0xf]
  %v75 = vld [vmem:[%s58 + $0x40] sm:$0xf]
  %v76 = vld [vmem:[%s58 + $0x44] sm:$0xf]
  %v77 = vld [vmem:[%s58 + $0x48] sm:$0xf]
  %v78 = vld [vmem:[%s58 + $0x4c] sm:$0xf]
  %v79 = vld [vmem:[%s58 + $0x50] sm:$0xf]
  %v80 = vld [vmem:[%s58 + $0x54] sm:$0xf]
  %v81 = vld [vmem:[%s58 + $0x58] sm:$0xf]
  %v82 = vld [vmem:[%s58 + $0x5c] sm:$0xf]
  %v83 = vld [vmem:[%s58 + $0x60] sm:$0xf]
  %v84 = vld [vmem:[%s58 + $0x64] sm:$0xf]
  %v85 = vld [vmem:[%s58 + $0x68] sm:$0xf]
  %v86 = vld [vmem:[%s58 + $0x6c] sm:$0xf]
  %v87 = vld [vmem:[%s58 + $0x70] sm:$0xf]
  %v88 = vld [vmem:[%s58 + $0x74] sm:$0xf]
  %v89 = vld [vmem:[%s58 + $0x78] sm:$0xf]
  %v90 = vld [vmem:[%s58 + $0x7c] sm:$0xf]
  %v92 = vshrl.u32 %v56, 16
  %v94 = vshll.u32 %v56, 16
  %v96 = vrot.slane %v94, 1
  %v97 = vor.u32 %v92, %v96
  %v99 = vshrl.u32 %v57, 16
  %v101 = vshll.u32 %v57, 16
  %v103 = vrot.slane %v101, 1
  %v104 = vor.u32 %v99, %v103
  %v139 = vunpack.c.l.b16 %v59
  %v140 = vunpack.c.l.b16 %v60
  %v141 = vunpack.c.l.b16 %v61
  %v142 = vunpack.c.l.b16 %v62
  %v143 = vunpack.c.l.b16 %v63
  %v144 = vunpack.c.l.b16 %v64
  %v145 = vunpack.c.l.b16 %v65
  %v146 = vunpack.c.l.b16 %v66
  %v147 = vunpack.c.l.b16 %v67
  %v148 = vunpack.c.l.b16 %v68
  %v149 = vunpack.c.l.b16 %v69
  %v150 = vunpack.c.l.b16 %v70
  %v151 = vunpack.c.l.b16 %v71
  %v152 = vunpack.c.l.b16 %v72
  %v153 = vunpack.c.l.b16 %v73
  %v154 = vunpack.c.l.b16 %v74
  %v155 = vunpack.c.l.b16 %v75
  %v156 = vunpack.c.l.b16 %v76
  %v157 = vunpack.c.l.b16 %v77
  %v158 = vunpack.c.l.b16 %v78
  %v159 = vunpack.c.l.b16 %v79
  %v160 = vunpack.c.l.b16 %v80
  %v161 = vunpack.c.l.b16 %v81
  %v162 = vunpack.c.l.b16 %v82
  %v163 = vunpack.c.l.b16 %v83
  %v164 = vunpack.c.l.b16 %v84
  %v165 = vunpack.c.l.b16 %v85
  %v166 = vunpack.c.l.b16 %v86
  %v167 = vunpack.c.l.b16 %v87
  %v168 = vunpack.c.l.b16 %v88
  %v169 = vunpack.c.l.b16 %v89
  %v170 = vunpack.c.l.b16 %v90
  %v171 = vpack.c.b16 %v140, %v139
  %v172 = vpack.c.b16 %v142, %v141
  %v173 = vpack.c.b16 %v144, %v143
  %v174 = vpack.c.b16 %v146, %v145
  %v175 = vpack.c.b16 %v148, %v147
  %v176 = vpack.c.b16 %v150, %v149
  %v177 = vpack.c.b16 %v152, %v151
  %v178 = vpack.c.b16 %v154, %v153
  %v179 = vpack.c.b16 %v156, %v155
  %v180 = vpack.c.b16 %v158, %v157
  %v181 = vpack.c.b16 %v160, %v159
  %v182 = vpack.c.b16 %v162, %v161
  %v183 = vpack.c.b16 %v164, %v163
  %v184 = vpack.c.b16 %v166, %v165
  %v185 = vpack.c.b16 %v168, %v167
  %v186 = vpack.c.b16 %v170, %v169
  %203 = vmatprep.subr.bf16.mxu0 0
  %204 = vmatpush1.bf16.msra.mxu0 %v178
  %205 = vmatprep.subr.bf16.mxu0 0
  %206 = vmatpush1.bf16.msra.mxu0 %v177
  %207 = vmatprep.subr.bf16.mxu0 0
  %208 = vmatpush1.bf16.msra.mxu0 %v176
  %209 = vmatprep.subr.bf16.mxu0 0
  %210 = vmatpush1.bf16.msra.mxu0 %v175
  %211 = vmatprep.subr.bf16.mxu0 0
  %212 = vmatpush1.bf16.msra.mxu0 %v174
  %213 = vmatprep.subr.bf16.mxu0 0
  %214 = vmatpush1.bf16.msra.mxu0 %v173
  %215 = vmatprep.subr.bf16.mxu0 0
  %216 = vmatpush1.bf16.msra.mxu0 %v172
  %217 = vmatprep.subr.bf16.mxu0 0
  %218 = vmatpush1.bf16.msra.mxu0 %v171
  %219 = vmatprep.subr.bf16.mxu0 0
  %220 = vmatpush2.bf16.msra.mxu0 %v186
  %221 = vmatprep.subr.bf16.mxu0 0
  %222 = vmatpush2.bf16.msra.mxu0 %v185
  %223 = vmatprep.subr.bf16.mxu0 0
  %224 = vmatpush2.bf16.msra.mxu0 %v184
  %225 = vmatprep.subr.bf16.mxu0 0
  %226 = vmatpush2.bf16.msra.mxu0 %v183
  %227 = vmatprep.subr.bf16.mxu0 0
  %228 = vmatpush2.bf16.msra.mxu0 %v182
  %229 = vmatprep.subr.bf16.mxu0 0
  %230 = vmatpush2.bf16.msra.mxu0 %v181
  %231 = vmatprep.subr.bf16.mxu0 0
  %232 = vmatpush2.bf16.msra.mxu0 %v180
  %233 = vmatprep.subr.bf16.mxu0 0
  %234 = vmatpush2.bf16.msra.mxu0 %v179
  %235 = vmatprep.mubr.bf16.mxu0 %v104
  %236 = vmatmul.mubr.bf16.gmra.mxu0 %v97
  %v237 = vpop.f32.mrf.mxu0
  %v238 = vadd.f32 0.0, %v237
  %v239 = vpop.f32.mrf.mxu0
  %v240 = vpop.f32.mrf.mxu0
  %v241 = vpop.f32.mrf.mxu0
  %242 = vdwg.mxu0
  %v275 = vunpack.c.l.b16 %v20
  %v276 = vunpack.c.l.b16 %v21
  %v277 = vunpack.c.l.b16 %v22
  %v278 = vunpack.c.l.b16 %v23
  %v279 = vunpack.c.l.b16 %v24
  %v280 = vunpack.c.l.b16 %v25
  %v281 = vunpack.c.l.b16 %v26
  %v282 = vunpack.c.l.b16 %v27
  %v283 = vunpack.c.l.b16 %v28
  %v284 = vunpack.c.l.b16 %v29
  %v285 = vunpack.c.l.b16 %v30
  %v286 = vunpack.c.l.b16 %v31
  %v287 = vunpack.c.l.b16 %v32
  %v288 = vunpack.c.l.b16 %v33
  %v289 = vunpack.c.l.b16 %v34
  %v290 = vunpack.c.l.b16 %v35
  %v291 = vunpack.c.l.b16 %v36
  %v292 = vunpack.c.l.b16 %v37
  %v293 = vunpack.c.l.b16 %v38
  %v294 = vunpack.c.l.b16 %v39
  %v295 = vunpack.c.l.b16 %v40
  %v296 = vunpack.c.l.b16 %v41
  %v297 = vunpack.c.l.b16 %v42
  %v298 = vunpack.c.l.b16 %v43
  %v299 = vunpack.c.l.b16 %v44
  %v300 = vunpack.c.l.b16 %v45
  %v301 = vunpack.c.l.b16 %v46
  %v302 = vunpack.c.l.b16 %v47
  %v303 = vunpack.c.l.b16 %v48
  %v304 = vunpack.c.l.b16 %v49
  %v305 = vunpack.c.l.b16 %v50
  %v306 = vunpack.c.l.b16 %v51
  %v307 = vpack.c.b16 %v276, %v275
  %v308 = vpack.c.b16 %v278, %v277
  %v309 = vpack.c.b16 %v280, %v279
  %v310 = vpack.c.b16 %v282, %v281
  %v311 = vpack.c.b16 %v284, %v283
  %v312 = vpack.c.b16 %v286, %v285
  %v313 = vpack.c.b16 %v288, %v287
  %v314 = vpack.c.b16 %v290, %v289
  %v315 = vpack.c.b16 %v292, %v291
  %v316 = vpack.c.b16 %v294, %v293
  %v317 = vpack.c.b16 %v296, %v295
  %v318 = vpack.c.b16 %v298, %v297
  %v319 = vpack.c.b16 %v300, %v299
  %v320 = vpack.c.b16 %v302, %v301
  %v321 = vpack.c.b16 %v304, %v303
  %v322 = vpack.c.b16 %v306, %v305
  %339 = vmatprep.subr.bf16.mxu0 0
  %340 = vmatpush1.bf16.msra.mxu0 %v314
  %341 = vmatprep.subr.bf16.mxu0 0
  %342 = vmatpush1.bf16.msra.mxu0 %v313
  %343 = vmatprep.subr.bf16.mxu0 0
  %344 = vmatpush1.bf16.msra.mxu0 %v312
  %345 = vmatprep.subr.bf16.mxu0 0
  %346 = vmatpush1.bf16.msra.mxu0 %v311
  %347 = vmatprep.subr.bf16.mxu0 0
  %348 = vmatpush1.bf16.msra.mxu0 %v310
  %349 = vmatprep.subr.bf16.mxu0 0
  %350 = vmatpush1.bf16.msra.mxu0 %v309
  %351 = vmatprep.subr.bf16.mxu0 0
  %352 = vmatpush1.bf16.msra.mxu0 %v308
  %353 = vmatprep.subr.bf16.mxu0 0
  %354 = vmatpush1.bf16.msra.mxu0 %v307
  %355 = vmatprep.subr.bf16.mxu0 0
  %356 = vmatpush2.bf16.msra.mxu0 %v322
  %357 = vmatprep.subr.bf16.mxu0 0
  %358 = vmatpush2.bf16.msra.mxu0 %v321
  %359 = vmatprep.subr.bf16.mxu0 0
  %360 = vmatpush2.bf16.msra.mxu0 %v320
  %361 = vmatprep.subr.bf16.mxu0 0
  %362 = vmatpush2.bf16.msra.mxu0 %v319
  %363 = vmatprep.subr.bf16.mxu0 0
  %364 = vmatpush2.bf16.msra.mxu0 %v318
  %365 = vmatprep.subr.bf16.mxu0 0
  %366 = vmatpush2.bf16.msra.mxu0 %v317
  %367 = vmatprep.subr.bf16.mxu0 0
  %368 = vmatpush2.bf16.msra.mxu0 %v316
  %369 = vmatprep.subr.bf16.mxu0 0
  %370 = vmatpush2.bf16.msra.mxu0 %v315
  %371 = vmatprep.mubr.bf16.mxu0 %v19
  %372 = vmatmul.mubr.bf16.gmra.mxu0 %v18
  %v373 = vpop.f32.mrf.mxu0
  %v374 = vadd.f32 %v238, %v373
  %v375 = vpop.f32.mrf.mxu0
  %v376 = vpop.f32.mrf.mxu0
  %v377 = vpop.f32.mrf.mxu0
  %378 = vdwg.mxu0
  %v380 = vlaneseq
  %v381 = vshrl.u32 %v380, 7
  %v382 = vsub.s32 0, %v381
  %v383 = vrot.slane %v15, %v382
  %v385 = vadd.f32 %v374, %v383
  %vm386 = vcmp.ge.f32.partialorder %v385, 0.0
  %v387 = vmul.f32 %v385, 0.1
  %v388 = vsel %vm386, %v385, %v387
  %vm389 = vcmask 523264
  %390 = vst.msk [vmem:[%s3] sm:$0xff] %vm389, %v388
  %s391 = scalar_lea.vmem %s0, 32
  %v392 = vld [vmem:[%s391] sm:$0xff]
  %v393 = vld [vmem:[%s391 + $0x8] sm:$0xff]
  %v394 = vpack.c.bf16 %v392, %v392
  %v395 = vpack.c.bf16 %v393, %v393
  %v396 = vld [vmem:[%s1] sm:$0xf]
  %v397 = vld [vmem:[%s1 + $0x4] sm:$0xf]
  %v398 = vld [vmem:[%s1 + $0x8] sm:$0xf]
  %v399 = vld [vmem:[%s1 + $0xc] sm:$0xf]
  %v400 = vld [vmem:[%s1 + $0x10] sm:$0xf]
  %v401 = vld [vmem:[%s1 + $0x14] sm:$0xf]
  %v402 = vld [vmem:[%s1 + $0x18] sm:$0xf]
  %v403 = vld [vmem:[%s1 + $0x1c] sm:$0xf]
  %v404 = vld [vmem:[%s1 + $0x20] sm:$0xf]
  %v405 = vld [vmem:[%s1 + $0x24] sm:$0xf]
  %v406 = vld [vmem:[%s1 + $0x28] sm:$0xf]
  %v407 = vld [vmem:[%s1 + $0x2c] sm:$0xf]
  %v408 = vld [vmem:[%s1 + $0x30] sm:$0xf]
  %v409 = vld [vmem:[%s1 + $0x34] sm:$0xf]
  %v410 = vld [vmem:[%s1 + $0x38] sm:$0xf]
  %v411 = vld [vmem:[%s1 + $0x3c] sm:$0xf]
  %v412 = vld [vmem:[%s1 + $0x40] sm:$0xf]
  %v413 = vld [vmem:[%s1 + $0x44] sm:$0xf]
  %v414 = vld [vmem:[%s1 + $0x48] sm:$0xf]
  %v415 = vld [vmem:[%s1 + $0x4c] sm:$0xf]
  %v416 = vld [vmem:[%s1 + $0x50] sm:$0xf]
  %v417 = vld [vmem:[%s1 + $0x54] sm:$0xf]
  %v418 = vld [vmem:[%s1 + $0x58] sm:$0xf]
  %v419 = vld [vmem:[%s1 + $0x5c] sm:$0xf]
  %v420 = vld [vmem:[%s1 + $0x60] sm:$0xf]
  %v421 = vld [vmem:[%s1 + $0x64] sm:$0xf]
  %v422 = vld [vmem:[%s1 + $0x68] sm:$0xf]
  %v423 = vld [vmem:[%s1 + $0x6c] sm:$0xf]
  %v424 = vld [vmem:[%s1 + $0x70] sm:$0xf]
  %v425 = vld [vmem:[%s1 + $0x74] sm:$0xf]
  %v426 = vld [vmem:[%s1 + $0x78] sm:$0xf]
  %v427 = vld [vmem:[%s1 + $0x7c] sm:$0xf]
  %v428 = vld [vmem:[%s391] sm:$0xfe]
  %v429 = vld [vmem:[%s391 + $0x8] sm:$0xfe]
  %v430 = vld [vmem:[%s391 + $0x10] sm:$0x1]
  %v431 = vld [vmem:[%s391 + $0x18] sm:$0x1]
  %v432 = vpack.c.bf16 %v430, %v428
  %v433 = vpack.c.bf16 %v431, %v429
  %v434 = vld [vmem:[%s58] sm:$0xf]
  %v435 = vld [vmem:[%s58 + $0x4] sm:$0xf]
  %v436 = vld [vmem:[%s58 + $0x8] sm:$0xf]
  %v437 = vld [vmem:[%s58 + $0xc] sm:$0xf]
  %v438 = vld [vmem:[%s58 + $0x10] sm:$0xf]
  %v439 = vld [vmem:[%s58 + $0x14] sm:$0xf]
  %v440 = vld [vmem:[%s58 + $0x18] sm:$0xf]
  %v441 = vld [vmem:[%s58 + $0x1c] sm:$0xf]
  %v442 = vld [vmem:[%s58 + $0x20] sm:$0xf]
  %v443 = vld [vmem:[%s58 + $0x24] sm:$0xf]
  %v444 = vld [vmem:[%s58 + $0x28] sm:$0xf]
  %v445 = vld [vmem:[%s58 + $0x2c] sm:$0xf]
  %v446 = vld [vmem:[%s58 + $0x30] sm:$0xf]
  %v447 = vld [vmem:[%s58 + $0x34] sm:$0xf]
  %v448 = vld [vmem:[%s58 + $0x38] sm:$0xf]
  %v449 = vld [vmem:[%s58 + $0x3c] sm:$0xf]
  %v450 = vld [vmem:[%s58 + $0x40] sm:$0xf]
  %v451 = vld [vmem:[%s58 + $0x44] sm:$0xf]
  %v452 = vld [vmem:[%s58 + $0x48] sm:$0xf]
  %v453 = vld [vmem:[%s58 + $0x4c] sm:$0xf]
  %v454 = vld [vmem:[%s58 + $0x50] sm:$0xf]
  %v455 = vld [vmem:[%s58 + $0x54] sm:$0xf]
  %v456 = vld [vmem:[%s58 + $0x58] sm:$0xf]
  %v457 = vld [vmem:[%s58 + $0x5c] sm:$0xf]
  %v458 = vld [vmem:[%s58 + $0x60] sm:$0xf]
  %v459 = vld [vmem:[%s58 + $0x64] sm:$0xf]
  %v460 = vld [vmem:[%s58 + $0x68] sm:$0xf]
  %v461 = vld [vmem:[%s58 + $0x6c] sm:$0xf]
  %v462 = vld [vmem:[%s58 + $0x70] sm:$0xf]
  %v463 = vld [vmem:[%s58 + $0x74] sm:$0xf]
  %v464 = vld [vmem:[%s58 + $0x78] sm:$0xf]
  %v465 = vld [vmem:[%s58 + $0x7c] sm:$0xf]
  %v467 = vshrl.u32 %v432, 16
  %v469 = vshll.u32 %v432, 16
  %v471 = vrot.slane %v469, 1
  %v472 = vor.u32 %v467, %v471
  %v474 = vshrl.u32 %v433, 16
  %v476 = vshll.u32 %v433, 16
  %v478 = vrot.slane %v476, 1
  %v479 = vor.u32 %v474, %v478
  %v514 = vunpack.c.l.b16 %v434
  %v515 = vunpack.c.l.b16 %v435
  %v516 = vunpack.c.l.b16 %v436
  %v517 = vunpack.c.l.b16 %v437
  %v518 = vunpack.c.l.b16 %v438
  %v519 = vunpack.c.l.b16 %v439
  %v520 = vunpack.c.l.b16 %v440
  %v521 = vunpack.c.l.b16 %v441
  %v522 = vunpack.c.l.b16 %v442
  %v523 = vunpack.c.l.b16 %v443
  %v524 = vunpack.c.l.b16 %v444
  %v525 = vunpack.c.l.b16 %v445
  %v526 = vunpack.c.l.b16 %v446
  %v527 = vunpack.c.l.b16 %v447
  %v528 = vunpack.c.l.b16 %v448
  %v529 = vunpack.c.l.b16 %v449
  %v530 = vunpack.c.l.b16 %v450
  %v531 = vunpack.c.l.b16 %v451
  %v532 = vunpack.c.l.b16 %v452
  %v533 = vunpack.c.l.b16 %v453
  %v534 = vunpack.c.l.b16 %v454
  %v535 = vunpack.c.l.b16 %v455
  %v536 = vunpack.c.l.b16 %v456
  %v537 = vunpack.c.l.b16 %v457
  %v538 = vunpack.c.l.b16 %v458
  %v539 = vunpack.c.l.b16 %v459
  %v540 = vunpack.c.l.b16 %v460
  %v541 = vunpack.c.l.b16 %v461
  %v542 = vunpack.c.l.b16 %v462
  %v543 = vunpack.c.l.b16 %v463
  %v544 = vunpack.c.l.b16 %v464
  %v545 = vunpack.c.l.b16 %v465
  %v546 = vpack.c.b16 %v515, %v514
  %v547 = vpack.c.b16 %v517, %v516
  %v548 = vpack.c.b16 %v519, %v518
  %v549 = vpack.c.b16 %v521, %v520
  %v550 = vpack.c.b16 %v523, %v522
  %v551 = vpack.c.b16 %v525, %v524
  %v552 = vpack.c.b16 %v527, %v526
  %v553 = vpack.c.b16 %v529, %v528
  %v554 = vpack.c.b16 %v531, %v530
  %v555 = vpack.c.b16 %v533, %v532
  %v556 = vpack.c.b16 %v535, %v534
  %v557 = vpack.c.b16 %v537, %v536
  %v558 = vpack.c.b16 %v539, %v538
  %v559 = vpack.c.b16 %v541, %v540
  %v560 = vpack.c.b16 %v543, %v542
  %v561 = vpack.c.b16 %v545, %v544
  %578 = vmatprep.subr.bf16.mxu0 0
  %579 = vmatpush1.bf16.msra.mxu0 %v553
  %580 = vmatprep.subr.bf16.mxu0 0
  %581 = vmatpush1.bf16.msra.mxu0 %v552
  %582 = vmatprep.subr.bf16.mxu0 0
  %583 = vmatpush1.bf16.msra.mxu0 %v551
  %584 = vmatprep.subr.bf16.mxu0 0
  %585 = vmatpush1.bf16.msra.mxu0 %v550
  %586 = vmatprep.subr.bf16.mxu0 0
  %587 = vmatpush1.bf16.msra.mxu0 %v549
  %588 = vmatprep.subr.bf16.mxu0 0
  %589 = vmatpush1.bf16.msra.mxu0 %v548
  %590 = vmatprep.subr.bf16.mxu0 0
  %591 = vmatpush1.bf16.msra.mxu0 %v547
  %592 = vmatprep.subr.bf16.mxu0 0
  %593 = vmatpush1.bf16.msra.mxu0 %v546
  %594 = vmatprep.subr.bf16.mxu0 0
  %595 = vmatpush2.bf16.msra.mxu0 %v561
  %596 = vmatprep.subr.bf16.mxu0 0
  %597 = vmatpush2.bf16.msra.mxu0 %v560
  %598 = vmatprep.subr.bf16.mxu0 0
  %599 = vmatpush2.bf16.msra.mxu0 %v559
  %600 = vmatprep.subr.bf16.mxu0 0
  %601 = vmatpush2.bf16.msra.mxu0 %v558
  %602 = vmatprep.subr.bf16.mxu0 0
  %603 = vmatpush2.bf16.msra.mxu0 %v557
  %604 = vmatprep.subr.bf16.mxu0 0
  %605 = vmatpush2.bf16.msra.mxu0 %v556
  %606 = vmatprep.subr.bf16.mxu0 0
  %607 = vmatpush2.bf16.msra.mxu0 %v555
  %608 = vmatprep.subr.bf16.mxu0 0
  %609 = vmatpush2.bf16.msra.mxu0 %v554
  %610 = vmatprep.mubr.bf16.mxu0 %v479
  %611 = vmatmul.mubr.bf16.gmra.mxu0 %v472
  %v612 = vpop.f32.mrf.mxu0
  %v613 = vadd.f32 0.0, %v612
  %v614 = vpop.f32.mrf.mxu0
  %v615 = vpop.f32.mrf.mxu0
  %v616 = vpop.f32.mrf.mxu0
  %617 = vdwg.mxu0
  %v650 = vunpack.c.l.b16 %v396
  %v651 = vunpack.c.l.b16 %v397
  %v652 = vunpack.c.l.b16 %v398
  %v653 = vunpack.c.l.b16 %v399
  %v654 = vunpack.c.l.b16 %v400
  %v655 = vunpack.c.l.b16 %v401
  %v656 = vunpack.c.l.b16 %v402
  %v657 = vunpack.c.l.b16 %v403
  %v658 = vunpack.c.l.b16 %v404
  %v659 = vunpack.c.l.b16 %v405
  %v660 = vunpack.c.l.b16 %v406
  %v661 = vunpack.c.l.b16 %v407
  %v662 = vunpack.c.l.b16 %v408
  %v663 = vunpack.c.l.b16 %v409
  %v664 = vunpack.c.l.b16 %v410
  %v665 = vunpack.c.l.b16 %v411
  %v666 = vunpack.c.l.b16 %v412
  %v667 = vunpack.c.l.b16 %v413
  %v668 = vunpack.c.l.b16 %v414
  %v669 = vunpack.c.l.b16 %v415
  %v670 = vunpack.c.l.b16 %v416
  %v671 = vunpack.c.l.b16 %v417
  %v672 = vunpack.c.l.b16 %v418
  %v673 = vunpack.c.l.b16 %v419
  %v674 = vunpack.c.l.b16 %v420
  %v675 = vunpack.c.l.b16 %v421
  %v676 = vunpack.c.l.b16 %v422
  %v677 = vunpack.c.l.b16 %v423
  %v678 = vunpack.c.l.b16 %v424
  %v679 = vunpack.c.l.b16 %v425
  %v680 = vunpack.c.l.b16 %v426
  %v681 = vunpack.c.l.b16 %v427
  %v682 = vpack.c.b16 %v651, %v650
  %v683 = vpack.c.b16 %v653, %v652
  %v684 = vpack.c.b16 %v655, %v654
  %v685 = vpack.c.b16 %v657, %v656
  %v686 = vpack.c.b16 %v659, %v658
  %v687 = vpack.c.b16 %v661, %v660
  %v688 = vpack.c.b16 %v663, %v662
  %v689 = vpack.c.b16 %v665, %v664
  %v690 = vpack.c.b16 %v667, %v666
  %v691 = vpack.c.b16 %v669, %v668
  %v692 = vpack.c.b16 %v671, %v670
  %v693 = vpack.c.b16 %v673, %v672
  %v694 = vpack.c.b16 %v675, %v674
  %v695 = vpack.c.b16 %v677, %v676
  %v696 = vpack.c.b16 %v679, %v678
  %v697 = vpack.c.b16 %v681, %v680
  %714 = vmatprep.subr.bf16.mxu0 0
  %715 = vmatpush1.bf16.msra.mxu0 %v689
  %716 = vmatprep.subr.bf16.mxu0 0
  %717 = vmatpush1.bf16.msra.mxu0 %v688
  %718 = vmatprep.subr.bf16.mxu0 0
  %719 = vmatpush1.bf16.msra.mxu0 %v687
  %720 = vmatprep.subr.bf16.mxu0 0
  %721 = vmatpush1.bf16.msra.mxu0 %v686
  %722 = vmatprep.subr.bf16.mxu0 0
  %723 = vmatpush1.bf16.msra.mxu0 %v685
  %724 = vmatprep.subr.bf16.mxu0 0
  %725 = vmatpush1.bf16.msra.mxu0 %v684
  %726 = vmatprep.subr.bf16.mxu0 0
  %727 = vmatpush1.bf16.msra.mxu0 %v683
  %728 = vmatprep.subr.bf16.mxu0 0
  %729 = vmatpush1.bf16.msra.mxu0 %v682
  %730 = vmatprep.subr.bf16.mxu0 0
  %731 = vmatpush2.bf16.msra.mxu0 %v697
  %732 = vmatprep.subr.bf16.mxu0 0
  %733 = vmatpush2.bf16.msra.mxu0 %v696
  %734 = vmatprep.subr.bf16.mxu0 0
  %735 = vmatpush2.bf16.msra.mxu0 %v695
  %736 = vmatprep.subr.bf16.mxu0 0
  %737 = vmatpush2.bf16.msra.mxu0 %v694
  %738 = vmatprep.subr.bf16.mxu0 0
  %739 = vmatpush2.bf16.msra.mxu0 %v693
  %740 = vmatprep.subr.bf16.mxu0 0
  %741 = vmatpush2.bf16.msra.mxu0 %v692
  %742 = vmatprep.subr.bf16.mxu0 0
  %743 = vmatpush2.bf16.msra.mxu0 %v691
  %744 = vmatprep.subr.bf16.mxu0 0
  %745 = vmatpush2.bf16.msra.mxu0 %v690
  %746 = vmatprep.mubr.bf16.mxu0 %v395
  %747 = vmatmul.mubr.bf16.gmra.mxu0 %v394
  %v748 = vpop.f32.mrf.mxu0
  %v749 = vadd.f32 %v613, %v748
  %v750 = vpop.f32.mrf.mxu0
  %v751 = vpop.f32.mrf.mxu0
  %v752 = vpop.f32.mrf.mxu0
  %753 = vdwg.mxu0
  %v754 = vadd.f32 %v749, %v383
  %vm755 = vcmp.ge.f32.partialorder %v754, 0.0
  %v756 = vmul.f32 %v754, 0.1
  %v757 = vsel %vm755, %v754, %v756
  %s758 = scalar_lea.vmem %s3, 8
  %759 = vst.msk [vmem:[%s758] sm:$0xff] %vm389, %v757
  // Predicated region
  $region14: #{_lambda_.46} parent=0 // pred_check
    _
  $region15: #{_lambda_.46} parent=0 // pred_check_branch
    %761 = sbr.rel (0) target = $region17
  $region16: #{_lambda_.46} parent=0 // pred_region
    _
  $region17: #{_lambda_.46} parent=0 // pred_fallthru
    _
  // Predicated region
  $region18: #{_lambda_.46} parent=0 // pred_check
    _
  $region19: #{_lambda_.46} parent=0 // pred_check_branch
    %763 = sbr.rel (0) target = $region21
  $region20: #{_lambda_.46} parent=0 // pred_region
    _
  $region21: #{_lambda_.46} parent=0 // pred_fallthru
    _

// kernel: _lambda_.48
$region0: #{_lambda_.48}
  #allocation0 [shape = 'u32[]', space=smem, size = 0x4, offset = 0x4, fixed_abs, tag = 'smem constant byte address 0x4 - core index']
  #allocation1 [shape = 'u32[144,128]{1,0:T(1,128)}', space=vmem, size = 0x12000, scoped, tag = 'internal scratch']
  %s0 = inlined_call_operand.vmem [shape: f32[2,6,32], index: 0, kind: input, shape index: {}]
  %s1 = inlined_call_operand.vmem [shape: bf16[3,32,32], index: 1, kind: input, shape index: {}]
  %s2 = inlined_call_operand.vmem [shape: f32[1,32], index: 2, kind: input, shape index: {}]
  %s3 = inlined_call_operand.vmem [shape: f32[2,4,32], index: 3, kind: output, shape index: {}]
  %s4 = sld [smem:[#allocation0]]
  $region22: #{_lambda_.48} parent=0
    _
  %s6 = ssub.s32 1, %s4
  %s7 = scalar_select 0, %s6, %s4
  // Predicated region
  $region2: #{_lambda_.48} parent=0 // pred_check
    _
  $region3: #{_lambda_.48} parent=0 // pred_check_branch
    %9 = sbr.rel (0) target = $region5
  $region4: #{_lambda_.48} parent=0 // pred_region
    _
  $region5: #{_lambda_.48} parent=0 // pred_fallthru
    _
  // Predicated region
  $region6: #{_lambda_.48} parent=0 // pred_check
    _
  $region7: #{_lambda_.48} parent=0 // pred_check_branch
    %11 = sbr.rel (0) target = $region9
  $region8: #{_lambda_.48} parent=0 // pred_region
    _
  $region9: #{_lambda_.48} parent=0 // pred_fallthru
    _
  // Predicated region
  $region10: #{_lambda_.48} parent=0 // pred_check
    _
  $region11: #{_lambda_.48} parent=0 // pred_check_branch
    %13 = sbr.rel (0) target = $region13
  $region12: #{_lambda_.48} parent=0 // pred_region
    _
  $region13: #{_lambda_.48} parent=0 // pred_fallthru
    _
  %v15 = vld [vmem:[%s2] sm:$0x1]
  %v16 = vld [vmem:[%s0] sm:$0xf]
  %v17 = vpack.c.bf16 %v16, %v16
  %v18 = vld [vmem:[%s1] sm:$0xf]
  %v19 = vld [vmem:[%s1 + $0x4] sm:$0xf]
  %v20 = vld [vmem:[%s1 + $0x8] sm:$0xf]
  %v21 = vld [vmem:[%s1 + $0xc] sm:$0xf]
  %v22 = vld [vmem:[%s0 + $0x1] sm:$0xf]
  %v23 = vpack.c.bf16 %v22, %v22
  %s24 = scalar_lea.vmem %s1, 16
  %v25 = vld [vmem:[%s24] sm:$0xf]
  %v26 = vld [vmem:[%s24 + $0x4] sm:$0xf]
  %v27 = vld [vmem:[%s24 + $0x8] sm:$0xf]
  %v28 = vld [vmem:[%s24 + $0xc] sm:$0xf]
  %v33 = vunpack.c.l.b16 %v25
  %v34 = vunpack.c.l.b16 %v26
  %v35 = vunpack.c.l.b16 %v27
  %v36 = vunpack.c.l.b16 %v28
  %v37 = vpack.c.b16 %v34, %v33
  %v38 = vpack.c.b16 %v36, %v35
  %vm41 = vcmask 261120
  %v43 = vsel %vm41, %v23, 0
  %45 = vmatprep.subr.bf16.mxu0 0
  %46 = vmatpush1.bf16.msra.mxu0 0
  %47 = vmatprep.subr.bf16.mxu0 0
  %48 = vmatpush1.bf16.msra.mxu0 0
  %49 = vmatprep.subr.bf16.mxu0 0
  %50 = vmatpush1.bf16.msra.mxu0 0
  %51 = vmatprep.subr.bf16.mxu0 0
  %52 = vmatpush1.bf16.msra.mxu0 0
  %53 = vmatprep.subr.bf16.mxu0 0
  %54 = vmatpush1.bf16.msra.mxu0 0
  %55 = vmatprep.subr.bf16.mxu0 0
  %56 = vmatpush1.bf16.msra.mxu0 0
  %57 = vmatprep.subr.bf16.mxu0 0
  %58 = vmatpush1.bf16.msra.mxu0 %v38
  %59 = vmatprep.subr.bf16.mxu0 0
  %60 = vmatpush1.bf16.msra.mxu0 %v37
  %61 = vmatprep.subr.bf16.mxu0 0
  %62 = vmatpush2.bf16.msra.mxu0 0
  %63 = vmatprep.subr.bf16.mxu0 0
  %64 = vmatpush2.bf16.msra.mxu0 0
  %65 = vmatprep.subr.bf16.mxu0 0
  %66 = vmatpush2.bf16.msra.mxu0 0
  %67 = vmatprep.subr.bf16.mxu0 0
  %68 = vmatpush2.bf16.msra.mxu0 0
  %69 = vmatprep.subr.bf16.mxu0 0
  %70 = vmatpush2.bf16.msra.mxu0 0
  %71 = vmatprep.subr.bf16.mxu0 0
  %72 = vmatpush2.bf16.msra.mxu0 0
  %73 = vmatprep.subr.bf16.mxu0 0
  %74 = vmatpush2.bf16.msra.mxu0 0
  %75 = vmatprep.subr.bf16.mxu0 0
  %76 = vmatpush2.bf16.msra.mxu0 0
  %77 = vmatprep.mubr.bf16.mxu0 0
  %78 = vmatmul.mubr.bf16.gmra.mxu0 %v43
  %v79 = vpop.f32.mrf.mxu0
  %v80 = vadd.f32 0.0, %v79
  %v81 = vpop.f32.mrf.mxu0
  %v82 = vpop.f32.mrf.mxu0
  %v83 = vpop.f32.mrf.mxu0
  %84 = vdwg.mxu0
  %v89 = vunpack.c.l.b16 %v18
  %v90 = vunpack.c.l.b16 %v19
  %v91 = vunpack.c.l.b16 %v20
  %v92 = vunpack.c.l.b16 %v21
  %v93 = vpack.c.b16 %v90, %v89
  %v94 = vpack.c.b16 %v92, %v91
  %v98 = vsel %vm41, %v17, 0
  %100 = vmatprep.subr.bf16.mxu0 0
  %101 = vmatpush1.bf16.msra.mxu0 0
  %102 = vmatprep.subr.bf16.mxu0 0
  %103 = vmatpush1.bf16.msra.mxu0 0
  %104 = vmatprep.subr.bf16.mxu0 0
  %105 = vmatpush1.bf16.msra.mxu0 0
  %106 = vmatprep.subr.bf16.mxu0 0
  %107 = vmatpush1.bf16.msra.mxu0 0
  %108 = vmatprep.subr.bf16.mxu0 0
  %109 = vmatpush1.bf16.msra.mxu0 0
  %110 = vmatprep.subr.bf16.mxu0 0
  %111 = vmatpush1.bf16.msra.mxu0 0
  %112 = vmatprep.subr.bf16.mxu0 0
  %113 = vmatpush1.bf16.msra.mxu0 %v94
  %114 = vmatprep.subr.bf16.mxu0 0
  %115 = vmatpush1.bf16.msra.mxu0 %v93
  %116 = vmatprep.subr.bf16.mxu0 0
  %117 = vmatpush2.bf16.msra.mxu0 0
  %118 = vmatprep.subr.bf16.mxu0 0
  %119 = vmatpush2.bf16.msra.mxu0 0
  %120 = vmatprep.subr.bf16.mxu0 0
  %121 = vmatpush2.bf16.msra.mxu0 0
  %122 = vmatprep.subr.bf16.mxu0 0
  %123 = vmatpush2.bf16.msra.mxu0 0
  %124 = vmatprep.subr.bf16.mxu0 0
  %125 = vmatpush2.bf16.msra.mxu0 0
  %126 = vmatprep.subr.bf16.mxu0 0
  %127 = vmatpush2.bf16.msra.mxu0 0
  %128 = vmatprep.subr.bf16.mxu0 0
  %129 = vmatpush2.bf16.msra.mxu0 0
  %130 = vmatprep.subr.bf16.mxu0 0
  %131 = vmatpush2.bf16.msra.mxu0 0
  %132 = vmatprep.mubr.bf16.mxu0 0
  %133 = vmatmul.mubr.bf16.gmra.mxu0 %v98
  %v134 = vpop.f32.mrf.mxu0
  %v135 = vadd.f32 %v80, %v134
  %v136 = vpop.f32.mrf.mxu0
  %v137 = vpop.f32.mrf.mxu0
  %v138 = vpop.f32.mrf.mxu0
  %139 = vdwg.mxu0
  %v140 = vld [vmem:[%s0 + $0x2] sm:$0xf]
  %v141 = vpack.c.bf16 %v140, %v140
  %s142 = scalar_lea.vmem %s1, 32
  %v143 = vld [vmem:[%s142] sm:$0xf]
  %v144 = vld [vmem:[%s142 + $0x4] sm:$0xf]
  %v145 = vld [vmem:[%s142 + $0x8] sm:$0xf]
  %v146 = vld [vmem:[%s142 + $0xc] sm:$0xf]
  %v151 = vunpack.c.l.b16 %v143
  %v152 = vunpack.c.l.b16 %v144
  %v153 = vunpack.c.l.b16 %v145
  %v154 = vunpack.c.l.b16 %v146
  %v155 = vpack.c.b16 %v152, %v151
  %v156 = vpack.c.b16 %v154, %v153
  %v160 = vsel %vm41, %v141, 0
  %162 = vmatprep.subr.bf16.mxu0 0
  %163 = vmatpush1.bf16.msra.mxu0 0
  %164 = vmatprep.subr.bf16.mxu0 0
  %165 = vmatpush1.bf16.msra.mxu0 0
  %166 = vmatprep.subr.bf16.mxu0 0
  %167 = vmatpush1.bf16.msra.mxu0 0
  %168 = vmatprep.subr.bf16.mxu0 0
  %169 = vmatpush1.bf16.msra.mxu0 0
  %170 = vmatprep.subr.bf16.mxu0 0
  %171 = vmatpush1.bf16.msra.mxu0 0
  %172 = vmatprep.subr.bf16.mxu0 0
  %173 = vmatpush1.bf16.msra.mxu0 0
  %174 = vmatprep.subr.bf16.mxu0 0
  %175 = vmatpush1.bf16.msra.mxu0 %v156
  %176 = vmatprep.subr.bf16.mxu0 0
  %177 = vmatpush1.bf16.msra.mxu0 %v155
  %178 = vmatprep.subr.bf16.mxu0 0
  %179 = vmatpush2.bf16.msra.mxu0 0
  %180 = vmatprep.subr.bf16.mxu0 0
  %181 = vmatpush2.bf16.msra.mxu0 0
  %182 = vmatprep.subr.bf16.mxu0 0
  %183 = vmatpush2.bf16.msra.mxu0 0
  %184 = vmatprep.subr.bf16.mxu0 0
  %185 = vmatpush2.bf16.msra.mxu0 0
  %186 = vmatprep.subr.bf16.mxu0 0
  %187 = vmatpush2.bf16.msra.mxu0 0
  %188 = vmatprep.subr.bf16.mxu0 0
  %189 = vmatpush2.bf16.msra.mxu0 0
  %190 = vmatprep.subr.bf16.mxu0 0
  %191 = vmatpush2.bf16.msra.mxu0 0
  %192 = vmatprep.subr.bf16.mxu0 0
  %193 = vmatpush2.bf16.msra.mxu0 0
  %194 = vmatprep.mubr.bf16.mxu0 0
  %195 = vmatmul.mubr.bf16.gmra.mxu0 %v160
  %v196 = vpop.f32.mrf.mxu0
  %v197 = vadd.f32 0.0, %v196
  %v198 = vpop.f32.mrf.mxu0
  %v199 = vpop.f32.mrf.mxu0
  %v200 = vpop.f32.mrf.mxu0
  %201 = vdwg.mxu0
  %v202 = vadd.f32 %v135, %v197
  %v204 = vlaneseq
  %v205 = vshrl.u32 %v204, 7
  %v206 = vsub.s32 0, %v205
  %v207 = vrot.slane %v15, %v206
  %v209 = vadd.f32 %v202, %v207
  %vm210 = vcmp.ge.f32.partialorder %v209, 0.0
  %v211 = vmul.f32 %v209, 0.1
  %v212 = vsel %vm210, %v209, %v211
  %vm213 = vcmask 257024
  %214 = vst.msk [vmem:[%s3] sm:$0xf] %vm213, %v212
  %s215 = scalar_lea.vmem %s0, 8
  %v216 = vld [vmem:[%s215] sm:$0xf]
  %v217 = vpack.c.bf16 %v216, %v216
  %v218 = vld [vmem:[%s1] sm:$0xf]
  %v219 = vld [vmem:[%s1 + $0x4] sm:$0xf]
  %v220 = vld [vmem:[%s1 + $0x8] sm:$0xf]
  %v221 = vld [vmem:[%s1 + $0xc] sm:$0xf]
  %v222 = vld [vmem:[%s215 + $0x1] sm:$0xf]
  %v223 = vpack.c.bf16 %v222, %v222
  %v224 = vld [vmem:[%s24] sm:$0xf]
  %v225 = vld [vmem:[%s24 + $0x4] sm:$0xf]
  %v226 = vld [vmem:[%s24 + $0x8] sm:$0xf]
  %v227 = vld [vmem:[%s24 + $0xc] sm:$0xf]
  %v232 = vunpack.c.l.b16 %v224
  %v233 = vunpack.c.l.b16 %v225
  %v234 = vunpack.c.l.b16 %v226
  %v235 = vunpack.c.l.b16 %v227
  %v236 = vpack.c.b16 %v233, %v232
  %v237 = vpack.c.b16 %v235, %v234
  %v241 = vsel %vm41, %v223, 0
  %243 = vmatprep.subr.bf16.mxu0 0
  %244 = vmatpush1.bf16.msra.mxu0 0
  %245 = vmatprep.subr.bf16.mxu0 0
  %246 = vmatpush1.bf16.msra.mxu0 0
  %247 = vmatprep.subr.bf16.mxu0 0
  %248 = vmatpush1.bf16.msra.mxu0 0
  %249 = vmatprep.subr.bf16.mxu0 0
  %250 = vmatpush1.bf16.msra.mxu0 0
  %251 = vmatprep.subr.bf16.mxu0 0
  %252 = vmatpush1.bf16.msra.mxu0 0
  %253 = vmatprep.subr.bf16.mxu0 0
  %254 = vmatpush1.bf16.msra.mxu0 0
  %255 = vmatprep.subr.bf16.mxu0 0
  %256 = vmatpush1.bf16.msra.mxu0 %v237
  %257 = vmatprep.subr.bf16.mxu0 0
  %258 = vmatpush1.bf16.msra.mxu0 %v236
  %259 = vmatprep.subr.bf16.mxu0 0
  %260 = vmatpush2.bf16.msra.mxu0 0
  %261 = vmatprep.subr.bf16.mxu0 0
  %262 = vmatpush2.bf16.msra.mxu0 0
  %263 = vmatprep.subr.bf16.mxu0 0
  %264 = vmatpush2.bf16.msra.mxu0 0
  %265 = vmatprep.subr.bf16.mxu0 0
  %266 = vmatpush2.bf16.msra.mxu0 0
  %267 = vmatprep.subr.bf16.mxu0 0
  %268 = vmatpush2.bf16.msra.mxu0 0
  %269 = vmatprep.subr.bf16.mxu0 0
  %270 = vmatpush2.bf16.msra.mxu0 0
  %271 = vmatprep.subr.bf16.mxu0 0
  %272 = vmatpush2.bf16.msra.mxu0 0
  %273 = vmatprep.subr.bf16.mxu0 0
  %274 = vmatpush2.bf16.msra.mxu0 0
  %275 = vmatprep.mubr.bf16.mxu0 0
  %276 = vmatmul.mubr.bf16.gmra.mxu0 %v241
  %v277 = vpop.f32.mrf.mxu0
  %v278 = vadd.f32 0.0, %v277
  %v279 = vpop.f32.mrf.mxu0
  %v280 = vpop.f32.mrf.mxu0
  %v281 = vpop.f32.mrf.mxu0
  %282 = vdwg.mxu0
  %v287 = vunpack.c.l.b16 %v218
  %v288 = vunpack.c.l.b16 %v219
  %v289 = vunpack.c.l.b16 %v220
  %v290 = vunpack.c.l.b16 %v221
  %v291 = vpack.c.b16 %v288, %v287
  %v292 = vpack.c.b16 %v290, %v289
  %v296 = vsel %vm41, %v217, 0
  %298 = vmatprep.subr.bf16.mxu0 0
  %299 = vmatpush1.bf16.msra.mxu0 0
  %300 = vmatprep.subr.bf16.mxu0 0
  %301 = vmatpush1.bf16.msra.mxu0 0
  %302 = vmatprep.subr.bf16.mxu0 0
  %303 = vmatpush1.bf16.msra.mxu0 0
  %304 = vmatprep.subr.bf16.mxu0 0
  %305 = vmatpush1.bf16.msra.mxu0 0
  %306 = vmatprep.subr.bf16.mxu0 0
  %307 = vmatpush1.bf16.msra.mxu0 0
  %308 = vmatprep.subr.bf16.mxu0 0
  %309 = vmatpush1.bf16.msra.mxu0 0
  %310 = vmatprep.subr.bf16.mxu0 0
  %311 = vmatpush1.bf16.msra.mxu0 %v292
  %312 = vmatprep.subr.bf16.mxu0 0
  %313 = vmatpush1.bf16.msra.mxu0 %v291
  %314 = vmatprep.subr.bf16.mxu0 0
  %315 = vmatpush2.bf16.msra.mxu0 0
  %316 = vmatprep.subr.bf16.mxu0 0
  %317 = vmatpush2.bf16.msra.mxu0 0
  %318 = vmatprep.subr.bf16.mxu0 0
  %319 = vmatpush2.bf16.msra.mxu0 0
  %320 = vmatprep.subr.bf16.mxu0 0
  %321 = vmatpush2.bf16.msra.mxu0 0
  %322 = vmatprep.subr.bf16.mxu0 0
  %323 = vmatpush2.bf16.msra.mxu0 0
  %324 = vmatprep.subr.bf16.mxu0 0
  %325 = vmatpush2.bf16.msra.mxu0 0
  %326 = vmatprep.subr.bf16.mxu0 0
  %327 = vmatpush2.bf16.msra.mxu0 0
  %328 = vmatprep.subr.bf16.mxu0 0
  %329 = vmatpush2.bf16.msra.mxu0 0
  %330 = vmatprep.mubr.bf16.mxu0 0
  %331 = vmatmul.mubr.bf16.gmra.mxu0 %v296
  %v332 = vpop.f32.mrf.mxu0
  %v333 = vadd.f32 %v278, %v332
  %v334 = vpop.f32.mrf.mxu0
  %v335 = vpop.f32.mrf.mxu0
  %v336 = vpop.f32.mrf.mxu0
  %337 = vdwg.mxu0
  %v338 = vld [vmem:[%s215 + $0x2] sm:$0xf]
  %v339 = vpack.c.bf16 %v338, %v338
  %v340 = vld [vmem:[%s142] sm:$0xf]
  %v341 = vld [vmem:[%s142 + $0x4] sm:$0xf]
  %v342 = vld [vmem:[%s142 + $0x8] sm:$0xf]
  %v343 = vld [vmem:[%s142 + $0xc] sm:$0xf]
  %v348 = vunpack.c.l.b16 %v340
  %v349 = vunpack.c.l.b16 %v341
  %v350 = vunpack.c.l.b16 %v342
  %v351 = vunpack.c.l.b16 %v343
  %v352 = vpack.c.b16 %v349, %v348
  %v353 = vpack.c.b16 %v351, %v350
  %v357 = vsel %vm41, %v339, 0
  %359 = vmatprep.subr.bf16.mxu0 0
  %360 = vmatpush1.bf16.msra.mxu0 0
  %361 = vmatprep.subr.bf16.mxu0 0
  %362 = vmatpush1.bf16.msra.mxu0 0
  %363 = vmatprep.subr.bf16.mxu0 0
  %364 = vmatpush1.bf16.msra.mxu0 0
  %365 = vmatprep.subr.bf16.mxu0 0
  %366 = vmatpush1.bf16.msra.mxu0 0
  %367 = vmatprep.subr.bf16.mxu0 0
  %368 = vmatpush1.bf16.msra.mxu0 0
  %369 = vmatprep.subr.bf16.mxu0 0
  %370 = vmatpush1.bf16.msra.mxu0 0
  %371 = vmatprep.subr.bf16.mxu0 0
  %372 = vmatpush1.bf16.msra.mxu0 %v353
  %373 = vmatprep.subr.bf16.mxu0 0
  %374 = vmatpush1.bf16.msra.mxu0 %v352
  %375 = vmatprep.subr.bf16.mxu0 0
  %376 = vmatpush2.bf16.msra.mxu0 0
  %377 = vmatprep.subr.bf16.mxu0 0
  %378 = vmatpush2.bf16.msra.mxu0 0
  %379 = vmatprep.subr.bf16.mxu0 0
  %380 = vmatpush2.bf16.msra.mxu0 0
  %381 = vmatprep.subr.bf16.mxu0 0
  %382 = vmatpush2.bf16.msra.mxu0 0
  %383 = vmatprep.subr.bf16.mxu0 0
  %384 = vmatpush2.bf16.msra.mxu0 0
  %385 = vmatprep.subr.bf16.mxu0 0
  %386 = vmatpush2.bf16.msra.mxu0 0
  %387 = vmatprep.subr.bf16.mxu0 0
  %388 = vmatpush2.bf16.msra.mxu0 0
  %389 = vmatprep.subr.bf16.mxu0 0
  %390 = vmatpush2.bf16.msra.mxu0 0
  %391 = vmatprep.mubr.bf16.mxu0 0
  %392 = vmatmul.mubr.bf16.gmra.mxu0 %v357
  %v393 = vpop.f32.mrf.mxu0
  %v394 = vadd.f32 0.0, %v393
  %v395 = vpop.f32.mrf.mxu0
  %v396 = vpop.f32.mrf.mxu0
  %v397 = vpop.f32.mrf.mxu0
  %398 = vdwg.mxu0
  %v399 = vadd.f32 %v333, %v394
  %v400 = vadd.f32 %v399, %v207
  %vm401 = vcmp.ge.f32.partialorder %v400, 0.0
  %v402 = vmul.f32 %v400, 0.1
  %v403 = vsel %vm401, %v400, %v402
  %s404 = scalar_lea.vmem %s3, 4
  %405 = vst.msk [vmem:[%s404] sm:$0xf] %vm213, %v403
  // Predicated region
  $region14: #{_lambda_.48} parent=0 // pred_check
    _
  $region15: #{_lambda_.48} parent=0 // pred_check_branch
    %407 = sbr.rel (0) target = $region17
  $region16: #{_lambda_.48} parent=0 // pred_region
    _
  $region17: #{_lambda_.48} parent=0 // pred_fallthru
    _
  // Predicated region
  $region18: #{_lambda_.48} parent=0 // pred_check
    _
  $region19: #{_lambda_.48} parent=0 // pred_check_branch
    %409 = sbr.rel (0) target = $region21
  $region20: #{_lambda_.48} parent=0 // pred_region
    _
  $region21: #{_lambda_.48} parent=0 // pred_fallthru
    _

// kernel: _lambda_.50
$region0: #{_lambda_.50}
  #allocation0 [shape = 'u32[]', space=smem, size = 0x4, offset = 0x4, fixed_abs, tag = 'smem constant byte address 0x4 - core index']
  #allocation1 [shape = 'u32[144,128]{1,0:T(1,128)}', space=vmem, size = 0x12000, scoped, tag = 'internal scratch']
  %s0 = inlined_call_operand.vmem [shape: f32[2,4,16], index: 0, kind: input, shape index: {}]
  %s1 = inlined_call_operand.vmem [shape: bf16[3,16,16], index: 1, kind: input, shape index: {}]
  %s2 = inlined_call_operand.vmem [shape: f32[1,16], index: 2, kind: input, shape index: {}]
  %s3 = inlined_call_operand.vmem [shape: f32[2,2,16], index: 3, kind: output, shape index: {}]
  %s4 = sld [smem:[#allocation0]]
  $region22: #{_lambda_.50} parent=0
    _
  %s6 = ssub.s32 1, %s4
  %s7 = scalar_select 0, %s6, %s4
  // Predicated region
  $region2: #{_lambda_.50} parent=0 // pred_check
    _
  $region3: #{_lambda_.50} parent=0 // pred_check_branch
    %9 = sbr.rel (0) target = $region5
  $region4: #{_lambda_.50} parent=0 // pred_region
    _
  $region5: #{_lambda_.50} parent=0 // pred_fallthru
    _
  // Predicated region
  $region6: #{_lambda_.50} parent=0 // pred_check
    _
  $region7: #{_lambda_.50} parent=0 // pred_check_branch
    %11 = sbr.rel (0) target = $region9
  $region8: #{_lambda_.50} parent=0 // pred_region
    _
  $region9: #{_lambda_.50} parent=0 // pred_fallthru
    _
  // Predicated region
  $region10: #{_lambda_.50} parent=0 // pred_check
    _
  $region11: #{_lambda_.50} parent=0 // pred_check_branch
    %13 = sbr.rel (0) target = $region13
  $region12: #{_lambda_.50} parent=0 // pred_region
    _
  $region13: #{_lambda_.50} parent=0 // pred_fallthru
    _
  %v15 = vld [vmem:[%s2] sm:$0x1]
  %v16 = vld [vmem:[%s0] sm:$0x3]
  %v17 = vpack.c.bf16 %v16, %v16
  %v18 = vld [vmem:[%s1] sm:$0xf]
  %v19 = vld [vmem:[%s1 + $0x4] sm:$0xf]
  %v20 = vld [vmem:[%s0 + $0x1] sm:$0x3]
  %v21 = vpack.c.bf16 %v20, %v20
  %s22 = scalar_lea.vmem %s1, 8
  %v23 = vld [vmem:[%s22] sm:$0xf]
  %v24 = vld [vmem:[%s22 + $0x4] sm:$0xf]
  %v27 = vunpack.c.l.b16 %v23
  %v28 = vunpack.c.l.b16 %v24
  %v29 = vpack.c.b16 %v28, %v27
  %vm31 = vcmask 130048
  %v33 = vsel %vm31, %v21, 0
  %35 = vmatprep.subr.bf16.mxu0 0
  %36 = vmatpush1.bf16.msra.mxu0 0
  %37 = vmatprep.subr.bf16.mxu0 0
  %38 = vmatpush1.bf16.msra.mxu0 0
  %39 = vmatprep.subr.bf16.mxu0 0
  %40 = vmatpush1.bf16.msra.mxu0 0
  %41 = vmatprep.subr.bf16.mxu0 0
  %42 = vmatpush1.bf16.msra.mxu0 0
  %43 = vmatprep.subr.bf16.mxu0 0
  %44 = vmatpush1.bf16.msra.mxu0 0
  %45 = vmatprep.subr.bf16.mxu0 0
  %46 = vmatpush1.bf16.msra.mxu0 0
  %47 = vmatprep.subr.bf16.mxu0 0
  %48 = vmatpush1.bf16.msra.mxu0 0
  %49 = vmatprep.subr.bf16.mxu0 0
  %50 = vmatpush1.bf16.msra.mxu0 %v29
  %51 = vmatprep.subr.bf16.mxu0 0
  %52 = vmatpush2.bf16.msra.mxu0 0
  %53 = vmatprep.subr.bf16.mxu0 0
  %54 = vmatpush2.bf16.msra.mxu0 0
  %55 = vmatprep.subr.bf16.mxu0 0
  %56 = vmatpush2.bf16.msra.mxu0 0
  %57 = vmatprep.subr.bf16.mxu0 0
  %58 = vmatpush2.bf16.msra.mxu0 0
  %59 = vmatprep.subr.bf16.mxu0 0
  %60 = vmatpush2.bf16.msra.mxu0 0
  %61 = vmatprep.subr.bf16.mxu0 0
  %62 = vmatpush2.bf16.msra.mxu0 0
  %63 = vmatprep.subr.bf16.mxu0 0
  %64 = vmatpush2.bf16.msra.mxu0 0
  %65 = vmatprep.subr.bf16.mxu0 0
  %66 = vmatpush2.bf16.msra.mxu0 0
  %67 = vmatprep.mubr.bf16.mxu0 0
  %68 = vmatmul.mubr.bf16.gmra.mxu0 %v33
  %v69 = vpop.f32.mrf.mxu0
  %v70 = vadd.f32 0.0, %v69
  %v71 = vpop.f32.mrf.mxu0
  %v72 = vpop.f32.mrf.mxu0
  %v73 = vpop.f32.mrf.mxu0
  %74 = vdwg.mxu0
  %v77 = vunpack.c.l.b16 %v18
  %v78 = vunpack.c.l.b16 %v19
  %v79 = vpack.c.b16 %v78, %v77
  %v82 = vsel %vm31, %v17, 0
  %84 = vmatprep.subr.bf16.mxu0 0
  %85 = vmatpush1.bf16.msra.mxu0 0
  %86 = vmatprep.subr.bf16.mxu0 0
  %87 = vmatpush1.bf16.msra.mxu0 0
  %88 = vmatprep.subr.bf16.mxu0 0
  %89 = vmatpush1.bf16.msra.mxu0 0
  %90 = vmatprep.subr.bf16.mxu0 0
  %91 = vmatpush1.bf16.msra.mxu0 0
  %92 = vmatprep.subr.bf16.mxu0 0
  %93 = vmatpush1.bf16.msra.mxu0 0
  %94 = vmatprep.subr.bf16.mxu0 0
  %95 = vmatpush1.bf16.msra.mxu0 0
  %96 = vmatprep.subr.bf16.mxu0 0
  %97 = vmatpush1.bf16.msra.mxu0 0
  %98 = vmatprep.subr.bf16.mxu0 0
  %99 = vmatpush1.bf16.msra.mxu0 %v79
  %100 = vmatprep.subr.bf16.mxu0 0
  %101 = vmatpush2.bf16.msra.mxu0 0
  %102 = vmatprep.subr.bf16.mxu0 0
  %103 = vmatpush2.bf16.msra.mxu0 0
  %104 = vmatprep.subr.bf16.mxu0 0
  %105 = vmatpush2.bf16.msra.mxu0 0
  %106 = vmatprep.subr.bf16.mxu0 0
  %107 = vmatpush2.bf16.msra.mxu0 0
  %108 = vmatprep.subr.bf16.mxu0 0
  %109 = vmatpush2.bf16.msra.mxu0 0
  %110 = vmatprep.subr.bf16.mxu0 0
  %111 = vmatpush2.bf16.msra.mxu0 0
  %112 = vmatprep.subr.bf16.mxu0 0
  %113 = vmatpush2.bf16.msra.mxu0 0
  %114 = vmatprep.subr.bf16.mxu0 0
  %115 = vmatpush2.bf16.msra.mxu0 0
  %116 = vmatprep.mubr.bf16.mxu0 0
  %117 = vmatmul.mubr.bf16.gmra.mxu0 %v82
  %v118 = vpop.f32.mrf.mxu0
  %v119 = vadd.f32 %v70, %v118
  %v120 = vpop.f32.mrf.mxu0
  %v121 = vpop.f32.mrf.mxu0
  %v122 = vpop.f32.mrf.mxu0
  %123 = vdwg.mxu0
  %v124 = vld [vmem:[%s0 + $0x2] sm:$0x3]
  %v125 = vpack.c.bf16 %v124, %v124
  %s126 = scalar_lea.vmem %s1, 16
  %v127 = vld [vmem:[%s126] sm:$0xf]
  %v128 = vld [vmem:[%s126 + $0x4] sm:$0xf]
  %v131 = vunpack.c.l.b16 %v127
  %v132 = vunpack.c.l.b16 %v128
  %v133 = vpack.c.b16 %v132, %v131
  %v136 = vsel %vm31, %v125, 0
  %138 = vmatprep.subr.bf16.mxu0 0
  %139 = vmatpush1.bf16.msra.mxu0 0
  %140 = vmatprep.subr.bf16.mxu0 0
  %141 = vmatpush1.bf16.msra.mxu0 0
  %142 = vmatprep.subr.bf16.mxu0 0
  %143 = vmatpush1.bf16.msra.mxu0 0
  %144 = vmatprep.subr.bf16.mxu0 0
  %145 = vmatpush1.bf16.msra.mxu0 0
  %146 = vmatprep.subr.bf16.mxu0 0
  %147 = vmatpush1.bf16.msra.mxu0 0
  %148 = vmatprep.subr.bf16.mxu0 0
  %149 = vmatpush1.bf16.msra.mxu0 0
  %150 = vmatprep.subr.bf16.mxu0 0
  %151 = vmatpush1.bf16.msra.mxu0 0
  %152 = vmatprep.subr.bf16.mxu0 0
  %153 = vmatpush1.bf16.msra.mxu0 %v133
  %154 = vmatprep.subr.bf16.mxu0 0
  %155 = vmatpush2.bf16.msra.mxu0 0
  %156 = vmatprep.subr.bf16.mxu0 0
  %157 = vmatpush2.bf16.msra.mxu0 0
  %158 = vmatprep.subr.bf16.mxu0 0
  %159 = vmatpush2.bf16.msra.mxu0 0
  %160 = vmatprep.subr.bf16.mxu0 0
  %161 = vmatpush2.bf16.msra.mxu0 0
  %162 = vmatprep.subr.bf16.mxu0 0
  %163 = vmatpush2.bf16.msra.mxu0 0
  %164 = vmatprep.subr.bf16.mxu0 0
  %165 = vmatpush2.bf16.msra.mxu0 0
  %166 = vmatprep.subr.bf16.mxu0 0
  %167 = vmatpush2.bf16.msra.mxu0 0
  %168 = vmatprep.subr.bf16.mxu0 0
  %169 = vmatpush2.bf16.msra.mxu0 0
  %170 = vmatprep.mubr.bf16.mxu0 0
  %171 = vmatmul.mubr.bf16.gmra.mxu0 %v136
  %v172 = vpop.f32.mrf.mxu0
  %v173 = vadd.f32 0.0, %v172
  %v174 = vpop.f32.mrf.mxu0
  %v175 = vpop.f32.mrf.mxu0
  %v176 = vpop.f32.mrf.mxu0
  %177 = vdwg.mxu0
  %v178 = vadd.f32 %v119, %v173
  %v180 = vlaneseq
  %v181 = vshrl.u32 %v180, 7
  %v182 = vsub.s32 0, %v181
  %v183 = vrot.slane %v15, %v182
  %v185 = vadd.f32 %v178, %v183
  %vm186 = vcmp.ge.f32.partialorder %v185, 0.0
  %v187 = vmul.f32 %v185, 0.1
  %v188 = vsel %vm186, %v185, %v187
  %vm189 = vcmask 123904
  %190 = vst.msk [vmem:[%s3] sm:$0x3] %vm189, %v188
  %s191 = scalar_lea.vmem %s0, 4
  %v192 = vld [vmem:[%s191] sm:$0x3]
  %v193 = vpack.c.bf16 %v192, %v192
  %v194 = vld [vmem:[%s1] sm:$0xf]
  %v195 = vld [vmem:[%s1 + $0x4] sm:$0xf]
  %v196 = vld [vmem:[%s191 + $0x1] sm:$0x3]
  %v197 = vpack.c.bf16 %v196, %v196
  %v198 = vld [vmem:[%s22] sm:$0xf]
  %v199 = vld [vmem:[%s22 + $0x4] sm:$0xf]
  %v202 = vunpack.c.l.b16 %v198
  %v203 = vunpack.c.l.b16 %v199
  %v204 = vpack.c.b16 %v203, %v202
  %v207 = vsel %vm31, %v197, 0
  %209 = vmatprep.subr.bf16.mxu0 0
  %210 = vmatpush1.bf16.msra.mxu0 0
  %211 = vmatprep.subr.bf16.mxu0 0
  %212 = vmatpush1.bf16.msra.mxu0 0
  %213 = vmatprep.subr.bf16.mxu0 0
  %214 = vmatpush1.bf16.msra.mxu0 0
  %215 = vmatprep.subr.bf16.mxu0 0
  %216 = vmatpush1.bf16.msra.mxu0 0
  %217 = vmatprep.subr.bf16.mxu0 0
  %218 = vmatpush1.bf16.msra.mxu0 0
  %219 = vmatprep.subr.bf16.mxu0 0
  %220 = vmatpush1.bf16.msra.mxu0 0
  %221 = vmatprep.subr.bf16.mxu0 0
  %222 = vmatpush1.bf16.msra.mxu0 0
  %223 = vmatprep.subr.bf16.mxu0 0
  %224 = vmatpush1.bf16.msra.mxu0 %v204
  %225 = vmatprep.subr.bf16.mxu0 0
  %226 = vmatpush2.bf16.msra.mxu0 0
  %227 = vmatprep.subr.bf16.mxu0 0
  %228 = vmatpush2.bf16.msra.mxu0 0
  %229 = vmatprep.subr.bf16.mxu0 0
  %230 = vmatpush2.bf16.msra.mxu0 0
  %231 = vmatprep.subr.bf16.mxu0 0
  %232 = vmatpush2.bf16.msra.mxu0 0
  %233 = vmatprep.subr.bf16.mxu0 0
  %234 = vmatpush2.bf16.msra.mxu0 0
  %235 = vmatprep.subr.bf16.mxu0 0
  %236 = vmatpush2.bf16.msra.mxu0 0
  %237 = vmatprep.subr.bf16.mxu0 0
  %238 = vmatpush2.bf16.msra.mxu0 0
  %239 = vmatprep.subr.bf16.mxu0 0
  %240 = vmatpush2.bf16.msra.mxu0 0
  %241 = vmatprep.mubr.bf16.mxu0 0
  %242 = vmatmul.mubr.bf16.gmra.mxu0 %v207
  %v243 = vpop.f32.mrf.mxu0
  %v244 = vadd.f32 0.0, %v243
  %v245 = vpop.f32.mrf.mxu0
  %v246 = vpop.f32.mrf.mxu0
  %v247 = vpop.f32.mrf.mxu0
  %248 = vdwg.mxu0
  %v251 = vunpack.c.l.b16 %v194
  %v252 = vunpack.c.l.b16 %v195
  %v253 = vpack.c.b16 %v252, %v251
  %v256 = vsel %vm31, %v193, 0
  %258 = vmatprep.subr.bf16.mxu0 0
  %259 = vmatpush1.bf16.msra.mxu0 0
  %260 = vmatprep.subr.bf16.mxu0 0
  %261 = vmatpush1.bf16.msra.mxu0 0
  %262 = vmatprep.subr.bf16.mxu0 0
  %263 = vmatpush1.bf16.msra.mxu0 0
  %264 = vmatprep.subr.bf16.mxu0 0
  %265 = vmatpush1.bf16.msra.mxu0 0
  %266 = vmatprep.subr.bf16.mxu0 0
  %267 = vmatpush1.bf16.msra.mxu0 0
  %268 = vmatprep.subr.bf16.mxu0 0
  %269 = vmatpush1.bf16.msra.mxu0 0
  %270 = vmatprep.subr.bf16.mxu0 0
  %271 = vmatpush1.bf16.msra.mxu0 0
  %272 = vmatprep.subr.bf16.mxu0 0
  %273 = vmatpush1.bf16.msra.mxu0 %v253
  %274 = vmatprep.subr.bf16.mxu0 0
  %275 = vmatpush2.bf16.msra.mxu0 0
  %276 = vmatprep.subr.bf16.mxu0 0
  %277 = vmatpush2.bf16.msra.mxu0 0
  %278 = vmatprep.subr.bf16.mxu0 0
  %279 = vmatpush2.bf16.msra.mxu0 0
  %280 = vmatprep.subr.bf16.mxu0 0
  %281 = vmatpush2.bf16.msra.mxu0 0
  %282 = vmatprep.subr.bf16.mxu0 0
  %283 = vmatpush2.bf16.msra.mxu0 0
  %284 = vmatprep.subr.bf16.mxu0 0
  %285 = vmatpush2.bf16.msra.mxu0 0
  %286 = vmatprep.subr.bf16.mxu0 0
  %287 = vmatpush2.bf16.msra.mxu0 0
  %288 = vmatprep.subr.bf16.mxu0 0
  %289 = vmatpush2.bf16.msra.mxu0 0
  %290 = vmatprep.mubr.bf16.mxu0 0
  %291 = vmatmul.mubr.bf16.gmra.mxu0 %v256
  %v292 = vpop.f32.mrf.mxu0
  %v293 = vadd.f32 %v244, %v292
  %v294 = vpop.f32.mrf.mxu0
  %v295 = vpop.f32.mrf.mxu0
  %v296 = vpop.f32.mrf.mxu0
  %297 = vdwg.mxu0
  %v298 = vld [vmem:[%s191 + $0x2] sm:$0x3]
  %v299 = vpack.c.bf16 %v298, %v298
  %v300 = vld [vmem:[%s126] sm:$0xf]
  %v301 = vld [vmem:[%s126 + $0x4] sm:$0xf]
  %v304 = vunpack.c.l.b16 %v300
  %v305 = vunpack.c.l.b16 %v301
  %v306 = vpack.c.b16 %v305, %v304
  %v309 = vsel %vm31, %v299, 0
  %311 = vmatprep.subr.bf16.mxu0 0
  %312 = vmatpush1.bf16.msra.mxu0 0
  %313 = vmatprep.subr.bf16.mxu0 0
  %314 = vmatpush1.bf16.msra.mxu0 0
  %315 = vmatprep.subr.bf16.mxu0 0
  %316 = vmatpush1.bf16.msra.mxu0 0
  %317 = vmatprep.subr.bf16.mxu0 0
  %318 = vmatpush1.bf16.msra.mxu0 0
  %319 = vmatprep.subr.bf16.mxu0 0
  %320 = vmatpush1.bf16.msra.mxu0 0
  %321 = vmatprep.subr.bf16.mxu0 0
  %322 = vmatpush1.bf16.msra.mxu0 0
  %323 = vmatprep.subr.bf16.mxu0 0
  %324 = vmatpush1.bf16.msra.mxu0 0
  %325 = vmatprep.subr.bf16.mxu0 0
  %326 = vmatpush1.bf16.msra.mxu0 %v306
  %327 = vmatprep.subr.bf16.mxu0 0
  %328 = vmatpush2.bf16.msra.mxu0 0
  %329 = vmatprep.subr.bf16.mxu0 0
  %330 = vmatpush2.bf16.msra.mxu0 0
  %331 = vmatprep.subr.bf16.mxu0 0
  %332 = vmatpush2.bf16.msra.mxu0 0
  %333 = vmatprep.subr.bf16.mxu0 0
  %334 = vmatpush2.bf16.msra.mxu0 0
  %335 = vmatprep.subr.bf16.mxu0 0
  %336 = vmatpush2.bf16.msra.mxu0 0
  %337 = vmatprep.subr.bf16.mxu0 0
  %338 = vmatpush2.bf16.msra.mxu0 0
  %339 = vmatprep.subr.bf16.mxu0 0
  %340 = vmatpush2.bf16.msra.mxu0 0
  %341 = vmatprep.subr.bf16.mxu0 0
  %342 = vmatpush2.bf16.msra.mxu0 0
  %343 = vmatprep.mubr.bf16.mxu0 0
  %344 = vmatmul.mubr.bf16.gmra.mxu0 %v309
  %v345 = vpop.f32.mrf.mxu0
  %v346 = vadd.f32 0.0, %v345
  %v347 = vpop.f32.mrf.mxu0
  %v348 = vpop.f32.mrf.mxu0
  %v349 = vpop.f32.mrf.mxu0
  %350 = vdwg.mxu0
  %v351 = vadd.f32 %v293, %v346
  %v352 = vadd.f32 %v351, %v183
  %vm353 = vcmp.ge.f32.partialorder %v352, 0.0
  %v354 = vmul.f32 %v352, 0.1
  %v355 = vsel %vm353, %v352, %v354
  %s356 = scalar_lea.vmem %s3, 2
  %357 = vst.msk [vmem:[%s356] sm:$0x3] %vm189, %v355
  // Predicated region
  $region14: #{_lambda_.50} parent=0 // pred_check
    _
  $region15: #{_lambda_.50} parent=0 // pred_check_branch
    %359 = sbr.rel (0) target = $region17
  $region16: #{_lambda_.50} parent=0 // pred_region
    _
  $region17: #{_lambda_.50} parent=0 // pred_fallthru
    _
  // Predicated region
  $region18: #{_lambda_.50} parent=0 // pred_check
    _
  $region19: #{_lambda_.50} parent=0 // pred_check_branch
    %361 = sbr.rel (0) target = $region21
  $region20: #{_lambda_.50} parent=0 // pred_region
    _
  $region21: #{_lambda_.50} parent=0 // pred_fallthru
    _

// kernel: _lambda_.49
$region0: #{_lambda_.49}
  #allocation0 [shape = 'u32[]', space=smem, size = 0x4, offset = 0x4, fixed_abs, tag = 'smem constant byte address 0x4 - core index']
  #allocation1 [shape = 'u32[144,128]{1,0:T(1,128)}', space=vmem, size = 0x12000, scoped, tag = 'internal scratch']
  %s0 = inlined_call_operand.vmem [shape: f32[2,3,64], index: 0, kind: input, shape index: {}]
  %s1 = inlined_call_operand.vmem [shape: bf16[2,64,16], index: 1, kind: input, shape index: {}]
  %s2 = inlined_call_operand.vmem [shape: f32[1,16], index: 2, kind: input, shape index: {}]
  %s3 = inlined_call_operand.vmem [shape: f32[2,2,16], index: 3, kind: output, shape index: {}]
  %s4 = sld [smem:[#allocation0]]
  $region22: #{_lambda_.49} parent=0
    _
  %s6 = ssub.s32 1, %s4
  %s7 = scalar_select 0, %s6, %s4
  // Predicated region
  $region2: #{_lambda_.49} parent=0 // pred_check
    _
  $region3: #{_lambda_.49} parent=0 // pred_check_branch
    %9 = sbr.rel (0) target = $region5
  $region4: #{_lambda_.49} parent=0 // pred_region
    _
  $region5: #{_lambda_.49} parent=0 // pred_fallthru
    _
  // Predicated region
  $region6: #{_lambda_.49} parent=0 // pred_check
    _
  $region7: #{_lambda_.49} parent=0 // pred_check_branch
    %11 = sbr.rel (0) target = $region9
  $region8: #{_lambda_.49} parent=0 // pred_region
    _
  $region9: #{_lambda_.49} parent=0 // pred_fallthru
    _
  // Predicated region
  $region10: #{_lambda_.49} parent=0 // pred_check
    _
  $region11: #{_lambda_.49} parent=0 // pred_check_branch
    %13 = sbr.rel (0) target = $region13
  $region12: #{_lambda_.49} parent=0 // pred_region
    _
  $region13: #{_lambda_.49} parent=0 // pred_fallthru
    _
  %v15 = vld [vmem:[%s2] sm:$0x1]
  %v16 = vld [vmem:[%s0] sm:$0x3]
  %v17 = vpack.c.bf16 %v16, %v16
  %v18 = vld [vmem:[%s1] sm:$0xf]
  %v19 = vld [vmem:[%s1 + $0x4] sm:$0xf]
  %v20 = vld [vmem:[%s1 + $0x8] sm:$0xf]
  %v21 = vld [vmem:[%s1 + $0xc] sm:$0xf]
  %v22 = vld [vmem:[%s1 + $0x10] sm:$0xf]
  %v23 = vld [vmem:[%s1 + $0x14] sm:$0xf]
  %v24 = vld [vmem:[%s1 + $0x18] sm:$0xf]
  %v25 = vld [vmem:[%s1 + $0x1c] sm:$0xf]
  %v26 = vld [vmem:[%s0 + $0x1] sm:$0x3]
  %v27 = vpack.c.bf16 %v26, %v26
  %s28 = scalar_lea.vmem %s1, 32
  %v29 = vld [vmem:[%s28] sm:$0xf]
  %v30 = vld [vmem:[%s28 + $0x4] sm:$0xf]
  %v31 = vld [vmem:[%s28 + $0x8] sm:$0xf]
  %v32 = vld [vmem:[%s28 + $0xc] sm:$0xf]
  %v33 = vld [vmem:[%s28 + $0x10] sm:$0xf]
  %v34 = vld [vmem:[%s28 + $0x14] sm:$0xf]
  %v35 = vld [vmem:[%s28 + $0x18] sm:$0xf]
  %v36 = vld [vmem:[%s28 + $0x1c] sm:$0xf]
  %v45 = vunpack.c.l.b16 %v29
  %v46 = vunpack.c.l.b16 %v30
  %v47 = vunpack.c.l.b16 %v31
  %v48 = vunpack.c.l.b16 %v32
  %v49 = vunpack.c.l.b16 %v33
  %v50 = vunpack.c.l.b16 %v34
  %v51 = vunpack.c.l.b16 %v35
  %v52 = vunpack.c.l.b16 %v36
  %v53 = vpack.c.b16 %v46, %v45
  %v54 = vpack.c.b16 %v48, %v47
  %v55 = vpack.c.b16 %v50, %v49
  %v56 = vpack.c.b16 %v52, %v51
  %vm61 = vcmask 523264
  %v63 = vsel %vm61, %v27, 0
  %65 = vmatprep.subr.bf16.mxu0 0
  %66 = vmatpush1.bf16.msra.mxu0 0
  %67 = vmatprep.subr.bf16.mxu0 0
  %68 = vmatpush1.bf16.msra.mxu0 0
  %69 = vmatprep.subr.bf16.mxu0 0
  %70 = vmatpush1.bf16.msra.mxu0 0
  %71 = vmatprep.subr.bf16.mxu0 0
  %72 = vmatpush1.bf16.msra.mxu0 0
  %73 = vmatprep.subr.bf16.mxu0 0
  %74 = vmatpush1.bf16.msra.mxu0 %v56
  %75 = vmatprep.subr.bf16.mxu0 0
  %76 = vmatpush1.bf16.msra.mxu0 %v55
  %77 = vmatprep.subr.bf16.mxu0 0
  %78 = vmatpush1.bf16.msra.mxu0 %v54
  %79 = vmatprep.subr.bf16.mxu0 0
  %80 = vmatpush1.bf16.msra.mxu0 %v53
  %81 = vmatprep.subr.bf16.mxu0 0
  %82 = vmatpush2.bf16.msra.mxu0 0
  %83 = vmatprep.subr.bf16.mxu0 0
  %84 = vmatpush2.bf16.msra.mxu0 0
  %85 = vmatprep.subr.bf16.mxu0 0
  %86 = vmatpush2.bf16.msra.mxu0 0
  %87 = vmatprep.subr.bf16.mxu0 0
  %88 = vmatpush2.bf16.msra.mxu0 0
  %89 = vmatprep.subr.bf16.mxu0 0
  %90 = vmatpush2.bf16.msra.mxu0 0
  %91 = vmatprep.subr.bf16.mxu0 0
  %92 = vmatpush2.bf16.msra.mxu0 0
  %93 = vmatprep.subr.bf16.mxu0 0
  %94 = vmatpush2.bf16.msra.mxu0 0
  %95 = vmatprep.subr.bf16.mxu0 0
  %96 = vmatpush2.bf16.msra.mxu0 0
  %97 = vmatprep.mubr.bf16.mxu0 0
  %98 = vmatmul.mubr.bf16.gmra.mxu0 %v63
  %v99 = vpop.f32.mrf.mxu0
  %v100 = vadd.f32 0.0, %v99
  %v101 = vpop.f32.mrf.mxu0
  %v102 = vpop.f32.mrf.mxu0
  %v103 = vpop.f32.mrf.mxu0
  %104 = vdwg.mxu0
  %v113 = vunpack.c.l.b16 %v18
  %v114 = vunpack.c.l.b16 %v19
  %v115 = vunpack.c.l.b16 %v20
  %v116 = vunpack.c.l.b16 %v21
  %v117 = vunpack.c.l.b16 %v22
  %v118 = vunpack.c.l.b16 %v23
  %v119 = vunpack.c.l.b16 %v24
  %v120 = vunpack.c.l.b16 %v25
  %v121 = vpack.c.b16 %v114, %v113
  %v122 = vpack.c.b16 %v116, %v115
  %v123 = vpack.c.b16 %v118, %v117
  %v124 = vpack.c.b16 %v120, %v119
  %v130 = vsel %vm61, %v17, 0
  %132 = vmatprep.subr.bf16.mxu0 0
  %133 = vmatpush1.bf16.msra.mxu0 0
  %134 = vmatprep.subr.bf16.mxu0 0
  %135 = vmatpush1.bf16.msra.mxu0 0
  %136 = vmatprep.subr.bf16.mxu0 0
  %137 = vmatpush1.bf16.msra.mxu0 0
  %138 = vmatprep.subr.bf16.mxu0 0
  %139 = vmatpush1.bf16.msra.mxu0 0
  %140 = vmatprep.subr.bf16.mxu0 0
  %141 = vmatpush1.bf16.msra.mxu0 %v124
  %142 = vmatprep.subr.bf16.mxu0 0
  %143 = vmatpush1.bf16.msra.mxu0 %v123
  %144 = vmatprep.subr.bf16.mxu0 0
  %145 = vmatpush1.bf16.msra.mxu0 %v122
  %146 = vmatprep.subr.bf16.mxu0 0
  %147 = vmatpush1.bf16.msra.mxu0 %v121
  %148 = vmatprep.subr.bf16.mxu0 0
  %149 = vmatpush2.bf16.msra.mxu0 0
  %150 = vmatprep.subr.bf16.mxu0 0
  %151 = vmatpush2.bf16.msra.mxu0 0
  %152 = vmatprep.subr.bf16.mxu0 0
  %153 = vmatpush2.bf16.msra.mxu0 0
  %154 = vmatprep.subr.bf16.mxu0 0
  %155 = vmatpush2.bf16.msra.mxu0 0
  %156 = vmatprep.subr.bf16.mxu0 0
  %157 = vmatpush2.bf16.msra.mxu0 0
  %158 = vmatprep.subr.bf16.mxu0 0
  %159 = vmatpush2.bf16.msra.mxu0 0
  %160 = vmatprep.subr.bf16.mxu0 0
  %161 = vmatpush2.bf16.msra.mxu0 0
  %162 = vmatprep.subr.bf16.mxu0 0
  %163 = vmatpush2.bf16.msra.mxu0 0
  %164 = vmatprep.mubr.bf16.mxu0 0
  %165 = vmatmul.mubr.bf16.gmra.mxu0 %v130
  %v166 = vpop.f32.mrf.mxu0
  %v167 = vadd.f32 %v100, %v166
  %v168 = vpop.f32.mrf.mxu0
  %v169 = vpop.f32.mrf.mxu0
  %v170 = vpop.f32.mrf.mxu0
  %171 = vdwg.mxu0
  %v173 = vlaneseq
  %v174 = vshrl.u32 %v173, 7
  %v175 = vsub.s32 0, %v174
  %v176 = vrot.slane %v15, %v175
  %v178 = vadd.f32 %v167, %v176
  %vm179 = vcmp.ge.f32.partialorder %v178, 0.0
  %v180 = vmul.f32 %v178, 0.1
  %v181 = vsel %vm179, %v178, %v180
  %vm182 = vcmask 123904
  %183 = vst.msk [vmem:[%s3] sm:$0x3] %vm182, %v181
  %s184 = scalar_lea.vmem %s0, 4
  %v185 = vld [vmem:[%s184] sm:$0x3]
  %v186 = vpack.c.bf16 %v185, %v185
  %v187 = vld [vmem:[%s1] sm:$0xf]
  %v188 = vld [vmem:[%s1 + $0x4] sm:$0xf]
  %v189 = vld [vmem:[%s1 + $0x8] sm:$0xf]
  %v190 = vld [vmem:[%s1 + $0xc] sm:$0xf]
  %v191 = vld [vmem:[%s1 + $0x10] sm:$0xf]
  %v192 = vld [vmem:[%s1 + $0x14] sm:$0xf]
  %v193 = vld [vmem:[%s1 + $0x18] sm:$0xf]
  %v194 = vld [vmem:[%s1 + $0x1c] sm:$0xf]
  %v195 = vld [vmem:[%s184 + $0x1] sm:$0x3]
  %v196 = vpack.c.bf16 %v195, %v195
  %v197 = vld [vmem:[%s28] sm:$0xf]
  %v198 = vld [vmem:[%s28 + $0x4] sm:$0xf]
  %v199 = vld [vmem:[%s28 + $0x8] sm:$0xf]
  %v200 = vld [vmem:[%s28 + $0xc] sm:$0xf]
  %v201 = vld [vmem:[%s28 + $0x10] sm:$0xf]
  %v202 = vld [vmem:[%s28 + $0x14] sm:$0xf]
  %v203 = vld [vmem:[%s28 + $0x18] sm:$0xf]
  %v204 = vld [vmem:[%s28 + $0x1c] sm:$0xf]
  %v213 = vunpack.c.l.b16 %v197
  %v214 = vunpack.c.l.b16 %v198
  %v215 = vunpack.c.l.b16 %v199
  %v216 = vunpack.c.l.b16 %v200
  %v217 = vunpack.c.l.b16 %v201
  %v218 = vunpack.c.l.b16 %v202
  %v219 = vunpack.c.l.b16 %v203
  %v220 = vunpack.c.l.b16 %v204
  %v221 = vpack.c.b16 %v214, %v213
  %v222 = vpack.c.b16 %v216, %v215
  %v223 = vpack.c.b16 %v218, %v217
  %v224 = vpack.c.b16 %v220, %v219
  %v230 = vsel %vm61, %v196, 0
  %232 = vmatprep.subr.bf16.mxu0 0
  %233 = vmatpush1.bf16.msra.mxu0 0
  %234 = vmatprep.subr.bf16.mxu0 0
  %235 = vmatpush1.bf16.msra.mxu0 0
  %236 = vmatprep.subr.bf16.mxu0 0
  %237 = vmatpush1.bf16.msra.mxu0 0
  %238 = vmatprep.subr.bf16.mxu0 0
  %239 = vmatpush1.bf16.msra.mxu0 0
  %240 = vmatprep.subr.bf16.mxu0 0
  %241 = vmatpush1.bf16.msra.mxu0 %v224
  %242 = vmatprep.subr.bf16.mxu0 0
  %243 = vmatpush1.bf16.msra.mxu0 %v223
  %244 = vmatprep.subr.bf16.mxu0 0
  %245 = vmatpush1.bf16.msra.mxu0 %v222
  %246 = vmatprep.subr.bf16.mxu0 0
  %247 = vmatpush1.bf16.msra.mxu0 %v221
  %248 = vmatprep.subr.bf16.mxu0 0
  %249 = vmatpush2.bf16.msra.mxu0 0
  %250 = vmatprep.subr.bf16.mxu0 0
  %251 = vmatpush2.bf16.msra.mxu0 0
  %252 = vmatprep.subr.bf16.mxu0 0
  %253 = vmatpush2.bf16.msra.mxu0 0
  %254 = vmatprep.subr.bf16.mxu0 0
  %255 = vmatpush2.bf16.msra.mxu0 0
  %256 = vmatprep.subr.bf16.mxu0 0
  %257 = vmatpush2.bf16.msra.mxu0 0
  %258 = vmatprep.subr.bf16.mxu0 0
  %259 = vmatpush2.bf16.msra.mxu0 0
  %260 = vmatprep.subr.bf16.mxu0 0
  %261 = vmatpush2.bf16.msra.mxu0 0
  %262 = vmatprep.subr.bf16.mxu0 0
  %263 = vmatpush2.bf16.msra.mxu0 0
  %264 = vmatprep.mubr.bf16.mxu0 0
  %265 = vmatmul.mubr.bf16.gmra.mxu0 %v230
  %v266 = vpop.f32.mrf.mxu0
  %v267 = vadd.f32 0.0, %v266
  %v268 = vpop.f32.mrf.mxu0
  %v269 = vpop.f32.mrf.mxu0
  %v270 = vpop.f32.mrf.mxu0
  %271 = vdwg.mxu0
  %v280 = vunpack.c.l.b16 %v187
  %v281 = vunpack.c.l.b16 %v188
  %v282 = vunpack.c.l.b16 %v189
  %v283 = vunpack.c.l.b16 %v190
  %v284 = vunpack.c.l.b16 %v191
  %v285 = vunpack.c.l.b16 %v192
  %v286 = vunpack.c.l.b16 %v193
  %v287 = vunpack.c.l.b16 %v194
  %v288 = vpack.c.b16 %v281, %v280
  %v289 = vpack.c.b16 %v283, %v282
  %v290 = vpack.c.b16 %v285, %v284
  %v291 = vpack.c.b16 %v287, %v286
  %v297 = vsel %vm61, %v186, 0
  %299 = vmatprep.subr.bf16.mxu0 0
  %300 = vmatpush1.bf16.msra.mxu0 0
  %301 = vmatprep.subr.bf16.mxu0 0
  %302 = vmatpush1.bf16.msra.mxu0 0
  %303 = vmatprep.subr.bf16.mxu0 0
  %304 = vmatpush1.bf16.msra.mxu0 0
  %305 = vmatprep.subr.bf16.mxu0 0
  %306 = vmatpush1.bf16.msra.mxu0 0
  %307 = vmatprep.subr.bf16.mxu0 0
  %308 = vmatpush1.bf16.msra.mxu0 %v291
  %309 = vmatprep.subr.bf16.mxu0 0
  %310 = vmatpush1.bf16.msra.mxu0 %v290
  %311 = vmatprep.subr.bf16.mxu0 0
  %312 = vmatpush1.bf16.msra.mxu0 %v289
  %313 = vmatprep.subr.bf16.mxu0 0
  %314 = vmatpush1.bf16.msra.mxu0 %v288
  %315 = vmatprep.subr.bf16.mxu0 0
  %316 = vmatpush2.bf16.msra.mxu0 0
  %317 = vmatprep.subr.bf16.mxu0 0
  %318 = vmatpush2.bf16.msra.mxu0 0
  %319 = vmatprep.subr.bf16.mxu0 0
  %320 = vmatpush2.bf16.msra.mxu0 0
  %321 = vmatprep.subr.bf16.mxu0 0
  %322 = vmatpush2.bf16.msra.mxu0 0
  %323 = vmatprep.subr.bf16.mxu0 0
  %324 = vmatpush2.bf16.msra.mxu0 0
  %325 = vmatprep.subr.bf16.mxu0 0
  %326 = vmatpush2.bf16.msra.mxu0 0
  %327 = vmatprep.subr.bf16.mxu0 0
  %328 = vmatpush2.bf16.msra.mxu0 0
  %329 = vmatprep.subr.bf16.mxu0 0
  %330 = vmatpush2.bf16.msra.mxu0 0
  %331 = vmatprep.mubr.bf16.mxu0 0
  %332 = vmatmul.mubr.bf16.gmra.mxu0 %v297
  %v333 = vpop.f32.mrf.mxu0
  %v334 = vadd.f32 %v267, %v333
  %v335 = vpop.f32.mrf.mxu0
  %v336 = vpop.f32.mrf.mxu0
  %v337 = vpop.f32.mrf.mxu0
  %338 = vdwg.mxu0
  %v339 = vadd.f32 %v334, %v176
  %vm340 = vcmp.ge.f32.partialorder %v339, 0.0
  %v341 = vmul.f32 %v339, 0.1
  %v342 = vsel %vm340, %v339, %v341
  %s343 = scalar_lea.vmem %s3, 2
  %344 = vst.msk [vmem:[%s343] sm:$0x3] %vm182, %v342
  // Predicated region
  $region14: #{_lambda_.49} parent=0 // pred_check
    _
  $region15: #{_lambda_.49} parent=0 // pred_check_branch
    %346 = sbr.rel (0) target = $region17
  $region16: #{_lambda_.49} parent=0 // pred_region
    _
  $region17: #{_lambda_.49} parent=0 // pred_fallthru
    _
  // Predicated region
  $region18: #{_lambda_.49} parent=0 // pred_check
    _
  $region19: #{_lambda_.49} parent=0 // pred_check_branch
    %348 = sbr.rel (0) target = $region21
  $region20: #{_lambda_.49} parent=0 // pred_region
    _
  $region21: #{_lambda_.49} parent=0 // pred_fallthru
    _

// kernel: _lambda_.51
$region0: #{_lambda_.51}
  #allocation0 [shape = 'u32[]', space=smem, size = 0x4, offset = 0x4, fixed_abs, tag = 'smem constant byte address 0x4 - core index']
  #allocation1 [shape = 'u32[144,128]{1,0:T(1,128)}', space=vmem, size = 0x12000, scoped, tag = 'internal scratch']
  %s0 = inlined_call_operand.vmem [shape: f32[2,4,16], index: 0, kind: input, shape index: {}]
  %s1 = inlined_call_operand.vmem [shape: bf16[3,16,64], index: 1, kind: input, shape index: {}]
  %s2 = inlined_call_operand.vmem [shape: f32[1,64], index: 2, kind: input, shape index: {}]
  %s3 = inlined_call_operand.vmem [shape: f32[2,2,64], index: 3, kind: output, shape index: {}]
  %s4 = sld [smem:[#allocation0]]
  $region22: #{_lambda_.51} parent=0
    _
  %s6 = ssub.s32 1, %s4
  %s7 = scalar_select 0, %s6, %s4
  // Predicated region
  $region2: #{_lambda_.51} parent=0 // pred_check
    _
  $region3: #{_lambda_.51} parent=0 // pred_check_branch
    %9 = sbr.rel (0) target = $region5
  $region4: #{_lambda_.51} parent=0 // pred_region
    _
  $region5: #{_lambda_.51} parent=0 // pred_fallthru
    _
  // Predicated region
  $region6: #{_lambda_.51} parent=0 // pred_check
    _
  $region7: #{_lambda_.51} parent=0 // pred_check_branch
    %11 = sbr.rel (0) target = $region9
  $region8: #{_lambda_.51} parent=0 // pred_region
    _
  $region9: #{_lambda_.51} parent=0 // pred_fallthru
    _
  // Predicated region
  $region10: #{_lambda_.51} parent=0 // pred_check
    _
  $region11: #{_lambda_.51} parent=0 // pred_check_branch
    %13 = sbr.rel (0) target = $region13
  $region12: #{_lambda_.51} parent=0 // pred_region
    _
  $region13: #{_lambda_.51} parent=0 // pred_fallthru
    _
  %v15 = vld [vmem:[%s2] sm:$0x1]
  %v16 = vld [vmem:[%s0] sm:$0x3]
  %v17 = vpack.c.bf16 %v16, %v16
  %v18 = vld [vmem:[%s1] sm:$0xf]
  %v19 = vld [vmem:[%s1 + $0x4] sm:$0xf]
  %v20 = vld [vmem:[%s0 + $0x1] sm:$0x3]
  %v21 = vpack.c.bf16 %v20, %v20
  %s22 = scalar_lea.vmem %s1, 8
  %v23 = vld [vmem:[%s22] sm:$0xf]
  %v24 = vld [vmem:[%s22 + $0x4] sm:$0xf]
  %v27 = vunpack.c.l.b16 %v23
  %v28 = vunpack.c.l.b16 %v24
  %v29 = vpack.c.b16 %v28, %v27
  %vm31 = vcmask 130048
  %v33 = vsel %vm31, %v21, 0
  %35 = vmatprep.subr.bf16.mxu0 0
  %36 = vmatpush1.bf16.msra.mxu0 0
  %37 = vmatprep.subr.bf16.mxu0 0
  %38 = vmatpush1.bf16.msra.mxu0 0
  %39 = vmatprep.subr.bf16.mxu0 0
  %40 = vmatpush1.bf16.msra.mxu0 0
  %41 = vmatprep.subr.bf16.mxu0 0
  %42 = vmatpush1.bf16.msra.mxu0 0
  %43 = vmatprep.subr.bf16.mxu0 0
  %44 = vmatpush1.bf16.msra.mxu0 0
  %45 = vmatprep.subr.bf16.mxu0 0
  %46 = vmatpush1.bf16.msra.mxu0 0
  %47 = vmatprep.subr.bf16.mxu0 0
  %48 = vmatpush1.bf16.msra.mxu0 0
  %49 = vmatprep.subr.bf16.mxu0 0
  %50 = vmatpush1.bf16.msra.mxu0 %v29
  %51 = vmatprep.subr.bf16.mxu0 0
  %52 = vmatpush2.bf16.msra.mxu0 0
  %53 = vmatprep.subr.bf16.mxu0 0
  %54 = vmatpush2.bf16.msra.mxu0 0
  %55 = vmatprep.subr.bf16.mxu0 0
  %56 = vmatpush2.bf16.msra.mxu0 0
  %57 = vmatprep.subr.bf16.mxu0 0
  %58 = vmatpush2.bf16.msra.mxu0 0
  %59 = vmatprep.subr.bf16.mxu0 0
  %60 = vmatpush2.bf16.msra.mxu0 0
  %61 = vmatprep.subr.bf16.mxu0 0
  %62 = vmatpush2.bf16.msra.mxu0 0
  %63 = vmatprep.subr.bf16.mxu0 0
  %64 = vmatpush2.bf16.msra.mxu0 0
  %65 = vmatprep.subr.bf16.mxu0 0
  %66 = vmatpush2.bf16.msra.mxu0 0
  %67 = vmatprep.mubr.bf16.mxu0 0
  %68 = vmatmul.mubr.bf16.gmra.mxu0 %v33
  %v69 = vpop.f32.mrf.mxu0
  %v70 = vadd.f32 0.0, %v69
  %v71 = vpop.f32.mrf.mxu0
  %v72 = vpop.f32.mrf.mxu0
  %v73 = vpop.f32.mrf.mxu0
  %74 = vdwg.mxu0
  %v77 = vunpack.c.l.b16 %v18
  %v78 = vunpack.c.l.b16 %v19
  %v79 = vpack.c.b16 %v78, %v77
  %v82 = vsel %vm31, %v17, 0
  %84 = vmatprep.subr.bf16.mxu0 0
  %85 = vmatpush1.bf16.msra.mxu0 0
  %86 = vmatprep.subr.bf16.mxu0 0
  %87 = vmatpush1.bf16.msra.mxu0 0
  %88 = vmatprep.subr.bf16.mxu0 0
  %89 = vmatpush1.bf16.msra.mxu0 0
  %90 = vmatprep.subr.bf16.mxu0 0
  %91 = vmatpush1.bf16.msra.mxu0 0
  %92 = vmatprep.subr.bf16.mxu0 0
  %93 = vmatpush1.bf16.msra.mxu0 0
  %94 = vmatprep.subr.bf16.mxu0 0
  %95 = vmatpush1.bf16.msra.mxu0 0
  %96 = vmatprep.subr.bf16.mxu0 0
  %97 = vmatpush1.bf16.msra.mxu0 0
  %98 = vmatprep.subr.bf16.mxu0 0
  %99 = vmatpush1.bf16.msra.mxu0 %v79
  %100 = vmatprep.subr.bf16.mxu0 0
  %101 = vmatpush2.bf16.msra.mxu0 0
  %102 = vmatprep.subr.bf16.mxu0 0
  %103 = vmatpush2.bf16.msra.mxu0 0
  %104 = vmatprep.subr.bf16.mxu0 0
  %105 = vmatpush2.bf16.msra.mxu0 0
  %106 = vmatprep.subr.bf16.mxu0 0
  %107 = vmatpush2.bf16.msra.mxu0 0
  %108 = vmatprep.subr.bf16.mxu0 0
  %109 = vmatpush2.bf16.msra.mxu0 0
  %110 = vmatprep.subr.bf16.mxu0 0
  %111 = vmatpush2.bf16.msra.mxu0 0
  %112 = vmatprep.subr.bf16.mxu0 0
  %113 = vmatpush2.bf16.msra.mxu0 0
  %114 = vmatprep.subr.bf16.mxu0 0
  %115 = vmatpush2.bf16.msra.mxu0 0
  %116 = vmatprep.mubr.bf16.mxu0 0
  %117 = vmatmul.mubr.bf16.gmra.mxu0 %v82
  %v118 = vpop.f32.mrf.mxu0
  %v119 = vadd.f32 %v70, %v118
  %v120 = vpop.f32.mrf.mxu0
  %v121 = vpop.f32.mrf.mxu0
  %v122 = vpop.f32.mrf.mxu0
  %123 = vdwg.mxu0
  %v124 = vld [vmem:[%s0 + $0x2] sm:$0x3]
  %v125 = vpack.c.bf16 %v124, %v124
  %s126 = scalar_lea.vmem %s1, 16
  %v127 = vld [vmem:[%s126] sm:$0xf]
  %v128 = vld [vmem:[%s126 + $0x4] sm:$0xf]
  %v131 = vunpack.c.l.b16 %v127
  %v132 = vunpack.c.l.b16 %v128
  %v133 = vpack.c.b16 %v132, %v131
  %v136 = vsel %vm31, %v125, 0
  %138 = vmatprep.subr.bf16.mxu0 0
  %139 = vmatpush1.bf16.msra.mxu0 0
  %140 = vmatprep.subr.bf16.mxu0 0
  %141 = vmatpush1.bf16.msra.mxu0 0
  %142 = vmatprep.subr.bf16.mxu0 0
  %143 = vmatpush1.bf16.msra.mxu0 0
  %144 = vmatprep.subr.bf16.mxu0 0
  %145 = vmatpush1.bf16.msra.mxu0 0
  %146 = vmatprep.subr.bf16.mxu0 0
  %147 = vmatpush1.bf16.msra.mxu0 0
  %148 = vmatprep.subr.bf16.mxu0 0
  %149 = vmatpush1.bf16.msra.mxu0 0
  %150 = vmatprep.subr.bf16.mxu0 0
  %151 = vmatpush1.bf16.msra.mxu0 0
  %152 = vmatprep.subr.bf16.mxu0 0
  %153 = vmatpush1.bf16.msra.mxu0 %v133
  %154 = vmatprep.subr.bf16.mxu0 0
  %155 = vmatpush2.bf16.msra.mxu0 0
  %156 = vmatprep.subr.bf16.mxu0 0
  %157 = vmatpush2.bf16.msra.mxu0 0
  %158 = vmatprep.subr.bf16.mxu0 0
  %159 = vmatpush2.bf16.msra.mxu0 0
  %160 = vmatprep.subr.bf16.mxu0 0
  %161 = vmatpush2.bf16.msra.mxu0 0
  %162 = vmatprep.subr.bf16.mxu0 0
  %163 = vmatpush2.bf16.msra.mxu0 0
  %164 = vmatprep.subr.bf16.mxu0 0
  %165 = vmatpush2.bf16.msra.mxu0 0
  %166 = vmatprep.subr.bf16.mxu0 0
  %167 = vmatpush2.bf16.msra.mxu0 0
  %168 = vmatprep.subr.bf16.mxu0 0
  %169 = vmatpush2.bf16.msra.mxu0 0
  %170 = vmatprep.mubr.bf16.mxu0 0
  %171 = vmatmul.mubr.bf16.gmra.mxu0 %v136
  %v172 = vpop.f32.mrf.mxu0
  %v173 = vadd.f32 0.0, %v172
  %v174 = vpop.f32.mrf.mxu0
  %v175 = vpop.f32.mrf.mxu0
  %v176 = vpop.f32.mrf.mxu0
  %177 = vdwg.mxu0
  %v178 = vadd.f32 %v119, %v173
  %v180 = vlaneseq
  %v181 = vshrl.u32 %v180, 7
  %v182 = vsub.s32 0, %v181
  %v183 = vrot.slane %v15, %v182
  %v185 = vadd.f32 %v178, %v183
  %vm186 = vcmp.ge.f32.partialorder %v185, 0.0
  %v187 = vmul.f32 %v185, 0.1
  %v188 = vsel %vm186, %v185, %v187
  %vm189 = vcmask 517120
  %190 = vst.msk [vmem:[%s3] sm:$0x3] %vm189, %v188
  %s191 = scalar_lea.vmem %s0, 4
  %v192 = vld [vmem:[%s191] sm:$0x3]
  %v193 = vpack.c.bf16 %v192, %v192
  %v194 = vld [vmem:[%s1] sm:$0xf]
  %v195 = vld [vmem:[%s1 + $0x4] sm:$0xf]
  %v196 = vld [vmem:[%s191 + $0x1] sm:$0x3]
  %v197 = vpack.c.bf16 %v196, %v196
  %v198 = vld [vmem:[%s22] sm:$0xf]
  %v199 = vld [vmem:[%s22 + $0x4] sm:$0xf]
  %v202 = vunpack.c.l.b16 %v198
  %v203 = vunpack.c.l.b16 %v199
  %v204 = vpack.c.b16 %v203, %v202
  %v207 = vsel %vm31, %v197, 0
  %209 = vmatprep.subr.bf16.mxu0 0
  %210 = vmatpush1.bf16.msra.mxu0 0
  %211 = vmatprep.subr.bf16.mxu0 0
  %212 = vmatpush1.bf16.msra.mxu0 0
  %213 = vmatprep.subr.bf16.mxu0 0
  %214 = vmatpush1.bf16.msra.mxu0 0
  %215 = vmatprep.subr.bf16.mxu0 0
  %216 = vmatpush1.bf16.msra.mxu0 0
  %217 = vmatprep.subr.bf16.mxu0 0
  %218 = vmatpush1.bf16.msra.mxu0 0
  %219 = vmatprep.subr.bf16.mxu0 0
  %220 = vmatpush1.bf16.msra.mxu0 0
  %221 = vmatprep.subr.bf16.mxu0 0
  %222 = vmatpush1.bf16.msra.mxu0 0
  %223 = vmatprep.subr.bf16.mxu0 0
  %224 = vmatpush1.bf16.msra.mxu0 %v204
  %225 = vmatprep.subr.bf16.mxu0 0
  %226 = vmatpush2.bf16.msra.mxu0 0
  %227 = vmatprep.subr.bf16.mxu0 0
  %228 = vmatpush2.bf16.msra.mxu0 0
  %229 = vmatprep.subr.bf16.mxu0 0
  %230 = vmatpush2.bf16.msra.mxu0 0
  %231 = vmatprep.subr.bf16.mxu0 0
  %232 = vmatpush2.bf16.msra.mxu0 0
  %233 = vmatprep.subr.bf16.mxu0 0
  %234 = vmatpush2.bf16.msra.mxu0 0
  %235 = vmatprep.subr.bf16.mxu0 0
  %236 = vmatpush2.bf16.msra.mxu0 0
  %237 = vmatprep.subr.bf16.mxu0 0
  %238 = vmatpush2.bf16.msra.mxu0 0
  %239 = vmatprep.subr.bf16.mxu0 0
  %240 = vmatpush2.bf16.msra.mxu0 0
  %241 = vmatprep.mubr.bf16.mxu0 0
  %242 = vmatmul.mubr.bf16.gmra.mxu0 %v207
  %v243 = vpop.f32.mrf.mxu0
  %v244 = vadd.f32 0.0, %v243
  %v245 = vpop.f32.mrf.mxu0
  %v246 = vpop.f32.mrf.mxu0
  %v247 = vpop.f32.mrf.mxu0
  %248 = vdwg.mxu0
  %v251 = vunpack.c.l.b16 %v194
  %v252 = vunpack.c.l.b16 %v195
  %v253 = vpack.c.b16 %v252, %v251
  %v256 = vsel %vm31, %v193, 0
  %258 = vmatprep.subr.bf16.mxu0 0
  %259 = vmatpush1.bf16.msra.mxu0 0
  %260 = vmatprep.subr.bf16.mxu0 0
  %261 = vmatpush1.bf16.msra.mxu0 0
  %262 = vmatprep.subr.bf16.mxu0 0
  %263 = vmatpush1.bf16.msra.mxu0 0
  %264 = vmatprep.subr.bf16.mxu0 0
  %265 = vmatpush1.bf16.msra.mxu0 0
  %266 = vmatprep.subr.bf16.mxu0 0
  %267 = vmatpush1.bf16.msra.mxu0 0
  %268 = vmatprep.subr.bf16.mxu0 0
  %269 = vmatpush1.bf16.msra.mxu0 0
  %270 = vmatprep.subr.bf16.mxu0 0
  %271 = vmatpush1.bf16.msra.mxu0 0
  %272 = vmatprep.subr.bf16.mxu0 0
  %273 = vmatpush1.bf16.msra.mxu0 %v253
  %274 = vmatprep.subr.bf16.mxu0 0
  %275 = vmatpush2.bf16.msra.mxu0 0
  %276 = vmatprep.subr.bf16.mxu0 0
  %277 = vmatpush2.bf16.msra.mxu0 0
  %278 = vmatprep.subr.bf16.mxu0 0
  %279 = vmatpush2.bf16.msra.mxu0 0
  %280 = vmatprep.subr.bf16.mxu0 0
  %281 = vmatpush2.bf16.msra.mxu0 0
  %282 = vmatprep.subr.bf16.mxu0 0
  %283 = vmatpush2.bf16.msra.mxu0 0
  %284 = vmatprep.subr.bf16.mxu0 0
  %285 = vmatpush2.bf16.msra.mxu0 0
  %286 = vmatprep.subr.bf16.mxu0 0
  %287 = vmatpush2.bf16.msra.mxu0 0
  %288 = vmatprep.subr.bf16.mxu0 0
  %289 = vmatpush2.bf16.msra.mxu0 0
  %290 = vmatprep.mubr.bf16.mxu0 0
  %291 = vmatmul.mubr.bf16.gmra.mxu0 %v256
  %v292 = vpop.f32.mrf.mxu0
  %v293 = vadd.f32 %v244, %v292
  %v294 = vpop.f32.mrf.mxu0
  %v295 = vpop.f32.mrf.mxu0
  %v296 = vpop.f32.mrf.mxu0
  %297 = vdwg.mxu0
  %v298 = vld [vmem:[%s191 + $0x2] sm:$0x3]
  %v299 = vpack.c.bf16 %v298, %v298
  %v300 = vld [vmem:[%s126] sm:$0xf]
  %v301 = vld [vmem:[%s126 + $0x4] sm:$0xf]
  %v304 = vunpack.c.l.b16 %v300
  %v305 = vunpack.c.l.b16 %v301
  %v306 = vpack.c.b16 %v305, %v304
  %v309 = vsel %vm31, %v299, 0
  %311 = vmatprep.subr.bf16.mxu0 0
  %312 = vmatpush1.bf16.msra.mxu0 0
  %313 = vmatprep.subr.bf16.mxu0 0
  %314 = vmatpush1.bf16.msra.mxu0 0
  %315 = vmatprep.subr.bf16.mxu0 0
  %316 = vmatpush1.bf16.msra.mxu0 0
  %317 = vmatprep.subr.bf16.mxu0 0
  %318 = vmatpush1.bf16.msra.mxu0 0
  %319 = vmatprep.subr.bf16.mxu0 0
  %320 = vmatpush1.bf16.msra.mxu0 0
  %321 = vmatprep.subr.bf16.mxu0 0
  %322 = vmatpush1.bf16.msra.mxu0 0
  %323 = vmatprep.subr.bf16.mxu0 0
  %324 = vmatpush1.bf16.msra.mxu0 0
  %325 = vmatprep.subr.bf16.mxu0 0
  %326 = vmatpush1.bf16.msra.mxu0 %v306
  %327 = vmatprep.subr.bf16.mxu0 0
  %328 = vmatpush2.bf16.msra.mxu0 0
  %329 = vmatprep.subr.bf16.mxu0 0
  %330 = vmatpush2.bf16.msra.mxu0 0
  %331 = vmatprep.subr.bf16.mxu0 0
  %332 = vmatpush2.bf16.msra.mxu0 0
  %333 = vmatprep.subr.bf16.mxu0 0
  %334 = vmatpush2.bf16.msra.mxu0 0
  %335 = vmatprep.subr.bf16.mxu0 0
  %336 = vmatpush2.bf16.msra.mxu0 0
  %337 = vmatprep.subr.bf16.mxu0 0
  %338 = vmatpush2.bf16.msra.mxu0 0
  %339 = vmatprep.subr.bf16.mxu0 0
  %340 = vmatpush2.bf16.msra.mxu0 0
  %341 = vmatprep.subr.bf16.mxu0 0
  %342 = vmatpush2.bf16.msra.mxu0 0
  %343 = vmatprep.mubr.bf16.mxu0 0
  %344 = vmatmul.mubr.bf16.gmra.mxu0 %v309
  %v345 = vpop.f32.mrf.mxu0
  %v346 = vadd.f32 0.0, %v345
  %v347 = vpop.f32.mrf.mxu0
  %v348 = vpop.f32.mrf.mxu0
  %v349 = vpop.f32.mrf.mxu0
  %350 = vdwg.mxu0
  %v351 = vadd.f32 %v293, %v346
  %v352 = vadd.f32 %v351, %v183
  %vm353 = vcmp.ge.f32.partialorder %v352, 0.0
  %v354 = vmul.f32 %v352, 0.1
  %v355 = vsel %vm353, %v352, %v354
  %s356 = scalar_lea.vmem %s3, 2
  %357 = vst.msk [vmem:[%s356] sm:$0x3] %vm189, %v355
  // Predicated region
  $region14: #{_lambda_.51} parent=0 // pred_check
    _
  $region15: #{_lambda_.51} parent=0 // pred_check_branch
    %359 = sbr.rel (0) target = $region17
  $region16: #{_lambda_.51} parent=0 // pred_region
    _
  $region17: #{_lambda_.51} parent=0 // pred_fallthru
    _
  // Predicated region
  $region18: #{_lambda_.51} parent=0 // pred_check
    _
  $region19: #{_lambda_.51} parent=0 // pred_check_branch
    %361 = sbr.rel (0) target = $region21
  $region20: #{_lambda_.51} parent=0 // pred_region
    _
  $region21: #{_lambda_.51} parent=0 // pred_fallthru
    _

// kernel: _lambda_.52
$region0: #{_lambda_.52}
  #allocation0 [shape = 'u32[]', space=smem, size = 0x4, offset = 0x4, fixed_abs, tag = 'smem constant byte address 0x4 - core index']
  #allocation1 [shape = 'u32[144,128]{1,0:T(1,128)}', space=vmem, size = 0x12000, scoped, tag = 'internal scratch']
  %s0 = inlined_call_operand.vmem [shape: f32[2,6,64], index: 0, kind: input, shape index: {}]
  %s1 = inlined_call_operand.vmem [shape: bf16[3,64,128], index: 1, kind: input, shape index: {}]
  %s2 = inlined_call_operand.vmem [shape: f32[1,128], index: 2, kind: input, shape index: {}]
  %s3 = inlined_call_operand.vmem [shape: f32[2,4,128], index: 3, kind: output, shape index: {}]
  %s4 = sld [smem:[#allocation0]]
  $region22: #{_lambda_.52} parent=0
    _
  %s6 = ssub.s32 1, %s4
  %s7 = scalar_select 0, %s6, %s4
  // Predicated region
  $region2: #{_lambda_.52} parent=0 // pred_check
    _
  $region3: #{_lambda_.52} parent=0 // pred_check_branch
    %9 = sbr.rel (0) target = $region5
  $region4: #{_lambda_.52} parent=0 // pred_region
    _
  $region5: #{_lambda_.52} parent=0 // pred_fallthru
    _
  // Predicated region
  $region6: #{_lambda_.52} parent=0 // pred_check
    _
  $region7: #{_lambda_.52} parent=0 // pred_check_branch
    %11 = sbr.rel (0) target = $region9
  $region8: #{_lambda_.52} parent=0 // pred_region
    _
  $region9: #{_lambda_.52} parent=0 // pred_fallthru
    _
  // Predicated region
  $region10: #{_lambda_.52} parent=0 // pred_check
    _
  $region11: #{_lambda_.52} parent=0 // pred_check_branch
    %13 = sbr.rel (0) target = $region13
  $region12: #{_lambda_.52} parent=0 // pred_region
    _
  $region13: #{_lambda_.52} parent=0 // pred_fallthru
    _
  %v15 = vld [vmem:[%s2] sm:$0x1]
  %v16 = vld [vmem:[%s0] sm:$0xf]
  %v17 = vpack.c.bf16 %v16, %v16
  %v18 = vld [vmem:[%s1] sm:$0xf]
  %v19 = vld [vmem:[%s1 + $0x4] sm:$0xf]
  %v20 = vld [vmem:[%s1 + $0x8] sm:$0xf]
  %v21 = vld [vmem:[%s1 + $0xc] sm:$0xf]
  %v22 = vld [vmem:[%s1 + $0x10] sm:$0xf]
  %v23 = vld [vmem:[%s1 + $0x14] sm:$0xf]
  %v24 = vld [vmem:[%s1 + $0x18] sm:$0xf]
  %v25 = vld [vmem:[%s1 + $0x1c] sm:$0xf]
  %v26 = vld [vmem:[%s0 + $0x1] sm:$0xf]
  %v27 = vpack.c.bf16 %v26, %v26
  %s28 = scalar_lea.vmem %s1, 32
  %v29 = vld [vmem:[%s28] sm:$0xf]
  %v30 = vld [vmem:[%s28 + $0x4] sm:$0xf]
  %v31 = vld [vmem:[%s28 + $0x8] sm:$0xf]
  %v32 = vld [vmem:[%s28 + $0xc] sm:$0xf]
  %v33 = vld [vmem:[%s28 + $0x10] sm:$0xf]
  %v34 = vld [vmem:[%s28 + $0x14] sm:$0xf]
  %v35 = vld [vmem:[%s28 + $0x18] sm:$0xf]
  %v36 = vld [vmem:[%s28 + $0x1c] sm:$0xf]
  %v45 = vunpack.c.l.b16 %v29
  %v46 = vunpack.c.l.b16 %v30
  %v47 = vunpack.c.l.b16 %v31
  %v48 = vunpack.c.l.b16 %v32
  %v49 = vunpack.c.l.b16 %v33
  %v50 = vunpack.c.l.b16 %v34
  %v51 = vunpack.c.l.b16 %v35
  %v52 = vunpack.c.l.b16 %v36
  %v53 = vpack.c.b16 %v46, %v45
  %v54 = vpack.c.b16 %v48, %v47
  %v55 = vpack.c.b16 %v50, %v49
  %v56 = vpack.c.b16 %v52, %v51
  %vm61 = vcmask 523264
  %v63 = vsel %vm61, %v27, 0
  %65 = vmatprep.subr.bf16.mxu0 0
  %66 = vmatpush1.bf16.msra.mxu0 0
  %67 = vmatprep.subr.bf16.mxu0 0
  %68 = vmatpush1.bf16.msra.mxu0 0
  %69 = vmatprep.subr.bf16.mxu0 0
  %70 = vmatpush1.bf16.msra.mxu0 0
  %71 = vmatprep.subr.bf16.mxu0 0
  %72 = vmatpush1.bf16.msra.mxu0 0
  %73 = vmatprep.subr.bf16.mxu0 0
  %74 = vmatpush1.bf16.msra.mxu0 %v56
  %75 = vmatprep.subr.bf16.mxu0 0
  %76 = vmatpush1.bf16.msra.mxu0 %v55
  %77 = vmatprep.subr.bf16.mxu0 0
  %78 = vmatpush1.bf16.msra.mxu0 %v54
  %79 = vmatprep.subr.bf16.mxu0 0
  %80 = vmatpush1.bf16.msra.mxu0 %v53
  %81 = vmatprep.subr.bf16.mxu0 0
  %82 = vmatpush2.bf16.msra.mxu0 0
  %83 = vmatprep.subr.bf16.mxu0 0
  %84 = vmatpush2.bf16.msra.mxu0 0
  %85 = vmatprep.subr.bf16.mxu0 0
  %86 = vmatpush2.bf16.msra.mxu0 0
  %87 = vmatprep.subr.bf16.mxu0 0
  %88 = vmatpush2.bf16.msra.mxu0 0
  %89 = vmatprep.subr.bf16.mxu0 0
  %90 = vmatpush2.bf16.msra.mxu0 0
  %91 = vmatprep.subr.bf16.mxu0 0
  %92 = vmatpush2.bf16.msra.mxu0 0
  %93 = vmatprep.subr.bf16.mxu0 0
  %94 = vmatpush2.bf16.msra.mxu0 0
  %95 = vmatprep.subr.bf16.mxu0 0
  %96 = vmatpush2.bf16.msra.mxu0 0
  %97 = vmatprep.mubr.bf16.mxu0 0
  %98 = vmatmul.mubr.bf16.gmra.mxu0 %v63
  %v99 = vpop.f32.mrf.mxu0
  %v100 = vadd.f32 0.0, %v99
  %v101 = vpop.f32.mrf.mxu0
  %v102 = vpop.f32.mrf.mxu0
  %v103 = vpop.f32.mrf.mxu0
  %104 = vdwg.mxu0
  %v113 = vunpack.c.l.b16 %v18
  %v114 = vunpack.c.l.b16 %v19
  %v115 = vunpack.c.l.b16 %v20
  %v116 = vunpack.c.l.b16 %v21
  %v117 = vunpack.c.l.b16 %v22
  %v118 = vunpack.c.l.b16 %v23
  %v119 = vunpack.c.l.b16 %v24
  %v120 = vunpack.c.l.b16 %v25
  %v121 = vpack.c.b16 %v114, %v113
  %v122 = vpack.c.b16 %v116, %v115
  %v123 = vpack.c.b16 %v118, %v117
  %v124 = vpack.c.b16 %v120, %v119
  %v130 = vsel %vm61, %v17, 0
  %132 = vmatprep.subr.bf16.mxu0 0
  %133 = vmatpush1.bf16.msra.mxu0 0
  %134 = vmatprep.subr.bf16.mxu0 0
  %135 = vmatpush1.bf16.msra.mxu0 0
  %136 = vmatprep.subr.bf16.mxu0 0
  %137 = vmatpush1.bf16.msra.mxu0 0
  %138 = vmatprep.subr.bf16.mxu0 0
  %139 = vmatpush1.bf16.msra.mxu0 0
  %140 = vmatprep.subr.bf16.mxu0 0
  %141 = vmatpush1.bf16.msra.mxu0 %v124
  %142 = vmatprep.subr.bf16.mxu0 0
  %143 = vmatpush1.bf16.msra.mxu0 %v123
  %144 = vmatprep.subr.bf16.mxu0 0
  %145 = vmatpush1.bf16.msra.mxu0 %v122
  %146 = vmatprep.subr.bf16.mxu0 0
  %147 = vmatpush1.bf16.msra.mxu0 %v121
  %148 = vmatprep.subr.bf16.mxu0 0
  %149 = vmatpush2.bf16.msra.mxu0 0
  %150 = vmatprep.subr.bf16.mxu0 0
  %151 = vmatpush2.bf16.msra.mxu0 0
  %152 = vmatprep.subr.bf16.mxu0 0
  %153 = vmatpush2.bf16.msra.mxu0 0
  %154 = vmatprep.subr.bf16.mxu0 0
  %155 = vmatpush2.bf16.msra.mxu0 0
  %156 = vmatprep.subr.bf16.mxu0 0
  %157 = vmatpush2.bf16.msra.mxu0 0
  %158 = vmatprep.subr.bf16.mxu0 0
  %159 = vmatpush2.bf16.msra.mxu0 0
  %160 = vmatprep.subr.bf16.mxu0 0
  %161 = vmatpush2.bf16.msra.mxu0 0
  %162 = vmatprep.subr.bf16.mxu0 0
  %163 = vmatpush2.bf16.msra.mxu0 0
  %164 = vmatprep.mubr.bf16.mxu0 0
  %165 = vmatmul.mubr.bf16.gmra.mxu0 %v130
  %v166 = vpop.f32.mrf.mxu0
  %v167 = vadd.f32 %v100, %v166
  %v168 = vpop.f32.mrf.mxu0
  %v169 = vpop.f32.mrf.mxu0
  %v170 = vpop.f32.mrf.mxu0
  %171 = vdwg.mxu0
  %v172 = vld [vmem:[%s0 + $0x2] sm:$0xf]
  %v173 = vpack.c.bf16 %v172, %v172
  %s174 = scalar_lea.vmem %s1, 64
  %v175 = vld [vmem:[%s174] sm:$0xf]
  %v176 = vld [vmem:[%s174 + $0x4] sm:$0xf]
  %v177 = vld [vmem:[%s174 + $0x8] sm:$0xf]
  %v178 = vld [vmem:[%s174 + $0xc] sm:$0xf]
  %v179 = vld [vmem:[%s174 + $0x10] sm:$0xf]
  %v180 = vld [vmem:[%s174 + $0x14] sm:$0xf]
  %v181 = vld [vmem:[%s174 + $0x18] sm:$0xf]
  %v182 = vld [vmem:[%s174 + $0x1c] sm:$0xf]
  %v191 = vunpack.c.l.b16 %v175
  %v192 = vunpack.c.l.b16 %v176
  %v193 = vunpack.c.l.b16 %v177
  %v194 = vunpack.c.l.b16 %v178
  %v195 = vunpack.c.l.b16 %v179
  %v196 = vunpack.c.l.b16 %v180
  %v197 = vunpack.c.l.b16 %v181
  %v198 = vunpack.c.l.b16 %v182
  %v199 = vpack.c.b16 %v192, %v191
  %v200 = vpack.c.b16 %v194, %v193
  %v201 = vpack.c.b16 %v196, %v195
  %v202 = vpack.c.b16 %v198, %v197
  %v208 = vsel %vm61, %v173, 0
  %210 = vmatprep.subr.bf16.mxu0 0
  %211 = vmatpush1.bf16.msra.mxu0 0
  %212 = vmatprep.subr.bf16.mxu0 0
  %213 = vmatpush1.bf16.msra.mxu0 0
  %214 = vmatprep.subr.bf16.mxu0 0
  %215 = vmatpush1.bf16.msra.mxu0 0
  %216 = vmatprep.subr.bf16.mxu0 0
  %217 = vmatpush1.bf16.msra.mxu0 0
  %218 = vmatprep.subr.bf16.mxu0 0
  %219 = vmatpush1.bf16.msra.mxu0 %v202
  %220 = vmatprep.subr.bf16.mxu0 0
  %221 = vmatpush1.bf16.msra.mxu0 %v201
  %222 = vmatprep.subr.bf16.mxu0 0
  %223 = vmatpush1.bf16.msra.mxu0 %v200
  %224 = vmatprep.subr.bf16.mxu0 0
  %225 = vmatpush1.bf16.msra.mxu0 %v199
  %226 = vmatprep.subr.bf16.mxu0 0
  %227 = vmatpush2.bf16.msra.mxu0 0
  %228 = vmatprep.subr.bf16.mxu0 0
  %229 = vmatpush2.bf16.msra.mxu0 0
  %230 = vmatprep.subr.bf16.mxu0 0
  %231 = vmatpush2.bf16.msra.mxu0 0
  %232 = vmatprep.subr.bf16.mxu0 0
  %233 = vmatpush2.bf16.msra.mxu0 0
  %234 = vmatprep.subr.bf16.mxu0 0
  %235 = vmatpush2.bf16.msra.mxu0 0
  %236 = vmatprep.subr.bf16.mxu0 0
  %237 = vmatpush2.bf16.msra.mxu0 0
  %238 = vmatprep.subr.bf16.mxu0 0
  %239 = vmatpush2.bf16.msra.mxu0 0
  %240 = vmatprep.subr.bf16.mxu0 0
  %241 = vmatpush2.bf16.msra.mxu0 0
  %242 = vmatprep.mubr.bf16.mxu0 0
  %243 = vmatmul.mubr.bf16.gmra.mxu0 %v208
  %v244 = vpop.f32.mrf.mxu0
  %v245 = vadd.f32 0.0, %v244
  %v246 = vpop.f32.mrf.mxu0
  %v247 = vpop.f32.mrf.mxu0
  %v248 = vpop.f32.mrf.mxu0
  %249 = vdwg.mxu0
  %v250 = vadd.f32 %v167, %v245
  %v252 = vlaneseq
  %v253 = vshrl.u32 %v252, 7
  %v254 = vsub.s32 0, %v253
  %v255 = vrot.slane %v15, %v254
  %v257 = vadd.f32 %v250, %v255
  %vm258 = vcmp.ge.f32.partialorder %v257, 0.0
  %v259 = vmul.f32 %v257, 0.1
  %v260 = vsel %vm258, %v257, %v259
  %261 = vst [vmem:[%s3] sm:$0xf] %v260
  %s262 = scalar_lea.vmem %s0, 8
  %v263 = vld [vmem:[%s262] sm:$0xf]
  %v264 = vpack.c.bf16 %v263, %v263
  %v265 = vld [vmem:[%s1] sm:$0xf]
  %v266 = vld [vmem:[%s1 + $0x4] sm:$0xf]
  %v267 = vld [vmem:[%s1 + $0x8] sm:$0xf]
  %v268 = vld [vmem:[%s1 + $0xc] sm:$0xf]
  %v269 = vld [vmem:[%s1 + $0x10] sm:$0xf]
  %v270 = vld [vmem:[%s1 + $0x14] sm:$0xf]
  %v271 = vld [vmem:[%s1 + $0x18] sm:$0xf]
  %v272 = vld [vmem:[%s1 + $0x1c] sm:$0xf]
  %v273 = vld [vmem:[%s262 + $0x1] sm:$0xf]
  %v274 = vpack.c.bf16 %v273, %v273
  %v275 = vld [vmem:[%s28] sm:$0xf]
  %v276 = vld [vmem:[%s28 + $0x4] sm:$0xf]
  %v277 = vld [vmem:[%s28 + $0x8] sm:$0xf]
  %v278 = vld [vmem:[%s28 + $0xc] sm:$0xf]
  %v279 = vld [vmem:[%s28 + $0x10] sm:$0xf]
  %v280 = vld [vmem:[%s28 + $0x14] sm:$0xf]
  %v281 = vld [vmem:[%s28 + $0x18] sm:$0xf]
  %v282 = vld [vmem:[%s28 + $0x1c] sm:$0xf]
  %v291 = vunpack.c.l.b16 %v275
  %v292 = vunpack.c.l.b16 %v276
  %v293 = vunpack.c.l.b16 %v277
  %v294 = vunpack.c.l.b16 %v278
  %v295 = vunpack.c.l.b16 %v279
  %v296 = vunpack.c.l.b16 %v280
  %v297 = vunpack.c.l.b16 %v281
  %v298 = vunpack.c.l.b16 %v282
  %v299 = vpack.c.b16 %v292, %v291
  %v300 = vpack.c.b16 %v294, %v293
  %v301 = vpack.c.b16 %v296, %v295
  %v302 = vpack.c.b16 %v298, %v297
  %v308 = vsel %vm61, %v274, 0
  %310 = vmatprep.subr.bf16.mxu0 0
  %311 = vmatpush1.bf16.msra.mxu0 0
  %312 = vmatprep.subr.bf16.mxu0 0
  %313 = vmatpush1.bf16.msra.mxu0 0
  %314 = vmatprep.subr.bf16.mxu0 0
  %315 = vmatpush1.bf16.msra.mxu0 0
  %316 = vmatprep.subr.bf16.mxu0 0
  %317 = vmatpush1.bf16.msra.mxu0 0
  %318 = vmatprep.subr.bf16.mxu0 0
  %319 = vmatpush1.bf16.msra.mxu0 %v302
  %320 = vmatprep.subr.bf16.mxu0 0
  %321 = vmatpush1.bf16.msra.mxu0 %v301
  %322 = vmatprep.subr.bf16.mxu0 0
  %323 = vmatpush1.bf16.msra.mxu0 %v300
  %324 = vmatprep.subr.bf16.mxu0 0
  %325 = vmatpush1.bf16.msra.mxu0 %v299
  %326 = vmatprep.subr.bf16.mxu0 0
  %327 = vmatpush2.bf16.msra.mxu0 0
  %328 = vmatprep.subr.bf16.mxu0 0
  %329 = vmatpush2.bf16.msra.mxu0 0
  %330 = vmatprep.subr.bf16.mxu0 0
  %331 = vmatpush2.bf16.msra.mxu0 0
  %332 = vmatprep.subr.bf16.mxu0 0
  %333 = vmatpush2.bf16.msra.mxu0 0
  %334 = vmatprep.subr.bf16.mxu0 0
  %335 = vmatpush2.bf16.msra.mxu0 0
  %336 = vmatprep.subr.bf16.mxu0 0
  %337 = vmatpush2.bf16.msra.mxu0 0
  %338 = vmatprep.subr.bf16.mxu0 0
  %339 = vmatpush2.bf16.msra.mxu0 0
  %340 = vmatprep.subr.bf16.mxu0 0
  %341 = vmatpush2.bf16.msra.mxu0 0
  %342 = vmatprep.mubr.bf16.mxu0 0
  %343 = vmatmul.mubr.bf16.gmra.mxu0 %v308
  %v344 = vpop.f32.mrf.mxu0
  %v345 = vadd.f32 0.0, %v344
  %v346 = vpop.f32.mrf.mxu0
  %v347 = vpop.f32.mrf.mxu0
  %v348 = vpop.f32.mrf.mxu0
  %349 = vdwg.mxu0
  %v358 = vunpack.c.l.b16 %v265
  %v359 = vunpack.c.l.b16 %v266
  %v360 = vunpack.c.l.b16 %v267
  %v361 = vunpack.c.l.b16 %v268
  %v362 = vunpack.c.l.b16 %v269
  %v363 = vunpack.c.l.b16 %v270
  %v364 = vunpack.c.l.b16 %v271
  %v365 = vunpack.c.l.b16 %v272
  %v366 = vpack.c.b16 %v359, %v358
  %v367 = vpack.c.b16 %v361, %v360
  %v368 = vpack.c.b16 %v363, %v362
  %v369 = vpack.c.b16 %v365, %v364
  %v375 = vsel %vm61, %v264, 0
  %377 = vmatprep.subr.bf16.mxu0 0
  %378 = vmatpush1.bf16.msra.mxu0 0
  %379 = vmatprep.subr.bf16.mxu0 0
  %380 = vmatpush1.bf16.msra.mxu0 0
  %381 = vmatprep.subr.bf16.mxu0 0
  %382 = vmatpush1.bf16.msra.mxu0 0
  %383 = vmatprep.subr.bf16.mxu0 0
  %384 = vmatpush1.bf16.msra.mxu0 0
  %385 = vmatprep.subr.bf16.mxu0 0
  %386 = vmatpush1.bf16.msra.mxu0 %v369
  %387 = vmatprep.subr.bf16.mxu0 0
  %388 = vmatpush1.bf16.msra.mxu0 %v368
  %389 = vmatprep.subr.bf16.mxu0 0
  %390 = vmatpush1.bf16.msra.mxu0 %v367
  %391 = vmatprep.subr.bf16.mxu0 0
  %392 = vmatpush1.bf16.msra.mxu0 %v366
  %393 = vmatprep.subr.bf16.mxu0 0
  %394 = vmatpush2.bf16.msra.mxu0 0
  %395 = vmatprep.subr.bf16.mxu0 0
  %396 = vmatpush2.bf16.msra.mxu0 0
  %397 = vmatprep.subr.bf16.mxu0 0
  %398 = vmatpush2.bf16.msra.mxu0 0
  %399 = vmatprep.subr.bf16.mxu0 0
  %400 = vmatpush2.bf16.msra.mxu0 0
  %401 = vmatprep.subr.bf16.mxu0 0
  %402 = vmatpush2.bf16.msra.mxu0 0
  %403 = vmatprep.subr.bf16.mxu0 0
  %404 = vmatpush2.bf16.msra.mxu0 0
  %405 = vmatprep.subr.bf16.mxu0 0
  %406 = vmatpush2.bf16.msra.mxu0 0
  %407 = vmatprep.subr.bf16.mxu0 0
  %408 = vmatpush2.bf16.msra.mxu0 0
  %409 = vmatprep.mubr.bf16.mxu0 0
  %410 = vmatmul.mubr.bf16.gmra.mxu0 %v375
  %v411 = vpop.f32.mrf.mxu0
  %v412 = vadd.f32 %v345, %v411
  %v413 = vpop.f32.mrf.mxu0
  %v414 = vpop.f32.mrf.mxu0
  %v415 = vpop.f32.mrf.mxu0
  %416 = vdwg.mxu0
  %v417 = vld [vmem:[%s262 + $0x2] sm:$0xf]
  %v418 = vpack.c.bf16 %v417, %v417
  %v419 = vld [vmem:[%s174] sm:$0xf]
  %v420 = vld [vmem:[%s174 + $0x4] sm:$0xf]
  %v421 = vld [vmem:[%s174 + $0x8] sm:$0xf]
  %v422 = vld [vmem:[%s174 + $0xc] sm:$0xf]
  %v423 = vld [vmem:[%s174 + $0x10] sm:$0xf]
  %v424 = vld [vmem:[%s174 + $0x14] sm:$0xf]
  %v425 = vld [vmem:[%s174 + $0x18] sm:$0xf]
  %v426 = vld [vmem:[%s174 + $0x1c] sm:$0xf]
  %v435 = vunpack.c.l.b16 %v419
  %v436 = vunpack.c.l.b16 %v420
  %v437 = vunpack.c.l.b16 %v421
  %v438 = vunpack.c.l.b16 %v422
  %v439 = vunpack.c.l.b16 %v423
  %v440 = vunpack.c.l.b16 %v424
  %v441 = vunpack.c.l.b16 %v425
  %v442 = vunpack.c.l.b16 %v426
  %v443 = vpack.c.b16 %v436, %v435
  %v444 = vpack.c.b16 %v438, %v437
  %v445 = vpack.c.b16 %v440, %v439
  %v446 = vpack.c.b16 %v442, %v441
  %v452 = vsel %vm61, %v418, 0
  %454 = vmatprep.subr.bf16.mxu0 0
  %455 = vmatpush1.bf16.msra.mxu0 0
  %456 = vmatprep.subr.bf16.mxu0 0
  %457 = vmatpush1.bf16.msra.mxu0 0
  %458 = vmatprep.subr.bf16.mxu0 0
  %459 = vmatpush1.bf16.msra.mxu0 0
  %460 = vmatprep.subr.bf16.mxu0 0
  %461 = vmatpush1.bf16.msra.mxu0 0
  %462 = vmatprep.subr.bf16.mxu0 0
  %463 = vmatpush1.bf16.msra.mxu0 %v446
  %464 = vmatprep.subr.bf16.mxu0 0
  %465 = vmatpush1.bf16.msra.mxu0 %v445
  %466 = vmatprep.subr.bf16.mxu0 0
  %467 = vmatpush1.bf16.msra.mxu0 %v444
  %468 = vmatprep.subr.bf16.mxu0 0
  %469 = vmatpush1.bf16.msra.mxu0 %v443
  %470 = vmatprep.subr.bf16.mxu0 0
  %471 = vmatpush2.bf16.msra.mxu0 0
  %472 = vmatprep.subr.bf16.mxu0 0
  %473 = vmatpush2.bf16.msra.mxu0 0
  %474 = vmatprep.subr.bf16.mxu0 0
  %475 = vmatpush2.bf16.msra.mxu0 0
  %476 = vmatprep.subr.bf16.mxu0 0
  %477 = vmatpush2.bf16.msra.mxu0 0
  %478 = vmatprep.subr.bf16.mxu0 0
  %479 = vmatpush2.bf16.msra.mxu0 0
  %480 = vmatprep.subr.bf16.mxu0 0
  %481 = vmatpush2.bf16.msra.mxu0 0
  %482 = vmatprep.subr.bf16.mxu0 0
  %483 = vmatpush2.bf16.msra.mxu0 0
  %484 = vmatprep.subr.bf16.mxu0 0
  %485 = vmatpush2.bf16.msra.mxu0 0
  %486 = vmatprep.mubr.bf16.mxu0 0
  %487 = vmatmul.mubr.bf16.gmra.mxu0 %v452
  %v488 = vpop.f32.mrf.mxu0
  %v489 = vadd.f32 0.0, %v488
  %v490 = vpop.f32.mrf.mxu0
  %v491 = vpop.f32.mrf.mxu0
  %v492 = vpop.f32.mrf.mxu0
  %493 = vdwg.mxu0
  %v494 = vadd.f32 %v412, %v489
  %v495 = vadd.f32 %v494, %v255
  %vm496 = vcmp.ge.f32.partialorder %v495, 0.0
  %v497 = vmul.f32 %v495, 0.1
  %v498 = vsel %vm496, %v495, %v497
  %s499 = scalar_lea.vmem %s3, 4
  %500 = vst [vmem:[%s499] sm:$0xf] %v498
  // Predicated region
  $region14: #{_lambda_.52} parent=0 // pred_check
    _
  $region15: #{_lambda_.52} parent=0 // pred_check_branch
    %502 = sbr.rel (0) target = $region17
  $region16: #{_lambda_.52} parent=0 // pred_region
    _
  $region17: #{_lambda_.52} parent=0 // pred_fallthru
    _
  // Predicated region
  $region18: #{_lambda_.52} parent=0 // pred_check
    _
  $region19: #{_lambda_.52} parent=0 // pred_check_branch
    %504 = sbr.rel (0) target = $region21
  $region20: #{_lambda_.52} parent=0 // pred_region
    _
  $region21: #{_lambda_.52} parent=0 // pred_fallthru
    _

// kernel: _lambda_.53
$region0: #{_lambda_.53}
  #allocation0 [shape = 'u32[]', space=smem, size = 0x4, offset = 0x4, fixed_abs, tag = 'smem constant byte address 0x4 - core index']
  #allocation1 [shape = 'u32[144,128]{1,0:T(1,128)}', space=vmem, size = 0x12000, scoped, tag = 'internal scratch']
  %s0 = inlined_call_operand.vmem [shape: f32[2,10,128], index: 0, kind: input, shape index: {}]
  %s1 = inlined_call_operand.vmem [shape: bf16[3,128,256], index: 1, kind: input, shape index: {}]
  %s2 = inlined_call_operand.vmem [shape: f32[1,256], index: 2, kind: input, shape index: {}]
  %s3 = inlined_call_operand.vmem [shape: f32[2,8,256], index: 3, kind: output, shape index: {}]
  %s4 = sld [smem:[#allocation0]]
  $region22: #{_lambda_.53} parent=0
    _
  %s6 = ssub.s32 1, %s4
  %s7 = scalar_select 0, %s6, %s4
  // Predicated region
  $region2: #{_lambda_.53} parent=0 // pred_check
    _
  $region3: #{_lambda_.53} parent=0 // pred_check_branch
    %9 = sbr.rel (0) target = $region5
  $region4: #{_lambda_.53} parent=0 // pred_region
    _
  $region5: #{_lambda_.53} parent=0 // pred_fallthru
    _
  // Predicated region
  $region6: #{_lambda_.53} parent=0 // pred_check
    _
  $region7: #{_lambda_.53} parent=0 // pred_check_branch
    %11 = sbr.rel (0) target = $region9
  $region8: #{_lambda_.53} parent=0 // pred_region
    _
  $region9: #{_lambda_.53} parent=0 // pred_fallthru
    _
  // Predicated region
  $region10: #{_lambda_.53} parent=0 // pred_check
    _
  $region11: #{_lambda_.53} parent=0 // pred_check_branch
    %13 = sbr.rel (0) target = $region13
  $region12: #{_lambda_.53} parent=0 // pred_region
    _
  $region13: #{_lambda_.53} parent=0 // pred_fallthru
    _
  %v15 = vld [vmem:[%s2] sm:$0x3]
  %v16 = vld [vmem:[%s0] sm:$0xff]
  %v17 = vpack.c.bf16 %v16, %v16
  %v18 = vld [vmem:[%s1] sm:$0xff]
  %v19 = vld [vmem:[%s1 + $0x8] sm:$0xff]
  %v20 = vld [vmem:[%s1 + $0x10] sm:$0xff]
  %v21 = vld [vmem:[%s1 + $0x18] sm:$0xff]
  %v22 = vld [vmem:[%s1 + $0x20] sm:$0xff]
  %v23 = vld [vmem:[%s1 + $0x28] sm:$0xff]
  %v24 = vld [vmem:[%s1 + $0x30] sm:$0xff]
  %v25 = vld [vmem:[%s1 + $0x38] sm:$0xff]
  %v26 = vld [vmem:[%s1 + $0x40] sm:$0xff]
  %v27 = vld [vmem:[%s1 + $0x48] sm:$0xff]
  %v28 = vld [vmem:[%s1 + $0x50] sm:$0xff]
  %v29 = vld [vmem:[%s1 + $0x58] sm:$0xff]
  %v30 = vld [vmem:[%s1 + $0x60] sm:$0xff]
  %v31 = vld [vmem:[%s1 + $0x68] sm:$0xff]
  %v32 = vld [vmem:[%s1 + $0x70] sm:$0xff]
  %v33 = vld [vmem:[%s1 + $0x78] sm:$0xff]
  %v34 = vld [vmem:[%s0 + $0x1] sm:$0xff]
  %v35 = vpack.c.bf16 %v34, %v34
  %s36 = scalar_lea.vmem %s1, 128
  %v37 = vld [vmem:[%s36] sm:$0xff]
  %v38 = vld [vmem:[%s36 + $0x8] sm:$0xff]
  %v39 = vld [vmem:[%s36 + $0x10] sm:$0xff]
  %v40 = vld [vmem:[%s36 + $0x18] sm:$0xff]
  %v41 = vld [vmem:[%s36 + $0x20] sm:$0xff]
  %v42 = vld [vmem:[%s36 + $0x28] sm:$0xff]
  %v43 = vld [vmem:[%s36 + $0x30] sm:$0xff]
  %v44 = vld [vmem:[%s36 + $0x38] sm:$0xff]
  %v45 = vld [vmem:[%s36 + $0x40] sm:$0xff]
  %v46 = vld [vmem:[%s36 + $0x48] sm:$0xff]
  %v47 = vld [vmem:[%s36 + $0x50] sm:$0xff]
  %v48 = vld [vmem:[%s36 + $0x58] sm:$0xff]
  %v49 = vld [vmem:[%s36 + $0x60] sm:$0xff]
  %v50 = vld [vmem:[%s36 + $0x68] sm:$0xff]
  %v51 = vld [vmem:[%s36 + $0x70] sm:$0xff]
  %v52 = vld [vmem:[%s36 + $0x78] sm:$0xff]
  %v69 = vunpack.c.l.b16 %v37
  %v70 = vunpack.c.h.b16 %v37
  %v71 = vunpack.c.l.b16 %v38
  %v72 = vunpack.c.h.b16 %v38
  %v73 = vunpack.c.l.b16 %v39
  %v74 = vunpack.c.h.b16 %v39
  %v75 = vunpack.c.l.b16 %v40
  %v76 = vunpack.c.h.b16 %v40
  %v77 = vunpack.c.l.b16 %v41
  %v78 = vunpack.c.h.b16 %v41
  %v79 = vunpack.c.l.b16 %v42
  %v80 = vunpack.c.h.b16 %v42
  %v81 = vunpack.c.l.b16 %v43
  %v82 = vunpack.c.h.b16 %v43
  %v83 = vunpack.c.l.b16 %v44
  %v84 = vunpack.c.h.b16 %v44
  %v85 = vunpack.c.l.b16 %v45
  %v86 = vunpack.c.h.b16 %v45
  %v87 = vunpack.c.l.b16 %v46
  %v88 = vunpack.c.h.b16 %v46
  %v89 = vunpack.c.l.b16 %v47
  %v90 = vunpack.c.h.b16 %v47
  %v91 = vunpack.c.l.b16 %v48
  %v92 = vunpack.c.h.b16 %v48
  %v93 = vunpack.c.l.b16 %v49
  %v94 = vunpack.c.h.b16 %v49
  %v95 = vunpack.c.l.b16 %v50
  %v96 = vunpack.c.h.b16 %v50
  %v97 = vunpack.c.l.b16 %v51
  %v98 = vunpack.c.h.b16 %v51
  %v99 = vunpack.c.l.b16 %v52
  %v100 = vunpack.c.h.b16 %v52
  %v101 = vpack.c.b16 %v71, %v69
  %v102 = vpack.c.b16 %v72, %v70
  %v103 = vpack.c.b16 %v75, %v73
  %v104 = vpack.c.b16 %v76, %v74
  %v105 = vpack.c.b16 %v79, %v77
  %v106 = vpack.c.b16 %v80, %v78
  %v107 = vpack.c.b16 %v83, %v81
  %v108 = vpack.c.b16 %v84, %v82
  %v109 = vpack.c.b16 %v87, %v85
  %v110 = vpack.c.b16 %v88, %v86
  %v111 = vpack.c.b16 %v91, %v89
  %v112 = vpack.c.b16 %v92, %v90
  %v113 = vpack.c.b16 %v95, %v93
  %v114 = vpack.c.b16 %v96, %v94
  %v115 = vpack.c.b16 %v99, %v97
  %v116 = vpack.c.b16 %v100, %v98
  %133 = vmatprep.subr.bf16.mxu0 %v116
  %134 = vmatpush1.bf16.msra.mxu0 %v115
  %135 = vmatprep.subr.bf16.mxu0 %v114
  %136 = vmatpush1.bf16.msra.mxu0 %v113
  %137 = vmatprep.subr.bf16.mxu0 %v112
  %138 = vmatpush1.bf16.msra.mxu0 %v111
  %139 = vmatprep.subr.bf16.mxu0 %v110
  %140 = vmatpush1.bf16.msra.mxu0 %v109
  %141 = vmatprep.subr.bf16.mxu0 %v108
  %142 = vmatpush1.bf16.msra.mxu0 %v107
  %143 = vmatprep.subr.bf16.mxu0 %v106
  %144 = vmatpush1.bf16.msra.mxu0 %v105
  %145 = vmatprep.subr.bf16.mxu0 %v104
  %146 = vmatpush1.bf16.msra.mxu0 %v103
  %147 = vmatprep.subr.bf16.mxu0 %v102
  %148 = vmatpush1.bf16.msra.mxu0 %v101
  %149 = vmatprep.subr.bf16.mxu0 0
  %150 = vmatpush2.bf16.msra.mxu0 0
  %151 = vmatprep.subr.bf16.mxu0 0
  %152 = vmatpush2.bf16.msra.mxu0 0
  %153 = vmatprep.subr.bf16.mxu0 0
  %154 = vmatpush2.bf16.msra.mxu0 0
  %155 = vmatprep.subr.bf16.mxu0 0
  %156 = vmatpush2.bf16.msra.mxu0 0
  %157 = vmatprep.subr.bf16.mxu0 0
  %158 = vmatpush2.bf16.msra.mxu0 0
  %159 = vmatprep.subr.bf16.mxu0 0
  %160 = vmatpush2.bf16.msra.mxu0 0
  %161 = vmatprep.subr.bf16.mxu0 0
  %162 = vmatpush2.bf16.msra.mxu0 0
  %163 = vmatprep.subr.bf16.mxu0 0
  %164 = vmatpush2.bf16.msra.mxu0 0
  %165 = vmatprep.mubr.bf16.mxu0 0
  %166 = vmatmul.mubr.bf16.gmra.mxu0 %v35
  %v167 = vpop.f32.mrf.mxu0
  %v168 = vadd.f32 0.0, %v167
  %v169 = vpop.f32.mrf.mxu0
  %v170 = vadd.f32 0.0, %v169
  %v171 = vpop.f32.mrf.mxu0
  %v172 = vpop.f32.mrf.mxu0
  %173 = vdwg.mxu0
  %v190 = vunpack.c.l.b16 %v18
  %v191 = vunpack.c.h.b16 %v18
  %v192 = vunpack.c.l.b16 %v19
  %v193 = vunpack.c.h.b16 %v19
  %v194 = vunpack.c.l.b16 %v20
  %v195 = vunpack.c.h.b16 %v20
  %v196 = vunpack.c.l.b16 %v21
  %v197 = vunpack.c.h.b16 %v21
  %v198 = vunpack.c.l.b16 %v22
  %v199 = vunpack.c.h.b16 %v22
  %v200 = vunpack.c.l.b16 %v23
  %v201 = vunpack.c.h.b16 %v23
  %v202 = vunpack.c.l.b16 %v24
  %v203 = vunpack.c.h.b16 %v24
  %v204 = vunpack.c.l.b16 %v25
  %v205 = vunpack.c.h.b16 %v25
  %v206 = vunpack.c.l.b16 %v26
  %v207 = vunpack.c.h.b16 %v26
  %v208 = vunpack.c.l.b16 %v27
  %v209 = vunpack.c.h.b16 %v27
  %v210 = vunpack.c.l.b16 %v28
  %v211 = vunpack.c.h.b16 %v28
  %v212 = vunpack.c.l.b16 %v29
  %v213 = vunpack.c.h.b16 %v29
  %v214 = vunpack.c.l.b16 %v30
  %v215 = vunpack.c.h.b16 %v30
  %v216 = vunpack.c.l.b16 %v31
  %v217 = vunpack.c.h.b16 %v31
  %v218 = vunpack.c.l.b16 %v32
  %v219 = vunpack.c.h.b16 %v32
  %v220 = vunpack.c.l.b16 %v33
  %v221 = vunpack.c.h.b16 %v33
  %v222 = vpack.c.b16 %v192, %v190
  %v223 = vpack.c.b16 %v193, %v191
  %v224 = vpack.c.b16 %v196, %v194
  %v225 = vpack.c.b16 %v197, %v195
  %v226 = vpack.c.b16 %v200, %v198
  %v227 = vpack.c.b16 %v201, %v199
  %v228 = vpack.c.b16 %v204, %v202
  %v229 = vpack.c.b16 %v205, %v203
  %v230 = vpack.c.b16 %v208, %v206
  %v231 = vpack.c.b16 %v209, %v207
  %v232 = vpack.c.b16 %v212, %v210
  %v233 = vpack.c.b16 %v213, %v211
  %v234 = vpack.c.b16 %v216, %v214
  %v235 = vpack.c.b16 %v217, %v215
  %v236 = vpack.c.b16 %v220, %v218
  %v237 = vpack.c.b16 %v221, %v219
  %254 = vmatprep.subr.bf16.mxu0 %v237
  %255 = vmatpush1.bf16.msra.mxu0 %v236
  %256 = vmatprep.subr.bf16.mxu0 %v235
  %257 = vmatpush1.bf16.msra.mxu0 %v234
  %258 = vmatprep.subr.bf16.mxu0 %v233
  %259 = vmatpush1.bf16.msra.mxu0 %v232
  %260 = vmatprep.subr.bf16.mxu0 %v231
  %261 = vmatpush1.bf16.msra.mxu0 %v230
  %262 = vmatprep.subr.bf16.mxu0 %v229
  %263 = vmatpush1.bf16.msra.mxu0 %v228
  %264 = vmatprep.subr.bf16.mxu0 %v227
  %265 = vmatpush1.bf16.msra.mxu0 %v226
  %266 = vmatprep.subr.bf16.mxu0 %v225
  %267 = vmatpush1.bf16.msra.mxu0 %v224
  %268 = vmatprep.subr.bf16.mxu0 %v223
  %269 = vmatpush1.bf16.msra.mxu0 %v222
  %270 = vmatprep.subr.bf16.mxu0 0
  %271 = vmatpush2.bf16.msra.mxu0 0
  %272 = vmatprep.subr.bf16.mxu0 0
  %273 = vmatpush2.bf16.msra.mxu0 0
  %274 = vmatprep.subr.bf16.mxu0 0
  %275 = vmatpush2.bf16.msra.mxu0 0
  %276 = vmatprep.subr.bf16.mxu0 0
  %277 = vmatpush2.bf16.msra.mxu0 0
  %278 = vmatprep.subr.bf16.mxu0 0
  %279 = vmatpush2.bf16.msra.mxu0 0
  %280 = vmatprep.subr.bf16.mxu0 0
  %281 = vmatpush2.bf16.msra.mxu0 0
  %282 = vmatprep.subr.bf16.mxu0 0
  %283 = vmatpush2.bf16.msra.mxu0 0
  %284 = vmatprep.subr.bf16.mxu0 0
  %285 = vmatpush2.bf16.msra.mxu0 0
  %286 = vmatprep.mubr.bf16.mxu0 0
  %287 = vmatmul.mubr.bf16.gmra.mxu0 %v17
  %v288 = vpop.f32.mrf.mxu0
  %v289 = vadd.f32 %v168, %v288
  %v290 = vpop.f32.mrf.mxu0
  %v291 = vadd.f32 %v170, %v290
  %v292 = vpop.f32.mrf.mxu0
  %v293 = vpop.f32.mrf.mxu0
  %294 = vdwg.mxu0
  %v295 = vld [vmem:[%s0 + $0x2] sm:$0xff]
  %v296 = vpack.c.bf16 %v295, %v295
  %s297 = scalar_lea.vmem %s1, 256
  %v298 = vld [vmem:[%s297] sm:$0xff]
  %v299 = vld [vmem:[%s297 + $0x8] sm:$0xff]
  %v300 = vld [vmem:[%s297 + $0x10] sm:$0xff]
  %v301 = vld [vmem:[%s297 + $0x18] sm:$0xff]
  %v302 = vld [vmem:[%s297 + $0x20] sm:$0xff]
  %v303 = vld [vmem:[%s297 + $0x28] sm:$0xff]
  %v304 = vld [vmem:[%s297 + $0x30] sm:$0xff]
  %v305 = vld [vmem:[%s297 + $0x38] sm:$0xff]
  %v306 = vld [vmem:[%s297 + $0x40] sm:$0xff]
  %v307 = vld [vmem:[%s297 + $0x48] sm:$0xff]
  %v308 = vld [vmem:[%s297 + $0x50] sm:$0xff]
  %v309 = vld [vmem:[%s297 + $0x58] sm:$0xff]
  %v310 = vld [vmem:[%s297 + $0x60] sm:$0xff]
  %v311 = vld [vmem:[%s297 + $0x68] sm:$0xff]
  %v312 = vld [vmem:[%s297 + $0x70] sm:$0xff]
  %v313 = vld [vmem:[%s297 + $0x78] sm:$0xff]
  %v330 = vunpack.c.l.b16 %v298
  %v331 = vunpack.c.h.b16 %v298
  %v332 = vunpack.c.l.b16 %v299
  %v333 = vunpack.c.h.b16 %v299
  %v334 = vunpack.c.l.b16 %v300
  %v335 = vunpack.c.h.b16 %v300
  %v336 = vunpack.c.l.b16 %v301
  %v337 = vunpack.c.h.b16 %v301
  %v338 = vunpack.c.l.b16 %v302
  %v339 = vunpack.c.h.b16 %v302
  %v340 = vunpack.c.l.b16 %v303
  %v341 = vunpack.c.h.b16 %v303
  %v342 = vunpack.c.l.b16 %v304
  %v343 = vunpack.c.h.b16 %v304
  %v344 = vunpack.c.l.b16 %v305
  %v345 = vunpack.c.h.b16 %v305
  %v346 = vunpack.c.l.b16 %v306
  %v347 = vunpack.c.h.b16 %v306
  %v348 = vunpack.c.l.b16 %v307
  %v349 = vunpack.c.h.b16 %v307
  %v350 = vunpack.c.l.b16 %v308
  %v351 = vunpack.c.h.b16 %v308
  %v352 = vunpack.c.l.b16 %v309
  %v353 = vunpack.c.h.b16 %v309
  %v354 = vunpack.c.l.b16 %v310
  %v355 = vunpack.c.h.b16 %v310
  %v356 = vunpack.c.l.b16 %v311
  %v357 = vunpack.c.h.b16 %v311
  %v358 = vunpack.c.l.b16 %v312
  %v359 = vunpack.c.h.b16 %v312
  %v360 = vunpack.c.l.b16 %v313
  %v361 = vunpack.c.h.b16 %v313
  %v362 = vpack.c.b16 %v332, %v330
  %v363 = vpack.c.b16 %v333, %v331
  %v364 = vpack.c.b16 %v336, %v334
  %v365 = vpack.c.b16 %v337, %v335
  %v366 = vpack.c.b16 %v340, %v338
  %v367 = vpack.c.b16 %v341, %v339
  %v368 = vpack.c.b16 %v344, %v342
  %v369 = vpack.c.b16 %v345, %v343
  %v370 = vpack.c.b16 %v348, %v346
  %v371 = vpack.c.b16 %v349, %v347
  %v372 = vpack.c.b16 %v352, %v350
  %v373 = vpack.c.b16 %v353, %v351
  %v374 = vpack.c.b16 %v356, %v354
  %v375 = vpack.c.b16 %v357, %v355
  %v376 = vpack.c.b16 %v360, %v358
  %v377 = vpack.c.b16 %v361, %v359
  %394 = vmatprep.subr.bf16.mxu0 %v377
  %395 = vmatpush1.bf16.msra.mxu0 %v376
  %396 = vmatprep.subr.bf16.mxu0 %v375
  %397 = vmatpush1.bf16.msra.mxu0 %v374
  %398 = vmatprep.subr.bf16.mxu0 %v373
  %399 = vmatpush1.bf16.msra.mxu0 %v372
  %400 = vmatprep.subr.bf16.mxu0 %v371
  %401 = vmatpush1.bf16.msra.mxu0 %v370
  %402 = vmatprep.subr.bf16.mxu0 %v369
  %403 = vmatpush1.bf16.msra.mxu0 %v368
  %404 = vmatprep.subr.bf16.mxu0 %v367
  %405 = vmatpush1.bf16.msra.mxu0 %v366
  %406 = vmatprep.subr.bf16.mxu0 %v365
  %407 = vmatpush1.bf16.msra.mxu0 %v364
  %408 = vmatprep.subr.bf16.mxu0 %v363
  %409 = vmatpush1.bf16.msra.mxu0 %v362
  %410 = vmatprep.subr.bf16.mxu0 0
  %411 = vmatpush2.bf16.msra.mxu0 0
  %412 = vmatprep.subr.bf16.mxu0 0
  %413 = vmatpush2.bf16.msra.mxu0 0
  %414 = vmatprep.subr.bf16.mxu0 0
  %415 = vmatpush2.bf16.msra.mxu0 0
  %416 = vmatprep.subr.bf16.mxu0 0
  %417 = vmatpush2.bf16.msra.mxu0 0
  %418 = vmatprep.subr.bf16.mxu0 0
  %419 = vmatpush2.bf16.msra.mxu0 0
  %420 = vmatprep.subr.bf16.mxu0 0
  %421 = vmatpush2.bf16.msra.mxu0 0
  %422 = vmatprep.subr.bf16.mxu0 0
  %423 = vmatpush2.bf16.msra.mxu0 0
  %424 = vmatprep.subr.bf16.mxu0 0
  %425 = vmatpush2.bf16.msra.mxu0 0
  %426 = vmatprep.mubr.bf16.mxu0 0
  %427 = vmatmul.mubr.bf16.gmra.mxu0 %v296
  %v428 = vpop.f32.mrf.mxu0
  %v429 = vadd.f32 0.0, %v428
  %v430 = vpop.f32.mrf.mxu0
  %v431 = vadd.f32 0.0, %v430
  %v432 = vpop.f32.mrf.mxu0
  %v433 = vpop.f32.mrf.mxu0
  %434 = vdwg.mxu0
  %v435 = vadd.f32 %v289, %v429
  %v436 = vadd.f32 %v291, %v431
  %v438 = vlaneseq
  %v439 = vshrl.u32 %v438, 7
  %v440 = vsub.s32 0, %v439
  %v441 = vrot.slane %v15, %v440
  %v442 = vlaneseq
  %v443 = vshrl.u32 %v442, 7
  %v444 = vsub.s32 1, %v443
  %v445 = vrot.slane %v15, %v444
  %v448 = vadd.f32 %v435, %v441
  %v449 = vadd.f32 %v436, %v445
  %vm450 = vcmp.ge.f32.partialorder %v448, 0.0
  %vm451 = vcmp.ge.f32.partialorder %v449, 0.0
  %v452 = vmul.f32 %v448, 0.1
  %v453 = vmul.f32 %v449, 0.1
  %v454 = vsel %vm450, %v448, %v452
  %v455 = vsel %vm451, %v449, %v453
  %456 = vst [vmem:[%s3] sm:$0xff] %v454
  %457 = vst [vmem:[%s3 + $0x8] sm:$0xff] %v455
  %s458 = scalar_lea.vmem %s0, 16
  %v459 = vld [vmem:[%s458] sm:$0xff]
  %v460 = vpack.c.bf16 %v459, %v459
  %v461 = vld [vmem:[%s1] sm:$0xff]
  %v462 = vld [vmem:[%s1 + $0x8] sm:$0xff]
  %v463 = vld [vmem:[%s1 + $0x10] sm:$0xff]
  %v464 = vld [vmem:[%s1 + $0x18] sm:$0xff]
  %v465 = vld [vmem:[%s1 + $0x20] sm:$0xff]
  %v466 = vld [vmem:[%s1 + $0x28] sm:$0xff]
  %v467 = vld [vmem:[%s1 + $0x30] sm:$0xff]
  %v468 = vld [vmem:[%s1 + $0x38] sm:$0xff]
  %v469 = vld [vmem:[%s1 + $0x40] sm:$0xff]
  %v470 = vld [vmem:[%s1 + $0x48] sm:$0xff]
  %v471 = vld [vmem:[%s1 + $0x50] sm:$0xff]
  %v472 = vld [vmem:[%s1 + $0x58] sm:$0xff]
  %v473 = vld [vmem:[%s1 + $0x60] sm:$0xff]
  %v474 = vld [vmem:[%s1 + $0x68] sm:$0xff]
  %v475 = vld [vmem:[%s1 + $0x70] sm:$0xff]
  %v476 = vld [vmem:[%s1 + $0x78] sm:$0xff]
  %v477 = vld [vmem:[%s458 + $0x1] sm:$0xff]
  %v478 = vpack.c.bf16 %v477, %v477
  %v479 = vld [vmem:[%s36] sm:$0xff]
  %v480 = vld [vmem:[%s36 + $0x8] sm:$0xff]
  %v481 = vld [vmem:[%s36 + $0x10] sm:$0xff]
  %v482 = vld [vmem:[%s36 + $0x18] sm:$0xff]
  %v483 = vld [vmem:[%s36 + $0x20] sm:$0xff]
  %v484 = vld [vmem:[%s36 + $0x28] sm:$0xff]
  %v485 = vld [vmem:[%s36 + $0x30] sm:$0xff]
  %v486 = vld [vmem:[%s36 + $0x38] sm:$0xff]
  %v487 = vld [vmem:[%s36 + $0x40] sm:$0xff]
  %v488 = vld [vmem:[%s36 + $0x48] sm:$0xff]
  %v489 = vld [vmem:[%s36 + $0x50] sm:$0xff]
  %v490 = vld [vmem:[%s36 + $0x58] sm:$0xff]
  %v491 = vld [vmem:[%s36 + $0x60] sm:$0xff]
  %v492 = vld [vmem:[%s36 + $0x68] sm:$0xff]
  %v493 = vld [vmem:[%s36 + $0x70] sm:$0xff]
  %v494 = vld [vmem:[%s36 + $0x78] sm:$0xff]
  %v511 = vunpack.c.l.b16 %v479
  %v512 = vunpack.c.h.b16 %v479
  %v513 = vunpack.c.l.b16 %v480
  %v514 = vunpack.c.h.b16 %v480
  %v515 = vunpack.c.l.b16 %v481
  %v516 = vunpack.c.h.b16 %v481
  %v517 = vunpack.c.l.b16 %v482
  %v518 = vunpack.c.h.b16 %v482
  %v519 = vunpack.c.l.b16 %v483
  %v520 = vunpack.c.h.b16 %v483
  %v521 = vunpack.c.l.b16 %v484
  %v522 = vunpack.c.h.b16 %v484
  %v523 = vunpack.c.l.b16 %v485
  %v524 = vunpack.c.h.b16 %v485
  %v525 = vunpack.c.l.b16 %v486
  %v526 = vunpack.c.h.b16 %v486
  %v527 = vunpack.c.l.b16 %v487
  %v528 = vunpack.c.h.b16 %v487
  %v529 = vunpack.c.l.b16 %v488
  %v530 = vunpack.c.h.b16 %v488
  %v531 = vunpack.c.l.b16 %v489
  %v532 = vunpack.c.h.b16 %v489
  %v533 = vunpack.c.l.b16 %v490
  %v534 = vunpack.c.h.b16 %v490
  %v535 = vunpack.c.l.b16 %v491
  %v536 = vunpack.c.h.b16 %v491
  %v537 = vunpack.c.l.b16 %v492
  %v538 = vunpack.c.h.b16 %v492
  %v539 = vunpack.c.l.b16 %v493
  %v540 = vunpack.c.h.b16 %v493
  %v541 = vunpack.c.l.b16 %v494
  %v542 = vunpack.c.h.b16 %v494
  %v543 = vpack.c.b16 %v513, %v511
  %v544 = vpack.c.b16 %v514, %v512
  %v545 = vpack.c.b16 %v517, %v515
  %v546 = vpack.c.b16 %v518, %v516
  %v547 = vpack.c.b16 %v521, %v519
  %v548 = vpack.c.b16 %v522, %v520
  %v549 = vpack.c.b16 %v525, %v523
  %v550 = vpack.c.b16 %v526, %v524
  %v551 = vpack.c.b16 %v529, %v527
  %v552 = vpack.c.b16 %v530, %v528
  %v553 = vpack.c.b16 %v533, %v531
  %v554 = vpack.c.b16 %v534, %v532
  %v555 = vpack.c.b16 %v537, %v535
  %v556 = vpack.c.b16 %v538, %v536
  %v557 = vpack.c.b16 %v541, %v539
  %v558 = vpack.c.b16 %v542, %v540
  %575 = vmatprep.subr.bf16.mxu0 %v558
  %576 = vmatpush1.bf16.msra.mxu0 %v557
  %577 = vmatprep.subr.bf16.mxu0 %v556
  %578 = vmatpush1.bf16.msra.mxu0 %v555
  %579 = vmatprep.subr.bf16.mxu0 %v554
  %580 = vmatpush1.bf16.msra.mxu0 %v553
  %581 = vmatprep.subr.bf16.mxu0 %v552
  %582 = vmatpush1.bf16.msra.mxu0 %v551
  %583 = vmatprep.subr.bf16.mxu0 %v550
  %584 = vmatpush1.bf16.msra.mxu0 %v549
  %585 = vmatprep.subr.bf16.mxu0 %v548
  %586 = vmatpush1.bf16.msra.mxu0 %v547
  %587 = vmatprep.subr.bf16.mxu0 %v546
  %588 = vmatpush1.bf16.msra.mxu0 %v545
  %589 = vmatprep.subr.bf16.mxu0 %v544
  %590 = vmatpush1.bf16.msra.mxu0 %v543
  %591 = vmatprep.subr.bf16.mxu0 0
  %592 = vmatpush2.bf16.msra.mxu0 0
  %593 = vmatprep.subr.bf16.mxu0 0
  %594 = vmatpush2.bf16.msra.mxu0 0
  %595 = vmatprep.subr.bf16.mxu0 0
  %596 = vmatpush2.bf16.msra.mxu0 0
  %597 = vmatprep.subr.bf16.mxu0 0
  %598 = vmatpush2.bf16.msra.mxu0 0
  %599 = vmatprep.subr.bf16.mxu0 0
  %600 = vmatpush2.bf16.msra.mxu0 0
  %601 = vmatprep.subr.bf16.mxu0 0
  %602 = vmatpush2.bf16.msra.mxu0 0
  %603 = vmatprep.subr.bf16.mxu0 0
  %604 = vmatpush2.bf16.msra.mxu0 0
  %605 = vmatprep.subr.bf16.mxu0 0
  %606 = vmatpush2.bf16.msra.mxu0 0
  %607 = vmatprep.mubr.bf16.mxu0 0
  %608 = vmatmul.mubr.bf16.gmra.mxu0 %v478
  %v609 = vpop.f32.mrf.mxu0
  %v610 = vadd.f32 0.0, %v609
  %v611 = vpop.f32.mrf.mxu0
  %v612 = vadd.f32 0.0, %v611
  %v613 = vpop.f32.mrf.mxu0
  %v614 = vpop.f32.mrf.mxu0
  %615 = vdwg.mxu0
  %v632 = vunpack.c.l.b16 %v461
  %v633 = vunpack.c.h.b16 %v461
  %v634 = vunpack.c.l.b16 %v462
  %v635 = vunpack.c.h.b16 %v462
  %v636 = vunpack.c.l.b16 %v463
  %v637 = vunpack.c.h.b16 %v463
  %v638 = vunpack.c.l.b16 %v464
  %v639 = vunpack.c.h.b16 %v464
  %v640 = vunpack.c.l.b16 %v465
  %v641 = vunpack.c.h.b16 %v465
  %v642 = vunpack.c.l.b16 %v466
  %v643 = vunpack.c.h.b16 %v466
  %v644 = vunpack.c.l.b16 %v467
  %v645 = vunpack.c.h.b16 %v467
  %v646 = vunpack.c.l.b16 %v468
  %v647 = vunpack.c.h.b16 %v468
  %v648 = vunpack.c.l.b16 %v469
  %v649 = vunpack.c.h.b16 %v469
  %v650 = vunpack.c.l.b16 %v470
  %v651 = vunpack.c.h.b16 %v470
  %v652 = vunpack.c.l.b16 %v471
  %v653 = vunpack.c.h.b16 %v471
  %v654 = vunpack.c.l.b16 %v472
  %v655 = vunpack.c.h.b16 %v472
  %v656 = vunpack.c.l.b16 %v473
  %v657 = vunpack.c.h.b16 %v473
  %v658 = vunpack.c.l.b16 %v474
  %v659 = vunpack.c.h.b16 %v474
  %v660 = vunpack.c.l.b16 %v475
  %v661 = vunpack.c.h.b16 %v475
  %v662 = vunpack.c.l.b16 %v476
  %v663 = vunpack.c.h.b16 %v476
  %v664 = vpack.c.b16 %v634, %v632
  %v665 = vpack.c.b16 %v635, %v633
  %v666 = vpack.c.b16 %v638, %v636
  %v667 = vpack.c.b16 %v639, %v637
  %v668 = vpack.c.b16 %v642, %v640
  %v669 = vpack.c.b16 %v643, %v641
  %v670 = vpack.c.b16 %v646, %v644
  %v671 = vpack.c.b16 %v647, %v645
  %v672 = vpack.c.b16 %v650, %v648
  %v673 = vpack.c.b16 %v651, %v649
  %v674 = vpack.c.b16 %v654, %v652
  %v675 = vpack.c.b16 %v655, %v653
  %v676 = vpack.c.b16 %v658, %v656
  %v677 = vpack.c.b16 %v659, %v657
  %v678 = vpack.c.b16 %v662, %v660
  %v679 = vpack.c.b16 %v663, %v661
  %696 = vmatprep.subr.bf16.mxu0 %v679
  %697 = vmatpush1.bf16.msra.mxu0 %v678
  %698 = vmatprep.subr.bf16.mxu0 %v677
  %699 = vmatpush1.bf16.msra.mxu0 %v676
  %700 = vmatprep.subr.bf16.mxu0 %v675
  %701 = vmatpush1.bf16.msra.mxu0 %v674
  %702 = vmatprep.subr.bf16.mxu0 %v673
  %703 = vmatpush1.bf16.msra.mxu0 %v672
  %704 = vmatprep.subr.bf16.mxu0 %v671
  %705 = vmatpush1.bf16.msra.mxu0 %v670
  %706 = vmatprep.subr.bf16.mxu0 %v669
  %707 = vmatpush1.bf16.msra.mxu0 %v668
  %708 = vmatprep.subr.bf16.mxu0 %v667
  %709 = vmatpush1.bf16.msra.mxu0 %v666
  %710 = vmatprep.subr.bf16.mxu0 %v665
  %711 = vmatpush1.bf16.msra.mxu0 %v664
  %712 = vmatprep.subr.bf16.mxu0 0
  %713 = vmatpush2.bf16.msra.mxu0 0
  %714 = vmatprep.subr.bf16.mxu0 0
  %715 = vmatpush2.bf16.msra.mxu0 0
  %716 = vmatprep.subr.bf16.mxu0 0
  %717 = vmatpush2.bf16.msra.mxu0 0
  %718 = vmatprep.subr.bf16.mxu0 0
  %719 = vmatpush2.bf16.msra.mxu0 0
  %720 = vmatprep.subr.bf16.mxu0 0
  %721 = vmatpush2.bf16.msra.mxu0 0
  %722 = vmatprep.subr.bf16.mxu0 0
  %723 = vmatpush2.bf16.msra.mxu0 0
  %724 = vmatprep.subr.bf16.mxu0 0
  %725 = vmatpush2.bf16.msra.mxu0 0
  %726 = vmatprep.subr.bf16.mxu0 0
  %727 = vmatpush2.bf16.msra.mxu0 0
  %728 = vmatprep.mubr.bf16.mxu0 0
  %729 = vmatmul.mubr.bf16.gmra.mxu0 %v460
  %v730 = vpop.f32.mrf.mxu0
  %v731 = vadd.f32 %v610, %v730
  %v732 = vpop.f32.mrf.mxu0
  %v733 = vadd.f32 %v612, %v732
  %v734 = vpop.f32.mrf.mxu0
  %v735 = vpop.f32.mrf.mxu0
  %736 = vdwg.mxu0
  %v737 = vld [vmem:[%s458 + $0x2] sm:$0xff]
  %v738 = vpack.c.bf16 %v737, %v737
  %v739 = vld [vmem:[%s297] sm:$0xff]
  %v740 = vld [vmem:[%s297 + $0x8] sm:$0xff]
  %v741 = vld [vmem:[%s297 + $0x10] sm:$0xff]
  %v742 = vld [vmem:[%s297 + $0x18] sm:$0xff]
  %v743 = vld [vmem:[%s297 + $0x20] sm:$0xff]
  %v744 = vld [vmem:[%s297 + $0x28] sm:$0xff]
  %v745 = vld [vmem:[%s297 + $0x30] sm:$0xff]
  %v746 = vld [vmem:[%s297 + $0x38] sm:$0xff]
  %v747 = vld [vmem:[%s297 + $0x40] sm:$0xff]
  %v748 = vld [vmem:[%s297 + $0x48] sm:$0xff]
  %v749 = vld [vmem:[%s297 + $0x50] sm:$0xff]
  %v750 = vld [vmem:[%s297 + $0x58] sm:$0xff]
  %v751 = vld [vmem:[%s297 + $0x60] sm:$0xff]
  %v752 = vld [vmem:[%s297 + $0x68] sm:$0xff]
  %v753 = vld [vmem:[%s297 + $0x70] sm:$0xff]
  %v754 = vld [vmem:[%s297 + $0x78] sm:$0xff]
  %v771 = vunpack.c.l.b16 %v739
  %v772 = vunpack.c.h.b16 %v739
  %v773 = vunpack.c.l.b16 %v740
  %v774 = vunpack.c.h.b16 %v740
  %v775 = vunpack.c.l.b16 %v741
  %v776 = vunpack.c.h.b16 %v741
  %v777 = vunpack.c.l.b16 %v742
  %v778 = vunpack.c.h.b16 %v742
  %v779 = vunpack.c.l.b16 %v743
  %v780 = vunpack.c.h.b16 %v743
  %v781 = vunpack.c.l.b16 %v744
  %v782 = vunpack.c.h.b16 %v744
  %v783 = vunpack.c.l.b16 %v745
  %v784 = vunpack.c.h.b16 %v745
  %v785 = vunpack.c.l.b16 %v746
  %v786 = vunpack.c.h.b16 %v746
  %v787 = vunpack.c.l.b16 %v747
  %v788 = vunpack.c.h.b16 %v747
  %v789 = vunpack.c.l.b16 %v748
  %v790 = vunpack.c.h.b16 %v748
  %v791 = vunpack.c.l.b16 %v749
  %v792 = vunpack.c.h.b16 %v749
  %v793 = vunpack.c.l.b16 %v750
  %v794 = vunpack.c.h.b16 %v750
  %v795 = vunpack.c.l.b16 %v751
  %v796 = vunpack.c.h.b16 %v751
  %v797 = vunpack.c.l.b16 %v752
  %v798 = vunpack.c.h.b16 %v752
  %v799 = vunpack.c.l.b16 %v753
  %v800 = vunpack.c.h.b16 %v753
  %v801 = vunpack.c.l.b16 %v754
  %v802 = vunpack.c.h.b16 %v754
  %v803 = vpack.c.b16 %v773, %v771
  %v804 = vpack.c.b16 %v774, %v772
  %v805 = vpack.c.b16 %v777, %v775
  %v806 = vpack.c.b16 %v778, %v776
  %v807 = vpack.c.b16 %v781, %v779
  %v808 = vpack.c.b16 %v782, %v780
  %v809 = vpack.c.b16 %v785, %v783
  %v810 = vpack.c.b16 %v786, %v784
  %v811 = vpack.c.b16 %v789, %v787
  %v812 = vpack.c.b16 %v790, %v788
  %v813 = vpack.c.b16 %v793, %v791
  %v814 = vpack.c.b16 %v794, %v792
  %v815 = vpack.c.b16 %v797, %v795
  %v816 = vpack.c.b16 %v798, %v796
  %v817 = vpack.c.b16 %v801, %v799
  %v818 = vpack.c.b16 %v802, %v800
  %835 = vmatprep.subr.bf16.mxu0 %v818
  %836 = vmatpush1.bf16.msra.mxu0 %v817
  %837 = vmatprep.subr.bf16.mxu0 %v816
  %838 = vmatpush1.bf16.msra.mxu0 %v815
  %839 = vmatprep.subr.bf16.mxu0 %v814
  %840 = vmatpush1.bf16.msra.mxu0 %v813
  %841 = vmatprep.subr.bf16.mxu0 %v812
  %842 = vmatpush1.bf16.msra.mxu0 %v811
  %843 = vmatprep.subr.bf16.mxu0 %v810
  %844 = vmatpush1.bf16.msra.mxu0 %v809
  %845 = vmatprep.subr.bf16.mxu0 %v808
  %846 = vmatpush1.bf16.msra.mxu0 %v807
  %847 = vmatprep.subr.bf16.mxu0 %v806
  %848 = vmatpush1.bf16.msra.mxu0 %v805
  %849 = vmatprep.subr.bf16.mxu0 %v804
  %850 = vmatpush1.bf16.msra.mxu0 %v803
  %851 = vmatprep.subr.bf16.mxu0 0
  %852 = vmatpush2.bf16.msra.mxu0 0
  %853 = vmatprep.subr.bf16.mxu0 0
  %854 = vmatpush2.bf16.msra.mxu0 0
  %855 = vmatprep.subr.bf16.mxu0 0
  %856 = vmatpush2.bf16.msra.mxu0 0
  %857 = vmatprep.subr.bf16.mxu0 0
  %858 = vmatpush2.bf16.msra.mxu0 0
  %859 = vmatprep.subr.bf16.mxu0 0
  %860 = vmatpush2.bf16.msra.mxu0 0
  %861 = vmatprep.subr.bf16.mxu0 0
  %862 = vmatpush2.bf16.msra.mxu0 0
  %863 = vmatprep.subr.bf16.mxu0 0
  %864 = vmatpush2.bf16.msra.mxu0 0
  %865 = vmatprep.subr.bf16.mxu0 0
  %866 = vmatpush2.bf16.msra.mxu0 0
  %867 = vmatprep.mubr.bf16.mxu0 0
  %868 = vmatmul.mubr.bf16.gmra.mxu0 %v738
  %v869 = vpop.f32.mrf.mxu0
  %v870 = vadd.f32 0.0, %v869
  %v871 = vpop.f32.mrf.mxu0
  %v872 = vadd.f32 0.0, %v871
  %v873 = vpop.f32.mrf.mxu0
  %v874 = vpop.f32.mrf.mxu0
  %875 = vdwg.mxu0
  %v876 = vadd.f32 %v731, %v870
  %v877 = vadd.f32 %v733, %v872
  %v878 = vadd.f32 %v876, %v441
  %v879 = vadd.f32 %v877, %v445
  %vm880 = vcmp.ge.f32.partialorder %v878, 0.0
  %vm881 = vcmp.ge.f32.partialorder %v879, 0.0
  %v882 = vmul.f32 %v878, 0.1
  %v883 = vmul.f32 %v879, 0.1
  %v884 = vsel %vm880, %v878, %v882
  %v885 = vsel %vm881, %v879, %v883
  %s886 = scalar_lea.vmem %s3, 16
  %887 = vst [vmem:[%s886] sm:$0xff] %v884
  %888 = vst [vmem:[%s886 + $0x8] sm:$0xff] %v885
  // Predicated region
  $region14: #{_lambda_.53} parent=0 // pred_check
    _
  $region15: #{_lambda_.53} parent=0 // pred_check_branch
    %890 = sbr.rel (0) target = $region17
  $region16: #{_lambda_.53} parent=0 // pred_region
    _
  $region17: #{_lambda_.53} parent=0 // pred_fallthru
    _
  // Predicated region
  $region18: #{_lambda_.53} parent=0 // pred_check
    _
  $region19: #{_lambda_.53} parent=0 // pred_check_branch
    %892 = sbr.rel (0) target = $region21
  $region20: #{_lambda_.53} parent=0 // pred_region
    _
  $region21: #{_lambda_.53} parent=0 // pred_fallthru
    _

// kernel: _lambda_.54
$region0: #{_lambda_.54}
  #allocation0 [shape = 'u32[]', space=smem, size = 0x4, offset = 0x4, fixed_abs, tag = 'smem constant byte address 0x4 - core index']
  #allocation1 [shape = 'u32[144,128]{1,0:T(1,128)}', space=vmem, size = 0x12000, scoped, tag = 'internal scratch']
  %s0 = inlined_call_operand.vmem [shape: f32[2,18,256], index: 0, kind: input, shape index: {}]
  %s1 = inlined_call_operand.vmem [shape: bf16[3,256,128], index: 1, kind: input, shape index: {}]
  %s2 = inlined_call_operand.vmem [shape: f32[1,128], index: 2, kind: input, shape index: {}]
  %s3 = inlined_call_operand.vmem [shape: f32[2,16,128], index: 3, kind: output, shape index: {}]
  %s4 = sld [smem:[#allocation0]]
  $region22: #{_lambda_.54} parent=0
    _
  %s6 = ssub.s32 1, %s4
  %s7 = scalar_select 0, %s6, %s4
  // Predicated region
  $region2: #{_lambda_.54} parent=0 // pred_check
    _
  $region3: #{_lambda_.54} parent=0 // pred_check_branch
    %9 = sbr.rel (0) target = $region5
  $region4: #{_lambda_.54} parent=0 // pred_region
    _
  $region5: #{_lambda_.54} parent=0 // pred_fallthru
    _
  // Predicated region
  $region6: #{_lambda_.54} parent=0 // pred_check
    _
  $region7: #{_lambda_.54} parent=0 // pred_check_branch
    %11 = sbr.rel (0) target = $region9
  $region8: #{_lambda_.54} parent=0 // pred_region
    _
  $region9: #{_lambda_.54} parent=0 // pred_fallthru
    _
  // Predicated region
  $region10: #{_lambda_.54} parent=0 // pred_check
    _
  $region11: #{_lambda_.54} parent=0 // pred_check_branch
    %13 = sbr.rel (0) target = $region13
  $region12: #{_lambda_.54} parent=0 // pred_region
    _
  $region13: #{_lambda_.54} parent=0 // pred_fallthru
    _
  %v15 = vld [vmem:[%s2] sm:$0x1]
  %v16 = vld [vmem:[%s0] sm:$0xff]
  %v17 = vld [vmem:[%s0 + $0x8] sm:$0xff]
  %v18 = vld [vmem:[%s0 + $0x10] sm:$0xff]
  %v19 = vld [vmem:[%s0 + $0x18] sm:$0xff]
  %v20 = vpack.c.bf16 %v18, %v16
  %v21 = vpack.c.bf16 %v19, %v17
  %v22 = vld [vmem:[%s1] sm:$0xf]
  %v23 = vld [vmem:[%s1 + $0x4] sm:$0xf]
  %v24 = vld [vmem:[%s1 + $0x8] sm:$0xf]
  %v25 = vld [vmem:[%s1 + $0xc] sm:$0xf]
  %v26 = vld [vmem:[%s1 + $0x10] sm:$0xf]
  %v27 = vld [vmem:[%s1 + $0x14] sm:$0xf]
  %v28 = vld [vmem:[%s1 + $0x18] sm:$0xf]
  %v29 = vld [vmem:[%s1 + $0x1c] sm:$0xf]
  %v30 = vld [vmem:[%s1 + $0x20] sm:$0xf]
  %v31 = vld [vmem:[%s1 + $0x24] sm:$0xf]
  %v32 = vld [vmem:[%s1 + $0x28] sm:$0xf]
  %v33 = vld [vmem:[%s1 + $0x2c] sm:$0xf]
  %v34 = vld [vmem:[%s1 + $0x30] sm:$0xf]
  %v35 = vld [vmem:[%s1 + $0x34] sm:$0xf]
  %v36 = vld [vmem:[%s1 + $0x38] sm:$0xf]
  %v37 = vld [vmem:[%s1 + $0x3c] sm:$0xf]
  %v38 = vld [vmem:[%s1 + $0x40] sm:$0xf]
  %v39 = vld [vmem:[%s1 + $0x44] sm:$0xf]
  %v40 = vld [vmem:[%s1 + $0x48] sm:$0xf]
  %v41 = vld [vmem:[%s1 + $0x4c] sm:$0xf]
  %v42 = vld [vmem:[%s1 + $0x50] sm:$0xf]
  %v43 = vld [vmem:[%s1 + $0x54] sm:$0xf]
  %v44 = vld [vmem:[%s1 + $0x58] sm:$0xf]
  %v45 = vld [vmem:[%s1 + $0x5c] sm:$0xf]
  %v46 = vld [vmem:[%s1 + $0x60] sm:$0xf]
  %v47 = vld [vmem:[%s1 + $0x64] sm:$0xf]
  %v48 = vld [vmem:[%s1 + $0x68] sm:$0xf]
  %v49 = vld [vmem:[%s1 + $0x6c] sm:$0xf]
  %v50 = vld [vmem:[%s1 + $0x70] sm:$0xf]
  %v51 = vld [vmem:[%s1 + $0x74] sm:$0xf]
  %v52 = vld [vmem:[%s1 + $0x78] sm:$0xf]
  %v53 = vld [vmem:[%s1 + $0x7c] sm:$0xf]
  %v54 = vld [vmem:[%s0] sm:$0xfe]
  %v55 = vld [vmem:[%s0 + $0x8] sm:$0xfe]
  %v56 = vld [vmem:[%s0 + $0x20] sm:$0x1]
  %v57 = vld [vmem:[%s0 + $0x28] sm:$0x1]
  %v58 = vpack.c.bf16 %v18, %v54
  %v59 = vpack.c.bf16 %v19, %v55
  %v60 = vpack.c.bf16 %v56, %v56
  %v61 = vpack.c.bf16 %v57, %v57
  %s62 = scalar_lea.vmem %s1, 128
  %v63 = vld [vmem:[%s62] sm:$0xf]
  %v64 = vld [vmem:[%s62 + $0x4] sm:$0xf]
  %v65 = vld [vmem:[%s62 + $0x8] sm:$0xf]
  %v66 = vld [vmem:[%s62 + $0xc] sm:$0xf]
  %v67 = vld [vmem:[%s62 + $0x10] sm:$0xf]
  %v68 = vld [vmem:[%s62 + $0x14] sm:$0xf]
  %v69 = vld [vmem:[%s62 + $0x18] sm:$0xf]
  %v70 = vld [vmem:[%s62 + $0x1c] sm:$0xf]
  %v71 = vld [vmem:[%s62 + $0x20] sm:$0xf]
  %v72 = vld [vmem:[%s62 + $0x24] sm:$0xf]
  %v73 = vld [vmem:[%s62 + $0x28] sm:$0xf]
  %v74 = vld [vmem:[%s62 + $0x2c] sm:$0xf]
  %v75 = vld [vmem:[%s62 + $0x30] sm:$0xf]
  %v76 = vld [vmem:[%s62 + $0x34] sm:$0xf]
  %v77 = vld [vmem:[%s62 + $0x38] sm:$0xf]
  %v78 = vld [vmem:[%s62 + $0x3c] sm:$0xf]
  %v79 = vld [vmem:[%s62 + $0x40] sm:$0xf]
  %v80 = vld [vmem:[%s62 + $0x44] sm:$0xf]
  %v81 = vld [vmem:[%s62 + $0x48] sm:$0xf]
  %v82 = vld [vmem:[%s62 + $0x4c] sm:$0xf]
  %v83 = vld [vmem:[%s62 + $0x50] sm:$0xf]
  %v84 = vld [vmem:[%s62 + $0x54] sm:$0xf]
  %v85 = vld [vmem:[%s62 + $0x58] sm:$0xf]
  %v86 = vld [vmem:[%s62 + $0x5c] sm:$0xf]
  %v87 = vld [vmem:[%s62 + $0x60] sm:$0xf]
  %v88 = vld [vmem:[%s62 + $0x64] sm:$0xf]
  %v89 = vld [vmem:[%s62 + $0x68] sm:$0xf]
  %v90 = vld [vmem:[%s62 + $0x6c] sm:$0xf]
  %v91 = vld [vmem:[%s62 + $0x70] sm:$0xf]
  %v92 = vld [vmem:[%s62 + $0x74] sm:$0xf]
  %v93 = vld [vmem:[%s62 + $0x78] sm:$0xf]
  %v94 = vld [vmem:[%s62 + $0x7c] sm:$0xf]
  %vm95 = vsmask.f32 7424
  %v97 = vshrl.u32 %v58, 16
  %v99 = vshll.u32 %v58, 16
  %v101 = vrot.slane %v99, 1
  %v102 = vor.u32 %v97, %v101
  %v104 = vshll.u32 %v60, 16
  %v106 = vrot.slane %v104, 1
  %v107 = vsel %vm95, %v102, %v106
  %v109 = vshrl.u32 %v59, 16
  %v111 = vshll.u32 %v59, 16
  %v113 = vrot.slane %v111, 1
  %v114 = vor.u32 %v109, %v113
  %v116 = vshll.u32 %v61, 16
  %v118 = vrot.slane %v116, 1
  %v119 = vsel %vm95, %v114, %v118
  %v154 = vunpack.c.l.b16 %v63
  %v155 = vunpack.c.l.b16 %v64
  %v156 = vunpack.c.l.b16 %v65
  %v157 = vunpack.c.l.b16 %v66
  %v158 = vunpack.c.l.b16 %v67
  %v159 = vunpack.c.l.b16 %v68
  %v160 = vunpack.c.l.b16 %v69
  %v161 = vunpack.c.l.b16 %v70
  %v162 = vunpack.c.l.b16 %v71
  %v163 = vunpack.c.l.b16 %v72
  %v164 = vunpack.c.l.b16 %v73
  %v165 = vunpack.c.l.b16 %v74
  %v166 = vunpack.c.l.b16 %v75
  %v167 = vunpack.c.l.b16 %v76
  %v168 = vunpack.c.l.b16 %v77
  %v169 = vunpack.c.l.b16 %v78
  %v170 = vunpack.c.l.b16 %v79
  %v171 = vunpack.c.l.b16 %v80
  %v172 = vunpack.c.l.b16 %v81
  %v173 = vunpack.c.l.b16 %v82
  %v174 = vunpack.c.l.b16 %v83
  %v175 = vunpack.c.l.b16 %v84
  %v176 = vunpack.c.l.b16 %v85
  %v177 = vunpack.c.l.b16 %v86
  %v178 = vunpack.c.l.b16 %v87
  %v179 = vunpack.c.l.b16 %v88
  %v180 = vunpack.c.l.b16 %v89
  %v181 = vunpack.c.l.b16 %v90
  %v182 = vunpack.c.l.b16 %v91
  %v183 = vunpack.c.l.b16 %v92
  %v184 = vunpack.c.l.b16 %v93
  %v185 = vunpack.c.l.b16 %v94
  %v186 = vpack.c.b16 %v155, %v154
  %v187 = vpack.c.b16 %v157, %v156
  %v188 = vpack.c.b16 %v159, %v158
  %v189 = vpack.c.b16 %v161, %v160
  %v190 = vpack.c.b16 %v163, %v162
  %v191 = vpack.c.b16 %v165, %v164
  %v192 = vpack.c.b16 %v167, %v166
  %v193 = vpack.c.b16 %v169, %v168
  %v194 = vpack.c.b16 %v171, %v170
  %v195 = vpack.c.b16 %v173, %v172
  %v196 = vpack.c.b16 %v175, %v174
  %v197 = vpack.c.b16 %v177, %v176
  %v198 = vpack.c.b16 %v179, %v178
  %v199 = vpack.c.b16 %v181, %v180
  %v200 = vpack.c.b16 %v183, %v182
  %v201 = vpack.c.b16 %v185, %v184
  %218 = vmatprep.subr.bf16.mxu0 0
  %219 = vmatpush1.bf16.msra.mxu0 %v193
  %220 = vmatprep.subr.bf16.mxu0 0
  %221 = vmatpush1.bf16.msra.mxu0 %v192
  %222 = vmatprep.subr.bf16.mxu0 0
  %223 = vmatpush1.bf16.msra.mxu0 %v191
  %224 = vmatprep.subr.bf16.mxu0 0
  %225 = vmatpush1.bf16.msra.mxu0 %v190
  %226 = vmatprep.subr.bf16.mxu0 0
  %227 = vmatpush1.bf16.msra.mxu0 %v189
  %228 = vmatprep.subr.bf16.mxu0 0
  %229 = vmatpush1.bf16.msra.mxu0 %v188
  %230 = vmatprep.subr.bf16.mxu0 0
  %231 = vmatpush1.bf16.msra.mxu0 %v187
  %232 = vmatprep.subr.bf16.mxu0 0
  %233 = vmatpush1.bf16.msra.mxu0 %v186
  %234 = vmatprep.subr.bf16.mxu0 0
  %235 = vmatpush2.bf16.msra.mxu0 %v201
  %236 = vmatprep.subr.bf16.mxu0 0
  %237 = vmatpush2.bf16.msra.mxu0 %v200
  %238 = vmatprep.subr.bf16.mxu0 0
  %239 = vmatpush2.bf16.msra.mxu0 %v199
  %240 = vmatprep.subr.bf16.mxu0 0
  %241 = vmatpush2.bf16.msra.mxu0 %v198
  %242 = vmatprep.subr.bf16.mxu0 0
  %243 = vmatpush2.bf16.msra.mxu0 %v197
  %244 = vmatprep.subr.bf16.mxu0 0
  %245 = vmatpush2.bf16.msra.mxu0 %v196
  %246 = vmatprep.subr.bf16.mxu0 0
  %247 = vmatpush2.bf16.msra.mxu0 %v195
  %248 = vmatprep.subr.bf16.mxu0 0
  %249 = vmatpush2.bf16.msra.mxu0 %v194
  %250 = vmatprep.mubr.bf16.mxu0 %v119
  %251 = vmatmul.mubr.bf16.gmra.mxu0 %v107
  %v252 = vpop.f32.mrf.mxu0
  %v253 = vadd.f32 0.0, %v252
  %v254 = vpop.f32.mrf.mxu0
  %v255 = vpop.f32.mrf.mxu0
  %v256 = vadd.f32 0.0, %v255
  %v257 = vpop.f32.mrf.mxu0
  %258 = vdwg.mxu0
  %v291 = vunpack.c.l.b16 %v22
  %v292 = vunpack.c.l.b16 %v23
  %v293 = vunpack.c.l.b16 %v24
  %v294 = vunpack.c.l.b16 %v25
  %v295 = vunpack.c.l.b16 %v26
  %v296 = vunpack.c.l.b16 %v27
  %v297 = vunpack.c.l.b16 %v28
  %v298 = vunpack.c.l.b16 %v29
  %v299 = vunpack.c.l.b16 %v30
  %v300 = vunpack.c.l.b16 %v31
  %v301 = vunpack.c.l.b16 %v32
  %v302 = vunpack.c.l.b16 %v33
  %v303 = vunpack.c.l.b16 %v34
  %v304 = vunpack.c.l.b16 %v35
  %v305 = vunpack.c.l.b16 %v36
  %v306 = vunpack.c.l.b16 %v37
  %v307 = vunpack.c.l.b16 %v38
  %v308 = vunpack.c.l.b16 %v39
  %v309 = vunpack.c.l.b16 %v40
  %v310 = vunpack.c.l.b16 %v41
  %v311 = vunpack.c.l.b16 %v42
  %v312 = vunpack.c.l.b16 %v43
  %v313 = vunpack.c.l.b16 %v44
  %v314 = vunpack.c.l.b16 %v45
  %v315 = vunpack.c.l.b16 %v46
  %v316 = vunpack.c.l.b16 %v47
  %v317 = vunpack.c.l.b16 %v48
  %v318 = vunpack.c.l.b16 %v49
  %v319 = vunpack.c.l.b16 %v50
  %v320 = vunpack.c.l.b16 %v51
  %v321 = vunpack.c.l.b16 %v52
  %v322 = vunpack.c.l.b16 %v53
  %v323 = vpack.c.b16 %v292, %v291
  %v324 = vpack.c.b16 %v294, %v293
  %v325 = vpack.c.b16 %v296, %v295
  %v326 = vpack.c.b16 %v298, %v297
  %v327 = vpack.c.b16 %v300, %v299
  %v328 = vpack.c.b16 %v302, %v301
  %v329 = vpack.c.b16 %v304, %v303
  %v330 = vpack.c.b16 %v306, %v305
  %v331 = vpack.c.b16 %v308, %v307
  %v332 = vpack.c.b16 %v310, %v309
  %v333 = vpack.c.b16 %v312, %v311
  %v334 = vpack.c.b16 %v314, %v313
  %v335 = vpack.c.b16 %v316, %v315
  %v336 = vpack.c.b16 %v318, %v317
  %v337 = vpack.c.b16 %v320, %v319
  %v338 = vpack.c.b16 %v322, %v321
  %355 = vmatprep.subr.bf16.mxu0 0
  %356 = vmatpush1.bf16.msra.mxu0 %v330
  %357 = vmatprep.subr.bf16.mxu0 0
  %358 = vmatpush1.bf16.msra.mxu0 %v329
  %359 = vmatprep.subr.bf16.mxu0 0
  %360 = vmatpush1.bf16.msra.mxu0 %v328
  %361 = vmatprep.subr.bf16.mxu0 0
  %362 = vmatpush1.bf16.msra.mxu0 %v327
  %363 = vmatprep.subr.bf16.mxu0 0
  %364 = vmatpush1.bf16.msra.mxu0 %v326
  %365 = vmatprep.subr.bf16.mxu0 0
  %366 = vmatpush1.bf16.msra.mxu0 %v325
  %367 = vmatprep.subr.bf16.mxu0 0
  %368 = vmatpush1.bf16.msra.mxu0 %v324
  %369 = vmatprep.subr.bf16.mxu0 0
  %370 = vmatpush1.bf16.msra.mxu0 %v323
  %371 = vmatprep.subr.bf16.mxu0 0
  %372 = vmatpush2.bf16.msra.mxu0 %v338
  %373 = vmatprep.subr.bf16.mxu0 0
  %374 = vmatpush2.bf16.msra.mxu0 %v337
  %375 = vmatprep.subr.bf16.mxu0 0
  %376 = vmatpush2.bf16.msra.mxu0 %v336
  %377 = vmatprep.subr.bf16.mxu0 0
  %378 = vmatpush2.bf16.msra.mxu0 %v335
  %379 = vmatprep.subr.bf16.mxu0 0
  %380 = vmatpush2.bf16.msra.mxu0 %v334
  %381 = vmatprep.subr.bf16.mxu0 0
  %382 = vmatpush2.bf16.msra.mxu0 %v333
  %383 = vmatprep.subr.bf16.mxu0 0
  %384 = vmatpush2.bf16.msra.mxu0 %v332
  %385 = vmatprep.subr.bf16.mxu0 0
  %386 = vmatpush2.bf16.msra.mxu0 %v331
  %387 = vmatprep.mubr.bf16.mxu0 %v21
  %388 = vmatmul.mubr.bf16.gmra.mxu0 %v20
  %v389 = vpop.f32.mrf.mxu0
  %v390 = vadd.f32 %v253, %v389
  %v391 = vpop.f32.mrf.mxu0
  %v392 = vpop.f32.mrf.mxu0
  %v393 = vadd.f32 %v256, %v392
  %v394 = vpop.f32.mrf.mxu0
  %395 = vdwg.mxu0
  %v396 = vld [vmem:[%s0] sm:$0xfc]
  %v397 = vld [vmem:[%s0 + $0x8] sm:$0xfc]
  %v398 = vld [vmem:[%s0 + $0x20] sm:$0x3]
  %v399 = vld [vmem:[%s0 + $0x28] sm:$0x3]
  %v400 = vpack.c.bf16 %v18, %v396
  %v401 = vpack.c.bf16 %v19, %v397
  %v402 = vpack.c.bf16 %v398, %v398
  %v403 = vpack.c.bf16 %v399, %v399
  %s404 = scalar_lea.vmem %s1, 256
  %v405 = vld [vmem:[%s404] sm:$0xf]
  %v406 = vld [vmem:[%s404 + $0x4] sm:$0xf]
  %v407 = vld [vmem:[%s404 + $0x8] sm:$0xf]
  %v408 = vld [vmem:[%s404 + $0xc] sm:$0xf]
  %v409 = vld [vmem:[%s404 + $0x10] sm:$0xf]
  %v410 = vld [vmem:[%s404 + $0x14] sm:$0xf]
  %v411 = vld [vmem:[%s404 + $0x18] sm:$0xf]
  %v412 = vld [vmem:[%s404 + $0x1c] sm:$0xf]
  %v413 = vld [vmem:[%s404 + $0x20] sm:$0xf]
  %v414 = vld [vmem:[%s404 + $0x24] sm:$0xf]
  %v415 = vld [vmem:[%s404 + $0x28] sm:$0xf]
  %v416 = vld [vmem:[%s404 + $0x2c] sm:$0xf]
  %v417 = vld [vmem:[%s404 + $0x30] sm:$0xf]
  %v418 = vld [vmem:[%s404 + $0x34] sm:$0xf]
  %v419 = vld [vmem:[%s404 + $0x38] sm:$0xf]
  %v420 = vld [vmem:[%s404 + $0x3c] sm:$0xf]
  %v421 = vld [vmem:[%s404 + $0x40] sm:$0xf]
  %v422 = vld [vmem:[%s404 + $0x44] sm:$0xf]
  %v423 = vld [vmem:[%s404 + $0x48] sm:$0xf]
  %v424 = vld [vmem:[%s404 + $0x4c] sm:$0xf]
  %v425 = vld [vmem:[%s404 + $0x50] sm:$0xf]
  %v426 = vld [vmem:[%s404 + $0x54] sm:$0xf]
  %v427 = vld [vmem:[%s404 + $0x58] sm:$0xf]
  %v428 = vld [vmem:[%s404 + $0x5c] sm:$0xf]
  %v429 = vld [vmem:[%s404 + $0x60] sm:$0xf]
  %v430 = vld [vmem:[%s404 + $0x64] sm:$0xf]
  %v431 = vld [vmem:[%s404 + $0x68] sm:$0xf]
  %v432 = vld [vmem:[%s404 + $0x6c] sm:$0xf]
  %v433 = vld [vmem:[%s404 + $0x70] sm:$0xf]
  %v434 = vld [vmem:[%s404 + $0x74] sm:$0xf]
  %v435 = vld [vmem:[%s404 + $0x78] sm:$0xf]
  %v436 = vld [vmem:[%s404 + $0x7c] sm:$0xf]
  %vm441 = vcmask 1046528
  %v442 = vrot.slane %v400, 1
  %v443 = vrot.slane %v402, 1
  %v444 = vsel %vm441, %v442, %v443
  %v445 = vrot.slane %v401, 1
  %v446 = vrot.slane %v403, 1
  %v447 = vsel %vm441, %v445, %v446
  %v482 = vunpack.c.l.b16 %v405
  %v483 = vunpack.c.l.b16 %v406
  %v484 = vunpack.c.l.b16 %v407
  %v485 = vunpack.c.l.b16 %v408
  %v486 = vunpack.c.l.b16 %v409
  %v487 = vunpack.c.l.b16 %v410
  %v488 = vunpack.c.l.b16 %v411
  %v489 = vunpack.c.l.b16 %v412
  %v490 = vunpack.c.l.b16 %v413
  %v491 = vunpack.c.l.b16 %v414
  %v492 = vunpack.c.l.b16 %v415
  %v493 = vunpack.c.l.b16 %v416
  %v494 = vunpack.c.l.b16 %v417
  %v495 = vunpack.c.l.b16 %v418
  %v496 = vunpack.c.l.b16 %v419
  %v497 = vunpack.c.l.b16 %v420
  %v498 = vunpack.c.l.b16 %v421
  %v499 = vunpack.c.l.b16 %v422
  %v500 = vunpack.c.l.b16 %v423
  %v501 = vunpack.c.l.b16 %v424
  %v502 = vunpack.c.l.b16 %v425
  %v503 = vunpack.c.l.b16 %v426
  %v504 = vunpack.c.l.b16 %v427
  %v505 = vunpack.c.l.b16 %v428
  %v506 = vunpack.c.l.b16 %v429
  %v507 = vunpack.c.l.b16 %v430
  %v508 = vunpack.c.l.b16 %v431
  %v509 = vunpack.c.l.b16 %v432
  %v510 = vunpack.c.l.b16 %v433
  %v511 = vunpack.c.l.b16 %v434
  %v512 = vunpack.c.l.b16 %v435
  %v513 = vunpack.c.l.b16 %v436
  %v514 = vpack.c.b16 %v483, %v482
  %v515 = vpack.c.b16 %v485, %v484
  %v516 = vpack.c.b16 %v487, %v486
  %v517 = vpack.c.b16 %v489, %v488
  %v518 = vpack.c.b16 %v491, %v490
  %v519 = vpack.c.b16 %v493, %v492
  %v520 = vpack.c.b16 %v495, %v494
  %v521 = vpack.c.b16 %v497, %v496
  %v522 = vpack.c.b16 %v499, %v498
  %v523 = vpack.c.b16 %v501, %v500
  %v524 = vpack.c.b16 %v503, %v502
  %v525 = vpack.c.b16 %v505, %v504
  %v526 = vpack.c.b16 %v507, %v506
  %v527 = vpack.c.b16 %v509, %v508
  %v528 = vpack.c.b16 %v511, %v510
  %v529 = vpack.c.b16 %v513, %v512
  %546 = vmatprep.subr.bf16.mxu0 0
  %547 = vmatpush1.bf16.msra.mxu0 %v521
  %548 = vmatprep.subr.bf16.mxu0 0
  %549 = vmatpush1.bf16.msra.mxu0 %v520
  %550 = vmatprep.subr.bf16.mxu0 0
  %551 = vmatpush1.bf16.msra.mxu0 %v519
  %552 = vmatprep.subr.bf16.mxu0 0
  %553 = vmatpush1.bf16.msra.mxu0 %v518
  %554 = vmatprep.subr.bf16.mxu0 0
  %555 = vmatpush1.bf16.msra.mxu0 %v517
  %556 = vmatprep.subr.bf16.mxu0 0
  %557 = vmatpush1.bf16.msra.mxu0 %v516
  %558 = vmatprep.subr.bf16.mxu0 0
  %559 = vmatpush1.bf16.msra.mxu0 %v515
  %560 = vmatprep.subr.bf16.mxu0 0
  %561 = vmatpush1.bf16.msra.mxu0 %v514
  %562 = vmatprep.subr.bf16.mxu0 0
  %563 = vmatpush2.bf16.msra.mxu0 %v529
  %564 = vmatprep.subr.bf16.mxu0 0
  %565 = vmatpush2.bf16.msra.mxu0 %v528
  %566 = vmatprep.subr.bf16.mxu0 0
  %567 = vmatpush2.bf16.msra.mxu0 %v527
  %568 = vmatprep.subr.bf16.mxu0 0
  %569 = vmatpush2.bf16.msra.mxu0 %v526
  %570 = vmatprep.subr.bf16.mxu0 0
  %571 = vmatpush2.bf16.msra.mxu0 %v525
  %572 = vmatprep.subr.bf16.mxu0 0
  %573 = vmatpush2.bf16.msra.mxu0 %v524
  %574 = vmatprep.subr.bf16.mxu0 0
  %575 = vmatpush2.bf16.msra.mxu0 %v523
  %576 = vmatprep.subr.bf16.mxu0 0
  %577 = vmatpush2.bf16.msra.mxu0 %v522
  %578 = vmatprep.mubr.bf16.mxu0 %v447
  %579 = vmatmul.mubr.bf16.gmra.mxu0 %v444
  %v580 = vpop.f32.mrf.mxu0
  %v581 = vadd.f32 0.0, %v580
  %v582 = vpop.f32.mrf.mxu0
  %v583 = vpop.f32.mrf.mxu0
  %v584 = vadd.f32 0.0, %v583
  %v585 = vpop.f32.mrf.mxu0
  %586 = vdwg.mxu0
  %v587 = vadd.f32 %v390, %v581
  %v588 = vadd.f32 %v393, %v584
  %v590 = vlaneseq
  %v591 = vshrl.u32 %v590, 7
  %v592 = vsub.s32 0, %v591
  %v593 = vrot.slane %v15, %v592
  %v595 = vadd.f32 %v587, %v593
  %v596 = vadd.f32 %v588, %v593
  %597 = vst [vmem:[%s3] sm:$0xff] %v595
  %598 = vst [vmem:[%s3 + $0x8] sm:$0xff] %v596
  %s599 = scalar_lea.vmem %s0, 48
  %v600 = vld [vmem:[%s599] sm:$0xff]
  %v601 = vld [vmem:[%s599 + $0x8] sm:$0xff]
  %v602 = vld [vmem:[%s599 + $0x10] sm:$0xff]
  %v603 = vld [vmem:[%s599 + $0x18] sm:$0xff]
  %v604 = vpack.c.bf16 %v602, %v600
  %v605 = vpack.c.bf16 %v603, %v601
  %v606 = vld [vmem:[%s1] sm:$0xf]
  %v607 = vld [vmem:[%s1 + $0x4] sm:$0xf]
  %v608 = vld [vmem:[%s1 + $0x8] sm:$0xf]
  %v609 = vld [vmem:[%s1 + $0xc] sm:$0xf]
  %v610 = vld [vmem:[%s1 + $0x10] sm:$0xf]
  %v611 = vld [vmem:[%s1 + $0x14] sm:$0xf]
  %v612 = vld [vmem:[%s1 + $0x18] sm:$0xf]
  %v613 = vld [vmem:[%s1 + $0x1c] sm:$0xf]
  %v614 = vld [vmem:[%s1 + $0x20] sm:$0xf]
  %v615 = vld [vmem:[%s1 + $0x24] sm:$0xf]
  %v616 = vld [vmem:[%s1 + $0x28] sm:$0xf]
  %v617 = vld [vmem:[%s1 + $0x2c] sm:$0xf]
  %v618 = vld [vmem:[%s1 + $0x30] sm:$0xf]
  %v619 = vld [vmem:[%s1 + $0x34] sm:$0xf]
  %v620 = vld [vmem:[%s1 + $0x38] sm:$0xf]
  %v621 = vld [vmem:[%s1 + $0x3c] sm:$0xf]
  %v622 = vld [vmem:[%s1 + $0x40] sm:$0xf]
  %v623 = vld [vmem:[%s1 + $0x44] sm:$0xf]
  %v624 = vld [vmem:[%s1 + $0x48] sm:$0xf]
  %v625 = vld [vmem:[%s1 + $0x4c] sm:$0xf]
  %v626 = vld [vmem:[%s1 + $0x50] sm:$0xf]
  %v627 = vld [vmem:[%s1 + $0x54] sm:$0xf]
  %v628 = vld [vmem:[%s1 + $0x58] sm:$0xf]
  %v629 = vld [vmem:[%s1 + $0x5c] sm:$0xf]
  %v630 = vld [vmem:[%s1 + $0x60] sm:$0xf]
  %v631 = vld [vmem:[%s1 + $0x64] sm:$0xf]
  %v632 = vld [vmem:[%s1 + $0x68] sm:$0xf]
  %v633 = vld [vmem:[%s1 + $0x6c] sm:$0xf]
  %v634 = vld [vmem:[%s1 + $0x70] sm:$0xf]
  %v635 = vld [vmem:[%s1 + $0x74] sm:$0xf]
  %v636 = vld [vmem:[%s1 + $0x78] sm:$0xf]
  %v637 = vld [vmem:[%s1 + $0x7c] sm:$0xf]
  %v638 = vld [vmem:[%s599] sm:$0xfe]
  %v639 = vld [vmem:[%s599 + $0x8] sm:$0xfe]
  %v640 = vld [vmem:[%s599 + $0x20] sm:$0x1]
  %v641 = vld [vmem:[%s599 + $0x28] sm:$0x1]
  %v642 = vpack.c.bf16 %v602, %v638
  %v643 = vpack.c.bf16 %v603, %v639
  %v644 = vpack.c.bf16 %v640, %v640
  %v645 = vpack.c.bf16 %v641, %v641
  %v646 = vld [vmem:[%s62] sm:$0xf]
  %v647 = vld [vmem:[%s62 + $0x4] sm:$0xf]
  %v648 = vld [vmem:[%s62 + $0x8] sm:$0xf]
  %v649 = vld [vmem:[%s62 + $0xc] sm:$0xf]
  %v650 = vld [vmem:[%s62 + $0x10] sm:$0xf]
  %v651 = vld [vmem:[%s62 + $0x14] sm:$0xf]
  %v652 = vld [vmem:[%s62 + $0x18] sm:$0xf]
  %v653 = vld [vmem:[%s62 + $0x1c] sm:$0xf]
  %v654 = vld [vmem:[%s62 + $0x20] sm:$0xf]
  %v655 = vld [vmem:[%s62 + $0x24] sm:$0xf]
  %v656 = vld [vmem:[%s62 + $0x28] sm:$0xf]
  %v657 = vld [vmem:[%s62 + $0x2c] sm:$0xf]
  %v658 = vld [vmem:[%s62 + $0x30] sm:$0xf]
  %v659 = vld [vmem:[%s62 + $0x34] sm:$0xf]
  %v660 = vld [vmem:[%s62 + $0x38] sm:$0xf]
  %v661 = vld [vmem:[%s62 + $0x3c] sm:$0xf]
  %v662 = vld [vmem:[%s62 + $0x40] sm:$0xf]
  %v663 = vld [vmem:[%s62 + $0x44] sm:$0xf]
  %v664 = vld [vmem:[%s62 + $0x48] sm:$0xf]
  %v665 = vld [vmem:[%s62 + $0x4c] sm:$0xf]
  %v666 = vld [vmem:[%s62 + $0x50] sm:$0xf]
  %v667 = vld [vmem:[%s62 + $0x54] sm:$0xf]
  %v668 = vld [vmem:[%s62 + $0x58] sm:$0xf]
  %v669 = vld [vmem:[%s62 + $0x5c] sm:$0xf]
  %v670 = vld [vmem:[%s62 + $0x60] sm:$0xf]
  %v671 = vld [vmem:[%s62 + $0x64] sm:$0xf]
  %v672 = vld [vmem:[%s62 + $0x68] sm:$0xf]
  %v673 = vld [vmem:[%s62 + $0x6c] sm:$0xf]
  %v674 = vld [vmem:[%s62 + $0x70] sm:$0xf]
  %v675 = vld [vmem:[%s62 + $0x74] sm:$0xf]
  %v676 = vld [vmem:[%s62 + $0x78] sm:$0xf]
  %v677 = vld [vmem:[%s62 + $0x7c] sm:$0xf]
  %v679 = vshrl.u32 %v642, 16
  %v681 = vshll.u32 %v642, 16
  %v683 = vrot.slane %v681, 1
  %v684 = vor.u32 %v679, %v683
  %v686 = vshll.u32 %v644, 16
  %v688 = vrot.slane %v686, 1
  %v689 = vsel %vm95, %v684, %v688
  %v691 = vshrl.u32 %v643, 16
  %v693 = vshll.u32 %v643, 16
  %v695 = vrot.slane %v693, 1
  %v696 = vor.u32 %v691, %v695
  %v698 = vshll.u32 %v645, 16
  %v700 = vrot.slane %v698, 1
  %v701 = vsel %vm95, %v696, %v700
  %v736 = vunpack.c.l.b16 %v646
  %v737 = vunpack.c.l.b16 %v647
  %v738 = vunpack.c.l.b16 %v648
  %v739 = vunpack.c.l.b16 %v649
  %v740 = vunpack.c.l.b16 %v650
  %v741 = vunpack.c.l.b16 %v651
  %v742 = vunpack.c.l.b16 %v652
  %v743 = vunpack.c.l.b16 %v653
  %v744 = vunpack.c.l.b16 %v654
  %v745 = vunpack.c.l.b16 %v655
  %v746 = vunpack.c.l.b16 %v656
  %v747 = vunpack.c.l.b16 %v657
  %v748 = vunpack.c.l.b16 %v658
  %v749 = vunpack.c.l.b16 %v659
  %v750 = vunpack.c.l.b16 %v660
  %v751 = vunpack.c.l.b16 %v661
  %v752 = vunpack.c.l.b16 %v662
  %v753 = vunpack.c.l.b16 %v663
  %v754 = vunpack.c.l.b16 %v664
  %v755 = vunpack.c.l.b16 %v665
  %v756 = vunpack.c.l.b16 %v666
  %v757 = vunpack.c.l.b16 %v667
  %v758 = vunpack.c.l.b16 %v668
  %v759 = vunpack.c.l.b16 %v669
  %v760 = vunpack.c.l.b16 %v670
  %v761 = vunpack.c.l.b16 %v671
  %v762 = vunpack.c.l.b16 %v672
  %v763 = vunpack.c.l.b16 %v673
  %v764 = vunpack.c.l.b16 %v674
  %v765 = vunpack.c.l.b16 %v675
  %v766 = vunpack.c.l.b16 %v676
  %v767 = vunpack.c.l.b16 %v677
  %v768 = vpack.c.b16 %v737, %v736
  %v769 = vpack.c.b16 %v739, %v738
  %v770 = vpack.c.b16 %v741, %v740
  %v771 = vpack.c.b16 %v743, %v742
  %v772 = vpack.c.b16 %v745, %v744
  %v773 = vpack.c.b16 %v747, %v746
  %v774 = vpack.c.b16 %v749, %v748
  %v775 = vpack.c.b16 %v751, %v750
  %v776 = vpack.c.b16 %v753, %v752
  %v777 = vpack.c.b16 %v755, %v754
  %v778 = vpack.c.b16 %v757, %v756
  %v779 = vpack.c.b16 %v759, %v758
  %v780 = vpack.c.b16 %v761, %v760
  %v781 = vpack.c.b16 %v763, %v762
  %v782 = vpack.c.b16 %v765, %v764
  %v783 = vpack.c.b16 %v767, %v766
  %800 = vmatprep.subr.bf16.mxu0 0
  %801 = vmatpush1.bf16.msra.mxu0 %v775
  %802 = vmatprep.subr.bf16.mxu0 0
  %803 = vmatpush1.bf16.msra.mxu0 %v774
  %804 = vmatprep.subr.bf16.mxu0 0
  %805 = vmatpush1.bf16.msra.mxu0 %v773
  %806 = vmatprep.subr.bf16.mxu0 0
  %807 = vmatpush1.bf16.msra.mxu0 %v772
  %808 = vmatprep.subr.bf16.mxu0 0
  %809 = vmatpush1.bf16.msra.mxu0 %v771
  %810 = vmatprep.subr.bf16.mxu0 0
  %811 = vmatpush1.bf16.msra.mxu0 %v770
  %812 = vmatprep.subr.bf16.mxu0 0
  %813 = vmatpush1.bf16.msra.mxu0 %v769
  %814 = vmatprep.subr.bf16.mxu0 0
  %815 = vmatpush1.bf16.msra.mxu0 %v768
  %816 = vmatprep.subr.bf16.mxu0 0
  %817 = vmatpush2.bf16.msra.mxu0 %v783
  %818 = vmatprep.subr.bf16.mxu0 0
  %819 = vmatpush2.bf16.msra.mxu0 %v782
  %820 = vmatprep.subr.bf16.mxu0 0
  %821 = vmatpush2.bf16.msra.mxu0 %v781
  %822 = vmatprep.subr.bf16.mxu0 0
  %823 = vmatpush2.bf16.msra.mxu0 %v780
  %824 = vmatprep.subr.bf16.mxu0 0
  %825 = vmatpush2.bf16.msra.mxu0 %v779
  %826 = vmatprep.subr.bf16.mxu0 0
  %827 = vmatpush2.bf16.msra.mxu0 %v778
  %828 = vmatprep.subr.bf16.mxu0 0
  %829 = vmatpush2.bf16.msra.mxu0 %v777
  %830 = vmatprep.subr.bf16.mxu0 0
  %831 = vmatpush2.bf16.msra.mxu0 %v776
  %832 = vmatprep.mubr.bf16.mxu0 %v701
  %833 = vmatmul.mubr.bf16.gmra.mxu0 %v689
  %v834 = vpop.f32.mrf.mxu0
  %v835 = vadd.f32 0.0, %v834
  %v836 = vpop.f32.mrf.mxu0
  %v837 = vpop.f32.mrf.mxu0
  %v838 = vadd.f32 0.0, %v837
  %v839 = vpop.f32.mrf.mxu0
  %840 = vdwg.mxu0
  %v873 = vunpack.c.l.b16 %v606
  %v874 = vunpack.c.l.b16 %v607
  %v875 = vunpack.c.l.b16 %v608
  %v876 = vunpack.c.l.b16 %v609
  %v877 = vunpack.c.l.b16 %v610
  %v878 = vunpack.c.l.b16 %v611
  %v879 = vunpack.c.l.b16 %v612
  %v880 = vunpack.c.l.b16 %v613
  %v881 = vunpack.c.l.b16 %v614
  %v882 = vunpack.c.l.b16 %v615
  %v883 = vunpack.c.l.b16 %v616
  %v884 = vunpack.c.l.b16 %v617
  %v885 = vunpack.c.l.b16 %v618
  %v886 = vunpack.c.l.b16 %v619
  %v887 = vunpack.c.l.b16 %v620
  %v888 = vunpack.c.l.b16 %v621
  %v889 = vunpack.c.l.b16 %v622
  %v890 = vunpack.c.l.b16 %v623
  %v891 = vunpack.c.l.b16 %v624
  %v892 = vunpack.c.l.b16 %v625
  %v893 = vunpack.c.l.b16 %v626
  %v894 = vunpack.c.l.b16 %v627
  %v895 = vunpack.c.l.b16 %v628
  %v896 = vunpack.c.l.b16 %v629
  %v897 = vunpack.c.l.b16 %v630
  %v898 = vunpack.c.l.b16 %v631
  %v899 = vunpack.c.l.b16 %v632
  %v900 = vunpack.c.l.b16 %v633
  %v901 = vunpack.c.l.b16 %v634
  %v902 = vunpack.c.l.b16 %v635
  %v903 = vunpack.c.l.b16 %v636
  %v904 = vunpack.c.l.b16 %v637
  %v905 = vpack.c.b16 %v874, %v873
  %v906 = vpack.c.b16 %v876, %v875
  %v907 = vpack.c.b16 %v878, %v877
  %v908 = vpack.c.b16 %v880, %v879
  %v909 = vpack.c.b16 %v882, %v881
  %v910 = vpack.c.b16 %v884, %v883
  %v911 = vpack.c.b16 %v886, %v885
  %v912 = vpack.c.b16 %v888, %v887
  %v913 = vpack.c.b16 %v890, %v889
  %v914 = vpack.c.b16 %v892, %v891
  %v915 = vpack.c.b16 %v894, %v893
  %v916 = vpack.c.b16 %v896, %v895
  %v917 = vpack.c.b16 %v898, %v897
  %v918 = vpack.c.b16 %v900, %v899
  %v919 = vpack.c.b16 %v902, %v901
  %v920 = vpack.c.b16 %v904, %v903
  %937 = vmatprep.subr.bf16.mxu0 0
  %938 = vmatpush1.bf16.msra.mxu0 %v912
  %939 = vmatprep.subr.bf16.mxu0 0
  %940 = vmatpush1.bf16.msra.mxu0 %v911
  %941 = vmatprep.subr.bf16.mxu0 0
  %942 = vmatpush1.bf16.msra.mxu0 %v910
  %943 = vmatprep.subr.bf16.mxu0 0
  %944 = vmatpush1.bf16.msra.mxu0 %v909
  %945 = vmatprep.subr.bf16.mxu0 0
  %946 = vmatpush1.bf16.msra.mxu0 %v908
  %947 = vmatprep.subr.bf16.mxu0 0
  %948 = vmatpush1.bf16.msra.mxu0 %v907
  %949 = vmatprep.subr.bf16.mxu0 0
  %950 = vmatpush1.bf16.msra.mxu0 %v906
  %951 = vmatprep.subr.bf16.mxu0 0
  %952 = vmatpush1.bf16.msra.mxu0 %v905
  %953 = vmatprep.subr.bf16.mxu0 0
  %954 = vmatpush2.bf16.msra.mxu0 %v920
  %955 = vmatprep.subr.bf16.mxu0 0
  %956 = vmatpush2.bf16.msra.mxu0 %v919
  %957 = vmatprep.subr.bf16.mxu0 0
  %958 = vmatpush2.bf16.msra.mxu0 %v918
  %959 = vmatprep.subr.bf16.mxu0 0
  %960 = vmatpush2.bf16.msra.mxu0 %v917
  %961 = vmatprep.subr.bf16.mxu0 0
  %962 = vmatpush2.bf16.msra.mxu0 %v916
  %963 = vmatprep.subr.bf16.mxu0 0
  %964 = vmatpush2.bf16.msra.mxu0 %v915
  %965 = vmatprep.subr.bf16.mxu0 0
  %966 = vmatpush2.bf16.msra.mxu0 %v914
  %967 = vmatprep.subr.bf16.mxu0 0
  %968 = vmatpush2.bf16.msra.mxu0 %v913
  %969 = vmatprep.mubr.bf16.mxu0 %v605
  %970 = vmatmul.mubr.bf16.gmra.mxu0 %v604
  %v971 = vpop.f32.mrf.mxu0
  %v972 = vadd.f32 %v835, %v971
  %v973 = vpop.f32.mrf.mxu0
  %v974 = vpop.f32.mrf.mxu0
  %v975 = vadd.f32 %v838, %v974
  %v976 = vpop.f32.mrf.mxu0
  %977 = vdwg.mxu0
  %v978 = vld [vmem:[%s599] sm:$0xfc]
  %v979 = vld [vmem:[%s599 + $0x8] sm:$0xfc]
  %v980 = vld [vmem:[%s599 + $0x20] sm:$0x3]
  %v981 = vld [vmem:[%s599 + $0x28] sm:$0x3]
  %v982 = vpack.c.bf16 %v602, %v978
  %v983 = vpack.c.bf16 %v603, %v979
  %v984 = vpack.c.bf16 %v980, %v980
  %v985 = vpack.c.bf16 %v981, %v981
  %v986 = vld [vmem:[%s404] sm:$0xf]
  %v987 = vld [vmem:[%s404 + $0x4] sm:$0xf]
  %v988 = vld [vmem:[%s404 + $0x8] sm:$0xf]
  %v989 = vld [vmem:[%s404 + $0xc] sm:$0xf]
  %v990 = vld [vmem:[%s404 + $0x10] sm:$0xf]
  %v991 = vld [vmem:[%s404 + $0x14] sm:$0xf]
  %v992 = vld [vmem:[%s404 + $0x18] sm:$0xf]
  %v993 = vld [vmem:[%s404 + $0x1c] sm:$0xf]
  %v994 = vld [vmem:[%s404 + $0x20] sm:$0xf]
  %v995 = vld [vmem:[%s404 + $0x24] sm:$0xf]
  %v996 = vld [vmem:[%s404 + $0x28] sm:$0xf]
  %v997 = vld [vmem:[%s404 + $0x2c] sm:$0xf]
  %v998 = vld [vmem:[%s404 + $0x30] sm:$0xf]
  %v999 = vld [vmem:[%s404 + $0x34] sm:$0xf]
  %v1000 = vld [vmem:[%s404 + $0x38] sm:$0xf]
  %v1001 = vld [vmem:[%s404 + $0x3c] sm:$0xf]
  %v1002 = vld [vmem:[%s404 + $0x40] sm:$0xf]
  %v1003 = vld [vmem:[%s404 + $0x44] sm:$0xf]
  %v1004 = vld [vmem:[%s404 + $0x48] sm:$0xf]
  %v1005 = vld [vmem:[%s404 + $0x4c] sm:$0xf]
  %v1006 = vld [vmem:[%s404 + $0x50] sm:$0xf]
  %v1007 = vld [vmem:[%s404 + $0x54] sm:$0xf]
  %v1008 = vld [vmem:[%s404 + $0x58] sm:$0xf]
  %v1009 = vld [vmem:[%s404 + $0x5c] sm:$0xf]
  %v1010 = vld [vmem:[%s404 + $0x60] sm:$0xf]
  %v1011 = vld [vmem:[%s404 + $0x64] sm:$0xf]
  %v1012 = vld [vmem:[%s404 + $0x68] sm:$0xf]
  %v1013 = vld [vmem:[%s404 + $0x6c] sm:$0xf]
  %v1014 = vld [vmem:[%s404 + $0x70] sm:$0xf]
  %v1015 = vld [vmem:[%s404 + $0x74] sm:$0xf]
  %v1016 = vld [vmem:[%s404 + $0x78] sm:$0xf]
  %v1017 = vld [vmem:[%s404 + $0x7c] sm:$0xf]
  %v1022 = vrot.slane %v982, 1
  %v1023 = vrot.slane %v984, 1
  %v1024 = vsel %vm441, %v1022, %v1023
  %v1025 = vrot.slane %v983, 1
  %v1026 = vrot.slane %v985, 1
  %v1027 = vsel %vm441, %v1025, %v1026
  %v1062 = vunpack.c.l.b16 %v986
  %v1063 = vunpack.c.l.b16 %v987
  %v1064 = vunpack.c.l.b16 %v988
  %v1065 = vunpack.c.l.b16 %v989
  %v1066 = vunpack.c.l.b16 %v990
  %v1067 = vunpack.c.l.b16 %v991
  %v1068 = vunpack.c.l.b16 %v992
  %v1069 = vunpack.c.l.b16 %v993
  %v1070 = vunpack.c.l.b16 %v994
  %v1071 = vunpack.c.l.b16 %v995
  %v1072 = vunpack.c.l.b16 %v996
  %v1073 = vunpack.c.l.b16 %v997
  %v1074 = vunpack.c.l.b16 %v998
  %v1075 = vunpack.c.l.b16 %v999
  %v1076 = vunpack.c.l.b16 %v1000
  %v1077 = vunpack.c.l.b16 %v1001
  %v1078 = vunpack.c.l.b16 %v1002
  %v1079 = vunpack.c.l.b16 %v1003
  %v1080 = vunpack.c.l.b16 %v1004
  %v1081 = vunpack.c.l.b16 %v1005
  %v1082 = vunpack.c.l.b16 %v1006
  %v1083 = vunpack.c.l.b16 %v1007
  %v1084 = vunpack.c.l.b16 %v1008
  %v1085 = vunpack.c.l.b16 %v1009
  %v1086 = vunpack.c.l.b16 %v1010
  %v1087 = vunpack.c.l.b16 %v1011
  %v1088 = vunpack.c.l.b16 %v1012
  %v1089 = vunpack.c.l.b16 %v1013
  %v1090 = vunpack.c.l.b16 %v1014
  %v1091 = vunpack.c.l.b16 %v1015
  %v1092 = vunpack.c.l.b16 %v1016
  %v1093 = vunpack.c.l.b16 %v1017
  %v1094 = vpack.c.b16 %v1063, %v1062
  %v1095 = vpack.c.b16 %v1065, %v1064
  %v1096 = vpack.c.b16 %v1067, %v1066
  %v1097 = vpack.c.b16 %v1069, %v1068
  %v1098 = vpack.c.b16 %v1071, %v1070
  %v1099 = vpack.c.b16 %v1073, %v1072
  %v1100 = vpack.c.b16 %v1075, %v1074
  %v1101 = vpack.c.b16 %v1077, %v1076
  %v1102 = vpack.c.b16 %v1079, %v1078
  %v1103 = vpack.c.b16 %v1081, %v1080
  %v1104 = vpack.c.b16 %v1083, %v1082
  %v1105 = vpack.c.b16 %v1085, %v1084
  %v1106 = vpack.c.b16 %v1087, %v1086
  %v1107 = vpack.c.b16 %v1089, %v1088
  %v1108 = vpack.c.b16 %v1091, %v1090
  %v1109 = vpack.c.b16 %v1093, %v1092
  %1126 = vmatprep.subr.bf16.mxu0 0
  %1127 = vmatpush1.bf16.msra.mxu0 %v1101
  %1128 = vmatprep.subr.bf16.mxu0 0
  %1129 = vmatpush1.bf16.msra.mxu0 %v1100
  %1130 = vmatprep.subr.bf16.mxu0 0
  %1131 = vmatpush1.bf16.msra.mxu0 %v1099
  %1132 = vmatprep.subr.bf16.mxu0 0
  %1133 = vmatpush1.bf16.msra.mxu0 %v1098
  %1134 = vmatprep.subr.bf16.mxu0 0
  %1135 = vmatpush1.bf16.msra.mxu0 %v1097
  %1136 = vmatprep.subr.bf16.mxu0 0
  %1137 = vmatpush1.bf16.msra.mxu0 %v1096
  %1138 = vmatprep.subr.bf16.mxu0 0
  %1139 = vmatpush1.bf16.msra.mxu0 %v1095
  %1140 = vmatprep.subr.bf16.mxu0 0
  %1141 = vmatpush1.bf16.msra.mxu0 %v1094
  %1142 = vmatprep.subr.bf16.mxu0 0
  %1143 = vmatpush2.bf16.msra.mxu0 %v1109
  %1144 = vmatprep.subr.bf16.mxu0 0
  %1145 = vmatpush2.bf16.msra.mxu0 %v1108
  %1146 = vmatprep.subr.bf16.mxu0 0
  %1147 = vmatpush2.bf16.msra.mxu0 %v1107
  %1148 = vmatprep.subr.bf16.mxu0 0
  %1149 = vmatpush2.bf16.msra.mxu0 %v1106
  %1150 = vmatprep.subr.bf16.mxu0 0
  %1151 = vmatpush2.bf16.msra.mxu0 %v1105
  %1152 = vmatprep.subr.bf16.mxu0 0
  %1153 = vmatpush2.bf16.msra.mxu0 %v1104
  %1154 = vmatprep.subr.bf16.mxu0 0
  %1155 = vmatpush2.bf16.msra.mxu0 %v1103
  %1156 = vmatprep.subr.bf16.mxu0 0
  %1157 = vmatpush2.bf16.msra.mxu0 %v1102
  %1158 = vmatprep.mubr.bf16.mxu0 %v1027
  %1159 = vmatmul.mubr.bf16.gmra.mxu0 %v1024
  %v1160 = vpop.f32.mrf.mxu0
  %v1161 = vadd.f32 0.0, %v1160
  %v1162 = vpop.f32.mrf.mxu0
  %v1163 = vpop.f32.mrf.mxu0
  %v1164 = vadd.f32 0.0, %v1163
  %v1165 = vpop.f32.mrf.mxu0
  %1166 = vdwg.mxu0
  %v1167 = vadd.f32 %v972, %v1161
  %v1168 = vadd.f32 %v975, %v1164
  %v1169 = vadd.f32 %v1167, %v593
  %v1170 = vadd.f32 %v1168, %v593
  %s1171 = scalar_lea.vmem %s3, 16
  %1172 = vst [vmem:[%s1171] sm:$0xff] %v1169
  %1173 = vst [vmem:[%s1171 + $0x8] sm:$0xff] %v1170
  // Predicated region
  $region14: #{_lambda_.54} parent=0 // pred_check
    _
  $region15: #{_lambda_.54} parent=0 // pred_check_branch
    %1175 = sbr.rel (0) target = $region17
  $region16: #{_lambda_.54} parent=0 // pred_region
    _
  $region17: #{_lambda_.54} parent=0 // pred_fallthru
    _
  // Predicated region
  $region18: #{_lambda_.54} parent=0 // pred_check
    _
  $region19: #{_lambda_.54} parent=0 // pred_check_branch
    %1177 = sbr.rel (0) target = $region21
  $region20: #{_lambda_.54} parent=0 // pred_region
    _
  $region21: #{_lambda_.54} parent=0 // pred_fallthru
    _

// kernel: _lambda_.55
$region0: #{_lambda_.55}
  #allocation0 [shape = 'u32[]', space=smem, size = 0x4, offset = 0x4, fixed_abs, tag = 'smem constant byte address 0x4 - core index']
  #allocation1 [shape = 'u32[144,128]{1,0:T(1,128)}', space=vmem, size = 0x12000, scoped, tag = 'internal scratch']
  %s0 = inlined_call_operand.vmem [shape: f32[512,8], index: 0, kind: input, shape index: {}]
  %s1 = inlined_call_operand.vmem [shape: bf16[8,8], index: 1, kind: input, shape index: {}]
  %s2 = inlined_call_operand.vmem [shape: f32[1,8], index: 2, kind: input, shape index: {}]
  %s3 = inlined_call_operand.vmem [shape: f32[512,8], index: 3, kind: input, shape index: {}]
  %s4 = inlined_call_operand.vmem [shape: f32[512,8], index: 4, kind: input, shape index: {}]
  %s5 = inlined_call_operand.vmem [shape: f32[512,8], index: 5, kind: output, shape index: {}]
  %s6 = sld [smem:[#allocation0]]
  $region30: #{_lambda_.55} parent=0
    _
  %s8 = ssub.s32 1, %s6
  %s9 = scalar_select 0, %s8, %s6
  // Predicated region
  $region2: #{_lambda_.55} parent=0 // pred_check
    _
  $region3: #{_lambda_.55} parent=0 // pred_check_branch
    %11 = sbr.rel (0) target = $region5
  $region4: #{_lambda_.55} parent=0 // pred_region
    _
  $region5: #{_lambda_.55} parent=0 // pred_fallthru
    _
  // Predicated region
  $region6: #{_lambda_.55} parent=0 // pred_check
    _
  $region7: #{_lambda_.55} parent=0 // pred_check_branch
    %13 = sbr.rel (0) target = $region9
  $region8: #{_lambda_.55} parent=0 // pred_region
    _
  $region9: #{_lambda_.55} parent=0 // pred_fallthru
    _
  // Predicated region
  $region10: #{_lambda_.55} parent=0 // pred_check
    _
  $region11: #{_lambda_.55} parent=0 // pred_check_branch
    %15 = sbr.rel (0) target = $region13
  $region12: #{_lambda_.55} parent=0 // pred_region
    _
  $region13: #{_lambda_.55} parent=0 // pred_fallthru
    _
  // Predicated region
  $region14: #{_lambda_.55} parent=0 // pred_check
    _
  $region15: #{_lambda_.55} parent=0 // pred_check_branch
    %17 = sbr.rel (0) target = $region17
  $region16: #{_lambda_.55} parent=0 // pred_region
    _
  $region17: #{_lambda_.55} parent=0 // pred_fallthru
    _
  // Predicated region
  $region18: #{_lambda_.55} parent=0 // pred_check
    _
  $region19: #{_lambda_.55} parent=0 // pred_check_branch
    %19 = sbr.rel (0) target = $region21
  $region20: #{_lambda_.55} parent=0 // pred_region
    _
  $region21: #{_lambda_.55} parent=0 // pred_fallthru
    _
  %v21 = vld [vmem:[%s0] sm:$0xff]
  %v22 = vld [vmem:[%s0 + $0x8] sm:$0xff]
  %v23 = vld [vmem:[%s0 + $0x10] sm:$0xff]
  %v24 = vld [vmem:[%s0 + $0x18] sm:$0xff]
  %v25 = vld [vmem:[%s0 + $0x20] sm:$0xff]
  %v26 = vld [vmem:[%s0 + $0x28] sm:$0xff]
  %v27 = vld [vmem:[%s0 + $0x30] sm:$0xff]
  %v28 = vld [vmem:[%s0 + $0x38] sm:$0xff]
  %v29 = vld [vmem:[%s0 + $0x40] sm:$0xff]
  %v30 = vld [vmem:[%s0 + $0x48] sm:$0xff]
  %v31 = vld [vmem:[%s0 + $0x50] sm:$0xff]
  %v32 = vld [vmem:[%s0 + $0x58] sm:$0xff]
  %v33 = vld [vmem:[%s0 + $0x60] sm:$0xff]
  %v34 = vld [vmem:[%s0 + $0x68] sm:$0xff]
  %v35 = vld [vmem:[%s0 + $0x70] sm:$0xff]
  %v36 = vld [vmem:[%s0 + $0x78] sm:$0xff]
  %v37 = vld [vmem:[%s0 + $0x80] sm:$0xff]
  %v38 = vld [vmem:[%s0 + $0x88] sm:$0xff]
  %v39 = vld [vmem:[%s0 + $0x90] sm:$0xff]
  %v40 = vld [vmem:[%s0 + $0x98] sm:$0xff]
  %v41 = vld [vmem:[%s0 + $0xa0] sm:$0xff]
  %v42 = vld [vmem:[%s0 + $0xa8] sm:$0xff]
  %v43 = vld [vmem:[%s0 + $0xb0] sm:$0xff]
  %v44 = vld [vmem:[%s0 + $0xb8] sm:$0xff]
  %v45 = vld [vmem:[%s0 + $0xc0] sm:$0xff]
  %v46 = vld [vmem:[%s0 + $0xc8] sm:$0xff]
  %v47 = vld [vmem:[%s0 + $0xd0] sm:$0xff]
  %v48 = vld [vmem:[%s0 + $0xd8] sm:$0xff]
  %v49 = vld [vmem:[%s0 + $0xe0] sm:$0xff]
  %v50 = vld [vmem:[%s0 + $0xe8] sm:$0xff]
  %v51 = vld [vmem:[%s0 + $0xf0] sm:$0xff]
  %v52 = vld [vmem:[%s0 + $0xf8] sm:$0xff]
  %v53 = vld [vmem:[%s0 + $0x100] sm:$0xff]
  %v54 = vld [vmem:[%s0 + $0x108] sm:$0xff]
  %v55 = vld [vmem:[%s0 + $0x110] sm:$0xff]
  %v56 = vld [vmem:[%s0 + $0x118] sm:$0xff]
  %v57 = vld [vmem:[%s0 + $0x120] sm:$0xff]
  %v58 = vld [vmem:[%s0 + $0x128] sm:$0xff]
  %v59 = vld [vmem:[%s0 + $0x130] sm:$0xff]
  %v60 = vld [vmem:[%s0 + $0x138] sm:$0xff]
  %v61 = vld [vmem:[%s0 + $0x140] sm:$0xff]
  %v62 = vld [vmem:[%s0 + $0x148] sm:$0xff]
  %v63 = vld [vmem:[%s0 + $0x150] sm:$0xff]
  %v64 = vld [vmem:[%s0 + $0x158] sm:$0xff]
  %v65 = vld [vmem:[%s0 + $0x160] sm:$0xff]
  %v66 = vld [vmem:[%s0 + $0x168] sm:$0xff]
  %v67 = vld [vmem:[%s0 + $0x170] sm:$0xff]
  %v68 = vld [vmem:[%s0 + $0x178] sm:$0xff]
  %v69 = vld [vmem:[%s0 + $0x180] sm:$0xff]
  %v70 = vld [vmem:[%s0 + $0x188] sm:$0xff]
  %v71 = vld [vmem:[%s0 + $0x190] sm:$0xff]
  %v72 = vld [vmem:[%s0 + $0x198] sm:$0xff]
  %v73 = vld [vmem:[%s0 + $0x1a0] sm:$0xff]
  %v74 = vld [vmem:[%s0 + $0x1a8] sm:$0xff]
  %v75 = vld [vmem:[%s0 + $0x1b0] sm:$0xff]
  %v76 = vld [vmem:[%s0 + $0x1b8] sm:$0xff]
  %v77 = vld [vmem:[%s0 + $0x1c0] sm:$0xff]
  %v78 = vld [vmem:[%s0 + $0x1c8] sm:$0xff]
  %v79 = vld [vmem:[%s0 + $0x1d0] sm:$0xff]
  %v80 = vld [vmem:[%s0 + $0x1d8] sm:$0xff]
  %v81 = vld [vmem:[%s0 + $0x1e0] sm:$0xff]
  %v82 = vld [vmem:[%s0 + $0x1e8] sm:$0xff]
  %v83 = vld [vmem:[%s0 + $0x1f0] sm:$0xff]
  %v84 = vld [vmem:[%s0 + $0x1f8] sm:$0xff]
  %v85 = vpack.c.bf16 %v22, %v21
  %v86 = vpack.c.bf16 %v24, %v23
  %v87 = vpack.c.bf16 %v26, %v25
  %v88 = vpack.c.bf16 %v28, %v27
  %v89 = vpack.c.bf16 %v30, %v29
  %v90 = vpack.c.bf16 %v32, %v31
  %v91 = vpack.c.bf16 %v34, %v33
  %v92 = vpack.c.bf16 %v36, %v35
  %v93 = vpack.c.bf16 %v38, %v37
  %v94 = vpack.c.bf16 %v40, %v39
  %v95 = vpack.c.bf16 %v42, %v41
  %v96 = vpack.c.bf16 %v44, %v43
  %v97 = vpack.c.bf16 %v46, %v45
  %v98 = vpack.c.bf16 %v48, %v47
  %v99 = vpack.c.bf16 %v50, %v49
  %v100 = vpack.c.bf16 %v52, %v51
  %v101 = vpack.c.bf16 %v54, %v53
  %v102 = vpack.c.bf16 %v56, %v55
  %v103 = vpack.c.bf16 %v58, %v57
  %v104 = vpack.c.bf16 %v60, %v59
  %v105 = vpack.c.bf16 %v62, %v61
  %v106 = vpack.c.bf16 %v64, %v63
  %v107 = vpack.c.bf16 %v66, %v65
  %v108 = vpack.c.bf16 %v68, %v67
  %v109 = vpack.c.bf16 %v70, %v69
  %v110 = vpack.c.bf16 %v72, %v71
  %v111 = vpack.c.bf16 %v74, %v73
  %v112 = vpack.c.bf16 %v76, %v75
  %v113 = vpack.c.bf16 %v78, %v77
  %v114 = vpack.c.bf16 %v80, %v79
  %v115 = vpack.c.bf16 %v82, %v81
  %v116 = vpack.c.bf16 %v84, %v83
  %v117 = vld [vmem:[%s1] sm:$0xf]
  %v118 = vld [vmem:[%s2] sm:$0x1]
  %v120 = vlaneseq
  %v121 = vshrl.u32 %v120, 7
  %v122 = vsub.s32 0, %v121
  %v123 = vrot.slane %v118, %v122
  %vm125 = vcmask 64512
  %v127 = vsel %vm125, %v85, 0
  %v130 = vsel %vm125, %v86, 0
  %v133 = vsel %vm125, %v87, 0
  %v136 = vsel %vm125, %v88, 0
  %v139 = vsel %vm125, %v89, 0
  %v142 = vsel %vm125, %v90, 0
  %v145 = vsel %vm125, %v91, 0
  %v148 = vsel %vm125, %v92, 0
  %v151 = vsel %vm125, %v93, 0
  %v154 = vsel %vm125, %v94, 0
  %v157 = vsel %vm125, %v95, 0
  %v160 = vsel %vm125, %v96, 0
  %v163 = vsel %vm125, %v97, 0
  %v166 = vsel %vm125, %v98, 0
  %v169 = vsel %vm125, %v99, 0
  %v172 = vsel %vm125, %v100, 0
  %v175 = vsel %vm125, %v101, 0
  %v178 = vsel %vm125, %v102, 0
  %v181 = vsel %vm125, %v103, 0
  %v184 = vsel %vm125, %v104, 0
  %v187 = vsel %vm125, %v105, 0
  %v190 = vsel %vm125, %v106, 0
  %v193 = vsel %vm125, %v107, 0
  %v196 = vsel %vm125, %v108, 0
  %v199 = vsel %vm125, %v109, 0
  %v202 = vsel %vm125, %v110, 0
  %v205 = vsel %vm125, %v111, 0
  %v208 = vsel %vm125, %v112, 0
  %v211 = vsel %vm125, %v113, 0
  %v214 = vsel %vm125, %v114, 0
  %v217 = vsel %vm125, %v115, 0
  %v220 = vsel %vm125, %v116, 0
  %vm222 = vcmask 1043456
  %v224 = vsel %vm222, %v117, 0
  %226 = vmatprep.subr.bf16.mxu0 0
  %227 = vmatpush1.bf16.msra.mxu0 0
  %228 = vmatprep.subr.bf16.mxu0 0
  %229 = vmatpush1.bf16.msra.mxu0 0
  %230 = vmatprep.subr.bf16.mxu0 0
  %231 = vmatpush1.bf16.msra.mxu0 0
  %232 = vmatprep.subr.bf16.mxu0 0
  %233 = vmatpush1.bf16.msra.mxu0 0
  %234 = vmatprep.subr.bf16.mxu0 0
  %235 = vmatpush1.bf16.msra.mxu0 0
  %236 = vmatprep.subr.bf16.mxu0 0
  %237 = vmatpush1.bf16.msra.mxu0 0
  %238 = vmatprep.subr.bf16.mxu0 0
  %239 = vmatpush1.bf16.msra.mxu0 0
  %240 = vmatprep.subr.bf16.mxu0 0
  %241 = vmatpush1.bf16.msra.mxu0 %v224
  %242 = vmatprep.subr.bf16.mxu0 0
  %243 = vmatpush2.bf16.msra.mxu0 0
  %244 = vmatprep.subr.bf16.mxu0 0
  %245 = vmatpush2.bf16.msra.mxu0 0
  %246 = vmatprep.subr.bf16.mxu0 0
  %247 = vmatpush2.bf16.msra.mxu0 0
  %248 = vmatprep.subr.bf16.mxu0 0
  %249 = vmatpush2.bf16.msra.mxu0 0
  %250 = vmatprep.subr.bf16.mxu0 0
  %251 = vmatpush2.bf16.msra.mxu0 0
  %252 = vmatprep.subr.bf16.mxu0 0
  %253 = vmatpush2.bf16.msra.mxu0 0
  %254 = vmatprep.subr.bf16.mxu0 0
  %255 = vmatpush2.bf16.msra.mxu0 0
  %256 = vmatprep.subr.bf16.mxu0 0
  %257 = vmatpush2.bf16.msra.mxu0 0
  %258 = vmatprep.mubr.bf16.mxu0 0
  %259 = vmatmul.mubr.bf16.gmra.mxu0 %v127
  %v260 = vpop.f32.mrf.mxu0
  %v261 = vadd.f32 %v123, %v260
  %v262 = vpop.f32.mrf.mxu0
  %v263 = vpop.f32.mrf.mxu0
  %v264 = vadd.f32 %v123, %v263
  %v265 = vpop.f32.mrf.mxu0
  %266 = vmatprep.mubr.bf16.mxu0 0
  %267 = vmatmul.mubr.bf16.gmra.mxu0 %v130
  %v268 = vpop.f32.mrf.mxu0
  %v269 = vadd.f32 %v123, %v268
  %v270 = vpop.f32.mrf.mxu0
  %v271 = vpop.f32.mrf.mxu0
  %v272 = vadd.f32 %v123, %v271
  %v273 = vpop.f32.mrf.mxu0
  %274 = vmatprep.mubr.bf16.mxu0 0
  %275 = vmatmul.mubr.bf16.gmra.mxu0 %v133
  %v276 = vpop.f32.mrf.mxu0
  %v277 = vadd.f32 %v123, %v276
  %v278 = vpop.f32.mrf.mxu0
  %v279 = vpop.f32.mrf.mxu0
  %v280 = vadd.f32 %v123, %v279
  %v281 = vpop.f32.mrf.mxu0
  %282 = vmatprep.mubr.bf16.mxu0 0
  %283 = vmatmul.mubr.bf16.gmra.mxu0 %v136
  %v284 = vpop.f32.mrf.mxu0
  %v285 = vadd.f32 %v123, %v284
  %v286 = vpop.f32.mrf.mxu0
  %v287 = vpop.f32.mrf.mxu0
  %v288 = vadd.f32 %v123, %v287
  %v289 = vpop.f32.mrf.mxu0
  %290 = vmatprep.mubr.bf16.mxu0 0
  %291 = vmatmul.mubr.bf16.gmra.mxu0 %v139
  %v292 = vpop.f32.mrf.mxu0
  %v293 = vadd.f32 %v123, %v292
  %v294 = vpop.f32.mrf.mxu0
  %v295 = vpop.f32.mrf.mxu0
  %v296 = vadd.f32 %v123, %v295
  %v297 = vpop.f32.mrf.mxu0
  %298 = vmatprep.mubr.bf16.mxu0 0
  %299 = vmatmul.mubr.bf16.gmra.mxu0 %v142
  %v300 = vpop.f32.mrf.mxu0
  %v301 = vadd.f32 %v123, %v300
  %v302 = vpop.f32.mrf.mxu0
  %v303 = vpop.f32.mrf.mxu0
  %v304 = vadd.f32 %v123, %v303
  %v305 = vpop.f32.mrf.mxu0
  %306 = vmatprep.mubr.bf16.mxu0 0
  %307 = vmatmul.mubr.bf16.gmra.mxu0 %v145
  %v308 = vpop.f32.mrf.mxu0
  %v309 = vadd.f32 %v123, %v308
  %v310 = vpop.f32.mrf.mxu0
  %v311 = vpop.f32.mrf.mxu0
  %v312 = vadd.f32 %v123, %v311
  %v313 = vpop.f32.mrf.mxu0
  %314 = vmatprep.mubr.bf16.mxu0 0
  %315 = vmatmul.mubr.bf16.gmra.mxu0 %v148
  %v316 = vpop.f32.mrf.mxu0
  %v317 = vadd.f32 %v123, %v316
  %v318 = vpop.f32.mrf.mxu0
  %v319 = vpop.f32.mrf.mxu0
  %v320 = vadd.f32 %v123, %v319
  %v321 = vpop.f32.mrf.mxu0
  %322 = vmatprep.mubr.bf16.mxu0 0
  %323 = vmatmul.mubr.bf16.gmra.mxu0 %v151
  %v324 = vpop.f32.mrf.mxu0
  %v325 = vadd.f32 %v123, %v324
  %v326 = vpop.f32.mrf.mxu0
  %v327 = vpop.f32.mrf.mxu0
  %v328 = vadd.f32 %v123, %v327
  %v329 = vpop.f32.mrf.mxu0
  %330 = vmatprep.mubr.bf16.mxu0 0
  %331 = vmatmul.mubr.bf16.gmra.mxu0 %v154
  %v332 = vpop.f32.mrf.mxu0
  %v333 = vadd.f32 %v123, %v332
  %v334 = vpop.f32.mrf.mxu0
  %v335 = vpop.f32.mrf.mxu0
  %v336 = vadd.f32 %v123, %v335
  %v337 = vpop.f32.mrf.mxu0
  %338 = vmatprep.mubr.bf16.mxu0 0
  %339 = vmatmul.mubr.bf16.gmra.mxu0 %v157
  %v340 = vpop.f32.mrf.mxu0
  %v341 = vadd.f32 %v123, %v340
  %v342 = vpop.f32.mrf.mxu0
  %v343 = vpop.f32.mrf.mxu0
  %v344 = vadd.f32 %v123, %v343
  %v345 = vpop.f32.mrf.mxu0
  %346 = vmatprep.mubr.bf16.mxu0 0
  %347 = vmatmul.mubr.bf16.gmra.mxu0 %v160
  %v348 = vpop.f32.mrf.mxu0
  %v349 = vadd.f32 %v123, %v348
  %v350 = vpop.f32.mrf.mxu0
  %v351 = vpop.f32.mrf.mxu0
  %v352 = vadd.f32 %v123, %v351
  %v353 = vpop.f32.mrf.mxu0
  %354 = vmatprep.mubr.bf16.mxu0 0
  %355 = vmatmul.mubr.bf16.gmra.mxu0 %v163
  %v356 = vpop.f32.mrf.mxu0
  %v357 = vadd.f32 %v123, %v356
  %v358 = vpop.f32.mrf.mxu0
  %v359 = vpop.f32.mrf.mxu0
  %v360 = vadd.f32 %v123, %v359
  %v361 = vpop.f32.mrf.mxu0
  %362 = vmatprep.mubr.bf16.mxu0 0
  %363 = vmatmul.mubr.bf16.gmra.mxu0 %v166
  %v364 = vpop.f32.mrf.mxu0
  %v365 = vadd.f32 %v123, %v364
  %v366 = vpop.f32.mrf.mxu0
  %v367 = vpop.f32.mrf.mxu0
  %v368 = vadd.f32 %v123, %v367
  %v369 = vpop.f32.mrf.mxu0
  %370 = vmatprep.mubr.bf16.mxu0 0
  %371 = vmatmul.mubr.bf16.gmra.mxu0 %v169
  %v372 = vpop.f32.mrf.mxu0
  %v373 = vadd.f32 %v123, %v372
  %v374 = vpop.f32.mrf.mxu0
  %v375 = vpop.f32.mrf.mxu0
  %v376 = vadd.f32 %v123, %v375
  %v377 = vpop.f32.mrf.mxu0
  %378 = vmatprep.mubr.bf16.mxu0 0
  %379 = vmatmul.mubr.bf16.gmra.mxu0 %v172
  %v380 = vpop.f32.mrf.mxu0
  %v381 = vadd.f32 %v123, %v380
  %v382 = vpop.f32.mrf.mxu0
  %v383 = vpop.f32.mrf.mxu0
  %v384 = vadd.f32 %v123, %v383
  %v385 = vpop.f32.mrf.mxu0
  %386 = vmatprep.mubr.bf16.mxu0 0
  %387 = vmatmul.mubr.bf16.gmra.mxu0 %v175
  %v388 = vpop.f32.mrf.mxu0
  %v389 = vadd.f32 %v123, %v388
  %v390 = vpop.f32.mrf.mxu0
  %v391 = vpop.f32.mrf.mxu0
  %v392 = vadd.f32 %v123, %v391
  %v393 = vpop.f32.mrf.mxu0
  %394 = vmatprep.mubr.bf16.mxu0 0
  %395 = vmatmul.mubr.bf16.gmra.mxu0 %v178
  %v396 = vpop.f32.mrf.mxu0
  %v397 = vadd.f32 %v123, %v396
  %v398 = vpop.f32.mrf.mxu0
  %v399 = vpop.f32.mrf.mxu0
  %v400 = vadd.f32 %v123, %v399
  %v401 = vpop.f32.mrf.mxu0
  %402 = vmatprep.mubr.bf16.mxu0 0
  %403 = vmatmul.mubr.bf16.gmra.mxu0 %v181
  %v404 = vpop.f32.mrf.mxu0
  %v405 = vadd.f32 %v123, %v404
  %v406 = vpop.f32.mrf.mxu0
  %v407 = vpop.f32.mrf.mxu0
  %v408 = vadd.f32 %v123, %v407
  %v409 = vpop.f32.mrf.mxu0
  %410 = vmatprep.mubr.bf16.mxu0 0
  %411 = vmatmul.mubr.bf16.gmra.mxu0 %v184
  %v412 = vpop.f32.mrf.mxu0
  %v413 = vadd.f32 %v123, %v412
  %v414 = vpop.f32.mrf.mxu0
  %v415 = vpop.f32.mrf.mxu0
  %v416 = vadd.f32 %v123, %v415
  %v417 = vpop.f32.mrf.mxu0
  %418 = vmatprep.mubr.bf16.mxu0 0
  %419 = vmatmul.mubr.bf16.gmra.mxu0 %v187
  %v420 = vpop.f32.mrf.mxu0
  %v421 = vadd.f32 %v123, %v420
  %v422 = vpop.f32.mrf.mxu0
  %v423 = vpop.f32.mrf.mxu0
  %v424 = vadd.f32 %v123, %v423
  %v425 = vpop.f32.mrf.mxu0
  %426 = vmatprep.mubr.bf16.mxu0 0
  %427 = vmatmul.mubr.bf16.gmra.mxu0 %v190
  %v428 = vpop.f32.mrf.mxu0
  %v429 = vadd.f32 %v123, %v428
  %v430 = vpop.f32.mrf.mxu0
  %v431 = vpop.f32.mrf.mxu0
  %v432 = vadd.f32 %v123, %v431
  %v433 = vpop.f32.mrf.mxu0
  %434 = vmatprep.mubr.bf16.mxu0 0
  %435 = vmatmul.mubr.bf16.gmra.mxu0 %v193
  %v436 = vpop.f32.mrf.mxu0
  %v437 = vadd.f32 %v123, %v436
  %v438 = vpop.f32.mrf.mxu0
  %v439 = vpop.f32.mrf.mxu0
  %v440 = vadd.f32 %v123, %v439
  %v441 = vpop.f32.mrf.mxu0
  %442 = vmatprep.mubr.bf16.mxu0 0
  %443 = vmatmul.mubr.bf16.gmra.mxu0 %v196
  %v444 = vpop.f32.mrf.mxu0
  %v445 = vadd.f32 %v123, %v444
  %v446 = vpop.f32.mrf.mxu0
  %v447 = vpop.f32.mrf.mxu0
  %v448 = vadd.f32 %v123, %v447
  %v449 = vpop.f32.mrf.mxu0
  %450 = vmatprep.mubr.bf16.mxu0 0
  %451 = vmatmul.mubr.bf16.gmra.mxu0 %v199
  %v452 = vpop.f32.mrf.mxu0
  %v453 = vadd.f32 %v123, %v452
  %v454 = vpop.f32.mrf.mxu0
  %v455 = vpop.f32.mrf.mxu0
  %v456 = vadd.f32 %v123, %v455
  %v457 = vpop.f32.mrf.mxu0
  %458 = vmatprep.mubr.bf16.mxu0 0
  %459 = vmatmul.mubr.bf16.gmra.mxu0 %v202
  %v460 = vpop.f32.mrf.mxu0
  %v461 = vadd.f32 %v123, %v460
  %v462 = vpop.f32.mrf.mxu0
  %v463 = vpop.f32.mrf.mxu0
  %v464 = vadd.f32 %v123, %v463
  %v465 = vpop.f32.mrf.mxu0
  %466 = vmatprep.mubr.bf16.mxu0 0
  %467 = vmatmul.mubr.bf16.gmra.mxu0 %v205
  %v468 = vpop.f32.mrf.mxu0
  %v469 = vadd.f32 %v123, %v468
  %v470 = vpop.f32.mrf.mxu0
  %v471 = vpop.f32.mrf.mxu0
  %v472 = vadd.f32 %v123, %v471
  %v473 = vpop.f32.mrf.mxu0
  %474 = vmatprep.mubr.bf16.mxu0 0
  %475 = vmatmul.mubr.bf16.gmra.mxu0 %v208
  %v476 = vpop.f32.mrf.mxu0
  %v477 = vadd.f32 %v123, %v476
  %v478 = vpop.f32.mrf.mxu0
  %v479 = vpop.f32.mrf.mxu0
  %v480 = vadd.f32 %v123, %v479
  %v481 = vpop.f32.mrf.mxu0
  %482 = vmatprep.mubr.bf16.mxu0 0
  %483 = vmatmul.mubr.bf16.gmra.mxu0 %v211
  %v484 = vpop.f32.mrf.mxu0
  %v485 = vadd.f32 %v123, %v484
  %v486 = vpop.f32.mrf.mxu0
  %v487 = vpop.f32.mrf.mxu0
  %v488 = vadd.f32 %v123, %v487
  %v489 = vpop.f32.mrf.mxu0
  %490 = vmatprep.mubr.bf16.mxu0 0
  %491 = vmatmul.mubr.bf16.gmra.mxu0 %v214
  %v492 = vpop.f32.mrf.mxu0
  %v493 = vadd.f32 %v123, %v492
  %v494 = vpop.f32.mrf.mxu0
  %v495 = vpop.f32.mrf.mxu0
  %v496 = vadd.f32 %v123, %v495
  %v497 = vpop.f32.mrf.mxu0
  %498 = vmatprep.mubr.bf16.mxu0 0
  %499 = vmatmul.mubr.bf16.gmra.mxu0 %v217
  %v500 = vpop.f32.mrf.mxu0
  %v501 = vadd.f32 %v123, %v500
  %v502 = vpop.f32.mrf.mxu0
  %v503 = vpop.f32.mrf.mxu0
  %v504 = vadd.f32 %v123, %v503
  %v505 = vpop.f32.mrf.mxu0
  %506 = vmatprep.mubr.bf16.mxu0 0
  %507 = vmatmul.mubr.bf16.gmra.mxu0 %v220
  %v508 = vpop.f32.mrf.mxu0
  %v509 = vadd.f32 %v123, %v508
  %v510 = vpop.f32.mrf.mxu0
  %v511 = vpop.f32.mrf.mxu0
  %v512 = vadd.f32 %v123, %v511
  %v513 = vpop.f32.mrf.mxu0
  %514 = vdwg.mxu0
  %v515 = vld [vmem:[%s3] sm:$0xff]
  %v516 = vld [vmem:[%s3 + $0x8] sm:$0xff]
  %v517 = vld [vmem:[%s3 + $0x10] sm:$0xff]
  %v518 = vld [vmem:[%s3 + $0x18] sm:$0xff]
  %v519 = vld [vmem:[%s3 + $0x20] sm:$0xff]
  %v520 = vld [vmem:[%s3 + $0x28] sm:$0xff]
  %v521 = vld [vmem:[%s3 + $0x30] sm:$0xff]
  %v522 = vld [vmem:[%s3 + $0x38] sm:$0xff]
  %v523 = vld [vmem:[%s3 + $0x40] sm:$0xff]
  %v524 = vld [vmem:[%s3 + $0x48] sm:$0xff]
  %v525 = vld [vmem:[%s3 + $0x50] sm:$0xff]
  %v526 = vld [vmem:[%s3 + $0x58] sm:$0xff]
  %v527 = vld [vmem:[%s3 + $0x60] sm:$0xff]
  %v528 = vld [vmem:[%s3 + $0x68] sm:$0xff]
  %v529 = vld [vmem:[%s3 + $0x70] sm:$0xff]
  %v530 = vld [vmem:[%s3 + $0x78] sm:$0xff]
  %v531 = vld [vmem:[%s3 + $0x80] sm:$0xff]
  %v532 = vld [vmem:[%s3 + $0x88] sm:$0xff]
  %v533 = vld [vmem:[%s3 + $0x90] sm:$0xff]
  %v534 = vld [vmem:[%s3 + $0x98] sm:$0xff]
  %v535 = vld [vmem:[%s3 + $0xa0] sm:$0xff]
  %v536 = vld [vmem:[%s3 + $0xa8] sm:$0xff]
  %v537 = vld [vmem:[%s3 + $0xb0] sm:$0xff]
  %v538 = vld [vmem:[%s3 + $0xb8] sm:$0xff]
  %v539 = vld [vmem:[%s3 + $0xc0] sm:$0xff]
  %v540 = vld [vmem:[%s3 + $0xc8] sm:$0xff]
  %v541 = vld [vmem:[%s3 + $0xd0] sm:$0xff]
  %v542 = vld [vmem:[%s3 + $0xd8] sm:$0xff]
  %v543 = vld [vmem:[%s3 + $0xe0] sm:$0xff]
  %v544 = vld [vmem:[%s3 + $0xe8] sm:$0xff]
  %v545 = vld [vmem:[%s3 + $0xf0] sm:$0xff]
  %v546 = vld [vmem:[%s3 + $0xf8] sm:$0xff]
  %v547 = vld [vmem:[%s3 + $0x100] sm:$0xff]
  %v548 = vld [vmem:[%s3 + $0x108] sm:$0xff]
  %v549 = vld [vmem:[%s3 + $0x110] sm:$0xff]
  %v550 = vld [vmem:[%s3 + $0x118] sm:$0xff]
  %v551 = vld [vmem:[%s3 + $0x120] sm:$0xff]
  %v552 = vld [vmem:[%s3 + $0x128] sm:$0xff]
  %v553 = vld [vmem:[%s3 + $0x130] sm:$0xff]
  %v554 = vld [vmem:[%s3 + $0x138] sm:$0xff]
  %v555 = vld [vmem:[%s3 + $0x140] sm:$0xff]
  %v556 = vld [vmem:[%s3 + $0x148] sm:$0xff]
  %v557 = vld [vmem:[%s3 + $0x150] sm:$0xff]
  %v558 = vld [vmem:[%s3 + $0x158] sm:$0xff]
  %v559 = vld [vmem:[%s3 + $0x160] sm:$0xff]
  %v560 = vld [vmem:[%s3 + $0x168] sm:$0xff]
  %v561 = vld [vmem:[%s3 + $0x170] sm:$0xff]
  %v562 = vld [vmem:[%s3 + $0x178] sm:$0xff]
  %v563 = vld [vmem:[%s3 + $0x180] sm:$0xff]
  %v564 = vld [vmem:[%s3 + $0x188] sm:$0xff]
  %v565 = vld [vmem:[%s3 + $0x190] sm:$0xff]
  %v566 = vld [vmem:[%s3 + $0x198] sm:$0xff]
  %v567 = vld [vmem:[%s3 + $0x1a0] sm:$0xff]
  %v568 = vld [vmem:[%s3 + $0x1a8] sm:$0xff]
  %v569 = vld [vmem:[%s3 + $0x1b0] sm:$0xff]
  %v570 = vld [vmem:[%s3 + $0x1b8] sm:$0xff]
  %v571 = vld [vmem:[%s3 + $0x1c0] sm:$0xff]
  %v572 = vld [vmem:[%s3 + $0x1c8] sm:$0xff]
  %v573 = vld [vmem:[%s3 + $0x1d0] sm:$0xff]
  %v574 = vld [vmem:[%s3 + $0x1d8] sm:$0xff]
  %v575 = vld [vmem:[%s3 + $0x1e0] sm:$0xff]
  %v576 = vld [vmem:[%s3 + $0x1e8] sm:$0xff]
  %v577 = vld [vmem:[%s3 + $0x1f0] sm:$0xff]
  %v578 = vld [vmem:[%s3 + $0x1f8] sm:$0xff]
  %v579 = vadd.f32 %v261, %v515
  %v580 = vadd.f32 %v264, %v516
  %v581 = vadd.f32 %v269, %v517
  %v582 = vadd.f32 %v272, %v518
  %v583 = vadd.f32 %v277, %v519
  %v584 = vadd.f32 %v280, %v520
  %v585 = vadd.f32 %v285, %v521
  %v586 = vadd.f32 %v288, %v522
  %v587 = vadd.f32 %v293, %v523
  %v588 = vadd.f32 %v296, %v524
  %v589 = vadd.f32 %v301, %v525
  %v590 = vadd.f32 %v304, %v526
  %v591 = vadd.f32 %v309, %v527
  %v592 = vadd.f32 %v312, %v528
  %v593 = vadd.f32 %v317, %v529
  %v594 = vadd.f32 %v320, %v530
  %v595 = vadd.f32 %v325, %v531
  %v596 = vadd.f32 %v328, %v532
  %v597 = vadd.f32 %v333, %v533
  %v598 = vadd.f32 %v336, %v534
  %v599 = vadd.f32 %v341, %v535
  %v600 = vadd.f32 %v344, %v536
  %v601 = vadd.f32 %v349, %v537
  %v602 = vadd.f32 %v352, %v538
  %v603 = vadd.f32 %v357, %v539
  %v604 = vadd.f32 %v360, %v540
  %v605 = vadd.f32 %v365, %v541
  %v606 = vadd.f32 %v368, %v542
  %v607 = vadd.f32 %v373, %v543
  %v608 = vadd.f32 %v376, %v544
  %v609 = vadd.f32 %v381, %v545
  %v610 = vadd.f32 %v384, %v546
  %v611 = vadd.f32 %v389, %v547
  %v612 = vadd.f32 %v392, %v548
  %v613 = vadd.f32 %v397, %v549
  %v614 = vadd.f32 %v400, %v550
  %v615 = vadd.f32 %v405, %v551
  %v616 = vadd.f32 %v408, %v552
  %v617 = vadd.f32 %v413, %v553
  %v618 = vadd.f32 %v416, %v554
  %v619 = vadd.f32 %v421, %v555
  %v620 = vadd.f32 %v424, %v556
  %v621 = vadd.f32 %v429, %v557
  %v622 = vadd.f32 %v432, %v558
  %v623 = vadd.f32 %v437, %v559
  %v624 = vadd.f32 %v440, %v560
  %v625 = vadd.f32 %v445, %v561
  %v626 = vadd.f32 %v448, %v562
  %v627 = vadd.f32 %v453, %v563
  %v628 = vadd.f32 %v456, %v564
  %v629 = vadd.f32 %v461, %v565
  %v630 = vadd.f32 %v464, %v566
  %v631 = vadd.f32 %v469, %v567
  %v632 = vadd.f32 %v472, %v568
  %v633 = vadd.f32 %v477, %v569
  %v634 = vadd.f32 %v480, %v570
  %v635 = vadd.f32 %v485, %v571
  %v636 = vadd.f32 %v488, %v572
  %v637 = vadd.f32 %v493, %v573
  %v638 = vadd.f32 %v496, %v574
  %v639 = vadd.f32 %v501, %v575
  %v640 = vadd.f32 %v504, %v576
  %v641 = vadd.f32 %v509, %v577
  %v642 = vadd.f32 %v512, %v578
  %v643 = vld [vmem:[%s4] sm:$0xff]
  %v644 = vld [vmem:[%s4 + $0x8] sm:$0xff]
  %v645 = vld [vmem:[%s4 + $0x10] sm:$0xff]
  %v646 = vld [vmem:[%s4 + $0x18] sm:$0xff]
  %v647 = vld [vmem:[%s4 + $0x20] sm:$0xff]
  %v648 = vld [vmem:[%s4 + $0x28] sm:$0xff]
  %v649 = vld [vmem:[%s4 + $0x30] sm:$0xff]
  %v650 = vld [vmem:[%s4 + $0x38] sm:$0xff]
  %v651 = vld [vmem:[%s4 + $0x40] sm:$0xff]
  %v652 = vld [vmem:[%s4 + $0x48] sm:$0xff]
  %v653 = vld [vmem:[%s4 + $0x50] sm:$0xff]
  %v654 = vld [vmem:[%s4 + $0x58] sm:$0xff]
  %v655 = vld [vmem:[%s4 + $0x60] sm:$0xff]
  %v656 = vld [vmem:[%s4 + $0x68] sm:$0xff]
  %v657 = vld [vmem:[%s4 + $0x70] sm:$0xff]
  %v658 = vld [vmem:[%s4 + $0x78] sm:$0xff]
  %v659 = vld [vmem:[%s4 + $0x80] sm:$0xff]
  %v660 = vld [vmem:[%s4 + $0x88] sm:$0xff]
  %v661 = vld [vmem:[%s4 + $0x90] sm:$0xff]
  %v662 = vld [vmem:[%s4 + $0x98] sm:$0xff]
  %v663 = vld [vmem:[%s4 + $0xa0] sm:$0xff]
  %v664 = vld [vmem:[%s4 + $0xa8] sm:$0xff]
  %v665 = vld [vmem:[%s4 + $0xb0] sm:$0xff]
  %v666 = vld [vmem:[%s4 + $0xb8] sm:$0xff]
  %v667 = vld [vmem:[%s4 + $0xc0] sm:$0xff]
  %v668 = vld [vmem:[%s4 + $0xc8] sm:$0xff]
  %v669 = vld [vmem:[%s4 + $0xd0] sm:$0xff]
  %v670 = vld [vmem:[%s4 + $0xd8] sm:$0xff]
  %v671 = vld [vmem:[%s4 + $0xe0] sm:$0xff]
  %v672 = vld [vmem:[%s4 + $0xe8] sm:$0xff]
  %v673 = vld [vmem:[%s4 + $0xf0] sm:$0xff]
  %v674 = vld [vmem:[%s4 + $0xf8] sm:$0xff]
  %v675 = vld [vmem:[%s4 + $0x100] sm:$0xff]
  %v676 = vld [vmem:[%s4 + $0x108] sm:$0xff]
  %v677 = vld [vmem:[%s4 + $0x110] sm:$0xff]
  %v678 = vld [vmem:[%s4 + $0x118] sm:$0xff]
  %v679 = vld [vmem:[%s4 + $0x120] sm:$0xff]
  %v680 = vld [vmem:[%s4 + $0x128] sm:$0xff]
  %v681 = vld [vmem:[%s4 + $0x130] sm:$0xff]
  %v682 = vld [vmem:[%s4 + $0x138] sm:$0xff]
  %v683 = vld [vmem:[%s4 + $0x140] sm:$0xff]
  %v684 = vld [vmem:[%s4 + $0x148] sm:$0xff]
  %v685 = vld [vmem:[%s4 + $0x150] sm:$0xff]
  %v686 = vld [vmem:[%s4 + $0x158] sm:$0xff]
  %v687 = vld [vmem:[%s4 + $0x160] sm:$0xff]
  %v688 = vld [vmem:[%s4 + $0x168] sm:$0xff]
  %v689 = vld [vmem:[%s4 + $0x170] sm:$0xff]
  %v690 = vld [vmem:[%s4 + $0x178] sm:$0xff]
  %v691 = vld [vmem:[%s4 + $0x180] sm:$0xff]
  %v692 = vld [vmem:[%s4 + $0x188] sm:$0xff]
  %v693 = vld [vmem:[%s4 + $0x190] sm:$0xff]
  %v694 = vld [vmem:[%s4 + $0x198] sm:$0xff]
  %v695 = vld [vmem:[%s4 + $0x1a0] sm:$0xff]
  %v696 = vld [vmem:[%s4 + $0x1a8] sm:$0xff]
  %v697 = vld [vmem:[%s4 + $0x1b0] sm:$0xff]
  %v698 = vld [vmem:[%s4 + $0x1b8] sm:$0xff]
  %v699 = vld [vmem:[%s4 + $0x1c0] sm:$0xff]
  %v700 = vld [vmem:[%s4 + $0x1c8] sm:$0xff]
  %v701 = vld [vmem:[%s4 + $0x1d0] sm:$0xff]
  %v702 = vld [vmem:[%s4 + $0x1d8] sm:$0xff]
  %v703 = vld [vmem:[%s4 + $0x1e0] sm:$0xff]
  %v704 = vld [vmem:[%s4 + $0x1e8] sm:$0xff]
  %v705 = vld [vmem:[%s4 + $0x1f0] sm:$0xff]
  %v706 = vld [vmem:[%s4 + $0x1f8] sm:$0xff]
  %v707 = vadd.f32 %v579, %v643
  %v708 = vadd.f32 %v580, %v644
  %v709 = vadd.f32 %v581, %v645
  %v710 = vadd.f32 %v582, %v646
  %v711 = vadd.f32 %v583, %v647
  %v712 = vadd.f32 %v584, %v648
  %v713 = vadd.f32 %v585, %v649
  %v714 = vadd.f32 %v586, %v650
  %v715 = vadd.f32 %v587, %v651
  %v716 = vadd.f32 %v588, %v652
  %v717 = vadd.f32 %v589, %v653
  %v718 = vadd.f32 %v590, %v654
  %v719 = vadd.f32 %v591, %v655
  %v720 = vadd.f32 %v592, %v656
  %v721 = vadd.f32 %v593, %v657
  %v722 = vadd.f32 %v594, %v658
  %v723 = vadd.f32 %v595, %v659
  %v724 = vadd.f32 %v596, %v660
  %v725 = vadd.f32 %v597, %v661
  %v726 = vadd.f32 %v598, %v662
  %v727 = vadd.f32 %v599, %v663
  %v728 = vadd.f32 %v600, %v664
  %v729 = vadd.f32 %v601, %v665
  %v730 = vadd.f32 %v602, %v666
  %v731 = vadd.f32 %v603, %v667
  %v732 = vadd.f32 %v604, %v668
  %v733 = vadd.f32 %v605, %v669
  %v734 = vadd.f32 %v606, %v670
  %v735 = vadd.f32 %v607, %v671
  %v736 = vadd.f32 %v608, %v672
  %v737 = vadd.f32 %v609, %v673
  %v738 = vadd.f32 %v610, %v674
  %v739 = vadd.f32 %v611, %v675
  %v740 = vadd.f32 %v612, %v676
  %v741 = vadd.f32 %v613, %v677
  %v742 = vadd.f32 %v614, %v678
  %v743 = vadd.f32 %v615, %v679
  %v744 = vadd.f32 %v616, %v680
  %v745 = vadd.f32 %v617, %v681
  %v746 = vadd.f32 %v618, %v682
  %v747 = vadd.f32 %v619, %v683
  %v748 = vadd.f32 %v620, %v684
  %v749 = vadd.f32 %v621, %v685
  %v750 = vadd.f32 %v622, %v686
  %v751 = vadd.f32 %v623, %v687
  %v752 = vadd.f32 %v624, %v688
  %v753 = vadd.f32 %v625, %v689
  %v754 = vadd.f32 %v626, %v690
  %v755 = vadd.f32 %v627, %v691
  %v756 = vadd.f32 %v628, %v692
  %v757 = vadd.f32 %v629, %v693
  %v758 = vadd.f32 %v630, %v694
  %v759 = vadd.f32 %v631, %v695
  %v760 = vadd.f32 %v632, %v696
  %v761 = vadd.f32 %v633, %v697
  %v762 = vadd.f32 %v634, %v698
  %v763 = vadd.f32 %v635, %v699
  %v764 = vadd.f32 %v636, %v700
  %v765 = vadd.f32 %v637, %v701
  %v766 = vadd.f32 %v638, %v702
  %v767 = vadd.f32 %v639, %v703
  %v768 = vadd.f32 %v640, %v704
  %v769 = vadd.f32 %v641, %v705
  %v770 = vadd.f32 %v642, %v706
  %v771 = vmax.f32 %v707, 0.0
  %v772 = vmax.f32 %v708, 0.0
  %v773 = vmax.f32 %v709, 0.0
  %v774 = vmax.f32 %v710, 0.0
  %v775 = vmax.f32 %v711, 0.0
  %v776 = vmax.f32 %v712, 0.0
  %v777 = vmax.f32 %v713, 0.0
  %v778 = vmax.f32 %v714, 0.0
  %v779 = vmax.f32 %v715, 0.0
  %v780 = vmax.f32 %v716, 0.0
  %v781 = vmax.f32 %v717, 0.0
  %v782 = vmax.f32 %v718, 0.0
  %v783 = vmax.f32 %v719, 0.0
  %v784 = vmax.f32 %v720, 0.0
  %v785 = vmax.f32 %v721, 0.0
  %v786 = vmax.f32 %v722, 0.0
  %v787 = vmax.f32 %v723, 0.0
  %v788 = vmax.f32 %v724, 0.0
  %v789 = vmax.f32 %v725, 0.0
  %v790 = vmax.f32 %v726, 0.0
  %v791 = vmax.f32 %v727, 0.0
  %v792 = vmax.f32 %v728, 0.0
  %v793 = vmax.f32 %v729, 0.0
  %v794 = vmax.f32 %v730, 0.0
  %v795 = vmax.f32 %v731, 0.0
  %v796 = vmax.f32 %v732, 0.0
  %v797 = vmax.f32 %v733, 0.0
  %v798 = vmax.f32 %v734, 0.0
  %v799 = vmax.f32 %v735, 0.0
  %v800 = vmax.f32 %v736, 0.0
  %v801 = vmax.f32 %v737, 0.0
  %v802 = vmax.f32 %v738, 0.0
  %v803 = vmax.f32 %v739, 0.0
  %v804 = vmax.f32 %v740, 0.0
  %v805 = vmax.f32 %v741, 0.0
  %v806 = vmax.f32 %v742, 0.0
  %v807 = vmax.f32 %v743, 0.0
  %v808 = vmax.f32 %v744, 0.0
  %v809 = vmax.f32 %v745, 0.0
  %v810 = vmax.f32 %v746, 0.0
  %v811 = vmax.f32 %v747, 0.0
  %v812 = vmax.f32 %v748, 0.0
  %v813 = vmax.f32 %v749, 0.0
  %v814 = vmax.f32 %v750, 0.0
  %v815 = vmax.f32 %v751, 0.0
  %v816 = vmax.f32 %v752, 0.0
  %v817 = vmax.f32 %v753, 0.0
  %v818 = vmax.f32 %v754, 0.0
  %v819 = vmax.f32 %v755, 0.0
  %v820 = vmax.f32 %v756, 0.0
  %v821 = vmax.f32 %v757, 0.0
  %v822 = vmax.f32 %v758, 0.0
  %v823 = vmax.f32 %v759, 0.0
  %v824 = vmax.f32 %v760, 0.0
  %v825 = vmax.f32 %v761, 0.0
  %v826 = vmax.f32 %v762, 0.0
  %v827 = vmax.f32 %v763, 0.0
  %v828 = vmax.f32 %v764, 0.0
  %v829 = vmax.f32 %v765, 0.0
  %v830 = vmax.f32 %v766, 0.0
  %v831 = vmax.f32 %v767, 0.0
  %v832 = vmax.f32 %v768, 0.0
  %v833 = vmax.f32 %v769, 0.0
  %v834 = vmax.f32 %v770, 0.0
  %835 = vst.msk [vmem:[%s5] sm:$0xff] %vm125, %v771
  %836 = vst.msk [vmem:[%s5 + $0x8] sm:$0xff] %vm125, %v772
  %837 = vst.msk [vmem:[%s5 + $0x10] sm:$0xff] %vm125, %v773
  %838 = vst.msk [vmem:[%s5 + $0x18] sm:$0xff] %vm125, %v774
  %839 = vst.msk [vmem:[%s5 + $0x20] sm:$0xff] %vm125, %v775
  %840 = vst.msk [vmem:[%s5 + $0x28] sm:$0xff] %vm125, %v776
  %841 = vst.msk [vmem:[%s5 + $0x30] sm:$0xff] %vm125, %v777
  %842 = vst.msk [vmem:[%s5 + $0x38] sm:$0xff] %vm125, %v778
  %843 = vst.msk [vmem:[%s5 + $0x40] sm:$0xff] %vm125, %v779
  %844 = vst.msk [vmem:[%s5 + $0x48] sm:$0xff] %vm125, %v780
  %845 = vst.msk [vmem:[%s5 + $0x50] sm:$0xff] %vm125, %v781
  %846 = vst.msk [vmem:[%s5 + $0x58] sm:$0xff] %vm125, %v782
  %847 = vst.msk [vmem:[%s5 + $0x60] sm:$0xff] %vm125, %v783
  %848 = vst.msk [vmem:[%s5 + $0x68] sm:$0xff] %vm125, %v784
  %849 = vst.msk [vmem:[%s5 + $0x70] sm:$0xff] %vm125, %v785
  %850 = vst.msk [vmem:[%s5 + $0x78] sm:$0xff] %vm125, %v786
  %851 = vst.msk [vmem:[%s5 + $0x80] sm:$0xff] %vm125, %v787
  %852 = vst.msk [vmem:[%s5 + $0x88] sm:$0xff] %vm125, %v788
  %853 = vst.msk [vmem:[%s5 + $0x90] sm:$0xff] %vm125, %v789
  %854 = vst.msk [vmem:[%s5 + $0x98] sm:$0xff] %vm125, %v790
  %855 = vst.msk [vmem:[%s5 + $0xa0] sm:$0xff] %vm125, %v791
  %856 = vst.msk [vmem:[%s5 + $0xa8] sm:$0xff] %vm125, %v792
  %857 = vst.msk [vmem:[%s5 + $0xb0] sm:$0xff] %vm125, %v793
  %858 = vst.msk [vmem:[%s5 + $0xb8] sm:$0xff] %vm125, %v794
  %859 = vst.msk [vmem:[%s5 + $0xc0] sm:$0xff] %vm125, %v795
  %860 = vst.msk [vmem:[%s5 + $0xc8] sm:$0xff] %vm125, %v796
  %861 = vst.msk [vmem:[%s5 + $0xd0] sm:$0xff] %vm125, %v797
  %862 = vst.msk [vmem:[%s5 + $0xd8] sm:$0xff] %vm125, %v798
  %863 = vst.msk [vmem:[%s5 + $0xe0] sm:$0xff] %vm125, %v799
  %864 = vst.msk [vmem:[%s5 + $0xe8] sm:$0xff] %vm125, %v800
  %865 = vst.msk [vmem:[%s5 + $0xf0] sm:$0xff] %vm125, %v801
  %866 = vst.msk [vmem:[%s5 + $0xf8] sm:$0xff] %vm125, %v802
  %867 = vst.msk [vmem:[%s5 + $0x100] sm:$0xff] %vm125, %v803
  %868 = vst.msk [vmem:[%s5 + $0x108] sm:$0xff] %vm125, %v804
  %869 = vst.msk [vmem:[%s5 + $0x110] sm:$0xff] %vm125, %v805
  %870 = vst.msk [vmem:[%s5 + $0x118] sm:$0xff] %vm125, %v806
  %871 = vst.msk [vmem:[%s5 + $0x120] sm:$0xff] %vm125, %v807
  %872 = vst.msk [vmem:[%s5 + $0x128] sm:$0xff] %vm125, %v808
  %873 = vst.msk [vmem:[%s5 + $0x130] sm:$0xff] %vm125, %v809
  %874 = vst.msk [vmem:[%s5 + $0x138] sm:$0xff] %vm125, %v810
  %875 = vst.msk [vmem:[%s5 + $0x140] sm:$0xff] %vm125, %v811
  %876 = vst.msk [vmem:[%s5 + $0x148] sm:$0xff] %vm125, %v812
  %877 = vst.msk [vmem:[%s5 + $0x150] sm:$0xff] %vm125, %v813
  %878 = vst.msk [vmem:[%s5 + $0x158] sm:$0xff] %vm125, %v814
  %879 = vst.msk [vmem:[%s5 + $0x160] sm:$0xff] %vm125, %v815
  %880 = vst.msk [vmem:[%s5 + $0x168] sm:$0xff] %vm125, %v816
  %881 = vst.msk [vmem:[%s5 + $0x170] sm:$0xff] %vm125, %v817
  %882 = vst.msk [vmem:[%s5 + $0x178] sm:$0xff] %vm125, %v818
  %883 = vst.msk [vmem:[%s5 + $0x180] sm:$0xff] %vm125, %v819
  %884 = vst.msk [vmem:[%s5 + $0x188] sm:$0xff] %vm125, %v820
  %885 = vst.msk [vmem:[%s5 + $0x190] sm:$0xff] %vm125, %v821
  %886 = vst.msk [vmem:[%s5 + $0x198] sm:$0xff] %vm125, %v822
  %887 = vst.msk [vmem:[%s5 + $0x1a0] sm:$0xff] %vm125, %v823
  %888 = vst.msk [vmem:[%s5 + $0x1a8] sm:$0xff] %vm125, %v824
  %889 = vst.msk [vmem:[%s5 + $0x1b0] sm:$0xff] %vm125, %v825
  %890 = vst.msk [vmem:[%s5 + $0x1b8] sm:$0xff] %vm125, %v826
  %891 = vst.msk [vmem:[%s5 + $0x1c0] sm:$0xff] %vm125, %v827
  %892 = vst.msk [vmem:[%s5 + $0x1c8] sm:$0xff] %vm125, %v828
  %893 = vst.msk [vmem:[%s5 + $0x1d0] sm:$0xff] %vm125, %v829
  %894 = vst.msk [vmem:[%s5 + $0x1d8] sm:$0xff] %vm125, %v830
  %895 = vst.msk [vmem:[%s5 + $0x1e0] sm:$0xff] %vm125, %v831
  %896 = vst.msk [vmem:[%s5 + $0x1e8] sm:$0xff] %vm125, %v832
  %897 = vst.msk [vmem:[%s5 + $0x1f0] sm:$0xff] %vm125, %v833
  %898 = vst.msk [vmem:[%s5 + $0x1f8] sm:$0xff] %vm125, %v834
  // Predicated region
  $region22: #{_lambda_.55} parent=0 // pred_check
    _
  $region23: #{_lambda_.55} parent=0 // pred_check_branch
    %900 = sbr.rel (0) target = $region25
  $region24: #{_lambda_.55} parent=0 // pred_region
    _
  $region25: #{_lambda_.55} parent=0 // pred_fallthru
    _
  // Predicated region
  $region26: #{_lambda_.55} parent=0 // pred_check
    _
  $region27: #{_lambda_.55} parent=0 // pred_check_branch
    %902 = sbr.rel (0) target = $region29
  $region28: #{_lambda_.55} parent=0 // pred_region
    _
  $region29: #{_lambda_.55} parent=0 // pred_fallthru
    _

// kernel: _lambda_.77
$region0: #{_lambda_.77}
  #allocation0 [shape = 'u32[]', space=smem, size = 0x4, offset = 0x4, fixed_abs, tag = 'smem constant byte address 0x4 - core index']
  #allocation1 [shape = 'u32[144,128]{1,0:T(1,128)}', space=vmem, size = 0x12000, scoped, tag = 'internal scratch']
  #allocation2 [shape = 'f32[1,1]{1,0:T(1,128)S(1)}', space=vmem, size = 0x200, scoped, tag = 'scoped memory for _lambda_.77']
  %s0 = inlined_call_operand.vmem [shape: f32[512,8], index: 0, kind: input, shape index: {}]
  %s1 = inlined_call_operand.vmem [shape: bf16[8,8], index: 1, kind: input, shape index: {}]
  %s2 = inlined_call_operand.vmem [shape: f32[1,8], index: 2, kind: input, shape index: {}]
  %s3 = inlined_call_operand.vmem [shape: f32[512,8], index: 3, kind: input, shape index: {}]
  %s4 = inlined_call_operand.vmem [shape: f32[512,8], index: 4, kind: input, shape index: {}]
  %s5 = inlined_call_operand.vmem [shape: bf16[8,16], index: 5, kind: input, shape index: {}]
  %s6 = inlined_call_operand.vmem [shape: f32[1,16], index: 6, kind: input, shape index: {}]
  %s7 = inlined_call_operand.vmem [shape: f32[1,16], index: 7, kind: input, shape index: {}]
  %s8 = inlined_call_operand.<no memory space> [shape: f32[1,1], index: 8, kind: input, shape index: {}]
  %s9 = inlined_call_operand.vmem [shape: f32[512,1], index: 9, kind: output, shape index: {}]
  %s10 = sld [smem:[#allocation0]]
  $region46: #{_lambda_.77} parent=0
    _
  %s12 = ssub.s32 1, %s10
  %s13 = scalar_select 0, %s12, %s10
  %v14 = vstv %s8
  %15 = vst [vmem:[#allocation2] sm:$0x1] %v14
  // Predicated region
  $region2: #{_lambda_.77} parent=0 // pred_check
    _
  $region3: #{_lambda_.77} parent=0 // pred_check_branch
    %17 = sbr.rel (0) target = $region5
  $region4: #{_lambda_.77} parent=0 // pred_region
    _
  $region5: #{_lambda_.77} parent=0 // pred_fallthru
    _
  // Predicated region
  $region6: #{_lambda_.77} parent=0 // pred_check
    _
  $region7: #{_lambda_.77} parent=0 // pred_check_branch
    %19 = sbr.rel (0) target = $region9
  $region8: #{_lambda_.77} parent=0 // pred_region
    _
  $region9: #{_lambda_.77} parent=0 // pred_fallthru
    _
  // Predicated region
  $region10: #{_lambda_.77} parent=0 // pred_check
    _
  $region11: #{_lambda_.77} parent=0 // pred_check_branch
    %21 = sbr.rel (0) target = $region13
  $region12: #{_lambda_.77} parent=0 // pred_region
    _
  $region13: #{_lambda_.77} parent=0 // pred_fallthru
    _
  // Predicated region
  $region14: #{_lambda_.77} parent=0 // pred_check
    _
  $region15: #{_lambda_.77} parent=0 // pred_check_branch
    %23 = sbr.rel (0) target = $region17
  $region16: #{_lambda_.77} parent=0 // pred_region
    _
  $region17: #{_lambda_.77} parent=0 // pred_fallthru
    _
  // Predicated region
  $region18: #{_lambda_.77} parent=0 // pred_check
    _
  $region19: #{_lambda_.77} parent=0 // pred_check_branch
    %25 = sbr.rel (0) target = $region21
  $region20: #{_lambda_.77} parent=0 // pred_region
    _
  $region21: #{_lambda_.77} parent=0 // pred_fallthru
    _
  // Predicated region
  $region22: #{_lambda_.77} parent=0 // pred_check
    _
  $region23: #{_lambda_.77} parent=0 // pred_check_branch
    %27 = sbr.rel (0) target = $region25
  $region24: #{_lambda_.77} parent=0 // pred_region
    _
  $region25: #{_lambda_.77} parent=0 // pred_fallthru
    _
  // Predicated region
  $region26: #{_lambda_.77} parent=0 // pred_check
    _
  $region27: #{_lambda_.77} parent=0 // pred_check_branch
    %29 = sbr.rel (0) target = $region29
  $region28: #{_lambda_.77} parent=0 // pred_region
    _
  $region29: #{_lambda_.77} parent=0 // pred_fallthru
    _
  // Predicated region
  $region30: #{_lambda_.77} parent=0 // pred_check
    _
  $region31: #{_lambda_.77} parent=0 // pred_check_branch
    %31 = sbr.rel (0) target = $region33
  $region32: #{_lambda_.77} parent=0 // pred_region
    _
  $region33: #{_lambda_.77} parent=0 // pred_fallthru
    _
  // Predicated region
  $region34: #{_lambda_.77} parent=0 // pred_check
    _
  $region35: #{_lambda_.77} parent=0 // pred_check_branch
    %33 = sbr.rel (0) target = $region37
  $region36: #{_lambda_.77} parent=0 // pred_region
    _
  $region37: #{_lambda_.77} parent=0 // pred_fallthru
    _
  %v35 = vld [vmem:[%s0] sm:$0xff]
  %v36 = vld [vmem:[%s0 + $0x8] sm:$0xff]
  %v37 = vld [vmem:[%s0 + $0x10] sm:$0xff]
  %v38 = vld [vmem:[%s0 + $0x18] sm:$0xff]
  %v39 = vld [vmem:[%s0 + $0x20] sm:$0xff]
  %v40 = vld [vmem:[%s0 + $0x28] sm:$0xff]
  %v41 = vld [vmem:[%s0 + $0x30] sm:$0xff]
  %v42 = vld [vmem:[%s0 + $0x38] sm:$0xff]
  %v43 = vld [vmem:[%s0 + $0x40] sm:$0xff]
  %v44 = vld [vmem:[%s0 + $0x48] sm:$0xff]
  %v45 = vld [vmem:[%s0 + $0x50] sm:$0xff]
  %v46 = vld [vmem:[%s0 + $0x58] sm:$0xff]
  %v47 = vld [vmem:[%s0 + $0x60] sm:$0xff]
  %v48 = vld [vmem:[%s0 + $0x68] sm:$0xff]
  %v49 = vld [vmem:[%s0 + $0x70] sm:$0xff]
  %v50 = vld [vmem:[%s0 + $0x78] sm:$0xff]
  %v51 = vld [vmem:[%s0 + $0x80] sm:$0xff]
  %v52 = vld [vmem:[%s0 + $0x88] sm:$0xff]
  %v53 = vld [vmem:[%s0 + $0x90] sm:$0xff]
  %v54 = vld [vmem:[%s0 + $0x98] sm:$0xff]
  %v55 = vld [vmem:[%s0 + $0xa0] sm:$0xff]
  %v56 = vld [vmem:[%s0 + $0xa8] sm:$0xff]
  %v57 = vld [vmem:[%s0 + $0xb0] sm:$0xff]
  %v58 = vld [vmem:[%s0 + $0xb8] sm:$0xff]
  %v59 = vld [vmem:[%s0 + $0xc0] sm:$0xff]
  %v60 = vld [vmem:[%s0 + $0xc8] sm:$0xff]
  %v61 = vld [vmem:[%s0 + $0xd0] sm:$0xff]
  %v62 = vld [vmem:[%s0 + $0xd8] sm:$0xff]
  %v63 = vld [vmem:[%s0 + $0xe0] sm:$0xff]
  %v64 = vld [vmem:[%s0 + $0xe8] sm:$0xff]
  %v65 = vld [vmem:[%s0 + $0xf0] sm:$0xff]
  %v66 = vld [vmem:[%s0 + $0xf8] sm:$0xff]
  %v67 = vld [vmem:[%s0 + $0x100] sm:$0xff]
  %v68 = vld [vmem:[%s0 + $0x108] sm:$0xff]
  %v69 = vld [vmem:[%s0 + $0x110] sm:$0xff]
  %v70 = vld [vmem:[%s0 + $0x118] sm:$0xff]
  %v71 = vld [vmem:[%s0 + $0x120] sm:$0xff]
  %v72 = vld [vmem:[%s0 + $0x128] sm:$0xff]
  %v73 = vld [vmem:[%s0 + $0x130] sm:$0xff]
  %v74 = vld [vmem:[%s0 + $0x138] sm:$0xff]
  %v75 = vld [vmem:[%s0 + $0x140] sm:$0xff]
  %v76 = vld [vmem:[%s0 + $0x148] sm:$0xff]
  %v77 = vld [vmem:[%s0 + $0x150] sm:$0xff]
  %v78 = vld [vmem:[%s0 + $0x158] sm:$0xff]
  %v79 = vld [vmem:[%s0 + $0x160] sm:$0xff]
  %v80 = vld [vmem:[%s0 + $0x168] sm:$0xff]
  %v81 = vld [vmem:[%s0 + $0x170] sm:$0xff]
  %v82 = vld [vmem:[%s0 + $0x178] sm:$0xff]
  %v83 = vld [vmem:[%s0 + $0x180] sm:$0xff]
  %v84 = vld [vmem:[%s0 + $0x188] sm:$0xff]
  %v85 = vld [vmem:[%s0 + $0x190] sm:$0xff]
  %v86 = vld [vmem:[%s0 + $0x198] sm:$0xff]
  %v87 = vld [vmem:[%s0 + $0x1a0] sm:$0xff]
  %v88 = vld [vmem:[%s0 + $0x1a8] sm:$0xff]
  %v89 = vld [vmem:[%s0 + $0x1b0] sm:$0xff]
  %v90 = vld [vmem:[%s0 + $0x1b8] sm:$0xff]
  %v91 = vld [vmem:[%s0 + $0x1c0] sm:$0xff]
  %v92 = vld [vmem:[%s0 + $0x1c8] sm:$0xff]
  %v93 = vld [vmem:[%s0 + $0x1d0] sm:$0xff]
  %v94 = vld [vmem:[%s0 + $0x1d8] sm:$0xff]
  %v95 = vld [vmem:[%s0 + $0x1e0] sm:$0xff]
  %v96 = vld [vmem:[%s0 + $0x1e8] sm:$0xff]
  %v97 = vld [vmem:[%s0 + $0x1f0] sm:$0xff]
  %v98 = vld [vmem:[%s0 + $0x1f8] sm:$0xff]
  %v99 = vpack.c.bf16 %v36, %v35
  %v100 = vpack.c.bf16 %v38, %v37
  %v101 = vpack.c.bf16 %v40, %v39
  %v102 = vpack.c.bf16 %v42, %v41
  %v103 = vpack.c.bf16 %v44, %v43
  %v104 = vpack.c.bf16 %v46, %v45
  %v105 = vpack.c.bf16 %v48, %v47
  %v106 = vpack.c.bf16 %v50, %v49
  %v107 = vpack.c.bf16 %v52, %v51
  %v108 = vpack.c.bf16 %v54, %v53
  %v109 = vpack.c.bf16 %v56, %v55
  %v110 = vpack.c.bf16 %v58, %v57
  %v111 = vpack.c.bf16 %v60, %v59
  %v112 = vpack.c.bf16 %v62, %v61
  %v113 = vpack.c.bf16 %v64, %v63
  %v114 = vpack.c.bf16 %v66, %v65
  %v115 = vpack.c.bf16 %v68, %v67
  %v116 = vpack.c.bf16 %v70, %v69
  %v117 = vpack.c.bf16 %v72, %v71
  %v118 = vpack.c.bf16 %v74, %v73
  %v119 = vpack.c.bf16 %v76, %v75
  %v120 = vpack.c.bf16 %v78, %v77
  %v121 = vpack.c.bf16 %v80, %v79
  %v122 = vpack.c.bf16 %v82, %v81
  %v123 = vpack.c.bf16 %v84, %v83
  %v124 = vpack.c.bf16 %v86, %v85
  %v125 = vpack.c.bf16 %v88, %v87
  %v126 = vpack.c.bf16 %v90, %v89
  %v127 = vpack.c.bf16 %v92, %v91
  %v128 = vpack.c.bf16 %v94, %v93
  %v129 = vpack.c.bf16 %v96, %v95
  %v130 = vpack.c.bf16 %v98, %v97
  %v131 = vld [vmem:[%s1] sm:$0xf]
  %v132 = vld [vmem:[%s2] sm:$0x1]
  %v134 = vlaneseq
  %v135 = vshrl.u32 %v134, 7
  %v136 = vsub.s32 0, %v135
  %v137 = vrot.slane %v132, %v136
  %vm139 = vcmask 64512
  %v141 = vsel %vm139, %v99, 0
  %v144 = vsel %vm139, %v100, 0
  %v147 = vsel %vm139, %v101, 0
  %v150 = vsel %vm139, %v102, 0
  %v153 = vsel %vm139, %v103, 0
  %v156 = vsel %vm139, %v104, 0
  %v159 = vsel %vm139, %v105, 0
  %v162 = vsel %vm139, %v106, 0
  %v165 = vsel %vm139, %v107, 0
  %v168 = vsel %vm139, %v108, 0
  %v171 = vsel %vm139, %v109, 0
  %v174 = vsel %vm139, %v110, 0
  %v177 = vsel %vm139, %v111, 0
  %v180 = vsel %vm139, %v112, 0
  %v183 = vsel %vm139, %v113, 0
  %v186 = vsel %vm139, %v114, 0
  %v189 = vsel %vm139, %v115, 0
  %v192 = vsel %vm139, %v116, 0
  %v195 = vsel %vm139, %v117, 0
  %v198 = vsel %vm139, %v118, 0
  %v201 = vsel %vm139, %v119, 0
  %v204 = vsel %vm139, %v120, 0
  %v207 = vsel %vm139, %v121, 0
  %v210 = vsel %vm139, %v122, 0
  %v213 = vsel %vm139, %v123, 0
  %v216 = vsel %vm139, %v124, 0
  %v219 = vsel %vm139, %v125, 0
  %v222 = vsel %vm139, %v126, 0
  %v225 = vsel %vm139, %v127, 0
  %v228 = vsel %vm139, %v128, 0
  %v231 = vsel %vm139, %v129, 0
  %v234 = vsel %vm139, %v130, 0
  %vm236 = vcmask 1043456
  %v238 = vsel %vm236, %v131, 0
  %240 = vmatprep.subr.bf16.mxu0 0
  %241 = vmatpush1.bf16.msra.mxu0 0
  %242 = vmatprep.subr.bf16.mxu0 0
  %243 = vmatpush1.bf16.msra.mxu0 0
  %244 = vmatprep.subr.bf16.mxu0 0
  %245 = vmatpush1.bf16.msra.mxu0 0
  %246 = vmatprep.subr.bf16.mxu0 0
  %247 = vmatpush1.bf16.msra.mxu0 0
  %248 = vmatprep.subr.bf16.mxu0 0
  %249 = vmatpush1.bf16.msra.mxu0 0
  %250 = vmatprep.subr.bf16.mxu0 0
  %251 = vmatpush1.bf16.msra.mxu0 0
  %252 = vmatprep.subr.bf16.mxu0 0
  %253 = vmatpush1.bf16.msra.mxu0 0
  %254 = vmatprep.subr.bf16.mxu0 0
  %255 = vmatpush1.bf16.msra.mxu0 %v238
  %256 = vmatprep.subr.bf16.mxu0 0
  %257 = vmatpush2.bf16.msra.mxu0 0
  %258 = vmatprep.subr.bf16.mxu0 0
  %259 = vmatpush2.bf16.msra.mxu0 0
  %260 = vmatprep.subr.bf16.mxu0 0
  %261 = vmatpush2.bf16.msra.mxu0 0
  %262 = vmatprep.subr.bf16.mxu0 0
  %263 = vmatpush2.bf16.msra.mxu0 0
  %264 = vmatprep.subr.bf16.mxu0 0
  %265 = vmatpush2.bf16.msra.mxu0 0
  %266 = vmatprep.subr.bf16.mxu0 0
  %267 = vmatpush2.bf16.msra.mxu0 0
  %268 = vmatprep.subr.bf16.mxu0 0
  %269 = vmatpush2.bf16.msra.mxu0 0
  %270 = vmatprep.subr.bf16.mxu0 0
  %271 = vmatpush2.bf16.msra.mxu0 0
  %272 = vmatprep.mubr.bf16.mxu0 0
  %273 = vmatmul.mubr.bf16.gmra.mxu0 %v141
  %v274 = vpop.f32.mrf.mxu0
  %v275 = vadd.f32 %v137, %v274
  %v276 = vpop.f32.mrf.mxu0
  %v277 = vpop.f32.mrf.mxu0
  %v278 = vadd.f32 %v137, %v277
  %v279 = vpop.f32.mrf.mxu0
  %280 = vmatprep.mubr.bf16.mxu0 0
  %281 = vmatmul.mubr.bf16.gmra.mxu0 %v144
  %v282 = vpop.f32.mrf.mxu0
  %v283 = vadd.f32 %v137, %v282
  %v284 = vpop.f32.mrf.mxu0
  %v285 = vpop.f32.mrf.mxu0
  %v286 = vadd.f32 %v137, %v285
  %v287 = vpop.f32.mrf.mxu0
  %288 = vmatprep.mubr.bf16.mxu0 0
  %289 = vmatmul.mubr.bf16.gmra.mxu0 %v147
  %v290 = vpop.f32.mrf.mxu0
  %v291 = vadd.f32 %v137, %v290
  %v292 = vpop.f32.mrf.mxu0
  %v293 = vpop.f32.mrf.mxu0
  %v294 = vadd.f32 %v137, %v293
  %v295 = vpop.f32.mrf.mxu0
  %296 = vmatprep.mubr.bf16.mxu0 0
  %297 = vmatmul.mubr.bf16.gmra.mxu0 %v150
  %v298 = vpop.f32.mrf.mxu0
  %v299 = vadd.f32 %v137, %v298
  %v300 = vpop.f32.mrf.mxu0
  %v301 = vpop.f32.mrf.mxu0
  %v302 = vadd.f32 %v137, %v301
  %v303 = vpop.f32.mrf.mxu0
  %304 = vmatprep.mubr.bf16.mxu0 0
  %305 = vmatmul.mubr.bf16.gmra.mxu0 %v153
  %v306 = vpop.f32.mrf.mxu0
  %v307 = vadd.f32 %v137, %v306
  %v308 = vpop.f32.mrf.mxu0
  %v309 = vpop.f32.mrf.mxu0
  %v310 = vadd.f32 %v137, %v309
  %v311 = vpop.f32.mrf.mxu0
  %312 = vmatprep.mubr.bf16.mxu0 0
  %313 = vmatmul.mubr.bf16.gmra.mxu0 %v156
  %v314 = vpop.f32.mrf.mxu0
  %v315 = vadd.f32 %v137, %v314
  %v316 = vpop.f32.mrf.mxu0
  %v317 = vpop.f32.mrf.mxu0
  %v318 = vadd.f32 %v137, %v317
  %v319 = vpop.f32.mrf.mxu0
  %320 = vmatprep.mubr.bf16.mxu0 0
  %321 = vmatmul.mubr.bf16.gmra.mxu0 %v159
  %v322 = vpop.f32.mrf.mxu0
  %v323 = vadd.f32 %v137, %v322
  %v324 = vpop.f32.mrf.mxu0
  %v325 = vpop.f32.mrf.mxu0
  %v326 = vadd.f32 %v137, %v325
  %v327 = vpop.f32.mrf.mxu0
  %328 = vmatprep.mubr.bf16.mxu0 0
  %329 = vmatmul.mubr.bf16.gmra.mxu0 %v162
  %v330 = vpop.f32.mrf.mxu0
  %v331 = vadd.f32 %v137, %v330
  %v332 = vpop.f32.mrf.mxu0
  %v333 = vpop.f32.mrf.mxu0
  %v334 = vadd.f32 %v137, %v333
  %v335 = vpop.f32.mrf.mxu0
  %336 = vmatprep.mubr.bf16.mxu0 0
  %337 = vmatmul.mubr.bf16.gmra.mxu0 %v165
  %v338 = vpop.f32.mrf.mxu0
  %v339 = vadd.f32 %v137, %v338
  %v340 = vpop.f32.mrf.mxu0
  %v341 = vpop.f32.mrf.mxu0
  %v342 = vadd.f32 %v137, %v341
  %v343 = vpop.f32.mrf.mxu0
  %344 = vmatprep.mubr.bf16.mxu0 0
  %345 = vmatmul.mubr.bf16.gmra.mxu0 %v168
  %v346 = vpop.f32.mrf.mxu0
  %v347 = vadd.f32 %v137, %v346
  %v348 = vpop.f32.mrf.mxu0
  %v349 = vpop.f32.mrf.mxu0
  %v350 = vadd.f32 %v137, %v349
  %v351 = vpop.f32.mrf.mxu0
  %352 = vmatprep.mubr.bf16.mxu0 0
  %353 = vmatmul.mubr.bf16.gmra.mxu0 %v171
  %v354 = vpop.f32.mrf.mxu0
  %v355 = vadd.f32 %v137, %v354
  %v356 = vpop.f32.mrf.mxu0
  %v357 = vpop.f32.mrf.mxu0
  %v358 = vadd.f32 %v137, %v357
  %v359 = vpop.f32.mrf.mxu0
  %360 = vmatprep.mubr.bf16.mxu0 0
  %361 = vmatmul.mubr.bf16.gmra.mxu0 %v174
  %v362 = vpop.f32.mrf.mxu0
  %v363 = vadd.f32 %v137, %v362
  %v364 = vpop.f32.mrf.mxu0
  %v365 = vpop.f32.mrf.mxu0
  %v366 = vadd.f32 %v137, %v365
  %v367 = vpop.f32.mrf.mxu0
  %368 = vmatprep.mubr.bf16.mxu0 0
  %369 = vmatmul.mubr.bf16.gmra.mxu0 %v177
  %v370 = vpop.f32.mrf.mxu0
  %v371 = vadd.f32 %v137, %v370
  %v372 = vpop.f32.mrf.mxu0
  %v373 = vpop.f32.mrf.mxu0
  %v374 = vadd.f32 %v137, %v373
  %v375 = vpop.f32.mrf.mxu0
  %376 = vmatprep.mubr.bf16.mxu0 0
  %377 = vmatmul.mubr.bf16.gmra.mxu0 %v180
  %v378 = vpop.f32.mrf.mxu0
  %v379 = vadd.f32 %v137, %v378
  %v380 = vpop.f32.mrf.mxu0
  %v381 = vpop.f32.mrf.mxu0
  %v382 = vadd.f32 %v137, %v381
  %v383 = vpop.f32.mrf.mxu0
  %384 = vmatprep.mubr.bf16.mxu0 0
  %385 = vmatmul.mubr.bf16.gmra.mxu0 %v183
  %v386 = vpop.f32.mrf.mxu0
  %v387 = vadd.f32 %v137, %v386
  %v388 = vpop.f32.mrf.mxu0
  %v389 = vpop.f32.mrf.mxu0
  %v390 = vadd.f32 %v137, %v389
  %v391 = vpop.f32.mrf.mxu0
  %392 = vmatprep.mubr.bf16.mxu0 0
  %393 = vmatmul.mubr.bf16.gmra.mxu0 %v186
  %v394 = vpop.f32.mrf.mxu0
  %v395 = vadd.f32 %v137, %v394
  %v396 = vpop.f32.mrf.mxu0
  %v397 = vpop.f32.mrf.mxu0
  %v398 = vadd.f32 %v137, %v397
  %v399 = vpop.f32.mrf.mxu0
  %400 = vmatprep.mubr.bf16.mxu0 0
  %401 = vmatmul.mubr.bf16.gmra.mxu0 %v189
  %v402 = vpop.f32.mrf.mxu0
  %v403 = vadd.f32 %v137, %v402
  %v404 = vpop.f32.mrf.mxu0
  %v405 = vpop.f32.mrf.mxu0
  %v406 = vadd.f32 %v137, %v405
  %v407 = vpop.f32.mrf.mxu0
  %408 = vmatprep.mubr.bf16.mxu0 0
  %409 = vmatmul.mubr.bf16.gmra.mxu0 %v192
  %v410 = vpop.f32.mrf.mxu0
  %v411 = vadd.f32 %v137, %v410
  %v412 = vpop.f32.mrf.mxu0
  %v413 = vpop.f32.mrf.mxu0
  %v414 = vadd.f32 %v137, %v413
  %v415 = vpop.f32.mrf.mxu0
  %416 = vmatprep.mubr.bf16.mxu0 0
  %417 = vmatmul.mubr.bf16.gmra.mxu0 %v195
  %v418 = vpop.f32.mrf.mxu0
  %v419 = vadd.f32 %v137, %v418
  %v420 = vpop.f32.mrf.mxu0
  %v421 = vpop.f32.mrf.mxu0
  %v422 = vadd.f32 %v137, %v421
  %v423 = vpop.f32.mrf.mxu0
  %424 = vmatprep.mubr.bf16.mxu0 0
  %425 = vmatmul.mubr.bf16.gmra.mxu0 %v198
  %v426 = vpop.f32.mrf.mxu0
  %v427 = vadd.f32 %v137, %v426
  %v428 = vpop.f32.mrf.mxu0
  %v429 = vpop.f32.mrf.mxu0
  %v430 = vadd.f32 %v137, %v429
  %v431 = vpop.f32.mrf.mxu0
  %432 = vmatprep.mubr.bf16.mxu0 0
  %433 = vmatmul.mubr.bf16.gmra.mxu0 %v201
  %v434 = vpop.f32.mrf.mxu0
  %v435 = vadd.f32 %v137, %v434
  %v436 = vpop.f32.mrf.mxu0
  %v437 = vpop.f32.mrf.mxu0
  %v438 = vadd.f32 %v137, %v437
  %v439 = vpop.f32.mrf.mxu0
  %440 = vmatprep.mubr.bf16.mxu0 0
  %441 = vmatmul.mubr.bf16.gmra.mxu0 %v204
  %v442 = vpop.f32.mrf.mxu0
  %v443 = vadd.f32 %v137, %v442
  %v444 = vpop.f32.mrf.mxu0
  %v445 = vpop.f32.mrf.mxu0
  %v446 = vadd.f32 %v137, %v445
  %v447 = vpop.f32.mrf.mxu0
  %448 = vmatprep.mubr.bf16.mxu0 0
  %449 = vmatmul.mubr.bf16.gmra.mxu0 %v207
  %v450 = vpop.f32.mrf.mxu0
  %v451 = vadd.f32 %v137, %v450
  %v452 = vpop.f32.mrf.mxu0
  %v453 = vpop.f32.mrf.mxu0
  %v454 = vadd.f32 %v137, %v453
  %v455 = vpop.f32.mrf.mxu0
  %456 = vmatprep.mubr.bf16.mxu0 0
  %457 = vmatmul.mubr.bf16.gmra.mxu0 %v210
  %v458 = vpop.f32.mrf.mxu0
  %v459 = vadd.f32 %v137, %v458
  %v460 = vpop.f32.mrf.mxu0
  %v461 = vpop.f32.mrf.mxu0
  %v462 = vadd.f32 %v137, %v461
  %v463 = vpop.f32.mrf.mxu0
  %464 = vmatprep.mubr.bf16.mxu0 0
  %465 = vmatmul.mubr.bf16.gmra.mxu0 %v213
  %v466 = vpop.f32.mrf.mxu0
  %v467 = vadd.f32 %v137, %v466
  %v468 = vpop.f32.mrf.mxu0
  %v469 = vpop.f32.mrf.mxu0
  %v470 = vadd.f32 %v137, %v469
  %v471 = vpop.f32.mrf.mxu0
  %472 = vmatprep.mubr.bf16.mxu0 0
  %473 = vmatmul.mubr.bf16.gmra.mxu0 %v216
  %v474 = vpop.f32.mrf.mxu0
  %v475 = vadd.f32 %v137, %v474
  %v476 = vpop.f32.mrf.mxu0
  %v477 = vpop.f32.mrf.mxu0
  %v478 = vadd.f32 %v137, %v477
  %v479 = vpop.f32.mrf.mxu0
  %480 = vmatprep.mubr.bf16.mxu0 0
  %481 = vmatmul.mubr.bf16.gmra.mxu0 %v219
  %v482 = vpop.f32.mrf.mxu0
  %v483 = vadd.f32 %v137, %v482
  %v484 = vpop.f32.mrf.mxu0
  %v485 = vpop.f32.mrf.mxu0
  %v486 = vadd.f32 %v137, %v485
  %v487 = vpop.f32.mrf.mxu0
  %488 = vmatprep.mubr.bf16.mxu0 0
  %489 = vmatmul.mubr.bf16.gmra.mxu0 %v222
  %v490 = vpop.f32.mrf.mxu0
  %v491 = vadd.f32 %v137, %v490
  %v492 = vpop.f32.mrf.mxu0
  %v493 = vpop.f32.mrf.mxu0
  %v494 = vadd.f32 %v137, %v493
  %v495 = vpop.f32.mrf.mxu0
  %496 = vmatprep.mubr.bf16.mxu0 0
  %497 = vmatmul.mubr.bf16.gmra.mxu0 %v225
  %v498 = vpop.f32.mrf.mxu0
  %v499 = vadd.f32 %v137, %v498
  %v500 = vpop.f32.mrf.mxu0
  %v501 = vpop.f32.mrf.mxu0
  %v502 = vadd.f32 %v137, %v501
  %v503 = vpop.f32.mrf.mxu0
  %504 = vmatprep.mubr.bf16.mxu0 0
  %505 = vmatmul.mubr.bf16.gmra.mxu0 %v228
  %v506 = vpop.f32.mrf.mxu0
  %v507 = vadd.f32 %v137, %v506
  %v508 = vpop.f32.mrf.mxu0
  %v509 = vpop.f32.mrf.mxu0
  %v510 = vadd.f32 %v137, %v509
  %v511 = vpop.f32.mrf.mxu0
  %512 = vmatprep.mubr.bf16.mxu0 0
  %513 = vmatmul.mubr.bf16.gmra.mxu0 %v231
  %v514 = vpop.f32.mrf.mxu0
  %v515 = vadd.f32 %v137, %v514
  %v516 = vpop.f32.mrf.mxu0
  %v517 = vpop.f32.mrf.mxu0
  %v518 = vadd.f32 %v137, %v517
  %v519 = vpop.f32.mrf.mxu0
  %520 = vmatprep.mubr.bf16.mxu0 0
  %521 = vmatmul.mubr.bf16.gmra.mxu0 %v234
  %v522 = vpop.f32.mrf.mxu0
  %v523 = vadd.f32 %v137, %v522
  %v524 = vpop.f32.mrf.mxu0
  %v525 = vpop.f32.mrf.mxu0
  %v526 = vadd.f32 %v137, %v525
  %v527 = vpop.f32.mrf.mxu0
  %528 = vdwg.mxu0
  %v529 = vld [vmem:[%s3] sm:$0xff]
  %v530 = vld [vmem:[%s3 + $0x8] sm:$0xff]
  %v531 = vld [vmem:[%s3 + $0x10] sm:$0xff]
  %v532 = vld [vmem:[%s3 + $0x18] sm:$0xff]
  %v533 = vld [vmem:[%s3 + $0x20] sm:$0xff]
  %v534 = vld [vmem:[%s3 + $0x28] sm:$0xff]
  %v535 = vld [vmem:[%s3 + $0x30] sm:$0xff]
  %v536 = vld [vmem:[%s3 + $0x38] sm:$0xff]
  %v537 = vld [vmem:[%s3 + $0x40] sm:$0xff]
  %v538 = vld [vmem:[%s3 + $0x48] sm:$0xff]
  %v539 = vld [vmem:[%s3 + $0x50] sm:$0xff]
  %v540 = vld [vmem:[%s3 + $0x58] sm:$0xff]
  %v541 = vld [vmem:[%s3 + $0x60] sm:$0xff]
  %v542 = vld [vmem:[%s3 + $0x68] sm:$0xff]
  %v543 = vld [vmem:[%s3 + $0x70] sm:$0xff]
  %v544 = vld [vmem:[%s3 + $0x78] sm:$0xff]
  %v545 = vld [vmem:[%s3 + $0x80] sm:$0xff]
  %v546 = vld [vmem:[%s3 + $0x88] sm:$0xff]
  %v547 = vld [vmem:[%s3 + $0x90] sm:$0xff]
  %v548 = vld [vmem:[%s3 + $0x98] sm:$0xff]
  %v549 = vld [vmem:[%s3 + $0xa0] sm:$0xff]
  %v550 = vld [vmem:[%s3 + $0xa8] sm:$0xff]
  %v551 = vld [vmem:[%s3 + $0xb0] sm:$0xff]
  %v552 = vld [vmem:[%s3 + $0xb8] sm:$0xff]
  %v553 = vld [vmem:[%s3 + $0xc0] sm:$0xff]
  %v554 = vld [vmem:[%s3 + $0xc8] sm:$0xff]
  %v555 = vld [vmem:[%s3 + $0xd0] sm:$0xff]
  %v556 = vld [vmem:[%s3 + $0xd8] sm:$0xff]
  %v557 = vld [vmem:[%s3 + $0xe0] sm:$0xff]
  %v558 = vld [vmem:[%s3 + $0xe8] sm:$0xff]
  %v559 = vld [vmem:[%s3 + $0xf0] sm:$0xff]
  %v560 = vld [vmem:[%s3 + $0xf8] sm:$0xff]
  %v561 = vld [vmem:[%s3 + $0x100] sm:$0xff]
  %v562 = vld [vmem:[%s3 + $0x108] sm:$0xff]
  %v563 = vld [vmem:[%s3 + $0x110] sm:$0xff]
  %v564 = vld [vmem:[%s3 + $0x118] sm:$0xff]
  %v565 = vld [vmem:[%s3 + $0x120] sm:$0xff]
  %v566 = vld [vmem:[%s3 + $0x128] sm:$0xff]
  %v567 = vld [vmem:[%s3 + $0x130] sm:$0xff]
  %v568 = vld [vmem:[%s3 + $0x138] sm:$0xff]
  %v569 = vld [vmem:[%s3 + $0x140] sm:$0xff]
  %v570 = vld [vmem:[%s3 + $0x148] sm:$0xff]
  %v571 = vld [vmem:[%s3 + $0x150] sm:$0xff]
  %v572 = vld [vmem:[%s3 + $0x158] sm:$0xff]
  %v573 = vld [vmem:[%s3 + $0x160] sm:$0xff]
  %v574 = vld [vmem:[%s3 + $0x168] sm:$0xff]
  %v575 = vld [vmem:[%s3 + $0x170] sm:$0xff]
  %v576 = vld [vmem:[%s3 + $0x178] sm:$0xff]
  %v577 = vld [vmem:[%s3 + $0x180] sm:$0xff]
  %v578 = vld [vmem:[%s3 + $0x188] sm:$0xff]
  %v579 = vld [vmem:[%s3 + $0x190] sm:$0xff]
  %v580 = vld [vmem:[%s3 + $0x198] sm:$0xff]
  %v581 = vld [vmem:[%s3 + $0x1a0] sm:$0xff]
  %v582 = vld [vmem:[%s3 + $0x1a8] sm:$0xff]
  %v583 = vld [vmem:[%s3 + $0x1b0] sm:$0xff]
  %v584 = vld [vmem:[%s3 + $0x1b8] sm:$0xff]
  %v585 = vld [vmem:[%s3 + $0x1c0] sm:$0xff]
  %v586 = vld [vmem:[%s3 + $0x1c8] sm:$0xff]
  %v587 = vld [vmem:[%s3 + $0x1d0] sm:$0xff]
  %v588 = vld [vmem:[%s3 + $0x1d8] sm:$0xff]
  %v589 = vld [vmem:[%s3 + $0x1e0] sm:$0xff]
  %v590 = vld [vmem:[%s3 + $0x1e8] sm:$0xff]
  %v591 = vld [vmem:[%s3 + $0x1f0] sm:$0xff]
  %v592 = vld [vmem:[%s3 + $0x1f8] sm:$0xff]
  %v593 = vadd.f32 %v275, %v529
  %v594 = vadd.f32 %v278, %v530
  %v595 = vadd.f32 %v283, %v531
  %v596 = vadd.f32 %v286, %v532
  %v597 = vadd.f32 %v291, %v533
  %v598 = vadd.f32 %v294, %v534
  %v599 = vadd.f32 %v299, %v535
  %v600 = vadd.f32 %v302, %v536
  %v601 = vadd.f32 %v307, %v537
  %v602 = vadd.f32 %v310, %v538
  %v603 = vadd.f32 %v315, %v539
  %v604 = vadd.f32 %v318, %v540
  %v605 = vadd.f32 %v323, %v541
  %v606 = vadd.f32 %v326, %v542
  %v607 = vadd.f32 %v331, %v543
  %v608 = vadd.f32 %v334, %v544
  %v609 = vadd.f32 %v339, %v545
  %v610 = vadd.f32 %v342, %v546
  %v611 = vadd.f32 %v347, %v547
  %v612 = vadd.f32 %v350, %v548
  %v613 = vadd.f32 %v355, %v549
  %v614 = vadd.f32 %v358, %v550
  %v615 = vadd.f32 %v363, %v551
  %v616 = vadd.f32 %v366, %v552
  %v617 = vadd.f32 %v371, %v553
  %v618 = vadd.f32 %v374, %v554
  %v619 = vadd.f32 %v379, %v555
  %v620 = vadd.f32 %v382, %v556
  %v621 = vadd.f32 %v387, %v557
  %v622 = vadd.f32 %v390, %v558
  %v623 = vadd.f32 %v395, %v559
  %v624 = vadd.f32 %v398, %v560
  %v625 = vadd.f32 %v403, %v561
  %v626 = vadd.f32 %v406, %v562
  %v627 = vadd.f32 %v411, %v563
  %v628 = vadd.f32 %v414, %v564
  %v629 = vadd.f32 %v419, %v565
  %v630 = vadd.f32 %v422, %v566
  %v631 = vadd.f32 %v427, %v567
  %v632 = vadd.f32 %v430, %v568
  %v633 = vadd.f32 %v435, %v569
  %v634 = vadd.f32 %v438, %v570
  %v635 = vadd.f32 %v443, %v571
  %v636 = vadd.f32 %v446, %v572
  %v637 = vadd.f32 %v451, %v573
  %v638 = vadd.f32 %v454, %v574
  %v639 = vadd.f32 %v459, %v575
  %v640 = vadd.f32 %v462, %v576
  %v641 = vadd.f32 %v467, %v577
  %v642 = vadd.f32 %v470, %v578
  %v643 = vadd.f32 %v475, %v579
  %v644 = vadd.f32 %v478, %v580
  %v645 = vadd.f32 %v483, %v581
  %v646 = vadd.f32 %v486, %v582
  %v647 = vadd.f32 %v491, %v583
  %v648 = vadd.f32 %v494, %v584
  %v649 = vadd.f32 %v499, %v585
  %v650 = vadd.f32 %v502, %v586
  %v651 = vadd.f32 %v507, %v587
  %v652 = vadd.f32 %v510, %v588
  %v653 = vadd.f32 %v515, %v589
  %v654 = vadd.f32 %v518, %v590
  %v655 = vadd.f32 %v523, %v591
  %v656 = vadd.f32 %v526, %v592
  %v657 = vld [vmem:[%s4] sm:$0xff]
  %v658 = vld [vmem:[%s4 + $0x8] sm:$0xff]
  %v659 = vld [vmem:[%s4 + $0x10] sm:$0xff]
  %v660 = vld [vmem:[%s4 + $0x18] sm:$0xff]
  %v661 = vld [vmem:[%s4 + $0x20] sm:$0xff]
  %v662 = vld [vmem:[%s4 + $0x28] sm:$0xff]
  %v663 = vld [vmem:[%s4 + $0x30] sm:$0xff]
  %v664 = vld [vmem:[%s4 + $0x38] sm:$0xff]
  %v665 = vld [vmem:[%s4 + $0x40] sm:$0xff]
  %v666 = vld [vmem:[%s4 + $0x48] sm:$0xff]
  %v667 = vld [vmem:[%s4 + $0x50] sm:$0xff]
  %v668 = vld [vmem:[%s4 + $0x58] sm:$0xff]
  %v669 = vld [vmem:[%s4 + $0x60] sm:$0xff]
  %v670 = vld [vmem:[%s4 + $0x68] sm:$0xff]
  %v671 = vld [vmem:[%s4 + $0x70] sm:$0xff]
  %v672 = vld [vmem:[%s4 + $0x78] sm:$0xff]
  %v673 = vld [vmem:[%s4 + $0x80] sm:$0xff]
  %v674 = vld [vmem:[%s4 + $0x88] sm:$0xff]
  %v675 = vld [vmem:[%s4 + $0x90] sm:$0xff]
  %v676 = vld [vmem:[%s4 + $0x98] sm:$0xff]
  %v677 = vld [vmem:[%s4 + $0xa0] sm:$0xff]
  %v678 = vld [vmem:[%s4 + $0xa8] sm:$0xff]
  %v679 = vld [vmem:[%s4 + $0xb0] sm:$0xff]
  %v680 = vld [vmem:[%s4 + $0xb8] sm:$0xff]
  %v681 = vld [vmem:[%s4 + $0xc0] sm:$0xff]
  %v682 = vld [vmem:[%s4 + $0xc8] sm:$0xff]
  %v683 = vld [vmem:[%s4 + $0xd0] sm:$0xff]
  %v684 = vld [vmem:[%s4 + $0xd8] sm:$0xff]
  %v685 = vld [vmem:[%s4 + $0xe0] sm:$0xff]
  %v686 = vld [vmem:[%s4 + $0xe8] sm:$0xff]
  %v687 = vld [vmem:[%s4 + $0xf0] sm:$0xff]
  %v688 = vld [vmem:[%s4 + $0xf8] sm:$0xff]
  %v689 = vld [vmem:[%s4 + $0x100] sm:$0xff]
  %v690 = vld [vmem:[%s4 + $0x108] sm:$0xff]
  %v691 = vld [vmem:[%s4 + $0x110] sm:$0xff]
  %v692 = vld [vmem:[%s4 + $0x118] sm:$0xff]
  %v693 = vld [vmem:[%s4 + $0x120] sm:$0xff]
  %v694 = vld [vmem:[%s4 + $0x128] sm:$0xff]
  %v695 = vld [vmem:[%s4 + $0x130] sm:$0xff]
  %v696 = vld [vmem:[%s4 + $0x138] sm:$0xff]
  %v697 = vld [vmem:[%s4 + $0x140] sm:$0xff]
  %v698 = vld [vmem:[%s4 + $0x148] sm:$0xff]
  %v699 = vld [vmem:[%s4 + $0x150] sm:$0xff]
  %v700 = vld [vmem:[%s4 + $0x158] sm:$0xff]
  %v701 = vld [vmem:[%s4 + $0x160] sm:$0xff]
  %v702 = vld [vmem:[%s4 + $0x168] sm:$0xff]
  %v703 = vld [vmem:[%s4 + $0x170] sm:$0xff]
  %v704 = vld [vmem:[%s4 + $0x178] sm:$0xff]
  %v705 = vld [vmem:[%s4 + $0x180] sm:$0xff]
  %v706 = vld [vmem:[%s4 + $0x188] sm:$0xff]
  %v707 = vld [vmem:[%s4 + $0x190] sm:$0xff]
  %v708 = vld [vmem:[%s4 + $0x198] sm:$0xff]
  %v709 = vld [vmem:[%s4 + $0x1a0] sm:$0xff]
  %v710 = vld [vmem:[%s4 + $0x1a8] sm:$0xff]
  %v711 = vld [vmem:[%s4 + $0x1b0] sm:$0xff]
  %v712 = vld [vmem:[%s4 + $0x1b8] sm:$0xff]
  %v713 = vld [vmem:[%s4 + $0x1c0] sm:$0xff]
  %v714 = vld [vmem:[%s4 + $0x1c8] sm:$0xff]
  %v715 = vld [vmem:[%s4 + $0x1d0] sm:$0xff]
  %v716 = vld [vmem:[%s4 + $0x1d8] sm:$0xff]
  %v717 = vld [vmem:[%s4 + $0x1e0] sm:$0xff]
  %v718 = vld [vmem:[%s4 + $0x1e8] sm:$0xff]
  %v719 = vld [vmem:[%s4 + $0x1f0] sm:$0xff]
  %v720 = vld [vmem:[%s4 + $0x1f8] sm:$0xff]
  %v721 = vadd.f32 %v593, %v657
  %v722 = vadd.f32 %v594, %v658
  %v723 = vadd.f32 %v595, %v659
  %v724 = vadd.f32 %v596, %v660
  %v725 = vadd.f32 %v597, %v661
  %v726 = vadd.f32 %v598, %v662
  %v727 = vadd.f32 %v599, %v663
  %v728 = vadd.f32 %v600, %v664
  %v729 = vadd.f32 %v601, %v665
  %v730 = vadd.f32 %v602, %v666
  %v731 = vadd.f32 %v603, %v667
  %v732 = vadd.f32 %v604, %v668
  %v733 = vadd.f32 %v605, %v669
  %v734 = vadd.f32 %v606, %v670
  %v735 = vadd.f32 %v607, %v671
  %v736 = vadd.f32 %v608, %v672
  %v737 = vadd.f32 %v609, %v673
  %v738 = vadd.f32 %v610, %v674
  %v739 = vadd.f32 %v611, %v675
  %v740 = vadd.f32 %v612, %v676
  %v741 = vadd.f32 %v613, %v677
  %v742 = vadd.f32 %v614, %v678
  %v743 = vadd.f32 %v615, %v679
  %v744 = vadd.f32 %v616, %v680
  %v745 = vadd.f32 %v617, %v681
  %v746 = vadd.f32 %v618, %v682
  %v747 = vadd.f32 %v619, %v683
  %v748 = vadd.f32 %v620, %v684
  %v749 = vadd.f32 %v621, %v685
  %v750 = vadd.f32 %v622, %v686
  %v751 = vadd.f32 %v623, %v687
  %v752 = vadd.f32 %v624, %v688
  %v753 = vadd.f32 %v625, %v689
  %v754 = vadd.f32 %v626, %v690
  %v755 = vadd.f32 %v627, %v691
  %v756 = vadd.f32 %v628, %v692
  %v757 = vadd.f32 %v629, %v693
  %v758 = vadd.f32 %v630, %v694
  %v759 = vadd.f32 %v631, %v695
  %v760 = vadd.f32 %v632, %v696
  %v761 = vadd.f32 %v633, %v697
  %v762 = vadd.f32 %v634, %v698
  %v763 = vadd.f32 %v635, %v699
  %v764 = vadd.f32 %v636, %v700
  %v765 = vadd.f32 %v637, %v701
  %v766 = vadd.f32 %v638, %v702
  %v767 = vadd.f32 %v639, %v703
  %v768 = vadd.f32 %v640, %v704
  %v769 = vadd.f32 %v641, %v705
  %v770 = vadd.f32 %v642, %v706
  %v771 = vadd.f32 %v643, %v707
  %v772 = vadd.f32 %v644, %v708
  %v773 = vadd.f32 %v645, %v709
  %v774 = vadd.f32 %v646, %v710
  %v775 = vadd.f32 %v647, %v711
  %v776 = vadd.f32 %v648, %v712
  %v777 = vadd.f32 %v649, %v713
  %v778 = vadd.f32 %v650, %v714
  %v779 = vadd.f32 %v651, %v715
  %v780 = vadd.f32 %v652, %v716
  %v781 = vadd.f32 %v653, %v717
  %v782 = vadd.f32 %v654, %v718
  %v783 = vadd.f32 %v655, %v719
  %v784 = vadd.f32 %v656, %v720
  %v785 = vmax.f32 %v721, 0.0
  %v786 = vmax.f32 %v722, 0.0
  %v787 = vmax.f32 %v723, 0.0
  %v788 = vmax.f32 %v724, 0.0
  %v789 = vmax.f32 %v725, 0.0
  %v790 = vmax.f32 %v726, 0.0
  %v791 = vmax.f32 %v727, 0.0
  %v792 = vmax.f32 %v728, 0.0
  %v793 = vmax.f32 %v729, 0.0
  %v794 = vmax.f32 %v730, 0.0
  %v795 = vmax.f32 %v731, 0.0
  %v796 = vmax.f32 %v732, 0.0
  %v797 = vmax.f32 %v733, 0.0
  %v798 = vmax.f32 %v734, 0.0
  %v799 = vmax.f32 %v735, 0.0
  %v800 = vmax.f32 %v736, 0.0
  %v801 = vmax.f32 %v737, 0.0
  %v802 = vmax.f32 %v738, 0.0
  %v803 = vmax.f32 %v739, 0.0
  %v804 = vmax.f32 %v740, 0.0
  %v805 = vmax.f32 %v741, 0.0
  %v806 = vmax.f32 %v742, 0.0
  %v807 = vmax.f32 %v743, 0.0
  %v808 = vmax.f32 %v744, 0.0
  %v809 = vmax.f32 %v745, 0.0
  %v810 = vmax.f32 %v746, 0.0
  %v811 = vmax.f32 %v747, 0.0
  %v812 = vmax.f32 %v748, 0.0
  %v813 = vmax.f32 %v749, 0.0
  %v814 = vmax.f32 %v750, 0.0
  %v815 = vmax.f32 %v751, 0.0
  %v816 = vmax.f32 %v752, 0.0
  %v817 = vmax.f32 %v753, 0.0
  %v818 = vmax.f32 %v754, 0.0
  %v819 = vmax.f32 %v755, 0.0
  %v820 = vmax.f32 %v756, 0.0
  %v821 = vmax.f32 %v757, 0.0
  %v822 = vmax.f32 %v758, 0.0
  %v823 = vmax.f32 %v759, 0.0
  %v824 = vmax.f32 %v760, 0.0
  %v825 = vmax.f32 %v761, 0.0
  %v826 = vmax.f32 %v762, 0.0
  %v827 = vmax.f32 %v763, 0.0
  %v828 = vmax.f32 %v764, 0.0
  %v829 = vmax.f32 %v765, 0.0
  %v830 = vmax.f32 %v766, 0.0
  %v831 = vmax.f32 %v767, 0.0
  %v832 = vmax.f32 %v768, 0.0
  %v833 = vmax.f32 %v769, 0.0
  %v834 = vmax.f32 %v770, 0.0
  %v835 = vmax.f32 %v771, 0.0
  %v836 = vmax.f32 %v772, 0.0
  %v837 = vmax.f32 %v773, 0.0
  %v838 = vmax.f32 %v774, 0.0
  %v839 = vmax.f32 %v775, 0.0
  %v840 = vmax.f32 %v776, 0.0
  %v841 = vmax.f32 %v777, 0.0
  %v842 = vmax.f32 %v778, 0.0
  %v843 = vmax.f32 %v779, 0.0
  %v844 = vmax.f32 %v780, 0.0
  %v845 = vmax.f32 %v781, 0.0
  %v846 = vmax.f32 %v782, 0.0
  %v847 = vmax.f32 %v783, 0.0
  %v848 = vmax.f32 %v784, 0.0
  %v849 = vpack.c.bf16 %v786, %v785
  %v850 = vpack.c.bf16 %v788, %v787
  %v851 = vpack.c.bf16 %v790, %v789
  %v852 = vpack.c.bf16 %v792, %v791
  %v853 = vpack.c.bf16 %v794, %v793
  %v854 = vpack.c.bf16 %v796, %v795
  %v855 = vpack.c.bf16 %v798, %v797
  %v856 = vpack.c.bf16 %v800, %v799
  %v857 = vpack.c.bf16 %v802, %v801
  %v858 = vpack.c.bf16 %v804, %v803
  %v859 = vpack.c.bf16 %v806, %v805
  %v860 = vpack.c.bf16 %v808, %v807
  %v861 = vpack.c.bf16 %v810, %v809
  %v862 = vpack.c.bf16 %v812, %v811
  %v863 = vpack.c.bf16 %v814, %v813
  %v864 = vpack.c.bf16 %v816, %v815
  %v865 = vpack.c.bf16 %v818, %v817
  %v866 = vpack.c.bf16 %v820, %v819
  %v867 = vpack.c.bf16 %v822, %v821
  %v868 = vpack.c.bf16 %v824, %v823
  %v869 = vpack.c.bf16 %v826, %v825
  %v870 = vpack.c.bf16 %v828, %v827
  %v871 = vpack.c.bf16 %v830, %v829
  %v872 = vpack.c.bf16 %v832, %v831
  %v873 = vpack.c.bf16 %v834, %v833
  %v874 = vpack.c.bf16 %v836, %v835
  %v875 = vpack.c.bf16 %v838, %v837
  %v876 = vpack.c.bf16 %v840, %v839
  %v877 = vpack.c.bf16 %v842, %v841
  %v878 = vpack.c.bf16 %v844, %v843
  %v879 = vpack.c.bf16 %v846, %v845
  %v880 = vpack.c.bf16 %v848, %v847
  %v881 = vld [vmem:[%s5] sm:$0xf]
  %v882 = vld [vmem:[%s6] sm:$0x1]
  %v884 = vlaneseq
  %v885 = vshrl.u32 %v884, 7
  %v886 = vsub.s32 0, %v885
  %v887 = vrot.slane %v882, %v886
  %v890 = vsel %vm139, %v849, 0
  %v893 = vsel %vm139, %v850, 0
  %v896 = vsel %vm139, %v851, 0
  %v899 = vsel %vm139, %v852, 0
  %v902 = vsel %vm139, %v853, 0
  %v905 = vsel %vm139, %v854, 0
  %v908 = vsel %vm139, %v855, 0
  %v911 = vsel %vm139, %v856, 0
  %v914 = vsel %vm139, %v857, 0
  %v917 = vsel %vm139, %v858, 0
  %v920 = vsel %vm139, %v859, 0
  %v923 = vsel %vm139, %v860, 0
  %v926 = vsel %vm139, %v861, 0
  %v929 = vsel %vm139, %v862, 0
  %v932 = vsel %vm139, %v863, 0
  %v935 = vsel %vm139, %v864, 0
  %v938 = vsel %vm139, %v865, 0
  %v941 = vsel %vm139, %v866, 0
  %v944 = vsel %vm139, %v867, 0
  %v947 = vsel %vm139, %v868, 0
  %v950 = vsel %vm139, %v869, 0
  %v953 = vsel %vm139, %v870, 0
  %v956 = vsel %vm139, %v871, 0
  %v959 = vsel %vm139, %v872, 0
  %v962 = vsel %vm139, %v873, 0
  %v965 = vsel %vm139, %v874, 0
  %v968 = vsel %vm139, %v875, 0
  %v971 = vsel %vm139, %v876, 0
  %v974 = vsel %vm139, %v877, 0
  %v977 = vsel %vm139, %v878, 0
  %v980 = vsel %vm139, %v879, 0
  %v983 = vsel %vm139, %v880, 0
  %v986 = vsel %vm236, %v881, 0
  %988 = vmatprep.subr.bf16.mxu0 0
  %989 = vmatpush1.bf16.msra.mxu0 0
  %990 = vmatprep.subr.bf16.mxu0 0
  %991 = vmatpush1.bf16.msra.mxu0 0
  %992 = vmatprep.subr.bf16.mxu0 0
  %993 = vmatpush1.bf16.msra.mxu0 0
  %994 = vmatprep.subr.bf16.mxu0 0
  %995 = vmatpush1.bf16.msra.mxu0 0
  %996 = vmatprep.subr.bf16.mxu0 0
  %997 = vmatpush1.bf16.msra.mxu0 0
  %998 = vmatprep.subr.bf16.mxu0 0
  %999 = vmatpush1.bf16.msra.mxu0 0
  %1000 = vmatprep.subr.bf16.mxu0 0
  %1001 = vmatpush1.bf16.msra.mxu0 0
  %1002 = vmatprep.subr.bf16.mxu0 0
  %1003 = vmatpush1.bf16.msra.mxu0 %v986
  %1004 = vmatprep.subr.bf16.mxu0 0
  %1005 = vmatpush2.bf16.msra.mxu0 0
  %1006 = vmatprep.subr.bf16.mxu0 0
  %1007 = vmatpush2.bf16.msra.mxu0 0
  %1008 = vmatprep.subr.bf16.mxu0 0
  %1009 = vmatpush2.bf16.msra.mxu0 0
  %1010 = vmatprep.subr.bf16.mxu0 0
  %1011 = vmatpush2.bf16.msra.mxu0 0
  %1012 = vmatprep.subr.bf16.mxu0 0
  %1013 = vmatpush2.bf16.msra.mxu0 0
  %1014 = vmatprep.subr.bf16.mxu0 0
  %1015 = vmatpush2.bf16.msra.mxu0 0
  %1016 = vmatprep.subr.bf16.mxu0 0
  %1017 = vmatpush2.bf16.msra.mxu0 0
  %1018 = vmatprep.subr.bf16.mxu0 0
  %1019 = vmatpush2.bf16.msra.mxu0 0
  %1020 = vmatprep.mubr.bf16.mxu0 0
  %1021 = vmatmul.mubr.bf16.gmra.mxu0 %v890
  %v1022 = vpop.f32.mrf.mxu0
  %v1023 = vadd.f32 %v887, %v1022
  %v1024 = vpop.f32.mrf.mxu0
  %v1025 = vpop.f32.mrf.mxu0
  %v1026 = vadd.f32 %v887, %v1025
  %v1027 = vpop.f32.mrf.mxu0
  %1028 = vmatprep.mubr.bf16.mxu0 0
  %1029 = vmatmul.mubr.bf16.gmra.mxu0 %v893
  %v1030 = vpop.f32.mrf.mxu0
  %v1031 = vadd.f32 %v887, %v1030
  %v1032 = vpop.f32.mrf.mxu0
  %v1033 = vpop.f32.mrf.mxu0
  %v1034 = vadd.f32 %v887, %v1033
  %v1035 = vpop.f32.mrf.mxu0
  %1036 = vmatprep.mubr.bf16.mxu0 0
  %1037 = vmatmul.mubr.bf16.gmra.mxu0 %v896
  %v1038 = vpop.f32.mrf.mxu0
  %v1039 = vadd.f32 %v887, %v1038
  %v1040 = vpop.f32.mrf.mxu0
  %v1041 = vpop.f32.mrf.mxu0
  %v1042 = vadd.f32 %v887, %v1041
  %v1043 = vpop.f32.mrf.mxu0
  %1044 = vmatprep.mubr.bf16.mxu0 0
  %1045 = vmatmul.mubr.bf16.gmra.mxu0 %v899
  %v1046 = vpop.f32.mrf.mxu0
  %v1047 = vadd.f32 %v887, %v1046
  %v1048 = vpop.f32.mrf.mxu0
  %v1049 = vpop.f32.mrf.mxu0
  %v1050 = vadd.f32 %v887, %v1049
  %v1051 = vpop.f32.mrf.mxu0
  %1052 = vmatprep.mubr.bf16.mxu0 0
  %1053 = vmatmul.mubr.bf16.gmra.mxu0 %v902
  %v1054 = vpop.f32.mrf.mxu0
  %v1055 = vadd.f32 %v887, %v1054
  %v1056 = vpop.f32.mrf.mxu0
  %v1057 = vpop.f32.mrf.mxu0
  %v1058 = vadd.f32 %v887, %v1057
  %v1059 = vpop.f32.mrf.mxu0
  %1060 = vmatprep.mubr.bf16.mxu0 0
  %1061 = vmatmul.mubr.bf16.gmra.mxu0 %v905
  %v1062 = vpop.f32.mrf.mxu0
  %v1063 = vadd.f32 %v887, %v1062
  %v1064 = vpop.f32.mrf.mxu0
  %v1065 = vpop.f32.mrf.mxu0
  %v1066 = vadd.f32 %v887, %v1065
  %v1067 = vpop.f32.mrf.mxu0
  %1068 = vmatprep.mubr.bf16.mxu0 0
  %1069 = vmatmul.mubr.bf16.gmra.mxu0 %v908
  %v1070 = vpop.f32.mrf.mxu0
  %v1071 = vadd.f32 %v887, %v1070
  %v1072 = vpop.f32.mrf.mxu0
  %v1073 = vpop.f32.mrf.mxu0
  %v1074 = vadd.f32 %v887, %v1073
  %v1075 = vpop.f32.mrf.mxu0
  %1076 = vmatprep.mubr.bf16.mxu0 0
  %1077 = vmatmul.mubr.bf16.gmra.mxu0 %v911
  %v1078 = vpop.f32.mrf.mxu0
  %v1079 = vadd.f32 %v887, %v1078
  %v1080 = vpop.f32.mrf.mxu0
  %v1081 = vpop.f32.mrf.mxu0
  %v1082 = vadd.f32 %v887, %v1081
  %v1083 = vpop.f32.mrf.mxu0
  %1084 = vmatprep.mubr.bf16.mxu0 0
  %1085 = vmatmul.mubr.bf16.gmra.mxu0 %v914
  %v1086 = vpop.f32.mrf.mxu0
  %v1087 = vadd.f32 %v887, %v1086
  %v1088 = vpop.f32.mrf.mxu0
  %v1089 = vpop.f32.mrf.mxu0
  %v1090 = vadd.f32 %v887, %v1089
  %v1091 = vpop.f32.mrf.mxu0
  %1092 = vmatprep.mubr.bf16.mxu0 0
  %1093 = vmatmul.mubr.bf16.gmra.mxu0 %v917
  %v1094 = vpop.f32.mrf.mxu0
  %v1095 = vadd.f32 %v887, %v1094
  %v1096 = vpop.f32.mrf.mxu0
  %v1097 = vpop.f32.mrf.mxu0
  %v1098 = vadd.f32 %v887, %v1097
  %v1099 = vpop.f32.mrf.mxu0
  %1100 = vmatprep.mubr.bf16.mxu0 0
  %1101 = vmatmul.mubr.bf16.gmra.mxu0 %v920
  %v1102 = vpop.f32.mrf.mxu0
  %v1103 = vadd.f32 %v887, %v1102
  %v1104 = vpop.f32.mrf.mxu0
  %v1105 = vpop.f32.mrf.mxu0
  %v1106 = vadd.f32 %v887, %v1105
  %v1107 = vpop.f32.mrf.mxu0
  %1108 = vmatprep.mubr.bf16.mxu0 0
  %1109 = vmatmul.mubr.bf16.gmra.mxu0 %v923
  %v1110 = vpop.f32.mrf.mxu0
  %v1111 = vadd.f32 %v887, %v1110
  %v1112 = vpop.f32.mrf.mxu0
  %v1113 = vpop.f32.mrf.mxu0
  %v1114 = vadd.f32 %v887, %v1113
  %v1115 = vpop.f32.mrf.mxu0
  %1116 = vmatprep.mubr.bf16.mxu0 0
  %1117 = vmatmul.mubr.bf16.gmra.mxu0 %v926
  %v1118 = vpop.f32.mrf.mxu0
  %v1119 = vadd.f32 %v887, %v1118
  %v1120 = vpop.f32.mrf.mxu0
  %v1121 = vpop.f32.mrf.mxu0
  %v1122 = vadd.f32 %v887, %v1121
  %v1123 = vpop.f32.mrf.mxu0
  %1124 = vmatprep.mubr.bf16.mxu0 0
  %1125 = vmatmul.mubr.bf16.gmra.mxu0 %v929
  %v1126 = vpop.f32.mrf.mxu0
  %v1127 = vadd.f32 %v887, %v1126
  %v1128 = vpop.f32.mrf.mxu0
  %v1129 = vpop.f32.mrf.mxu0
  %v1130 = vadd.f32 %v887, %v1129
  %v1131 = vpop.f32.mrf.mxu0
  %1132 = vmatprep.mubr.bf16.mxu0 0
  %1133 = vmatmul.mubr.bf16.gmra.mxu0 %v932
  %v1134 = vpop.f32.mrf.mxu0
  %v1135 = vadd.f32 %v887, %v1134
  %v1136 = vpop.f32.mrf.mxu0
  %v1137 = vpop.f32.mrf.mxu0
  %v1138 = vadd.f32 %v887, %v1137
  %v1139 = vpop.f32.mrf.mxu0
  %1140 = vmatprep.mubr.bf16.mxu0 0
  %1141 = vmatmul.mubr.bf16.gmra.mxu0 %v935
  %v1142 = vpop.f32.mrf.mxu0
  %v1143 = vadd.f32 %v887, %v1142
  %v1144 = vpop.f32.mrf.mxu0
  %v1145 = vpop.f32.mrf.mxu0
  %v1146 = vadd.f32 %v887, %v1145
  %v1147 = vpop.f32.mrf.mxu0
  %1148 = vmatprep.mubr.bf16.mxu0 0
  %1149 = vmatmul.mubr.bf16.gmra.mxu0 %v938
  %v1150 = vpop.f32.mrf.mxu0
  %v1151 = vadd.f32 %v887, %v1150
  %v1152 = vpop.f32.mrf.mxu0
  %v1153 = vpop.f32.mrf.mxu0
  %v1154 = vadd.f32 %v887, %v1153
  %v1155 = vpop.f32.mrf.mxu0
  %1156 = vmatprep.mubr.bf16.mxu0 0
  %1157 = vmatmul.mubr.bf16.gmra.mxu0 %v941
  %v1158 = vpop.f32.mrf.mxu0
  %v1159 = vadd.f32 %v887, %v1158
  %v1160 = vpop.f32.mrf.mxu0
  %v1161 = vpop.f32.mrf.mxu0
  %v1162 = vadd.f32 %v887, %v1161
  %v1163 = vpop.f32.mrf.mxu0
  %1164 = vmatprep.mubr.bf16.mxu0 0
  %1165 = vmatmul.mubr.bf16.gmra.mxu0 %v944
  %v1166 = vpop.f32.mrf.mxu0
  %v1167 = vadd.f32 %v887, %v1166
  %v1168 = vpop.f32.mrf.mxu0
  %v1169 = vpop.f32.mrf.mxu0
  %v1170 = vadd.f32 %v887, %v1169
  %v1171 = vpop.f32.mrf.mxu0
  %1172 = vmatprep.mubr.bf16.mxu0 0
  %1173 = vmatmul.mubr.bf16.gmra.mxu0 %v947
  %v1174 = vpop.f32.mrf.mxu0
  %v1175 = vadd.f32 %v887, %v1174
  %v1176 = vpop.f32.mrf.mxu0
  %v1177 = vpop.f32.mrf.mxu0
  %v1178 = vadd.f32 %v887, %v1177
  %v1179 = vpop.f32.mrf.mxu0
  %1180 = vmatprep.mubr.bf16.mxu0 0
  %1181 = vmatmul.mubr.bf16.gmra.mxu0 %v950
  %v1182 = vpop.f32.mrf.mxu0
  %v1183 = vadd.f32 %v887, %v1182
  %v1184 = vpop.f32.mrf.mxu0
  %v1185 = vpop.f32.mrf.mxu0
  %v1186 = vadd.f32 %v887, %v1185
  %v1187 = vpop.f32.mrf.mxu0
  %1188 = vmatprep.mubr.bf16.mxu0 0
  %1189 = vmatmul.mubr.bf16.gmra.mxu0 %v953
  %v1190 = vpop.f32.mrf.mxu0
  %v1191 = vadd.f32 %v887, %v1190
  %v1192 = vpop.f32.mrf.mxu0
  %v1193 = vpop.f32.mrf.mxu0
  %v1194 = vadd.f32 %v887, %v1193
  %v1195 = vpop.f32.mrf.mxu0
  %1196 = vmatprep.mubr.bf16.mxu0 0
  %1197 = vmatmul.mubr.bf16.gmra.mxu0 %v956
  %v1198 = vpop.f32.mrf.mxu0
  %v1199 = vadd.f32 %v887, %v1198
  %v1200 = vpop.f32.mrf.mxu0
  %v1201 = vpop.f32.mrf.mxu0
  %v1202 = vadd.f32 %v887, %v1201
  %v1203 = vpop.f32.mrf.mxu0
  %1204 = vmatprep.mubr.bf16.mxu0 0
  %1205 = vmatmul.mubr.bf16.gmra.mxu0 %v959
  %v1206 = vpop.f32.mrf.mxu0
  %v1207 = vadd.f32 %v887, %v1206
  %v1208 = vpop.f32.mrf.mxu0
  %v1209 = vpop.f32.mrf.mxu0
  %v1210 = vadd.f32 %v887, %v1209
  %v1211 = vpop.f32.mrf.mxu0
  %1212 = vmatprep.mubr.bf16.mxu0 0
  %1213 = vmatmul.mubr.bf16.gmra.mxu0 %v962
  %v1214 = vpop.f32.mrf.mxu0
  %v1215 = vadd.f32 %v887, %v1214
  %v1216 = vpop.f32.mrf.mxu0
  %v1217 = vpop.f32.mrf.mxu0
  %v1218 = vadd.f32 %v887, %v1217
  %v1219 = vpop.f32.mrf.mxu0
  %1220 = vmatprep.mubr.bf16.mxu0 0
  %1221 = vmatmul.mubr.bf16.gmra.mxu0 %v965
  %v1222 = vpop.f32.mrf.mxu0
  %v1223 = vadd.f32 %v887, %v1222
  %v1224 = vpop.f32.mrf.mxu0
  %v1225 = vpop.f32.mrf.mxu0
  %v1226 = vadd.f32 %v887, %v1225
  %v1227 = vpop.f32.mrf.mxu0
  %1228 = vmatprep.mubr.bf16.mxu0 0
  %1229 = vmatmul.mubr.bf16.gmra.mxu0 %v968
  %v1230 = vpop.f32.mrf.mxu0
  %v1231 = vadd.f32 %v887, %v1230
  %v1232 = vpop.f32.mrf.mxu0
  %v1233 = vpop.f32.mrf.mxu0
  %v1234 = vadd.f32 %v887, %v1233
  %v1235 = vpop.f32.mrf.mxu0
  %1236 = vmatprep.mubr.bf16.mxu0 0
  %1237 = vmatmul.mubr.bf16.gmra.mxu0 %v971
  %v1238 = vpop.f32.mrf.mxu0
  %v1239 = vadd.f32 %v887, %v1238
  %v1240 = vpop.f32.mrf.mxu0
  %v1241 = vpop.f32.mrf.mxu0
  %v1242 = vadd.f32 %v887, %v1241
  %v1243 = vpop.f32.mrf.mxu0
  %1244 = vmatprep.mubr.bf16.mxu0 0
  %1245 = vmatmul.mubr.bf16.gmra.mxu0 %v974
  %v1246 = vpop.f32.mrf.mxu0
  %v1247 = vadd.f32 %v887, %v1246
  %v1248 = vpop.f32.mrf.mxu0
  %v1249 = vpop.f32.mrf.mxu0
  %v1250 = vadd.f32 %v887, %v1249
  %v1251 = vpop.f32.mrf.mxu0
  %1252 = vmatprep.mubr.bf16.mxu0 0
  %1253 = vmatmul.mubr.bf16.gmra.mxu0 %v977
  %v1254 = vpop.f32.mrf.mxu0
  %v1255 = vadd.f32 %v887, %v1254
  %v1256 = vpop.f32.mrf.mxu0
  %v1257 = vpop.f32.mrf.mxu0
  %v1258 = vadd.f32 %v887, %v1257
  %v1259 = vpop.f32.mrf.mxu0
  %1260 = vmatprep.mubr.bf16.mxu0 0
  %1261 = vmatmul.mubr.bf16.gmra.mxu0 %v980
  %v1262 = vpop.f32.mrf.mxu0
  %v1263 = vadd.f32 %v887, %v1262
  %v1264 = vpop.f32.mrf.mxu0
  %v1265 = vpop.f32.mrf.mxu0
  %v1266 = vadd.f32 %v887, %v1265
  %v1267 = vpop.f32.mrf.mxu0
  %1268 = vmatprep.mubr.bf16.mxu0 0
  %1269 = vmatmul.mubr.bf16.gmra.mxu0 %v983
  %v1270 = vpop.f32.mrf.mxu0
  %v1271 = vadd.f32 %v887, %v1270
  %v1272 = vpop.f32.mrf.mxu0
  %v1273 = vpop.f32.mrf.mxu0
  %v1274 = vadd.f32 %v887, %v1273
  %v1275 = vpop.f32.mrf.mxu0
  %1276 = vdwg.mxu0
  %v1277 = vmax.f32 %v1023, 0.0
  %v1278 = vmax.f32 %v1026, 0.0
  %v1279 = vmax.f32 %v1031, 0.0
  %v1280 = vmax.f32 %v1034, 0.0
  %v1281 = vmax.f32 %v1039, 0.0
  %v1282 = vmax.f32 %v1042, 0.0
  %v1283 = vmax.f32 %v1047, 0.0
  %v1284 = vmax.f32 %v1050, 0.0
  %v1285 = vmax.f32 %v1055, 0.0
  %v1286 = vmax.f32 %v1058, 0.0
  %v1287 = vmax.f32 %v1063, 0.0
  %v1288 = vmax.f32 %v1066, 0.0
  %v1289 = vmax.f32 %v1071, 0.0
  %v1290 = vmax.f32 %v1074, 0.0
  %v1291 = vmax.f32 %v1079, 0.0
  %v1292 = vmax.f32 %v1082, 0.0
  %v1293 = vmax.f32 %v1087, 0.0
  %v1294 = vmax.f32 %v1090, 0.0
  %v1295 = vmax.f32 %v1095, 0.0
  %v1296 = vmax.f32 %v1098, 0.0
  %v1297 = vmax.f32 %v1103, 0.0
  %v1298 = vmax.f32 %v1106, 0.0
  %v1299 = vmax.f32 %v1111, 0.0
  %v1300 = vmax.f32 %v1114, 0.0
  %v1301 = vmax.f32 %v1119, 0.0
  %v1302 = vmax.f32 %v1122, 0.0
  %v1303 = vmax.f32 %v1127, 0.0
  %v1304 = vmax.f32 %v1130, 0.0
  %v1305 = vmax.f32 %v1135, 0.0
  %v1306 = vmax.f32 %v1138, 0.0
  %v1307 = vmax.f32 %v1143, 0.0
  %v1308 = vmax.f32 %v1146, 0.0
  %v1309 = vmax.f32 %v1151, 0.0
  %v1310 = vmax.f32 %v1154, 0.0
  %v1311 = vmax.f32 %v1159, 0.0
  %v1312 = vmax.f32 %v1162, 0.0
  %v1313 = vmax.f32 %v1167, 0.0
  %v1314 = vmax.f32 %v1170, 0.0
  %v1315 = vmax.f32 %v1175, 0.0
  %v1316 = vmax.f32 %v1178, 0.0
  %v1317 = vmax.f32 %v1183, 0.0
  %v1318 = vmax.f32 %v1186, 0.0
  %v1319 = vmax.f32 %v1191, 0.0
  %v1320 = vmax.f32 %v1194, 0.0
  %v1321 = vmax.f32 %v1199, 0.0
  %v1322 = vmax.f32 %v1202, 0.0
  %v1323 = vmax.f32 %v1207, 0.0
  %v1324 = vmax.f32 %v1210, 0.0
  %v1325 = vmax.f32 %v1215, 0.0
  %v1326 = vmax.f32 %v1218, 0.0
  %v1327 = vmax.f32 %v1223, 0.0
  %v1328 = vmax.f32 %v1226, 0.0
  %v1329 = vmax.f32 %v1231, 0.0
  %v1330 = vmax.f32 %v1234, 0.0
  %v1331 = vmax.f32 %v1239, 0.0
  %v1332 = vmax.f32 %v1242, 0.0
  %v1333 = vmax.f32 %v1247, 0.0
  %v1334 = vmax.f32 %v1250, 0.0
  %v1335 = vmax.f32 %v1255, 0.0
  %v1336 = vmax.f32 %v1258, 0.0
  %v1337 = vmax.f32 %v1263, 0.0
  %v1338 = vmax.f32 %v1266, 0.0
  %v1339 = vmax.f32 %v1271, 0.0
  %v1340 = vmax.f32 %v1274, 0.0
  %v1341 = vld [vmem:[%s7] sm:$0x1]
  %v1343 = vlaneseq
  %v1344 = vshrl.u32 %v1343, 7
  %v1345 = vsub.s32 0, %v1344
  %v1346 = vrot.slane %v1341, %v1345
  %v1348 = vmul.f32 %v1277, %v1346
  %v1349 = vmul.f32 %v1278, %v1346
  %v1350 = vmul.f32 %v1279, %v1346
  %v1351 = vmul.f32 %v1280, %v1346
  %v1352 = vmul.f32 %v1281, %v1346
  %v1353 = vmul.f32 %v1282, %v1346
  %v1354 = vmul.f32 %v1283, %v1346
  %v1355 = vmul.f32 %v1284, %v1346
  %v1356 = vmul.f32 %v1285, %v1346
  %v1357 = vmul.f32 %v1286, %v1346
  %v1358 = vmul.f32 %v1287, %v1346
  %v1359 = vmul.f32 %v1288, %v1346
  %v1360 = vmul.f32 %v1289, %v1346
  %v1361 = vmul.f32 %v1290, %v1346
  %v1362 = vmul.f32 %v1291, %v1346
  %v1363 = vmul.f32 %v1292, %v1346
  %v1364 = vmul.f32 %v1293, %v1346
  %v1365 = vmul.f32 %v1294, %v1346
  %v1366 = vmul.f32 %v1295, %v1346
  %v1367 = vmul.f32 %v1296, %v1346
  %v1368 = vmul.f32 %v1297, %v1346
  %v1369 = vmul.f32 %v1298, %v1346
  %v1370 = vmul.f32 %v1299, %v1346
  %v1371 = vmul.f32 %v1300, %v1346
  %v1372 = vmul.f32 %v1301, %v1346
  %v1373 = vmul.f32 %v1302, %v1346
  %v1374 = vmul.f32 %v1303, %v1346
  %v1375 = vmul.f32 %v1304, %v1346
  %v1376 = vmul.f32 %v1305, %v1346
  %v1377 = vmul.f32 %v1306, %v1346
  %v1378 = vmul.f32 %v1307, %v1346
  %v1379 = vmul.f32 %v1308, %v1346
  %v1380 = vmul.f32 %v1309, %v1346
  %v1381 = vmul.f32 %v1310, %v1346
  %v1382 = vmul.f32 %v1311, %v1346
  %v1383 = vmul.f32 %v1312, %v1346
  %v1384 = vmul.f32 %v1313, %v1346
  %v1385 = vmul.f32 %v1314, %v1346
  %v1386 = vmul.f32 %v1315, %v1346
  %v1387 = vmul.f32 %v1316, %v1346
  %v1388 = vmul.f32 %v1317, %v1346
  %v1389 = vmul.f32 %v1318, %v1346
  %v1390 = vmul.f32 %v1319, %v1346
  %v1391 = vmul.f32 %v1320, %v1346
  %v1392 = vmul.f32 %v1321, %v1346
  %v1393 = vmul.f32 %v1322, %v1346
  %v1394 = vmul.f32 %v1323, %v1346
  %v1395 = vmul.f32 %v1324, %v1346
  %v1396 = vmul.f32 %v1325, %v1346
  %v1397 = vmul.f32 %v1326, %v1346
  %v1398 = vmul.f32 %v1327, %v1346
  %v1399 = vmul.f32 %v1328, %v1346
  %v1400 = vmul.f32 %v1329, %v1346
  %v1401 = vmul.f32 %v1330, %v1346
  %v1402 = vmul.f32 %v1331, %v1346
  %v1403 = vmul.f32 %v1332, %v1346
  %v1404 = vmul.f32 %v1333, %v1346
  %v1405 = vmul.f32 %v1334, %v1346
  %v1406 = vmul.f32 %v1335, %v1346
  %v1407 = vmul.f32 %v1336, %v1346
  %v1408 = vmul.f32 %v1337, %v1346
  %v1409 = vmul.f32 %v1338, %v1346
  %v1410 = vmul.f32 %v1339, %v1346
  %v1411 = vmul.f32 %v1340, %v1346
  %vm1412 = vcmask 130048
  %v1413 = vsel %vm1412, %v1348, 0.0
  %1414 = vadd.xlane.f32.xlu0 %v1413
  %v1415 = vpop.xlane.xlu0 %1414
  %v1416 = vsel %vm1412, %v1349, 0.0
  %1417 = vadd.xlane.f32.xlu0 %v1416
  %v1418 = vpop.xlane.xlu0 %1417
  %v1419 = vsel %vm1412, %v1350, 0.0
  %1420 = vadd.xlane.f32.xlu0 %v1419
  %v1421 = vpop.xlane.xlu0 %1420
  %v1422 = vsel %vm1412, %v1351, 0.0
  %1423 = vadd.xlane.f32.xlu0 %v1422
  %v1424 = vpop.xlane.xlu0 %1423
  %v1425 = vsel %vm1412, %v1352, 0.0
  %1426 = vadd.xlane.f32.xlu0 %v1425
  %v1427 = vpop.xlane.xlu0 %1426
  %v1428 = vsel %vm1412, %v1353, 0.0
  %1429 = vadd.xlane.f32.xlu0 %v1428
  %v1430 = vpop.xlane.xlu0 %1429
  %v1431 = vsel %vm1412, %v1354, 0.0
  %1432 = vadd.xlane.f32.xlu0 %v1431
  %v1433 = vpop.xlane.xlu0 %1432
  %v1434 = vsel %vm1412, %v1355, 0.0
  %1435 = vadd.xlane.f32.xlu0 %v1434
  %v1436 = vpop.xlane.xlu0 %1435
  %v1437 = vsel %vm1412, %v1356, 0.0
  %1438 = vadd.xlane.f32.xlu0 %v1437
  %v1439 = vpop.xlane.xlu0 %1438
  %v1440 = vsel %vm1412, %v1357, 0.0
  %1441 = vadd.xlane.f32.xlu0 %v1440
  %v1442 = vpop.xlane.xlu0 %1441
  %v1443 = vsel %vm1412, %v1358, 0.0
  %1444 = vadd.xlane.f32.xlu0 %v1443
  %v1445 = vpop.xlane.xlu0 %1444
  %v1446 = vsel %vm1412, %v1359, 0.0
  %1447 = vadd.xlane.f32.xlu0 %v1446
  %v1448 = vpop.xlane.xlu0 %1447
  %v1449 = vsel %vm1412, %v1360, 0.0
  %1450 = vadd.xlane.f32.xlu0 %v1449
  %v1451 = vpop.xlane.xlu0 %1450
  %v1452 = vsel %vm1412, %v1361, 0.0
  %1453 = vadd.xlane.f32.xlu0 %v1452
  %v1454 = vpop.xlane.xlu0 %1453
  %v1455 = vsel %vm1412, %v1362, 0.0
  %1456 = vadd.xlane.f32.xlu0 %v1455
  %v1457 = vpop.xlane.xlu0 %1456
  %v1458 = vsel %vm1412, %v1363, 0.0
  %1459 = vadd.xlane.f32.xlu0 %v1458
  %v1460 = vpop.xlane.xlu0 %1459
  %v1461 = vsel %vm1412, %v1364, 0.0
  %1462 = vadd.xlane.f32.xlu0 %v1461
  %v1463 = vpop.xlane.xlu0 %1462
  %v1464 = vsel %vm1412, %v1365, 0.0
  %1465 = vadd.xlane.f32.xlu0 %v1464
  %v1466 = vpop.xlane.xlu0 %1465
  %v1467 = vsel %vm1412, %v1366, 0.0
  %1468 = vadd.xlane.f32.xlu0 %v1467
  %v1469 = vpop.xlane.xlu0 %1468
  %v1470 = vsel %vm1412, %v1367, 0.0
  %1471 = vadd.xlane.f32.xlu0 %v1470
  %v1472 = vpop.xlane.xlu0 %1471
  %v1473 = vsel %vm1412, %v1368, 0.0
  %1474 = vadd.xlane.f32.xlu0 %v1473
  %v1475 = vpop.xlane.xlu0 %1474
  %v1476 = vsel %vm1412, %v1369, 0.0
  %1477 = vadd.xlane.f32.xlu0 %v1476
  %v1478 = vpop.xlane.xlu0 %1477
  %v1479 = vsel %vm1412, %v1370, 0.0
  %1480 = vadd.xlane.f32.xlu0 %v1479
  %v1481 = vpop.xlane.xlu0 %1480
  %v1482 = vsel %vm1412, %v1371, 0.0
  %1483 = vadd.xlane.f32.xlu0 %v1482
  %v1484 = vpop.xlane.xlu0 %1483
  %v1485 = vsel %vm1412, %v1372, 0.0
  %1486 = vadd.xlane.f32.xlu0 %v1485
  %v1487 = vpop.xlane.xlu0 %1486
  %v1488 = vsel %vm1412, %v1373, 0.0
  %1489 = vadd.xlane.f32.xlu0 %v1488
  %v1490 = vpop.xlane.xlu0 %1489
  %v1491 = vsel %vm1412, %v1374, 0.0
  %1492 = vadd.xlane.f32.xlu0 %v1491
  %v1493 = vpop.xlane.xlu0 %1492
  %v1494 = vsel %vm1412, %v1375, 0.0
  %1495 = vadd.xlane.f32.xlu0 %v1494
  %v1496 = vpop.xlane.xlu0 %1495
  %v1497 = vsel %vm1412, %v1376, 0.0
  %1498 = vadd.xlane.f32.xlu0 %v1497
  %v1499 = vpop.xlane.xlu0 %1498
  %v1500 = vsel %vm1412, %v1377, 0.0
  %1501 = vadd.xlane.f32.xlu0 %v1500
  %v1502 = vpop.xlane.xlu0 %1501
  %v1503 = vsel %vm1412, %v1378, 0.0
  %1504 = vadd.xlane.f32.xlu0 %v1503
  %v1505 = vpop.xlane.xlu0 %1504
  %v1506 = vsel %vm1412, %v1379, 0.0
  %1507 = vadd.xlane.f32.xlu0 %v1506
  %v1508 = vpop.xlane.xlu0 %1507
  %v1509 = vsel %vm1412, %v1380, 0.0
  %1510 = vadd.xlane.f32.xlu0 %v1509
  %v1511 = vpop.xlane.xlu0 %1510
  %v1512 = vsel %vm1412, %v1381, 0.0
  %1513 = vadd.xlane.f32.xlu0 %v1512
  %v1514 = vpop.xlane.xlu0 %1513
  %v1515 = vsel %vm1412, %v1382, 0.0
  %1516 = vadd.xlane.f32.xlu0 %v1515
  %v1517 = vpop.xlane.xlu0 %1516
  %v1518 = vsel %vm1412, %v1383, 0.0
  %1519 = vadd.xlane.f32.xlu0 %v1518
  %v1520 = vpop.xlane.xlu0 %1519
  %v1521 = vsel %vm1412, %v1384, 0.0
  %1522 = vadd.xlane.f32.xlu0 %v1521
  %v1523 = vpop.xlane.xlu0 %1522
  %v1524 = vsel %vm1412, %v1385, 0.0
  %1525 = vadd.xlane.f32.xlu0 %v1524
  %v1526 = vpop.xlane.xlu0 %1525
  %v1527 = vsel %vm1412, %v1386, 0.0
  %1528 = vadd.xlane.f32.xlu0 %v1527
  %v1529 = vpop.xlane.xlu0 %1528
  %v1530 = vsel %vm1412, %v1387, 0.0
  %1531 = vadd.xlane.f32.xlu0 %v1530
  %v1532 = vpop.xlane.xlu0 %1531
  %v1533 = vsel %vm1412, %v1388, 0.0
  %1534 = vadd.xlane.f32.xlu0 %v1533
  %v1535 = vpop.xlane.xlu0 %1534
  %v1536 = vsel %vm1412, %v1389, 0.0
  %1537 = vadd.xlane.f32.xlu0 %v1536
  %v1538 = vpop.xlane.xlu0 %1537
  %v1539 = vsel %vm1412, %v1390, 0.0
  %1540 = vadd.xlane.f32.xlu0 %v1539
  %v1541 = vpop.xlane.xlu0 %1540
  %v1542 = vsel %vm1412, %v1391, 0.0
  %1543 = vadd.xlane.f32.xlu0 %v1542
  %v1544 = vpop.xlane.xlu0 %1543
  %v1545 = vsel %vm1412, %v1392, 0.0
  %1546 = vadd.xlane.f32.xlu0 %v1545
  %v1547 = vpop.xlane.xlu0 %1546
  %v1548 = vsel %vm1412, %v1393, 0.0
  %1549 = vadd.xlane.f32.xlu0 %v1548
  %v1550 = vpop.xlane.xlu0 %1549
  %v1551 = vsel %vm1412, %v1394, 0.0
  %1552 = vadd.xlane.f32.xlu0 %v1551
  %v1553 = vpop.xlane.xlu0 %1552
  %v1554 = vsel %vm1412, %v1395, 0.0
  %1555 = vadd.xlane.f32.xlu0 %v1554
  %v1556 = vpop.xlane.xlu0 %1555
  %v1557 = vsel %vm1412, %v1396, 0.0
  %1558 = vadd.xlane.f32.xlu0 %v1557
  %v1559 = vpop.xlane.xlu0 %1558
  %v1560 = vsel %vm1412, %v1397, 0.0
  %1561 = vadd.xlane.f32.xlu0 %v1560
  %v1562 = vpop.xlane.xlu0 %1561
  %v1563 = vsel %vm1412, %v1398, 0.0
  %1564 = vadd.xlane.f32.xlu0 %v1563
  %v1565 = vpop.xlane.xlu0 %1564
  %v1566 = vsel %vm1412, %v1399, 0.0
  %1567 = vadd.xlane.f32.xlu0 %v1566
  %v1568 = vpop.xlane.xlu0 %1567
  %v1569 = vsel %vm1412, %v1400, 0.0
  %1570 = vadd.xlane.f32.xlu0 %v1569
  %v1571 = vpop.xlane.xlu0 %1570
  %v1572 = vsel %vm1412, %v1401, 0.0
  %1573 = vadd.xlane.f32.xlu0 %v1572
  %v1574 = vpop.xlane.xlu0 %1573
  %v1575 = vsel %vm1412, %v1402, 0.0
  %1576 = vadd.xlane.f32.xlu0 %v1575
  %v1577 = vpop.xlane.xlu0 %1576
  %v1578 = vsel %vm1412, %v1403, 0.0
  %1579 = vadd.xlane.f32.xlu0 %v1578
  %v1580 = vpop.xlane.xlu0 %1579
  %v1581 = vsel %vm1412, %v1404, 0.0
  %1582 = vadd.xlane.f32.xlu0 %v1581
  %v1583 = vpop.xlane.xlu0 %1582
  %v1584 = vsel %vm1412, %v1405, 0.0
  %1585 = vadd.xlane.f32.xlu0 %v1584
  %v1586 = vpop.xlane.xlu0 %1585
  %v1587 = vsel %vm1412, %v1406, 0.0
  %1588 = vadd.xlane.f32.xlu0 %v1587
  %v1589 = vpop.xlane.xlu0 %1588
  %v1590 = vsel %vm1412, %v1407, 0.0
  %1591 = vadd.xlane.f32.xlu0 %v1590
  %v1592 = vpop.xlane.xlu0 %1591
  %v1593 = vsel %vm1412, %v1408, 0.0
  %1594 = vadd.xlane.f32.xlu0 %v1593
  %v1595 = vpop.xlane.xlu0 %1594
  %v1596 = vsel %vm1412, %v1409, 0.0
  %1597 = vadd.xlane.f32.xlu0 %v1596
  %v1598 = vpop.xlane.xlu0 %1597
  %v1599 = vsel %vm1412, %v1410, 0.0
  %1600 = vadd.xlane.f32.xlu0 %v1599
  %v1601 = vpop.xlane.xlu0 %1600
  %v1602 = vsel %vm1412, %v1411, 0.0
  %1603 = vadd.xlane.f32.xlu0 %v1602
  %v1604 = vpop.xlane.xlu0 %1603
  %v1605 = vld [vmem:[#allocation2] sm:$0x1]
  %v1607 = vlaneseq
  %v1608 = vshrl.u32 %v1607, 7
  %v1609 = vsub.s32 0, %v1608
  %v1610 = vrot.slane %v1605, %v1609
  %v1612 = vadd.f32 %v1415, %v1610
  %v1613 = vadd.f32 %v1418, %v1610
  %v1614 = vadd.f32 %v1421, %v1610
  %v1615 = vadd.f32 %v1424, %v1610
  %v1616 = vadd.f32 %v1427, %v1610
  %v1617 = vadd.f32 %v1430, %v1610
  %v1618 = vadd.f32 %v1433, %v1610
  %v1619 = vadd.f32 %v1436, %v1610
  %v1620 = vadd.f32 %v1439, %v1610
  %v1621 = vadd.f32 %v1442, %v1610
  %v1622 = vadd.f32 %v1445, %v1610
  %v1623 = vadd.f32 %v1448, %v1610
  %v1624 = vadd.f32 %v1451, %v1610
  %v1625 = vadd.f32 %v1454, %v1610
  %v1626 = vadd.f32 %v1457, %v1610
  %v1627 = vadd.f32 %v1460, %v1610
  %v1628 = vadd.f32 %v1463, %v1610
  %v1629 = vadd.f32 %v1466, %v1610
  %v1630 = vadd.f32 %v1469, %v1610
  %v1631 = vadd.f32 %v1472, %v1610
  %v1632 = vadd.f32 %v1475, %v1610
  %v1633 = vadd.f32 %v1478, %v1610
  %v1634 = vadd.f32 %v1481, %v1610
  %v1635 = vadd.f32 %v1484, %v1610
  %v1636 = vadd.f32 %v1487, %v1610
  %v1637 = vadd.f32 %v1490, %v1610
  %v1638 = vadd.f32 %v1493, %v1610
  %v1639 = vadd.f32 %v1496, %v1610
  %v1640 = vadd.f32 %v1499, %v1610
  %v1641 = vadd.f32 %v1502, %v1610
  %v1642 = vadd.f32 %v1505, %v1610
  %v1643 = vadd.f32 %v1508, %v1610
  %v1644 = vadd.f32 %v1511, %v1610
  %v1645 = vadd.f32 %v1514, %v1610
  %v1646 = vadd.f32 %v1517, %v1610
  %v1647 = vadd.f32 %v1520, %v1610
  %v1648 = vadd.f32 %v1523, %v1610
  %v1649 = vadd.f32 %v1526, %v1610
  %v1650 = vadd.f32 %v1529, %v1610
  %v1651 = vadd.f32 %v1532, %v1610
  %v1652 = vadd.f32 %v1535, %v1610
  %v1653 = vadd.f32 %v1538, %v1610
  %v1654 = vadd.f32 %v1541, %v1610
  %v1655 = vadd.f32 %v1544, %v1610
  %v1656 = vadd.f32 %v1547, %v1610
  %v1657 = vadd.f32 %v1550, %v1610
  %v1658 = vadd.f32 %v1553, %v1610
  %v1659 = vadd.f32 %v1556, %v1610
  %v1660 = vadd.f32 %v1559, %v1610
  %v1661 = vadd.f32 %v1562, %v1610
  %v1662 = vadd.f32 %v1565, %v1610
  %v1663 = vadd.f32 %v1568, %v1610
  %v1664 = vadd.f32 %v1571, %v1610
  %v1665 = vadd.f32 %v1574, %v1610
  %v1666 = vadd.f32 %v1577, %v1610
  %v1667 = vadd.f32 %v1580, %v1610
  %v1668 = vadd.f32 %v1583, %v1610
  %v1669 = vadd.f32 %v1586, %v1610
  %v1670 = vadd.f32 %v1589, %v1610
  %v1671 = vadd.f32 %v1592, %v1610
  %v1672 = vadd.f32 %v1595, %v1610
  %v1673 = vadd.f32 %v1598, %v1610
  %v1674 = vadd.f32 %v1601, %v1610
  %v1675 = vadd.f32 %v1604, %v1610
  %vm1676 = vcmask 7168
  %1677 = vst.msk [vmem:[%s9] sm:$0xff] %vm1676, %v1612
  %1678 = vst.msk [vmem:[%s9 + $0x8] sm:$0xff] %vm1676, %v1613
  %1679 = vst.msk [vmem:[%s9 + $0x10] sm:$0xff] %vm1676, %v1614
  %1680 = vst.msk [vmem:[%s9 + $0x18] sm:$0xff] %vm1676, %v1615
  %1681 = vst.msk [vmem:[%s9 + $0x20] sm:$0xff] %vm1676, %v1616
  %1682 = vst.msk [vmem:[%s9 + $0x28] sm:$0xff] %vm1676, %v1617
  %1683 = vst.msk [vmem:[%s9 + $0x30] sm:$0xff] %vm1676, %v1618
  %1684 = vst.msk [vmem:[%s9 + $0x38] sm:$0xff] %vm1676, %v1619
  %1685 = vst.msk [vmem:[%s9 + $0x40] sm:$0xff] %vm1676, %v1620
  %1686 = vst.msk [vmem:[%s9 + $0x48] sm:$0xff] %vm1676, %v1621
  %1687 = vst.msk [vmem:[%s9 + $0x50] sm:$0xff] %vm1676, %v1622
  %1688 = vst.msk [vmem:[%s9 + $0x58] sm:$0xff] %vm1676, %v1623
  %1689 = vst.msk [vmem:[%s9 + $0x60] sm:$0xff] %vm1676, %v1624
  %1690 = vst.msk [vmem:[%s9 + $0x68] sm:$0xff] %vm1676, %v1625
  %1691 = vst.msk [vmem:[%s9 + $0x70] sm:$0xff] %vm1676, %v1626
  %1692 = vst.msk [vmem:[%s9 + $0x78] sm:$0xff] %vm1676, %v1627
  %1693 = vst.msk [vmem:[%s9 + $0x80] sm:$0xff] %vm1676, %v1628
  %1694 = vst.msk [vmem:[%s9 + $0x88] sm:$0xff] %vm1676, %v1629
  %1695 = vst.msk [vmem:[%s9 + $0x90] sm:$0xff] %vm1676, %v1630
  %1696 = vst.msk [vmem:[%s9 + $0x98] sm:$0xff] %vm1676, %v1631
  %1697 = vst.msk [vmem:[%s9 + $0xa0] sm:$0xff] %vm1676, %v1632
  %1698 = vst.msk [vmem:[%s9 + $0xa8] sm:$0xff] %vm1676, %v1633
  %1699 = vst.msk [vmem:[%s9 + $0xb0] sm:$0xff] %vm1676, %v1634
  %1700 = vst.msk [vmem:[%s9 + $0xb8] sm:$0xff] %vm1676, %v1635
  %1701 = vst.msk [vmem:[%s9 + $0xc0] sm:$0xff] %vm1676, %v1636
  %1702 = vst.msk [vmem:[%s9 + $0xc8] sm:$0xff] %vm1676, %v1637
  %1703 = vst.msk [vmem:[%s9 + $0xd0] sm:$0xff] %vm1676, %v1638
  %1704 = vst.msk [vmem:[%s9 + $0xd8] sm:$0xff] %vm1676, %v1639
  %1705 = vst.msk [vmem:[%s9 + $0xe0] sm:$0xff] %vm1676, %v1640
  %1706 = vst.msk [vmem:[%s9 + $0xe8] sm:$0xff] %vm1676, %v1641
  %1707 = vst.msk [vmem:[%s9 + $0xf0] sm:$0xff] %vm1676, %v1642
  %1708 = vst.msk [vmem:[%s9 + $0xf8] sm:$0xff] %vm1676, %v1643
  %1709 = vst.msk [vmem:[%s9 + $0x100] sm:$0xff] %vm1676, %v1644
  %1710 = vst.msk [vmem:[%s9 + $0x108] sm:$0xff] %vm1676, %v1645
  %1711 = vst.msk [vmem:[%s9 + $0x110] sm:$0xff] %vm1676, %v1646
  %1712 = vst.msk [vmem:[%s9 + $0x118] sm:$0xff] %vm1676, %v1647
  %1713 = vst.msk [vmem:[%s9 + $0x120] sm:$0xff] %vm1676, %v1648
  %1714 = vst.msk [vmem:[%s9 + $0x128] sm:$0xff] %vm1676, %v1649
  %1715 = vst.msk [vmem:[%s9 + $0x130] sm:$0xff] %vm1676, %v1650
  %1716 = vst.msk [vmem:[%s9 + $0x138] sm:$0xff] %vm1676, %v1651
  %1717 = vst.msk [vmem:[%s9 + $0x140] sm:$0xff] %vm1676, %v1652
  %1718 = vst.msk [vmem:[%s9 + $0x148] sm:$0xff] %vm1676, %v1653
  %1719 = vst.msk [vmem:[%s9 + $0x150] sm:$0xff] %vm1676, %v1654
  %1720 = vst.msk [vmem:[%s9 + $0x158] sm:$0xff] %vm1676, %v1655
  %1721 = vst.msk [vmem:[%s9 + $0x160] sm:$0xff] %vm1676, %v1656
  %1722 = vst.msk [vmem:[%s9 + $0x168] sm:$0xff] %vm1676, %v1657
  %1723 = vst.msk [vmem:[%s9 + $0x170] sm:$0xff] %vm1676, %v1658
  %1724 = vst.msk [vmem:[%s9 + $0x178] sm:$0xff] %vm1676, %v1659
  %1725 = vst.msk [vmem:[%s9 + $0x180] sm:$0xff] %vm1676, %v1660
  %1726 = vst.msk [vmem:[%s9 + $0x188] sm:$0xff] %vm1676, %v1661
  %1727 = vst.msk [vmem:[%s9 + $0x190] sm:$0xff] %vm1676, %v1662
  %1728 = vst.msk [vmem:[%s9 + $0x198] sm:$0xff] %vm1676, %v1663
  %1729 = vst.msk [vmem:[%s9 + $0x1a0] sm:$0xff] %vm1676, %v1664
  %1730 = vst.msk [vmem:[%s9 + $0x1a8] sm:$0xff] %vm1676, %v1665
  %1731 = vst.msk [vmem:[%s9 + $0x1b0] sm:$0xff] %vm1676, %v1666
  %1732 = vst.msk [vmem:[%s9 + $0x1b8] sm:$0xff] %vm1676, %v1667
  %1733 = vst.msk [vmem:[%s9 + $0x1c0] sm:$0xff] %vm1676, %v1668
  %1734 = vst.msk [vmem:[%s9 + $0x1c8] sm:$0xff] %vm1676, %v1669
  %1735 = vst.msk [vmem:[%s9 + $0x1d0] sm:$0xff] %vm1676, %v1670
  %1736 = vst.msk [vmem:[%s9 + $0x1d8] sm:$0xff] %vm1676, %v1671
  %1737 = vst.msk [vmem:[%s9 + $0x1e0] sm:$0xff] %vm1676, %v1672
  %1738 = vst.msk [vmem:[%s9 + $0x1e8] sm:$0xff] %vm1676, %v1673
  %1739 = vst.msk [vmem:[%s9 + $0x1f0] sm:$0xff] %vm1676, %v1674
  %1740 = vst.msk [vmem:[%s9 + $0x1f8] sm:$0xff] %vm1676, %v1675
  // Predicated region
  $region38: #{_lambda_.77} parent=0 // pred_check
    _
  $region39: #{_lambda_.77} parent=0 // pred_check_branch
    %1742 = sbr.rel (0) target = $region41
  $region40: #{_lambda_.77} parent=0 // pred_region
    _
  $region41: #{_lambda_.77} parent=0 // pred_fallthru
    _
  // Predicated region
  $region42: #{_lambda_.77} parent=0 // pred_check
    _
  $region43: #{_lambda_.77} parent=0 // pred_check_branch
    %1744 = sbr.rel (0) target = $region45
  $region44: #{_lambda_.77} parent=0 // pred_region
    _
  $region45: #{_lambda_.77} parent=0 // pred_fallthru
    _

</llo_original>
